<compile_context>
chip_gen: v7x
topology: tpu7x:2x2x1
jax: 0.10.0
libtpu: 0.0.40
codegen_flags: <defaults>
</compile_context>

<pallas_src>
import functools

import numpy as np
import jax
import jax.numpy as jnp
from jax.experimental import pallas as pl
from jax.experimental.pallas import tpu as pltpu

# ---------------------------------------------------------------------------
# Architecture constants (fixed by the PyTorch module)
# ---------------------------------------------------------------------------
H0 = W0 = 4                     # spatial size after Linear + view
K1 = K2 = 5                     # kernel of block1 / block2 deconvs
HO1 = WO1 = H0 + K1 - 1         # 8   (block1 output)
HC = WC = 7                     # crop after block1
HO2 = WO2 = HC + K2 - 1         # 11  (block2 output)
K3, S3 = 8, 2                   # deconv_out kernel / stride
HO3 = WO3 = (HO2 - 1) * S3 + K3  # 28
PO = HO3 // S3                  # 14  per-phase output size
PP = K3 // S3 - 1               # 3   polyphase zero-pad
HP1 = H0 + 2 * (K1 - 1)         # 12  padded conv1 input
HP2 = HC + 2 * (K2 - 1)         # 15  padded conv2 input
HP3 = HO2 + 2 * PP              # 17  padded conv3 input


# ---------------------------------------------------------------------------
# Fused Pallas kernel: whole Generator forward for one batch element
# ---------------------------------------------------------------------------
def _generator_kernel(x_ref, lin_w_ref, lin_b_ref,
                      w1_ref, b1_ref, w2_ref, b2_ref, w3_ref, b3_ref,
                      out_ref,
                      pad1_ref, pad2_ref, pad3_ref,
                      *, c0, c1, c2):
    f32 = jnp.float32
    bf16 = jnp.bfloat16

    # ---------------- Linear(128 -> 4*4*c0) + ReLU -------------------------
    x = x_ref[0]                                               # (1, 128) bf16
    h0 = jnp.dot(x, lin_w_ref[...], preferred_element_type=f32)
    h0 = jnp.maximum(h0 + lin_b_ref[...], 0.0)                 # (1, 16*c0) f32

    # Scatter the 4 spatial rows (already in HWC column order) into the
    # zero-padded conv1 input laid out as (H, W*C).
    pad1_ref[...] = jnp.zeros_like(pad1_ref)
    p1 = K1 - 1
    for r in range(H0):
        pad1_ref[p1 + r:p1 + r + 1, p1 * c0:(p1 + W0) * c0] = (
            h0[:, r * W0 * c0:(r + 1) * W0 * c0])

    # ---------------- ConvTranspose2d(4ngf -> 2ngf, k=5) + ReLU ------------
    acc1 = jnp.zeros((HO1, WO1 * c1), f32)
    for a in range(K1):
        acc1 += jnp.dot(pad1_ref[a:a + HO1, :].astype(bf16), w1_ref[a],
                        preferred_element_type=f32)
    h1 = jnp.maximum(acc1 + b1_ref[...], 0.0)                  # (8, 8*c1)

    # crop [:7, :7] and place into the zero-padded conv2 input
    pad2_ref[...] = jnp.zeros_like(pad2_ref)
    p2 = K2 - 1
    pad2_ref[p2:p2 + HC, p2 * c1:(p2 + WC) * c1] = h1[:HC, :WC * c1]

    # ---------------- ConvTranspose2d(2ngf -> ngf, k=5) + ReLU -------------
    acc2 = jnp.zeros((HO2, WO2 * c2), f32)
    for a in range(K2):
        acc2 += jnp.dot(pad2_ref[a:a + HO2, :].astype(bf16), w2_ref[a],
                        preferred_element_type=f32)
    h2 = jnp.maximum(acc2 + b2_ref[...], 0.0)                  # (11, 11*c2)

    pad3_ref[...] = jnp.zeros_like(pad3_ref)
    pad3_ref[PP:PP + HO2, PP * c2:(PP + WO2) * c2] = h2

    # -------- ConvTranspose2d(ngf -> 1, k=8, s=2), polyphase + Sigmoid -----
    # All 4 output phases (p, q) share the lane dim: column = (p*2+q)*14 + b.
    acc3 = jnp.zeros((PO, 4 * PO), f32)
    for d in range(K3 // S3):
        acc3 += jnp.dot(pad3_ref[d:d + PO, :].astype(bf16), w3_ref[d],
                        preferred_element_type=f32)
    z = acc3 + b3_ref[...]                                     # (14, 56)
    out_ref[0] = 1.0 / (1.0 + jnp.exp(-z))                     # sigmoid


# ---------------------------------------------------------------------------
# One-time parameter repacking (hoisted out of the forward pass)
# ---------------------------------------------------------------------------
def _toeplitz(w_t, wp, wo):
    """Build per-tap-row banded weights for a stride-1 ConvTranspose2d.

    w_t: (Cin, Cout, k, k) PyTorch ConvTranspose weight.
    Returns (k, wp*Cin, wo*Cout) such that, with the input zero-padded by k-1
    on every side and laid out as rows=y, lanes=x*Cin+c,
        out2d = sum_a in_pad[a:a+Ho, :] @ W[a]
    gives rows=oy, lanes=ox*Cout+co.
    """
    cin, cout, k, _ = w_t.shape
    w_flip = w_t[:, :, ::-1, ::-1]                      # [c, co, a, b]
    W = np.zeros((k, wp * cin, wo * cout), np.float32)
    for a in range(k):
        for b in range(k):
            blk = w_flip[:, :, a, b]                    # (Cin, Cout)
            for ox in range(wo):
                W[a, (ox + b) * cin:(ox + b + 1) * cin,
                  ox * cout:(ox + 1) * cout] = blk
    return W


def _toeplitz_deconv_s2(w_t, cin):
    """Polyphase weights for ConvTranspose2d(cin, 1, 8, stride=2).

    Returns (4, HP3*cin, 4*PO) so that with the 11x11 input zero-padded by 3
    (rows=y, lanes=x*cin+c):
        out = sum_d in_pad[d:d+14, :] @ W[d]
    yields out[a, (p*2+q)*14 + b] = ConvTranspose output at (2a+p, 2b+q).
    """
    W = np.zeros((K3 // S3, HP3 * cin, 4 * PO), np.float32)
    for p in range(S3):
        for q in range(S3):
            for d in range(K3 // S3):
                for e in range(K3 // S3):
                    col = w_t[:, 0, (K3 - 2) - 2 * d + p, (K3 - 2) - 2 * e + q]
                    for b in range(PO):
                        W[d, (b + e) * cin:(b + e + 1) * cin,
                          (p * 2 + q) * PO + b] = col
    return W


def prepare_params(params, ngf):
    """PyTorch-layout params -> kernel-layout params (bf16 weights, f32 bias)."""
    c0, c1, c2 = 4 * ngf, 2 * ngf, ngf

    lin_w = np.asarray(params["lin_w"], np.float32)     # (128, c0*16), CHW cols
    lin_b = np.asarray(params["lin_b"], np.float32)
    # permute Linear output columns CHW -> HWC so conv1 input is channels-last
    chw = np.arange(c0 * H0 * W0).reshape(c0, H0, W0)
    perm = chw.transpose(1, 2, 0).reshape(-1)
    lin_w_hwc = lin_w[:, perm]
    lin_b_hwc = lin_b[perm]

    w1 = _toeplitz(np.asarray(params["w1"], np.float32), HP1, WO1)
    w2 = _toeplitz(np.asarray(params["w2"], np.float32), HP2, WO2)
    w3 = _toeplitz_deconv_s2(np.asarray(params["w3"], np.float32), c2)

    bf = lambda a: jnp.asarray(a, jnp.bfloat16)
    f32 = lambda a: jnp.asarray(a, jnp.float32)
    return {
        "lin_w": bf(lin_w_hwc),                                   # (128, 16*c0)
        "lin_b": f32(lin_b_hwc)[None, :],                         # (1, 16*c0)
        "w1": bf(w1),                                             # (5, HP1*c0, 8*c1)
        "b1": f32(np.tile(np.asarray(params["b1"], np.float32), WO1))[None, :],
        "w2": bf(w2),                                             # (5, HP2*c1, 11*c2)
        "b2": f32(np.tile(np.asarray(params["b2"], np.float32), WO2))[None, :],
        "w3": bf(w3),                                             # (4, HP3*c2, 56)
        "b3": f32(np.asarray(params["b3"], np.float32)).reshape(1, 1),
    }


# ---------------------------------------------------------------------------
# Forward pass (single fused pallas_call)
# ---------------------------------------------------------------------------
def generator_forward(x, kparams, *, ngf, output_dim):
    B = x.shape[0]
    c0, c1, c2 = 4 * ngf, 2 * ngf, ngf

    x_b = x.astype(jnp.bfloat16).reshape(B, 1, 128)
    kernel = functools.partial(_generator_kernel, c0=c0, c1=c1, c2=c2)

    zero2 = lambda b: (0, 0)
    zero3 = lambda b: (0, 0, 0)

    out = pl.pallas_call(
        kernel,
        out_shape=jax.ShapeDtypeStruct((B, PO, 4 * PO), jnp.float32),
        grid=(B,),
        in_specs=[
            pl.BlockSpec((1, 1, 128), lambda b: (b, 0, 0)),            # x
            pl.BlockSpec((128, H0 * W0 * c0), zero2),                  # lin_w
            pl.BlockSpec((1, H0 * W0 * c0), zero2),                    # lin_b
            pl.BlockSpec((K1, HP1 * c0, WO1 * c1), zero3),             # w1
            pl.BlockSpec((1, WO1 * c1), zero2),                        # b1
            pl.BlockSpec((K2, HP2 * c1, WO2 * c2), zero3),             # w2
            pl.BlockSpec((1, WO2 * c2), zero2),                        # b2
            pl.BlockSpec((K3 // S3, HP3 * c2, 4 * PO), zero3),         # w3
            pl.BlockSpec((1, 1), zero2),                               # b3
        ],
        out_specs=pl.BlockSpec((1, PO, 4 * PO), lambda b: (b, 0, 0)),
        scratch_shapes=[
            pltpu.VMEM((HP1, HP1 * c0), jnp.float32),   # padded conv1 input
            pltpu.VMEM((HP2, HP2 * c1), jnp.float32),   # padded conv2 input
            pltpu.VMEM((HP3, HP3 * c2), jnp.float32),   # padded conv3 input
        ],
        compiler_params=pltpu.CompilerParams(
            dimension_semantics=("parallel",),
            vmem_limit_bytes=32 * 1024 * 1024,
        ),
    )(x_b, kparams["lin_w"], kparams["lin_b"],
      kparams["w1"], kparams["b1"], kparams["w2"], kparams["b2"],
      kparams["w3"], kparams["b3"])

    # TODO(synk): tiny (3 KB/sample) polyphase pixel de-interleave done as an
    # XLA epilogue; in-kernel 2x2 lane/sublane interleave is not worth it here.
    # out[b, a, (p*2+q)*14 + c]  ->  y[b, 2a+p, 2c+q]
    out = out.reshape(B, PO, 2, 2, PO).transpose(0, 1, 2, 4, 3)
    return out.reshape(B, output_dim)


# ---------------------------------------------------------------------------
# PyTorch-layout parameter init + pure-JAX reference (for verification)
# ---------------------------------------------------------------------------
def init_params(key, ngf):
    ks = jax.random.split(key, 8)
    scale = 0.05
    return {
        "lin_w": scale * jax.random.normal(ks[0], (128, 4 * 4 * 4 * ngf), jnp.float32),
        "lin_b": scale * jax.random.normal(ks[1], (4 * 4 * 4 * ngf,), jnp.float32),
        "w1": scale * jax.random.normal(ks[2], (4 * ngf, 2 * ngf, 5, 5), jnp.float32),
        "b1": scale * jax.random.normal(ks[3], (2 * ngf,), jnp.float32),
        "w2": scale * jax.random.normal(ks[4], (2 * ngf, ngf, 5, 5), jnp.float32),
        "b2": scale * jax.random.normal(ks[5], (ngf,), jnp.float32),
        "w3": scale * jax.random.normal(ks[6], (ngf, 1, 8, 8), jnp.float32),
        "b3": scale * jax.random.normal(ks[7], (1,), jnp.float32),
    }


def _conv_transpose_ref(x, w_t, b, stride):
    cin, cout, k, _ = w_t.shape
    w_conv = jnp.flip(w_t, (2, 3)).transpose(1, 0, 2, 3)       # (Cout, Cin, k, k)
    y = jax.lax.conv_general_dilated(
        x, w_conv, window_strides=(1, 1),
        padding=[(k - 1, k - 1), (k - 1, k - 1)],
        lhs_dilation=(stride, stride),
        dimension_numbers=("NCHW", "OIHW", "NCHW"))
    return y + b.reshape(1, cout, 1, 1)


def reference_forward(x, params, ngf, output_dim):
    B = x.shape[0]
    h = jnp.maximum(x @ params["lin_w"] + params["lin_b"], 0.0)
    h = h.reshape(B, 4 * ngf, 4, 4)
    h = jnp.maximum(_conv_transpose_ref(h, params["w1"], params["b1"], 1), 0.0)
    h = h[:, :, :7, :7]
    h = jnp.maximum(_conv_transpose_ref(h, params["w2"], params["b2"], 1), 0.0)
    h = _conv_transpose_ref(h, params["w3"], params["b3"], 2)
    return jax.nn.sigmoid(h).reshape(B, output_dim)


# ---------------------------------------------------------------------------
if __name__ == "__main__":
    NGF = 16
    OUTPUT_DIM = 28 * 28   # 784
    B = 2

    key = jax.random.PRNGKey(0)
    k_in, k_param = jax.random.split(key)
    x = jax.random.normal(k_in, (B, 128), jnp.float32)
    params = init_params(k_param, NGF)

    # One-time weight repacking (hoisted out of the jitted forward).
    kparams = prepare_params(params, NGF)

    fwd = jax.jit(functools.partial(generator_forward, ngf=NGF, output_dim=OUTPUT_DIM))
    out = jax.block_until_ready(fwd(x, kparams))

    assert out.shape == (B, OUTPUT_DIM), out.shape
    assert bool(jnp.all(jnp.isfinite(out)))
    assert bool(jnp.all((out >= 0.0) & (out <= 1.0)))   # sigmoid output range

    # Verify against a pure-JAX/XLA reference (f32); bf16 weights/activations
    # in the kernel account for the small tolerance.
    ref = reference_forward(x, params, NGF, OUTPUT_DIM)
    max_err = float(jnp.max(jnp.abs(out - ref)))
    assert max_err < 3e-2, f"max abs error vs reference: {max_err}"

    print("KERNEL_OK")
</pallas_src>

<mosaic_0001>
module attributes {stable_mosaic.version = 11 : i64} {
  func.func @_generator_kernel(%arg0: i32, %arg1: memref<1x1x128xbf16, #tpu.memory_space<vmem>>, %arg2: memref<128x1024xbf16, #tpu.memory_space<vmem>>, %arg3: memref<1x1024xf32, #tpu.memory_space<vmem>>, %arg4: memref<5x768x256xbf16, #tpu.memory_space<vmem>>, %arg5: memref<1x256xf32, #tpu.memory_space<vmem>>, %arg6: memref<5x480x176xbf16, #tpu.memory_space<vmem>>, %arg7: memref<1x176xf32, #tpu.memory_space<vmem>>, %arg8: memref<4x272x56xbf16, #tpu.memory_space<vmem>>, %arg9: memref<1x1xf32, #tpu.memory_space<vmem>>, %arg10: memref<1x14x56xf32, #tpu.memory_space<vmem>>, %arg11: memref<12x768xf32, #tpu.memory_space<vmem>>, %arg12: memref<15x480xf32, #tpu.memory_space<vmem>>, %arg13: memref<17x272xf32, #tpu.memory_space<vmem>>) attributes {dimension_semantics = [#tpu.dimension_semantics<parallel>], iteration_bounds = array<i64: 2>, scalar_prefetch = 0 : i64, scratch_operands = 3 : i64, tpu.core_type = #tpu.core_type<tc>, window_params = [{transform_indices = @transform_0, window_bounds = array<i64: 1, 1, 128>}, {pipeline_mode = #tpu.pipeline_mode<synchronous>, transform_indices = @transform_1, window_bounds = array<i64: 128, 1024>}, {pipeline_mode = #tpu.pipeline_mode<synchronous>, transform_indices = @transform_2, window_bounds = array<i64: 1, 1024>}, {pipeline_mode = #tpu.pipeline_mode<synchronous>, transform_indices = @transform_3, window_bounds = array<i64: 5, 768, 256>}, {pipeline_mode = #tpu.pipeline_mode<synchronous>, transform_indices = @transform_4, window_bounds = array<i64: 1, 256>}, {pipeline_mode = #tpu.pipeline_mode<synchronous>, transform_indices = @transform_5, window_bounds = array<i64: 5, 480, 176>}, {pipeline_mode = #tpu.pipeline_mode<synchronous>, transform_indices = @transform_6, window_bounds = array<i64: 1, 176>}, {pipeline_mode = #tpu.pipeline_mode<synchronous>, transform_indices = @transform_7, window_bounds = array<i64: 4, 272, 56>}, {pipeline_mode = #tpu.pipeline_mode<synchronous>, transform_indices = @transform_8, window_bounds = array<i64: 1, 1>}, {transform_indices = @transform_9, window_bounds = array<i64: 1, 14, 56>}]} {
    %c0 = arith.constant 0 : index
    %c0_0 = arith.constant 0 : index
    %c0_1 = arith.constant 0 : index
    %0 = vector.load %arg1[%c0, %c0_0, %c0_1] : memref<1x1x128xbf16, #tpu.memory_space<vmem>>, vector<1x1x128xbf16>
    %1 = vector.shape_cast %0 : vector<1x1x128xbf16> to vector<1x128xbf16>
    %c0_2 = arith.constant 0 : index
    %c0_3 = arith.constant 0 : index
    %2 = vector.load %arg2[%c0_2, %c0_3] : memref<128x1024xbf16, #tpu.memory_space<vmem>>, vector<128x1024xbf16>
    %cst = arith.constant dense<0.000000e+00> : vector<1x1024xf32>
    %3 = tpu.matmul %1, %2, %cst {dimension_numbers = #tpu.dot_dimension_numbers<[1], [0], [0], [1], [0, 0, 1, 1], [], []>} : vector<1x128xbf16>, vector<128x1024xbf16>, vector<1x1024xf32> -> vector<1x1024xf32>
    %c0_4 = arith.constant 0 : index
    %c0_5 = arith.constant 0 : index
    %4 = vector.load %arg3[%c0_4, %c0_5] : memref<1x1024xf32, #tpu.memory_space<vmem>>, vector<1x1024xf32>
    %5 = arith.addf %3, %4 : vector<1x1024xf32>
    %cst_6 = arith.constant 0.000000e+00 : f32
    %6 = vector.broadcast %cst_6 : f32 to vector<1x1024xf32>
    %7 = arith.maximumf %5, %6 : vector<1x1024xf32>
    %cst_7 = arith.constant 0.000000e+00 : f32
    %8 = vector.broadcast %cst_7 : f32 to vector<12x768xf32>
    %c0_8 = arith.constant 0 : index
    %c0_9 = arith.constant 0 : index
    %9 = vector.load %arg11[%c0_8, %c0_9] : memref<12x768xf32, #tpu.memory_space<vmem>>, vector<12x768xf32>
    tpu.vector_store %arg11[%c0_8, %c0_9], %8 {strides = array<i32>} : memref<12x768xf32, #tpu.memory_space<vmem>>, vector<12x768xf32>,
    %10 = vector.extract_strided_slice %7 {offsets = [0, 0], sizes = [1, 256], strides = [1, 1]} : vector<1x1024xf32> to vector<1x256xf32>
    %c4 = arith.constant 4 : index
    %c256 = arith.constant 256 : index
    %11 = vector.load %arg11[%c4, %c256] : memref<12x768xf32, #tpu.memory_space<vmem>>, vector<1x256xf32>
    tpu.vector_store %arg11[%c4, %c256], %10 {strides = array<i32>} : memref<12x768xf32, #tpu.memory_space<vmem>>, vector<1x256xf32>,
    %12 = vector.extract_strided_slice %7 {offsets = [0, 256], sizes = [1, 256], strides = [1, 1]} : vector<1x1024xf32> to vector<1x256xf32>
    %c5 = arith.constant 5 : index
    %c256_10 = arith.constant 256 : index
    %13 = vector.load %arg11[%c5, %c256_10] : memref<12x768xf32, #tpu.memory_space<vmem>>, vector<1x256xf32>
    tpu.vector_store %arg11[%c5, %c256_10], %12 {strides = array<i32>} : memref<12x768xf32, #tpu.memory_space<vmem>>, vector<1x256xf32>,
    %14 = vector.extract_strided_slice %7 {offsets = [0, 512], sizes = [1, 256], strides = [1, 1]} : vector<1x1024xf32> to vector<1x256xf32>
    %c6 = arith.constant 6 : index
    %c256_11 = arith.constant 256 : index
    %15 = vector.load %arg11[%c6, %c256_11] : memref<12x768xf32, #tpu.memory_space<vmem>>, vector<1x256xf32>
    tpu.vector_store %arg11[%c6, %c256_11], %14 {strides = array<i32>} : memref<12x768xf32, #tpu.memory_space<vmem>>, vector<1x256xf32>,
    %16 = vector.extract_strided_slice %7 {offsets = [0, 768], sizes = [1, 256], strides = [1, 1]} : vector<1x1024xf32> to vector<1x256xf32>
    %c7 = arith.constant 7 : index
    %c256_12 = arith.constant 256 : index
    %17 = vector.load %arg11[%c7, %c256_12] : memref<12x768xf32, #tpu.memory_space<vmem>>, vector<1x256xf32>
    tpu.vector_store %arg11[%c7, %c256_12], %16 {strides = array<i32>} : memref<12x768xf32, #tpu.memory_space<vmem>>, vector<1x256xf32>,
    %cst_13 = arith.constant 0.000000e+00 : f32
    %18 = vector.broadcast %cst_13 : f32 to vector<8x256xf32>
    %c0_14 = arith.constant 0 : index
    %c0_15 = arith.constant 0 : index
    %19 = vector.load %arg11[%c0_14, %c0_15] : memref<12x768xf32, #tpu.memory_space<vmem>>, vector<8x768xf32>
    %20 = arith.truncf %19 : vector<8x768xf32> to vector<8x768xbf16>
    %c0_16 = arith.constant 0 : index
    %c0_17 = arith.constant 0 : index
    %c0_18 = arith.constant 0 : index
    %21 = vector.load %arg4[%c0_16, %c0_17, %c0_18] : memref<5x768x256xbf16, #tpu.memory_space<vmem>>, vector<1x768x256xbf16>
    %22 = vector.shape_cast %21 : vector<1x768x256xbf16> to vector<768x256xbf16>
    %cst_19 = arith.constant dense<0.000000e+00> : vector<8x256xf32>
    %23 = tpu.matmul %20, %22, %cst_19 {dimension_numbers = #tpu.dot_dimension_numbers<[1], [0], [0], [1], [0, 0, 1, 1], [], []>} : vector<8x768xbf16>, vector<768x256xbf16>, vector<8x256xf32> -> vector<8x256xf32>
    %24 = arith.addf %18, %23 : vector<8x256xf32>
    %c1 = arith.constant 1 : index
    %c0_20 = arith.constant 0 : index
    %25 = vector.load %arg11[%c1, %c0_20] : memref<12x768xf32, #tpu.memory_space<vmem>>, vector<8x768xf32>
    %26 = arith.truncf %25 : vector<8x768xf32> to vector<8x768xbf16>
    %c1_21 = arith.constant 1 : index
    %c0_22 = arith.constant 0 : index
    %c0_23 = arith.constant 0 : index
    %27 = vector.load %arg4[%c1_21, %c0_22, %c0_23] : memref<5x768x256xbf16, #tpu.memory_space<vmem>>, vector<1x768x256xbf16>
    %28 = vector.shape_cast %27 : vector<1x768x256xbf16> to vector<768x256xbf16>
    %cst_24 = arith.constant dense<0.000000e+00> : vector<8x256xf32>
    %29 = tpu.matmul %26, %28, %cst_24 {dimension_numbers = #tpu.dot_dimension_numbers<[1], [0], [0], [1], [0, 0, 1, 1], [], []>} : vector<8x768xbf16>, vector<768x256xbf16>, vector<8x256xf32> -> vector<8x256xf32>
    %30 = arith.addf %24, %29 : vector<8x256xf32>
    %c2 = arith.constant 2 : index
    %c0_25 = arith.constant 0 : index
    %31 = vector.load %arg11[%c2, %c0_25] : memref<12x768xf32, #tpu.memory_space<vmem>>, vector<8x768xf32>
    %32 = arith.truncf %31 : vector<8x768xf32> to vector<8x768xbf16>
    %c2_26 = arith.constant 2 : index
    %c0_27 = arith.constant 0 : index
    %c0_28 = arith.constant 0 : index
    %33 = vector.load %arg4[%c2_26, %c0_27, %c0_28] : memref<5x768x256xbf16, #tpu.memory_space<vmem>>, vector<1x768x256xbf16>
    %34 = vector.shape_cast %33 : vector<1x768x256xbf16> to vector<768x256xbf16>
    %cst_29 = arith.constant dense<0.000000e+00> : vector<8x256xf32>
    %35 = tpu.matmul %32, %34, %cst_29 {dimension_numbers = #tpu.dot_dimension_numbers<[1], [0], [0], [1], [0, 0, 1, 1], [], []>} : vector<8x768xbf16>, vector<768x256xbf16>, vector<8x256xf32> -> vector<8x256xf32>
    %36 = arith.addf %30, %35 : vector<8x256xf32>
    %c3 = arith.constant 3 : index
    %c0_30 = arith.constant 0 : index
    %37 = vector.load %arg11[%c3, %c0_30] : memref<12x768xf32, #tpu.memory_space<vmem>>, vector<8x768xf32>
    %38 = arith.truncf %37 : vector<8x768xf32> to vector<8x768xbf16>
    %c3_31 = arith.constant 3 : index
    %c0_32 = arith.constant 0 : index
    %c0_33 = arith.constant 0 : index
    %39 = vector.load %arg4[%c3_31, %c0_32, %c0_33] : memref<5x768x256xbf16, #tpu.memory_space<vmem>>, vector<1x768x256xbf16>
    %40 = vector.shape_cast %39 : vector<1x768x256xbf16> to vector<768x256xbf16>
    %cst_34 = arith.constant dense<0.000000e+00> : vector<8x256xf32>
    %41 = tpu.matmul %38, %40, %cst_34 {dimension_numbers = #tpu.dot_dimension_numbers<[1], [0], [0], [1], [0, 0, 1, 1], [], []>} : vector<8x768xbf16>, vector<768x256xbf16>, vector<8x256xf32> -> vector<8x256xf32>
    %42 = arith.addf %36, %41 : vector<8x256xf32>
    %c4_35 = arith.constant 4 : index
    %c0_36 = arith.constant 0 : index
    %43 = vector.load %arg11[%c4_35, %c0_36] : memref<12x768xf32, #tpu.memory_space<vmem>>, vector<8x768xf32>
    %44 = arith.truncf %43 : vector<8x768xf32> to vector<8x768xbf16>
    %c4_37 = arith.constant 4 : index
    %c0_38 = arith.constant 0 : index
    %c0_39 = arith.constant 0 : index
    %45 = vector.load %arg4[%c4_37, %c0_38, %c0_39] : memref<5x768x256xbf16, #tpu.memory_space<vmem>>, vector<1x768x256xbf16>
    %46 = vector.shape_cast %45 : vector<1x768x256xbf16> to vector<768x256xbf16>
    %cst_40 = arith.constant dense<0.000000e+00> : vector<8x256xf32>
    %47 = tpu.matmul %44, %46, %cst_40 {dimension_numbers = #tpu.dot_dimension_numbers<[1], [0], [0], [1], [0, 0, 1, 1], [], []>} : vector<8x768xbf16>, vector<768x256xbf16>, vector<8x256xf32> -> vector<8x256xf32>
    %48 = arith.addf %42, %47 : vector<8x256xf32>
    %c0_41 = arith.constant 0 : index
    %c0_42 = arith.constant 0 : index
    %49 = vector.load %arg5[%c0_41, %c0_42] : memref<1x256xf32, #tpu.memory_space<vmem>>, vector<1x256xf32>
    %50 = vector.broadcast %49 : vector<1x256xf32> to vector<8x256xf32>
    %51 = arith.addf %48, %50 : vector<8x256xf32>
    %cst_43 = arith.constant 0.000000e+00 : f32
    %52 = vector.broadcast %cst_43 : f32 to vector<8x256xf32>
    %53 = arith.maximumf %51, %52 : vector<8x256xf32>
    %cst_44 = arith.constant 0.000000e+00 : f32
    %54 = vector.broadcast %cst_44 : f32 to vector<15x480xf32>
    %c0_45 = arith.constant 0 : index
    %c0_46 = arith.constant 0 : index
    %55 = vector.load %arg12[%c0_45, %c0_46] : memref<15x480xf32, #tpu.memory_space<vmem>>, vector<15x480xf32>
    tpu.vector_store %arg12[%c0_45, %c0_46], %54 {strides = array<i32>} : memref<15x480xf32, #tpu.memory_space<vmem>>, vector<15x480xf32>,
    %56 = vector.extract_strided_slice %53 {offsets = [0, 0], sizes = [7, 224], strides = [1, 1]} : vector<8x256xf32> to vector<7x224xf32>
    %c4_47 = arith.constant 4 : index
    %c128 = arith.constant 128 : index
    %57 = vector.load %arg12[%c4_47, %c128] : memref<15x480xf32, #tpu.memory_space<vmem>>, vector<7x224xf32>
    tpu.vector_store %arg12[%c4_47, %c128], %56 {strides = array<i32>} : memref<15x480xf32, #tpu.memory_space<vmem>>, vector<7x224xf32>,
    %cst_48 = arith.constant 0.000000e+00 : f32
    %58 = vector.broadcast %cst_48 : f32 to vector<11x176xf32>
    %c0_49 = arith.constant 0 : index
    %c0_50 = arith.constant 0 : index
    %59 = vector.load %arg12[%c0_49, %c0_50] : memref<15x480xf32, #tpu.memory_space<vmem>>, vector<11x480xf32>
    %60 = arith.truncf %59 : vector<11x480xf32> to vector<11x480xbf16>
    %c0_51 = arith.constant 0 : index
    %c0_52 = arith.constant 0 : index
    %c0_53 = arith.constant 0 : index
    %61 = vector.load %arg6[%c0_51, %c0_52, %c0_53] : memref<5x480x176xbf16, #tpu.memory_space<vmem>>, vector<1x480x176xbf16>
    %62 = vector.shape_cast %61 : vector<1x480x176xbf16> to vector<480x176xbf16>
    %cst_54 = arith.constant dense<0.000000e+00> : vector<11x176xf32>
    %63 = tpu.matmul %60, %62, %cst_54 {dimension_numbers = #tpu.dot_dimension_numbers<[1], [0], [0], [1], [0, 0, 1, 1], [], []>} : vector<11x480xbf16>, vector<480x176xbf16>, vector<11x176xf32> -> vector<11x176xf32>
    %64 = arith.addf %58, %63 : vector<11x176xf32>
    %c1_55 = arith.constant 1 : index
    %c0_56 = arith.constant 0 : index
    %65 = vector.load %arg12[%c1_55, %c0_56] : memref<15x480xf32, #tpu.memory_space<vmem>>, vector<11x480xf32>
    %66 = arith.truncf %65 : vector<11x480xf32> to vector<11x480xbf16>
    %c1_57 = arith.constant 1 : index
    %c0_58 = arith.constant 0 : index
    %c0_59 = arith.constant 0 : index
    %67 = vector.load %arg6[%c1_57, %c0_58, %c0_59] : memref<5x480x176xbf16, #tpu.memory_space<vmem>>, vector<1x480x176xbf16>
    %68 = vector.shape_cast %67 : vector<1x480x176xbf16> to vector<480x176xbf16>
    %cst_60 = arith.constant dense<0.000000e+00> : vector<11x176xf32>
    %69 = tpu.matmul %66, %68, %cst_60 {dimension_numbers = #tpu.dot_dimension_numbers<[1], [0], [0], [1], [0, 0, 1, 1], [], []>} : vector<11x480xbf16>, vector<480x176xbf16>, vector<11x176xf32> -> vector<11x176xf32>
    %70 = arith.addf %64, %69 : vector<11x176xf32>
    %c2_61 = arith.constant 2 : index
    %c0_62 = arith.constant 0 : index
    %71 = vector.load %arg12[%c2_61, %c0_62] : memref<15x480xf32, #tpu.memory_space<vmem>>, vector<11x480xf32>
    %72 = arith.truncf %71 : vector<11x480xf32> to vector<11x480xbf16>
    %c2_63 = arith.constant 2 : index
    %c0_64 = arith.constant 0 : index
    %c0_65 = arith.constant 0 : index
    %73 = vector.load %arg6[%c2_63, %c0_64, %c0_65] : memref<5x480x176xbf16, #tpu.memory_space<vmem>>, vector<1x480x176xbf16>
    %74 = vector.shape_cast %73 : vector<1x480x176xbf16> to vector<480x176xbf16>
    %cst_66 = arith.constant dense<0.000000e+00> : vector<11x176xf32>
    %75 = tpu.matmul %72, %74, %cst_66 {dimension_numbers = #tpu.dot_dimension_numbers<[1], [0], [0], [1], [0, 0, 1, 1], [], []>} : vector<11x480xbf16>, vector<480x176xbf16>, vector<11x176xf32> -> vector<11x176xf32>
    %76 = arith.addf %70, %75 : vector<11x176xf32>
    %c3_67 = arith.constant 3 : index
    %c0_68 = arith.constant 0 : index
    %77 = vector.load %arg12[%c3_67, %c0_68] : memref<15x480xf32, #tpu.memory_space<vmem>>, vector<11x480xf32>
    %78 = arith.truncf %77 : vector<11x480xf32> to vector<11x480xbf16>
    %c3_69 = arith.constant 3 : index
    %c0_70 = arith.constant 0 : index
    %c0_71 = arith.constant 0 : index
    %79 = vector.load %arg6[%c3_69, %c0_70, %c0_71] : memref<5x480x176xbf16, #tpu.memory_space<vmem>>, vector<1x480x176xbf16>
    %80 = vector.shape_cast %79 : vector<1x480x176xbf16> to vector<480x176xbf16>
    %cst_72 = arith.constant dense<0.000000e+00> : vector<11x176xf32>
    %81 = tpu.matmul %78, %80, %cst_72 {dimension_numbers = #tpu.dot_dimension_numbers<[1], [0], [0], [1], [0, 0, 1, 1], [], []>} : vector<11x480xbf16>, vector<480x176xbf16>, vector<11x176xf32> -> vector<11x176xf32>
    %82 = arith.addf %76, %81 : vector<11x176xf32>
    %c4_73 = arith.constant 4 : index
    %c0_74 = arith.constant 0 : index
    %83 = vector.load %arg12[%c4_73, %c0_74] : memref<15x480xf32, #tpu.memory_space<vmem>>, vector<11x480xf32>
    %84 = arith.truncf %83 : vector<11x480xf32> to vector<11x480xbf16>
    %c4_75 = arith.constant 4 : index
    %c0_76 = arith.constant 0 : index
    %c0_77 = arith.constant 0 : index
    %85 = vector.load %arg6[%c4_75, %c0_76, %c0_77] : memref<5x480x176xbf16, #tpu.memory_space<vmem>>, vector<1x480x176xbf16>
    %86 = vector.shape_cast %85 : vector<1x480x176xbf16> to vector<480x176xbf16>
    %cst_78 = arith.constant dense<0.000000e+00> : vector<11x176xf32>
    %87 = tpu.matmul %84, %86, %cst_78 {dimension_numbers = #tpu.dot_dimension_numbers<[1], [0], [0], [1], [0, 0, 1, 1], [], []>} : vector<11x480xbf16>, vector<480x176xbf16>, vector<11x176xf32> -> vector<11x176xf32>
    %88 = arith.addf %82, %87 : vector<11x176xf32>
    %c0_79 = arith.constant 0 : index
    %c0_80 = arith.constant 0 : index
    %89 = vector.load %arg7[%c0_79, %c0_80] : memref<1x176xf32, #tpu.memory_space<vmem>>, vector<1x176xf32>
    %90 = vector.broadcast %89 : vector<1x176xf32> to vector<11x176xf32>
    %91 = arith.addf %88, %90 : vector<11x176xf32>
    %cst_81 = arith.constant 0.000000e+00 : f32
    %92 = vector.broadcast %cst_81 : f32 to vector<11x176xf32>
    %93 = arith.maximumf %91, %92 : vector<11x176xf32>
    %cst_82 = arith.constant 0.000000e+00 : f32
    %94 = vector.broadcast %cst_82 : f32 to vector<17x272xf32>
    %c0_83 = arith.constant 0 : index
    %c0_84 = arith.constant 0 : index
    %95 = vector.load %arg13[%c0_83, %c0_84] : memref<17x272xf32, #tpu.memory_space<vmem>>, vector<17x272xf32>
    tpu.vector_store %arg13[%c0_83, %c0_84], %94 {strides = array<i32>} : memref<17x272xf32, #tpu.memory_space<vmem>>, vector<17x272xf32>,
    %c3_85 = arith.constant 3 : index
    %c48 = arith.constant 48 : index
    %96 = vector.load %arg13[%c3_85, %c48] : memref<17x272xf32, #tpu.memory_space<vmem>>, vector<11x176xf32>
    tpu.vector_store %arg13[%c3_85, %c48], %93 {strides = array<i32>} : memref<17x272xf32, #tpu.memory_space<vmem>>, vector<11x176xf32>,
    %cst_86 = arith.constant 0.000000e+00 : f32
    %97 = vector.broadcast %cst_86 : f32 to vector<14x56xf32>
    %c0_87 = arith.constant 0 : index
    %c0_88 = arith.constant 0 : index
    %98 = vector.load %arg13[%c0_87, %c0_88] : memref<17x272xf32, #tpu.memory_space<vmem>>, vector<14x272xf32>
    %99 = arith.truncf %98 : vector<14x272xf32> to vector<14x272xbf16>
    %c0_89 = arith.constant 0 : index
    %c0_90 = arith.constant 0 : index
    %c0_91 = arith.constant 0 : index
    %100 = vector.load %arg8[%c0_89, %c0_90, %c0_91] : memref<4x272x56xbf16, #tpu.memory_space<vmem>>, vector<1x272x56xbf16>
    %101 = vector.shape_cast %100 : vector<1x272x56xbf16> to vector<272x56xbf16>
    %cst_92 = arith.constant dense<0.000000e+00> : vector<14x56xf32>
    %102 = tpu.matmul %99, %101, %cst_92 {dimension_numbers = #tpu.dot_dimension_numbers<[1], [0], [0], [1], [0, 0, 1, 1], [], []>} : vector<14x272xbf16>, vector<272x56xbf16>, vector<14x56xf32> -> vector<14x56xf32>
    %103 = arith.addf %97, %102 : vector<14x56xf32>
    %c1_93 = arith.constant 1 : index
    %c0_94 = arith.constant 0 : index
    %104 = vector.load %arg13[%c1_93, %c0_94] : memref<17x272xf32, #tpu.memory_space<vmem>>, vector<14x272xf32>
    %105 = arith.truncf %104 : vector<14x272xf32> to vector<14x272xbf16>
    %c1_95 = arith.constant 1 : index
    %c0_96 = arith.constant 0 : index
    %c0_97 = arith.constant 0 : index
    %106 = vector.load %arg8[%c1_95, %c0_96, %c0_97] : memref<4x272x56xbf16, #tpu.memory_space<vmem>>, vector<1x272x56xbf16>
    %107 = vector.shape_cast %106 : vector<1x272x56xbf16> to vector<272x56xbf16>
    %cst_98 = arith.constant dense<0.000000e+00> : vector<14x56xf32>
    %108 = tpu.matmul %105, %107, %cst_98 {dimension_numbers = #tpu.dot_dimension_numbers<[1], [0], [0], [1], [0, 0, 1, 1], [], []>} : vector<14x272xbf16>, vector<272x56xbf16>, vector<14x56xf32> -> vector<14x56xf32>
    %109 = arith.addf %103, %108 : vector<14x56xf32>
    %c2_99 = arith.constant 2 : index
    %c0_100 = arith.constant 0 : index
    %110 = vector.load %arg13[%c2_99, %c0_100] : memref<17x272xf32, #tpu.memory_space<vmem>>, vector<14x272xf32>
    %111 = arith.truncf %110 : vector<14x272xf32> to vector<14x272xbf16>
    %c2_101 = arith.constant 2 : index
    %c0_102 = arith.constant 0 : index
    %c0_103 = arith.constant 0 : index
    %112 = vector.load %arg8[%c2_101, %c0_102, %c0_103] : memref<4x272x56xbf16, #tpu.memory_space<vmem>>, vector<1x272x56xbf16>
    %113 = vector.shape_cast %112 : vector<1x272x56xbf16> to vector<272x56xbf16>
    %cst_104 = arith.constant dense<0.000000e+00> : vector<14x56xf32>
    %114 = tpu.matmul %111, %113, %cst_104 {dimension_numbers = #tpu.dot_dimension_numbers<[1], [0], [0], [1], [0, 0, 1, 1], [], []>} : vector<14x272xbf16>, vector<272x56xbf16>, vector<14x56xf32> -> vector<14x56xf32>
    %115 = arith.addf %109, %114 : vector<14x56xf32>
    %c3_105 = arith.constant 3 : index
    %c0_106 = arith.constant 0 : index
    %116 = vector.load %arg13[%c3_105, %c0_106] : memref<17x272xf32, #tpu.memory_space<vmem>>, vector<14x272xf32>
    %117 = arith.truncf %116 : vector<14x272xf32> to vector<14x272xbf16>
    %c3_107 = arith.constant 3 : index
    %c0_108 = arith.constant 0 : index
    %c0_109 = arith.constant 0 : index
    %118 = vector.load %arg8[%c3_107, %c0_108, %c0_109] : memref<4x272x56xbf16, #tpu.memory_space<vmem>>, vector<1x272x56xbf16>
    %119 = vector.shape_cast %118 : vector<1x272x56xbf16> to vector<272x56xbf16>
    %cst_110 = arith.constant dense<0.000000e+00> : vector<14x56xf32>
    %120 = tpu.matmul %117, %119, %cst_110 {dimension_numbers = #tpu.dot_dimension_numbers<[1], [0], [0], [1], [0, 0, 1, 1], [], []>} : vector<14x272xbf16>, vector<272x56xbf16>, vector<14x56xf32> -> vector<14x56xf32>
    %121 = arith.addf %115, %120 : vector<14x56xf32>
    %c0_111 = arith.constant 0 : index
    %c0_112 = arith.constant 0 : index
    %122 = vector.load %arg9[%c0_111, %c0_112] : memref<1x1xf32, #tpu.memory_space<vmem>>, vector<1x1xf32>
    %123 = vector.broadcast %122 : vector<1x1xf32> to vector<14x56xf32>
    %124 = arith.addf %121, %123 : vector<14x56xf32>
    %cst_113 = arith.constant 0.000000e+00 : f32
    %125 = vector.broadcast %cst_113 : f32 to vector<14x56xf32>
    %126 = arith.subf %125, %124 : vector<14x56xf32>
    %127 = math.exp %126 : vector<14x56xf32>
    %cst_114 = arith.constant 1.000000e+00 : f32
    %128 = vector.broadcast %cst_114 : f32 to vector<14x56xf32>
    %129 = arith.addf %128, %127 : vector<14x56xf32>
    %cst_115 = arith.constant 1.000000e+00 : f32
    %130 = vector.broadcast %cst_115 : f32 to vector<14x56xf32>
    %131 = arith.divf %130, %129 : vector<14x56xf32>
    %c0_116 = arith.constant 0 : index
    %c0_117 = arith.constant 0 : index
    %c0_118 = arith.constant 0 : index
    %132 = vector.load %arg10[%c0_116, %c0_117, %c0_118] : memref<1x14x56xf32, #tpu.memory_space<vmem>>, vector<1x14x56xf32>
    %133 = vector.shape_cast %132 : vector<1x14x56xf32> to vector<14x56xf32>
    %134 = vector.shape_cast %131 : vector<14x56xf32> to vector<1x14x56xf32>
    tpu.vector_store %arg10[%c0_116, %c0_117, %c0_118], %134 {strides = array<i32>} : memref<1x14x56xf32, #tpu.memory_space<vmem>>, vector<1x14x56xf32>,
    return
  }
  func.func @transform_0(%arg0: i32) -> (i32, i32, i32) {
    %c0_i32 = arith.constant 0 : i32
    %c0_i32_0 = arith.constant 0 : i32
    %c0_i32_1 = arith.constant 0 : i32
    return %arg0, %c0_i32, %c0_i32_0 : i32, i32, i32
  }
  func.func @transform_1(%arg0: i32) -> (i32, i32) {
    %c0_i32 = arith.constant 0 : i32
    %c0_i32_0 = arith.constant 0 : i32
    %c0_i32_1 = arith.constant 0 : i32
    return %c0_i32, %c0_i32_0 : i32, i32
  }
  func.func @transform_2(%arg0: i32) -> (i32, i32) {
    %c0_i32 = arith.constant 0 : i32
    %c0_i32_0 = arith.constant 0 : i32
    %c0_i32_1 = arith.constant 0 : i32
    return %c0_i32, %c0_i32_0 : i32, i32
  }
  func.func @transform_3(%arg0: i32) -> (i32, i32, i32) {
    %c0_i32 = arith.constant 0 : i32
    %c0_i32_0 = arith.constant 0 : i32
    %c0_i32_1 = arith.constant 0 : i32
    %c0_i32_2 = arith.constant 0 : i32
    return %c0_i32, %c0_i32_0, %c0_i32_1 : i32, i32, i32
  }
  func.func @transform_4(%arg0: i32) -> (i32, i32) {
    %c0_i32 = arith.constant 0 : i32
    %c0_i32_0 = arith.constant 0 : i32
    %c0_i32_1 = arith.constant 0 : i32
    return %c0_i32, %c0_i32_0 : i32, i32
  }
  func.func @transform_5(%arg0: i32) -> (i32, i32, i32) {
    %c0_i32 = arith.constant 0 : i32
    %c0_i32_0 = arith.constant 0 : i32
    %c0_i32_1 = arith.constant 0 : i32
    %c0_i32_2 = arith.constant 0 : i32
    return %c0_i32, %c0_i32_0, %c0_i32_1 : i32, i32, i32
  }
  func.func @transform_6(%arg0: i32) -> (i32, i32) {
    %c0_i32 = arith.constant 0 : i32
    %c0_i32_0 = arith.constant 0 : i32
    %c0_i32_1 = arith.constant 0 : i32
    return %c0_i32, %c0_i32_0 : i32, i32
  }
  func.func @transform_7(%arg0: i32) -> (i32, i32, i32) {
    %c0_i32 = arith.constant 0 : i32
    %c0_i32_0 = arith.constant 0 : i32
    %c0_i32_1 = arith.constant 0 : i32
    %c0_i32_2 = arith.constant 0 : i32
    return %c0_i32, %c0_i32_0, %c0_i32_1 : i32, i32, i32
  }
  func.func @transform_8(%arg0: i32) -> (i32, i32) {
    %c0_i32 = arith.constant 0 : i32
    %c0_i32_0 = arith.constant 0 : i32
    %c0_i32_1 = arith.constant 0 : i32
    return %c0_i32, %c0_i32_0 : i32, i32
  }
  func.func @transform_9(%arg0: i32) -> (i32, i32, i32) {
    %c0_i32 = arith.constant 0 : i32
    %c0_i32_0 = arith.constant 0 : i32
    %c0_i32_1 = arith.constant 0 : i32
    return %arg0, %c0_i32, %c0_i32_0 : i32, i32, i32
  }
}

</mosaic_0001>

<llo_original>
// kernel: generator_forward.1
$region0: #{generator_forward.1}
  #allocation0 [shape = 'u32[]', space=smem, size = 0x4, offset = 0x4, fixed_abs, tag = 'smem constant byte address 0x4 - core index']
  #allocation1 [shape = 'u32[144,128]{1,0:T(1,128)}', space=vmem, size = 0x12000, scoped, tag = 'internal scratch']
  #allocation2 [shape = 'f32[12,768]{1,0:T(8,128)}', space=vmem, size = 0xc000, scoped, tag = 'scratch operand']
  #allocation3 [shape = 'f32[15,480]{1,0:T(8,128)}', space=vmem, size = 0x8000, scoped, tag = 'scratch operand']
  #allocation4 [shape = 'f32[17,272]{1,0:T(8,128)}', space=vmem, size = 0x9000, scoped, tag = 'scratch operand']
  #allocation5 [shape = 'f32[1,1]{1,0:T(1,128)S(1)}', space=vmem, size = 0x200, scoped, tag = 'scoped memory for generator_forward.1']
  %s0 = inlined_call_operand.vmem [shape: bf16[2,1,128], index: 0, kind: input, shape index: {}]
  %s1 = inlined_call_operand.vmem [shape: bf16[128,1024], index: 1, kind: input, shape index: {}]
  %s2 = inlined_call_operand.vmem [shape: f32[1,1024], index: 2, kind: input, shape index: {}]
  %s3 = inlined_call_operand.vmem [shape: bf16[5,768,256], index: 3, kind: input, shape index: {}]
  %s4 = inlined_call_operand.vmem [shape: f32[1,256], index: 4, kind: input, shape index: {}]
  %s5 = inlined_call_operand.vmem [shape: bf16[5,480,176], index: 5, kind: input, shape index: {}]
  %s6 = inlined_call_operand.vmem [shape: f32[1,176], index: 6, kind: input, shape index: {}]
  %s7 = inlined_call_operand.vmem [shape: bf16[4,272,56], index: 7, kind: input, shape index: {}]
  %s8 = inlined_call_operand.<no memory space> [shape: f32[1,1], index: 8, kind: input, shape index: {}]
  %s9 = inlined_call_operand.vmem [shape: f32[2,14,56], index: 9, kind: output, shape index: {}]
  %s10 = sld [smem:[#allocation0]]
  $region69: #{generator_forward.1} parent=0
    _
  %s12 = ssub.s32 1, %s10
  %s13 = scalar_select 0, %s12, %s10
  %v14 = vstv %s8
  %15 = vst [vmem:[#allocation5] sm:$0x1] %v14
  loop: start=0, step=1, limit=4
  $region2: #{generator_forward.1} parent=0 // loop_pre_header
    _
  $region3: #{generator_forward.1} parent=0 // loop_header
    %s17 = sphi 0, %s21
    %p18 = scmp.ge.s32.totalorder %s17, 4
    %s27 = sphi 0, %s29
    %s30 = sphi 0, %s27
    %s31 = sphi 0, %s30
    %s47 = sphi 0, %s31
    %s51 = sphi 0, %s51
    %s53 = sphi 0, %s51
    %s54 = sphi 0, %s53
    %s68 = sphi 0, %s54
    %s72 = sphi 0, %s72
    %s74 = sphi 0, %s72
    %s75 = sphi 0, %s74
    %s89 = sphi 0, %s75
    %s93 = sphi 0, %s93
    %s95 = sphi 0, %s93
    %s96 = sphi 0, %s95
    %s110 = sphi 0, %s96
    %s114 = sphi 0, %s114
    %s116 = sphi 0, %s114
    %s117 = sphi 0, %s116
    %s131 = sphi 0, %s117
    %s135 = sphi 0, %s135
    %s137 = sphi 0, %s135
    %s138 = sphi 0, %s137
    %s152 = sphi 0, %s138
    %s156 = sphi 0, %s156
    %s158 = sphi 0, %s156
    %s159 = sphi 0, %s158
    %s173 = sphi 0, %s159
    %s177 = sphi 0, %s177
    %s179 = sphi 0, %s177
    %s180 = sphi 0, %s179
    %s194 = sphi 0, %s180
    %s198 = sphi 0, %s198
    %s200 = sphi 0, %s198
    %s201 = sphi 0, %s200
    %s215 = sphi 0, %s201
    %s221 = sphi 0, %s223
    %s224 = sphi 0, %s221
    %s225 = sphi 0, %s224
    %s241 = sphi 0, %s225
  $region4: #{generator_forward.1} parent=0 // loop_header_branch
    %20 = sbr.rel (%p18) target = $region8
  $region5: #{generator_forward.1} parent=0 // loop_body
    %s22 = ssub.s32 %s17, 1
    %s23 = ssub.s32 %s17, 2
    %s24 = sadd.s32 %s17, 1
    %s25 = ssub.s32 %s17, %s24
    %p26 = scmp.eq.s32.totalorder %s25, 0
    %s28 = sadd.s32 %s27, 1
    %s29 = scalar_select %p26, %s27, %s28
    %p32 = pneg %p26
    %p33 = scmp.eq.s32.totalorder %s17, 1
    %p34 = por %p32, %p33
    %p35 = scmp.ne.s32.totalorder %s27, %s30
    %p36 = scmp.eq.s32.totalorder %s17, 0
    %p37 = por %p35, %p36
    %p38 = scmp.ne.s32.totalorder %s27, %s30
    %p39 = scmp.eq.s32.totalorder %s22, 1
    %p40 = por %p38, %p39
    %p41 = scmp.ne.s32.totalorder %s30, %s31
    %p42 = scmp.eq.s32.totalorder %s22, 0
    %p43 = por %p41, %p42
    %p44 = scmp.ne.s32.totalorder %s30, %s31
    %p45 = scmp.eq.s32.totalorder %s23, 1
    %p46 = por %p44, %p45
    %p48 = scmp.ne.s32.totalorder %s31, %s47
    %p49 = scmp.eq.s32.totalorder %s23, 0
    %p50 = por %p48, %p49
    %s52 = sadd.s32 %s51, 1
    %p55 = scmp.eq.s32.totalorder %s17, 1
    %p56 = scmp.ne.s32.totalorder %s51, %s53
    %p57 = scmp.eq.s32.totalorder %s17, 0
    %p58 = por %p56, %p57
    %p59 = scmp.ne.s32.totalorder %s51, %s53
    %p60 = scmp.eq.s32.totalorder %s22, 1
    %p61 = por %p59, %p60
    %p62 = scmp.ne.s32.totalorder %s53, %s54
    %p63 = scmp.eq.s32.totalorder %s22, 0
    %p64 = por %p62, %p63
    %p65 = scmp.ne.s32.totalorder %s53, %s54
    %p66 = scmp.eq.s32.totalorder %s23, 1
    %p67 = por %p65, %p66
    %p69 = scmp.ne.s32.totalorder %s54, %s68
    %p70 = scmp.eq.s32.totalorder %s23, 0
    %p71 = por %p69, %p70
    %s73 = sadd.s32 %s72, 1
    %p76 = scmp.eq.s32.totalorder %s17, 1
    %p77 = scmp.ne.s32.totalorder %s72, %s74
    %p78 = scmp.eq.s32.totalorder %s17, 0
    %p79 = por %p77, %p78
    %p80 = scmp.ne.s32.totalorder %s72, %s74
    %p81 = scmp.eq.s32.totalorder %s22, 1
    %p82 = por %p80, %p81
    %p83 = scmp.ne.s32.totalorder %s74, %s75
    %p84 = scmp.eq.s32.totalorder %s22, 0
    %p85 = por %p83, %p84
    %p86 = scmp.ne.s32.totalorder %s74, %s75
    %p87 = scmp.eq.s32.totalorder %s23, 1
    %p88 = por %p86, %p87
    %p90 = scmp.ne.s32.totalorder %s75, %s89
    %p91 = scmp.eq.s32.totalorder %s23, 0
    %p92 = por %p90, %p91
    %s94 = sadd.s32 %s93, 1
    %p97 = scmp.eq.s32.totalorder %s17, 1
    %p98 = scmp.ne.s32.totalorder %s93, %s95
    %p99 = scmp.eq.s32.totalorder %s17, 0
    %p100 = por %p98, %p99
    %p101 = scmp.ne.s32.totalorder %s93, %s95
    %p102 = scmp.eq.s32.totalorder %s22, 1
    %p103 = por %p101, %p102
    %p104 = scmp.ne.s32.totalorder %s95, %s96
    %p105 = scmp.eq.s32.totalorder %s22, 0
    %p106 = por %p104, %p105
    %p107 = scmp.ne.s32.totalorder %s95, %s96
    %p108 = scmp.eq.s32.totalorder %s23, 1
    %p109 = por %p107, %p108
    %p111 = scmp.ne.s32.totalorder %s96, %s110
    %p112 = scmp.eq.s32.totalorder %s23, 0
    %p113 = por %p111, %p112
    %s115 = sadd.s32 %s114, 1
    %p118 = scmp.eq.s32.totalorder %s17, 1
    %p119 = scmp.ne.s32.totalorder %s114, %s116
    %p120 = scmp.eq.s32.totalorder %s17, 0
    %p121 = por %p119, %p120
    %p122 = scmp.ne.s32.totalorder %s114, %s116
    %p123 = scmp.eq.s32.totalorder %s22, 1
    %p124 = por %p122, %p123
    %p125 = scmp.ne.s32.totalorder %s116, %s117
    %p126 = scmp.eq.s32.totalorder %s22, 0
    %p127 = por %p125, %p126
    %p128 = scmp.ne.s32.totalorder %s116, %s117
    %p129 = scmp.eq.s32.totalorder %s23, 1
    %p130 = por %p128, %p129
    %p132 = scmp.ne.s32.totalorder %s117, %s131
    %p133 = scmp.eq.s32.totalorder %s23, 0
    %p134 = por %p132, %p133
    %s136 = sadd.s32 %s135, 1
    %p139 = scmp.eq.s32.totalorder %s17, 1
    %p140 = scmp.ne.s32.totalorder %s135, %s137
    %p141 = scmp.eq.s32.totalorder %s17, 0
    %p142 = por %p140, %p141
    %p143 = scmp.ne.s32.totalorder %s135, %s137
    %p144 = scmp.eq.s32.totalorder %s22, 1
    %p145 = por %p143, %p144
    %p146 = scmp.ne.s32.totalorder %s137, %s138
    %p147 = scmp.eq.s32.totalorder %s22, 0
    %p148 = por %p146, %p147
    %p149 = scmp.ne.s32.totalorder %s137, %s138
    %p150 = scmp.eq.s32.totalorder %s23, 1
    %p151 = por %p149, %p150
    %p153 = scmp.ne.s32.totalorder %s138, %s152
    %p154 = scmp.eq.s32.totalorder %s23, 0
    %p155 = por %p153, %p154
    %s157 = sadd.s32 %s156, 1
    %p160 = scmp.eq.s32.totalorder %s17, 1
    %p161 = scmp.ne.s32.totalorder %s156, %s158
    %p162 = scmp.eq.s32.totalorder %s17, 0
    %p163 = por %p161, %p162
    %p164 = scmp.ne.s32.totalorder %s156, %s158
    %p165 = scmp.eq.s32.totalorder %s22, 1
    %p166 = por %p164, %p165
    %p167 = scmp.ne.s32.totalorder %s158, %s159
    %p168 = scmp.eq.s32.totalorder %s22, 0
    %p169 = por %p167, %p168
    %p170 = scmp.ne.s32.totalorder %s158, %s159
    %p171 = scmp.eq.s32.totalorder %s23, 1
    %p172 = por %p170, %p171
    %p174 = scmp.ne.s32.totalorder %s159, %s173
    %p175 = scmp.eq.s32.totalorder %s23, 0
    %p176 = por %p174, %p175
    %s178 = sadd.s32 %s177, 1
    %p181 = scmp.eq.s32.totalorder %s17, 1
    %p182 = scmp.ne.s32.totalorder %s177, %s179
    %p183 = scmp.eq.s32.totalorder %s17, 0
    %p184 = por %p182, %p183
    %p185 = scmp.ne.s32.totalorder %s177, %s179
    %p186 = scmp.eq.s32.totalorder %s22, 1
    %p187 = por %p185, %p186
    %p188 = scmp.ne.s32.totalorder %s179, %s180
    %p189 = scmp.eq.s32.totalorder %s22, 0
    %p190 = por %p188, %p189
    %p191 = scmp.ne.s32.totalorder %s179, %s180
    %p192 = scmp.eq.s32.totalorder %s23, 1
    %p193 = por %p191, %p192
    %p195 = scmp.ne.s32.totalorder %s180, %s194
    %p196 = scmp.eq.s32.totalorder %s23, 0
    %p197 = por %p195, %p196
    %s199 = sadd.s32 %s198, 1
    %p202 = scmp.eq.s32.totalorder %s17, 1
    %p203 = scmp.ne.s32.totalorder %s198, %s200
    %p204 = scmp.eq.s32.totalorder %s17, 0
    %p205 = por %p203, %p204
    %p206 = scmp.ne.s32.totalorder %s198, %s200
    %p207 = scmp.eq.s32.totalorder %s22, 1
    %p208 = por %p206, %p207
    %p209 = scmp.ne.s32.totalorder %s200, %s201
    %p210 = scmp.eq.s32.totalorder %s22, 0
    %p211 = por %p209, %p210
    %p212 = scmp.ne.s32.totalorder %s200, %s201
    %p213 = scmp.eq.s32.totalorder %s23, 1
    %p214 = por %p212, %p213
    %p216 = scmp.ne.s32.totalorder %s201, %s215
    %p217 = scmp.eq.s32.totalorder %s23, 0
    %p218 = por %p216, %p217
    %s219 = ssub.s32 %s17, %s24
    %p220 = scmp.eq.s32.totalorder %s219, 0
    %s222 = sadd.s32 %s221, 1
    %s223 = scalar_select %p220, %s221, %s222
    %p226 = pneg %p220
    %p227 = scmp.eq.s32.totalorder %s17, 1
    %p228 = por %p226, %p227
    %p229 = scmp.ne.s32.totalorder %s221, %s224
    %p230 = scmp.eq.s32.totalorder %s17, 0
    %p231 = por %p229, %p230
    %p232 = scmp.ne.s32.totalorder %s221, %s224
    %p233 = scmp.eq.s32.totalorder %s22, 1
    %p234 = por %p232, %p233
    %p235 = scmp.ne.s32.totalorder %s224, %s225
    %p236 = scmp.eq.s32.totalorder %s22, 0
    %p237 = por %p235, %p236
    %p238 = scmp.ne.s32.totalorder %s224, %s225
    %p239 = scmp.eq.s32.totalorder %s23, 1
    %p240 = por %p238, %p239
    %p242 = scmp.ne.s32.totalorder %s225, %s241
    %p243 = scmp.eq.s32.totalorder %s23, 0
    %p244 = por %p242, %p243
    %p245 = scmp.le.s32.totalorder 1, %s17
    %p246 = scmp.lt.s32.totalorder %s17, 3
    %p247 = pnand %p245, %p246
    %p248 = pneg %p247
    // Predicated region
    $region9: #{generator_forward.1} parent=5 // pred_check
      _
    $region10: #{generator_forward.1} parent=5 // pred_check_branch
      %250 = sbr.rel (%p247) target = $region12
    $region11: #{generator_forward.1} parent=5 // pred_region
      %s251 = ssub.s32 %s17, 1
      // Predicated region
      $region13: #{generator_forward.1} parent=11 // pred_check
        %p252 = pneg %p64
      $region14: #{generator_forward.1} parent=11 // pred_check_branch
        %254 = sbr.rel (%p252) target = $region16
      $region15: #{generator_forward.1} parent=11 // pred_region
        _
      $region16: #{generator_forward.1} parent=11 // pred_fallthru
        _
      // Predicated region
      $region17: #{generator_forward.1} parent=11 // pred_check
        %p255 = pneg %p85
      $region18: #{generator_forward.1} parent=11 // pred_check_branch
        %257 = sbr.rel (%p255) target = $region20
      $region19: #{generator_forward.1} parent=11 // pred_region
        _
      $region20: #{generator_forward.1} parent=11 // pred_fallthru
        _
      // Predicated region
      $region21: #{generator_forward.1} parent=11 // pred_check
        %p258 = pneg %p106
      $region22: #{generator_forward.1} parent=11 // pred_check_branch
        %260 = sbr.rel (%p258) target = $region24
      $region23: #{generator_forward.1} parent=11 // pred_region
        _
      $region24: #{generator_forward.1} parent=11 // pred_fallthru
        _
      // Predicated region
      $region25: #{generator_forward.1} parent=11 // pred_check
        %p261 = pneg %p127
      $region26: #{generator_forward.1} parent=11 // pred_check_branch
        %263 = sbr.rel (%p261) target = $region28
      $region27: #{generator_forward.1} parent=11 // pred_region
        _
      $region28: #{generator_forward.1} parent=11 // pred_fallthru
        _
      // Predicated region
      $region29: #{generator_forward.1} parent=11 // pred_check
        %p264 = pneg %p148
      $region30: #{generator_forward.1} parent=11 // pred_check_branch
        %266 = sbr.rel (%p264) target = $region32
      $region31: #{generator_forward.1} parent=11 // pred_region
        _
      $region32: #{generator_forward.1} parent=11 // pred_fallthru
        _
      // Predicated region
      $region33: #{generator_forward.1} parent=11 // pred_check
        %p267 = pneg %p169
      $region34: #{generator_forward.1} parent=11 // pred_check_branch
        %269 = sbr.rel (%p267) target = $region36
      $region35: #{generator_forward.1} parent=11 // pred_region
        _
      $region36: #{generator_forward.1} parent=11 // pred_fallthru
        _
      // Predicated region
      $region37: #{generator_forward.1} parent=11 // pred_check
        %p270 = pneg %p190
      $region38: #{generator_forward.1} parent=11 // pred_check_branch
        %272 = sbr.rel (%p270) target = $region40
      $region39: #{generator_forward.1} parent=11 // pred_region
        _
      $region40: #{generator_forward.1} parent=11 // pred_fallthru
        _
      // Predicated region
      $region41: #{generator_forward.1} parent=11 // pred_check
        %p273 = pneg %p211
      $region42: #{generator_forward.1} parent=11 // pred_check_branch
        %275 = sbr.rel (%p273) target = $region44
      $region43: #{generator_forward.1} parent=11 // pred_region
        _
      $region44: #{generator_forward.1} parent=11 // pred_fallthru
        _
    $region12: #{generator_forward.1} parent=5 // pred_fallthru
      _
    %p276 = scmp.lt.s32.totalorder %s17, 2
    // Predicated region
    $region45: #{generator_forward.1} parent=5 // pred_check
      %p277 = pneg %p276
    $region46: #{generator_forward.1} parent=5 // pred_check_branch
      %279 = sbr.rel (%p277) target = $region48
    $region47: #{generator_forward.1} parent=5 // pred_region
      // Predicated region
      $region49: #{generator_forward.1} parent=47 // pred_check
        %p280 = pneg %p37
      $region50: #{generator_forward.1} parent=47 // pred_check_branch
        %282 = sbr.rel (%p280) target = $region52
      $region51: #{generator_forward.1} parent=47 // pred_region
        %p283 = scmp.lt.s32.totalorder %s17, 1
        %s284 = scalar_select %p283, %s17, 1
        %s285 = scalar_lea.vmem %s0, %s284
      $region52: #{generator_forward.1} parent=47 // pred_fallthru
        _
    $region48: #{generator_forward.1} parent=5 // pred_fallthru
      _
    %p286 = scmp.le.s32.totalorder 1, %s17
    %p287 = scmp.lt.s32.totalorder %s17, 3
    %p288 = pnand %p286, %p287
    %p289 = pneg %p288
    // Predicated region
    $region53: #{generator_forward.1} parent=5 // pred_check
      _
    $region54: #{generator_forward.1} parent=5 // pred_check_branch
      %291 = sbr.rel (%p288) target = $region56
    $region55: #{generator_forward.1} parent=5 // pred_region
      %s292 = ssub.s32 %s17, 1
      %p293 = scmp.lt.s32.totalorder %s22, 1
      %s294 = scalar_select %p293, %s22, 1
      %s295 = scalar_lea.vmem %s0, %s294
      %p296 = pneg %p43
      %p297 = pneg %p40
      %p298 = pneg %p64
      %p299 = pneg %p61
      %p300 = pneg %p85
      %p301 = pneg %p82
      %p302 = pneg %p106
      %p303 = pneg %p103
      %p304 = pneg %p127
      %p305 = pneg %p124
      %p306 = pneg %p148
      %p307 = pneg %p145
      %p308 = pneg %p169
      %p309 = pneg %p166
      %p310 = pneg %p190
      %p311 = pneg %p187
      %p312 = pneg %p211
      %p313 = pneg %p208
      %p314 = pneg %p237
      %p315 = pneg %p234
      %p316 = scmp.lt.s32.totalorder %s22, 1
      %s317 = scalar_select %p316, %s22, 1
      %s318 = smul.addr %s317, 2
      %s319 = smul.addr %s318, 8
      %s320 = scalar_lea.vmem %s9, %s319
      %p321 = scmp.lt.s32.totalorder %s22, 1
      %s322 = scalar_select %p321, %s22, 1
      %s323 = scalar_lea.vmem %s0, %s322
      %p324 = scmp.lt.s32.totalorder %s22, 1
      %s325 = scalar_select %p324, %s22, 1
      %s326 = smul.addr %s325, 2
      %s327 = smul.addr %s326, 8
      %s328 = scalar_lea.vmem %s9, %s327
      %v330 = vld [vmem:[%s323] sm:$0x1]
      %v331 = vld [vmem:[%s1] sm:$0xff]
      %v332 = vld [vmem:[%s1 + $0x8] sm:$0xff]
      %v333 = vld [vmem:[%s1 + $0x10] sm:$0xff]
      %v334 = vld [vmem:[%s1 + $0x18] sm:$0xff]
      %v335 = vld [vmem:[%s1 + $0x20] sm:$0xff]
      %v336 = vld [vmem:[%s1 + $0x28] sm:$0xff]
      %v337 = vld [vmem:[%s1 + $0x30] sm:$0xff]
      %v338 = vld [vmem:[%s1 + $0x38] sm:$0xff]
      %v339 = vld [vmem:[%s1 + $0x40] sm:$0xff]
      %v340 = vld [vmem:[%s1 + $0x48] sm:$0xff]
      %v341 = vld [vmem:[%s1 + $0x50] sm:$0xff]
      %v342 = vld [vmem:[%s1 + $0x58] sm:$0xff]
      %v343 = vld [vmem:[%s1 + $0x60] sm:$0xff]
      %v344 = vld [vmem:[%s1 + $0x68] sm:$0xff]
      %v345 = vld [vmem:[%s1 + $0x70] sm:$0xff]
      %v346 = vld [vmem:[%s1 + $0x78] sm:$0xff]
      %v347 = vld [vmem:[%s1 + $0x80] sm:$0xff]
      %v348 = vld [vmem:[%s1 + $0x88] sm:$0xff]
      %v349 = vld [vmem:[%s1 + $0x90] sm:$0xff]
      %v350 = vld [vmem:[%s1 + $0x98] sm:$0xff]
      %v351 = vld [vmem:[%s1 + $0xa0] sm:$0xff]
      %v352 = vld [vmem:[%s1 + $0xa8] sm:$0xff]
      %v353 = vld [vmem:[%s1 + $0xb0] sm:$0xff]
      %v354 = vld [vmem:[%s1 + $0xb8] sm:$0xff]
      %v355 = vld [vmem:[%s1 + $0xc0] sm:$0xff]
      %v356 = vld [vmem:[%s1 + $0xc8] sm:$0xff]
      %v357 = vld [vmem:[%s1 + $0xd0] sm:$0xff]
      %v358 = vld [vmem:[%s1 + $0xd8] sm:$0xff]
      %v359 = vld [vmem:[%s1 + $0xe0] sm:$0xff]
      %v360 = vld [vmem:[%s1 + $0xe8] sm:$0xff]
      %v361 = vld [vmem:[%s1 + $0xf0] sm:$0xff]
      %v362 = vld [vmem:[%s1 + $0xf8] sm:$0xff]
      %v363 = vld [vmem:[%s1 + $0x100] sm:$0xff]
      %v364 = vld [vmem:[%s1 + $0x108] sm:$0xff]
      %v365 = vld [vmem:[%s1 + $0x110] sm:$0xff]
      %v366 = vld [vmem:[%s1 + $0x118] sm:$0xff]
      %v367 = vld [vmem:[%s1 + $0x120] sm:$0xff]
      %v368 = vld [vmem:[%s1 + $0x128] sm:$0xff]
      %v369 = vld [vmem:[%s1 + $0x130] sm:$0xff]
      %v370 = vld [vmem:[%s1 + $0x138] sm:$0xff]
      %v371 = vld [vmem:[%s1 + $0x140] sm:$0xff]
      %v372 = vld [vmem:[%s1 + $0x148] sm:$0xff]
      %v373 = vld [vmem:[%s1 + $0x150] sm:$0xff]
      %v374 = vld [vmem:[%s1 + $0x158] sm:$0xff]
      %v375 = vld [vmem:[%s1 + $0x160] sm:$0xff]
      %v376 = vld [vmem:[%s1 + $0x168] sm:$0xff]
      %v377 = vld [vmem:[%s1 + $0x170] sm:$0xff]
      %v378 = vld [vmem:[%s1 + $0x178] sm:$0xff]
      %v379 = vld [vmem:[%s1 + $0x180] sm:$0xff]
      %v380 = vld [vmem:[%s1 + $0x188] sm:$0xff]
      %v381 = vld [vmem:[%s1 + $0x190] sm:$0xff]
      %v382 = vld [vmem:[%s1 + $0x198] sm:$0xff]
      %v383 = vld [vmem:[%s1 + $0x1a0] sm:$0xff]
      %v384 = vld [vmem:[%s1 + $0x1a8] sm:$0xff]
      %v385 = vld [vmem:[%s1 + $0x1b0] sm:$0xff]
      %v386 = vld [vmem:[%s1 + $0x1b8] sm:$0xff]
      %v387 = vld [vmem:[%s1 + $0x1c0] sm:$0xff]
      %v388 = vld [vmem:[%s1 + $0x1c8] sm:$0xff]
      %v389 = vld [vmem:[%s1 + $0x1d0] sm:$0xff]
      %v390 = vld [vmem:[%s1 + $0x1d8] sm:$0xff]
      %v391 = vld [vmem:[%s1 + $0x1e0] sm:$0xff]
      %v392 = vld [vmem:[%s1 + $0x1e8] sm:$0xff]
      %v393 = vld [vmem:[%s1 + $0x1f0] sm:$0xff]
      %v394 = vld [vmem:[%s1 + $0x1f8] sm:$0xff]
      %v395 = vld [vmem:[%s2] sm:$0xff]
      %v460 = vunpack.c.l.b16 %v331
      %v461 = vunpack.c.h.b16 %v331
      %v462 = vunpack.c.l.b16 %v332
      %v463 = vunpack.c.h.b16 %v332
      %v464 = vunpack.c.l.b16 %v333
      %v465 = vunpack.c.h.b16 %v333
      %v466 = vunpack.c.l.b16 %v334
      %v467 = vunpack.c.h.b16 %v334
      %v468 = vunpack.c.l.b16 %v335
      %v469 = vunpack.c.h.b16 %v335
      %v470 = vunpack.c.l.b16 %v336
      %v471 = vunpack.c.h.b16 %v336
      %v472 = vunpack.c.l.b16 %v337
      %v473 = vunpack.c.h.b16 %v337
      %v474 = vunpack.c.l.b16 %v338
      %v475 = vunpack.c.h.b16 %v338
      %v476 = vunpack.c.l.b16 %v339
      %v477 = vunpack.c.h.b16 %v339
      %v478 = vunpack.c.l.b16 %v340
      %v479 = vunpack.c.h.b16 %v340
      %v480 = vunpack.c.l.b16 %v341
      %v481 = vunpack.c.h.b16 %v341
      %v482 = vunpack.c.l.b16 %v342
      %v483 = vunpack.c.h.b16 %v342
      %v484 = vunpack.c.l.b16 %v343
      %v485 = vunpack.c.h.b16 %v343
      %v486 = vunpack.c.l.b16 %v344
      %v487 = vunpack.c.h.b16 %v344
      %v488 = vunpack.c.l.b16 %v345
      %v489 = vunpack.c.h.b16 %v345
      %v490 = vunpack.c.l.b16 %v346
      %v491 = vunpack.c.h.b16 %v346
      %v492 = vunpack.c.l.b16 %v347
      %v493 = vunpack.c.h.b16 %v347
      %v494 = vunpack.c.l.b16 %v348
      %v495 = vunpack.c.h.b16 %v348
      %v496 = vunpack.c.l.b16 %v349
      %v497 = vunpack.c.h.b16 %v349
      %v498 = vunpack.c.l.b16 %v350
      %v499 = vunpack.c.h.b16 %v350
      %v500 = vunpack.c.l.b16 %v351
      %v501 = vunpack.c.h.b16 %v351
      %v502 = vunpack.c.l.b16 %v352
      %v503 = vunpack.c.h.b16 %v352
      %v504 = vunpack.c.l.b16 %v353
      %v505 = vunpack.c.h.b16 %v353
      %v506 = vunpack.c.l.b16 %v354
      %v507 = vunpack.c.h.b16 %v354
      %v508 = vunpack.c.l.b16 %v355
      %v509 = vunpack.c.h.b16 %v355
      %v510 = vunpack.c.l.b16 %v356
      %v511 = vunpack.c.h.b16 %v356
      %v512 = vunpack.c.l.b16 %v357
      %v513 = vunpack.c.h.b16 %v357
      %v514 = vunpack.c.l.b16 %v358
      %v515 = vunpack.c.h.b16 %v358
      %v516 = vunpack.c.l.b16 %v359
      %v517 = vunpack.c.h.b16 %v359
      %v518 = vunpack.c.l.b16 %v360
      %v519 = vunpack.c.h.b16 %v360
      %v520 = vunpack.c.l.b16 %v361
      %v521 = vunpack.c.h.b16 %v361
      %v522 = vunpack.c.l.b16 %v362
      %v523 = vunpack.c.h.b16 %v362
      %v524 = vunpack.c.l.b16 %v363
      %v525 = vunpack.c.h.b16 %v363
      %v526 = vunpack.c.l.b16 %v364
      %v527 = vunpack.c.h.b16 %v364
      %v528 = vunpack.c.l.b16 %v365
      %v529 = vunpack.c.h.b16 %v365
      %v530 = vunpack.c.l.b16 %v366
      %v531 = vunpack.c.h.b16 %v366
      %v532 = vunpack.c.l.b16 %v367
      %v533 = vunpack.c.h.b16 %v367
      %v534 = vunpack.c.l.b16 %v368
      %v535 = vunpack.c.h.b16 %v368
      %v536 = vunpack.c.l.b16 %v369
      %v537 = vunpack.c.h.b16 %v369
      %v538 = vunpack.c.l.b16 %v370
      %v539 = vunpack.c.h.b16 %v370
      %v540 = vunpack.c.l.b16 %v371
      %v541 = vunpack.c.h.b16 %v371
      %v542 = vunpack.c.l.b16 %v372
      %v543 = vunpack.c.h.b16 %v372
      %v544 = vunpack.c.l.b16 %v373
      %v545 = vunpack.c.h.b16 %v373
      %v546 = vunpack.c.l.b16 %v374
      %v547 = vunpack.c.h.b16 %v374
      %v548 = vunpack.c.l.b16 %v375
      %v549 = vunpack.c.h.b16 %v375
      %v550 = vunpack.c.l.b16 %v376
      %v551 = vunpack.c.h.b16 %v376
      %v552 = vunpack.c.l.b16 %v377
      %v553 = vunpack.c.h.b16 %v377
      %v554 = vunpack.c.l.b16 %v378
      %v555 = vunpack.c.h.b16 %v378
      %v556 = vunpack.c.l.b16 %v379
      %v557 = vunpack.c.h.b16 %v379
      %v558 = vunpack.c.l.b16 %v380
      %v559 = vunpack.c.h.b16 %v380
      %v560 = vunpack.c.l.b16 %v381
      %v561 = vunpack.c.h.b16 %v381
      %v562 = vunpack.c.l.b16 %v382
      %v563 = vunpack.c.h.b16 %v382
      %v564 = vunpack.c.l.b16 %v383
      %v565 = vunpack.c.h.b16 %v383
      %v566 = vunpack.c.l.b16 %v384
      %v567 = vunpack.c.h.b16 %v384
      %v568 = vunpack.c.l.b16 %v385
      %v569 = vunpack.c.h.b16 %v385
      %v570 = vunpack.c.l.b16 %v386
      %v571 = vunpack.c.h.b16 %v386
      %v572 = vunpack.c.l.b16 %v387
      %v573 = vunpack.c.h.b16 %v387
      %v574 = vunpack.c.l.b16 %v388
      %v575 = vunpack.c.h.b16 %v388
      %v576 = vunpack.c.l.b16 %v389
      %v577 = vunpack.c.h.b16 %v389
      %v578 = vunpack.c.l.b16 %v390
      %v579 = vunpack.c.h.b16 %v390
      %v580 = vunpack.c.l.b16 %v391
      %v581 = vunpack.c.h.b16 %v391
      %v582 = vunpack.c.l.b16 %v392
      %v583 = vunpack.c.h.b16 %v392
      %v584 = vunpack.c.l.b16 %v393
      %v585 = vunpack.c.h.b16 %v393
      %v586 = vunpack.c.l.b16 %v394
      %v587 = vunpack.c.h.b16 %v394
      %v588 = vpack.c.b16 %v468, %v460
      %v589 = vpack.c.b16 %v469, %v461
      %v590 = vpack.c.b16 %v470, %v462
      %v591 = vpack.c.b16 %v471, %v463
      %v592 = vpack.c.b16 %v472, %v464
      %v593 = vpack.c.b16 %v473, %v465
      %v594 = vpack.c.b16 %v474, %v466
      %v595 = vpack.c.b16 %v475, %v467
      %v596 = vpack.c.b16 %v484, %v476
      %v597 = vpack.c.b16 %v485, %v477
      %v598 = vpack.c.b16 %v486, %v478
      %v599 = vpack.c.b16 %v487, %v479
      %v600 = vpack.c.b16 %v488, %v480
      %v601 = vpack.c.b16 %v489, %v481
      %v602 = vpack.c.b16 %v490, %v482
      %v603 = vpack.c.b16 %v491, %v483
      %v604 = vpack.c.b16 %v500, %v492
      %v605 = vpack.c.b16 %v501, %v493
      %v606 = vpack.c.b16 %v502, %v494
      %v607 = vpack.c.b16 %v503, %v495
      %v608 = vpack.c.b16 %v504, %v496
      %v609 = vpack.c.b16 %v505, %v497
      %v610 = vpack.c.b16 %v506, %v498
      %v611 = vpack.c.b16 %v507, %v499
      %v612 = vpack.c.b16 %v516, %v508
      %v613 = vpack.c.b16 %v517, %v509
      %v614 = vpack.c.b16 %v518, %v510
      %v615 = vpack.c.b16 %v519, %v511
      %v616 = vpack.c.b16 %v520, %v512
      %v617 = vpack.c.b16 %v521, %v513
      %v618 = vpack.c.b16 %v522, %v514
      %v619 = vpack.c.b16 %v523, %v515
      %v620 = vpack.c.b16 %v532, %v524
      %v621 = vpack.c.b16 %v533, %v525
      %v622 = vpack.c.b16 %v534, %v526
      %v623 = vpack.c.b16 %v535, %v527
      %v624 = vpack.c.b16 %v536, %v528
      %v625 = vpack.c.b16 %v537, %v529
      %v626 = vpack.c.b16 %v538, %v530
      %v627 = vpack.c.b16 %v539, %v531
      %v628 = vpack.c.b16 %v548, %v540
      %v629 = vpack.c.b16 %v549, %v541
      %v630 = vpack.c.b16 %v550, %v542
      %v631 = vpack.c.b16 %v551, %v543
      %v632 = vpack.c.b16 %v552, %v544
      %v633 = vpack.c.b16 %v553, %v545
      %v634 = vpack.c.b16 %v554, %v546
      %v635 = vpack.c.b16 %v555, %v547
      %v636 = vpack.c.b16 %v564, %v556
      %v637 = vpack.c.b16 %v565, %v557
      %v638 = vpack.c.b16 %v566, %v558
      %v639 = vpack.c.b16 %v567, %v559
      %v640 = vpack.c.b16 %v568, %v560
      %v641 = vpack.c.b16 %v569, %v561
      %v642 = vpack.c.b16 %v570, %v562
      %v643 = vpack.c.b16 %v571, %v563
      %v644 = vpack.c.b16 %v580, %v572
      %v645 = vpack.c.b16 %v581, %v573
      %v646 = vpack.c.b16 %v582, %v574
      %v647 = vpack.c.b16 %v583, %v575
      %v648 = vpack.c.b16 %v584, %v576
      %v649 = vpack.c.b16 %v585, %v577
      %v650 = vpack.c.b16 %v586, %v578
      %v651 = vpack.c.b16 %v587, %v579
      %v717 = vlaneseq
      %v718 = vshrl.u32 %v717, 7
      %v719 = vsub.s32 0, %v718
      %v720 = vrot.slane %v395, %v719
      %v721 = vlaneseq
      %v722 = vshrl.u32 %v721, 7
      %v723 = vsub.s32 1, %v722
      %v724 = vrot.slane %v395, %v723
      %v725 = vlaneseq
      %v726 = vshrl.u32 %v725, 7
      %v727 = vsub.s32 2, %v726
      %v728 = vrot.slane %v395, %v727
      %v729 = vlaneseq
      %v730 = vshrl.u32 %v729, 7
      %v731 = vsub.s32 3, %v730
      %v732 = vrot.slane %v395, %v731
      %v733 = vlaneseq
      %v734 = vshrl.u32 %v733, 7
      %v735 = vsub.s32 4, %v734
      %v736 = vrot.slane %v395, %v735
      %v737 = vlaneseq
      %v738 = vshrl.u32 %v737, 7
      %v739 = vsub.s32 5, %v738
      %v740 = vrot.slane %v395, %v739
      %v741 = vlaneseq
      %v742 = vshrl.u32 %v741, 7
      %v743 = vsub.s32 6, %v742
      %v744 = vrot.slane %v395, %v743
      %v745 = vlaneseq
      %v746 = vshrl.u32 %v745, 7
      %v747 = vsub.s32 7, %v746
      %v748 = vrot.slane %v395, %v747
      %757 = vmatprep.subr.bf16.mxu0 %v589
      %758 = vmatpush1.bf16.msra.mxu0 %v588
      %759 = vmatprep.subr.bf16.mxu0 %v597
      %760 = vmatpush1.bf16.msra.mxu0 %v596
      %761 = vmatprep.subr.bf16.mxu0 %v605
      %762 = vmatpush1.bf16.msra.mxu0 %v604
      %763 = vmatprep.subr.bf16.mxu0 %v613
      %764 = vmatpush1.bf16.msra.mxu0 %v612
      %765 = vmatprep.subr.bf16.mxu0 %v621
      %766 = vmatpush1.bf16.msra.mxu0 %v620
      %767 = vmatprep.subr.bf16.mxu0 %v629
      %768 = vmatpush1.bf16.msra.mxu0 %v628
      %769 = vmatprep.subr.bf16.mxu0 %v637
      %770 = vmatpush1.bf16.msra.mxu0 %v636
      %771 = vmatprep.subr.bf16.mxu0 %v645
      %772 = vmatpush1.bf16.msra.mxu0 %v644
      %773 = vmatprep.subr.bf16.mxu0 0
      %774 = vmatpush1.bf16.msra.mxu0 0
      %775 = vmatprep.subr.bf16.mxu0 0
      %776 = vmatpush1.bf16.msra.mxu0 0
      %777 = vmatprep.subr.bf16.mxu0 0
      %778 = vmatpush1.bf16.msra.mxu0 0
      %779 = vmatprep.subr.bf16.mxu0 0
      %780 = vmatpush1.bf16.msra.mxu0 0
      %781 = vmatprep.subr.bf16.mxu0 0
      %782 = vmatpush1.bf16.msra.mxu0 0
      %783 = vmatprep.subr.bf16.mxu0 0
      %784 = vmatpush1.bf16.msra.mxu0 0
      %785 = vmatprep.subr.bf16.mxu0 0
      %786 = vmatpush1.bf16.msra.mxu0 0
      %787 = vmatprep.subr.bf16.mxu0 0
      %788 = vmatpush1.bf16.msra.mxu0 0
      %789 = vmatprep.mubr.bf16.mxu0 0
      %790 = vmatmul.mubr.bf16.gmra.mrb[0].mxu0 %v330
      %v791 = vpop.f32.mrb[0].mxu0
      %v792 = vadd.f32 %v720, %v791
      %v793 = vpop.f32.mrb[0].mxu0
      %v794 = vadd.f32 %v724, %v793
      %v795 = vpop.f32.mrb[0].mxu0
      %v796 = vpop.f32.mrb[0].mxu0
      %797 = vdwg.mxu0
      %798 = vmatprep.subr.bf16.mxu0 %v591
      %799 = vmatpush1.bf16.msra.mxu0 %v590
      %800 = vmatprep.subr.bf16.mxu0 %v599
      %801 = vmatpush1.bf16.msra.mxu0 %v598
      %802 = vmatprep.subr.bf16.mxu0 %v607
      %803 = vmatpush1.bf16.msra.mxu0 %v606
      %804 = vmatprep.subr.bf16.mxu0 %v615
      %805 = vmatpush1.bf16.msra.mxu0 %v614
      %806 = vmatprep.subr.bf16.mxu0 %v623
      %807 = vmatpush1.bf16.msra.mxu0 %v622
      %808 = vmatprep.subr.bf16.mxu0 %v631
      %809 = vmatpush1.bf16.msra.mxu0 %v630
      %810 = vmatprep.subr.bf16.mxu0 %v639
      %811 = vmatpush1.bf16.msra.mxu0 %v638
      %812 = vmatprep.subr.bf16.mxu0 %v647
      %813 = vmatpush1.bf16.msra.mxu0 %v646
      %814 = vmatprep.subr.bf16.mxu0 0
      %815 = vmatpush1.bf16.msra.mxu0 0
      %816 = vmatprep.subr.bf16.mxu0 0
      %817 = vmatpush1.bf16.msra.mxu0 0
      %818 = vmatprep.subr.bf16.mxu0 0
      %819 = vmatpush1.bf16.msra.mxu0 0
      %820 = vmatprep.subr.bf16.mxu0 0
      %821 = vmatpush1.bf16.msra.mxu0 0
      %822 = vmatprep.subr.bf16.mxu0 0
      %823 = vmatpush1.bf16.msra.mxu0 0
      %824 = vmatprep.subr.bf16.mxu0 0
      %825 = vmatpush1.bf16.msra.mxu0 0
      %826 = vmatprep.subr.bf16.mxu0 0
      %827 = vmatpush1.bf16.msra.mxu0 0
      %828 = vmatprep.subr.bf16.mxu0 0
      %829 = vmatpush1.bf16.msra.mxu0 0
      %830 = vmatprep.mubr.bf16.mxu0 0
      %831 = vmatmul.mubr.bf16.gmra.mrb[0].mxu0 %v330
      %v832 = vpop.f32.mrb[0].mxu0
      %v833 = vadd.f32 %v728, %v832
      %v834 = vpop.f32.mrb[0].mxu0
      %v835 = vadd.f32 %v732, %v834
      %v836 = vpop.f32.mrb[0].mxu0
      %v837 = vpop.f32.mrb[0].mxu0
      %838 = vdwg.mxu0
      %839 = vmatprep.subr.bf16.mxu0 %v593
      %840 = vmatpush1.bf16.msra.mxu0 %v592
      %841 = vmatprep.subr.bf16.mxu0 %v601
      %842 = vmatpush1.bf16.msra.mxu0 %v600
      %843 = vmatprep.subr.bf16.mxu0 %v609
      %844 = vmatpush1.bf16.msra.mxu0 %v608
      %845 = vmatprep.subr.bf16.mxu0 %v617
      %846 = vmatpush1.bf16.msra.mxu0 %v616
      %847 = vmatprep.subr.bf16.mxu0 %v625
      %848 = vmatpush1.bf16.msra.mxu0 %v624
      %849 = vmatprep.subr.bf16.mxu0 %v633
      %850 = vmatpush1.bf16.msra.mxu0 %v632
      %851 = vmatprep.subr.bf16.mxu0 %v641
      %852 = vmatpush1.bf16.msra.mxu0 %v640
      %853 = vmatprep.subr.bf16.mxu0 %v649
      %854 = vmatpush1.bf16.msra.mxu0 %v648
      %855 = vmatprep.subr.bf16.mxu0 0
      %856 = vmatpush1.bf16.msra.mxu0 0
      %857 = vmatprep.subr.bf16.mxu0 0
      %858 = vmatpush1.bf16.msra.mxu0 0
      %859 = vmatprep.subr.bf16.mxu0 0
      %860 = vmatpush1.bf16.msra.mxu0 0
      %861 = vmatprep.subr.bf16.mxu0 0
      %862 = vmatpush1.bf16.msra.mxu0 0
      %863 = vmatprep.subr.bf16.mxu0 0
      %864 = vmatpush1.bf16.msra.mxu0 0
      %865 = vmatprep.subr.bf16.mxu0 0
      %866 = vmatpush1.bf16.msra.mxu0 0
      %867 = vmatprep.subr.bf16.mxu0 0
      %868 = vmatpush1.bf16.msra.mxu0 0
      %869 = vmatprep.subr.bf16.mxu0 0
      %870 = vmatpush1.bf16.msra.mxu0 0
      %871 = vmatprep.mubr.bf16.mxu0 0
      %872 = vmatmul.mubr.bf16.gmra.mrb[0].mxu0 %v330
      %v873 = vpop.f32.mrb[0].mxu0
      %v874 = vadd.f32 %v736, %v873
      %v875 = vpop.f32.mrb[0].mxu0
      %v876 = vadd.f32 %v740, %v875
      %v877 = vpop.f32.mrb[0].mxu0
      %v878 = vpop.f32.mrb[0].mxu0
      %879 = vdwg.mxu0
      %880 = vmatprep.subr.bf16.mxu0 %v595
      %881 = vmatpush1.bf16.msra.mxu0 %v594
      %882 = vmatprep.subr.bf16.mxu0 %v603
      %883 = vmatpush1.bf16.msra.mxu0 %v602
      %884 = vmatprep.subr.bf16.mxu0 %v611
      %885 = vmatpush1.bf16.msra.mxu0 %v610
      %886 = vmatprep.subr.bf16.mxu0 %v619
      %887 = vmatpush1.bf16.msra.mxu0 %v618
      %888 = vmatprep.subr.bf16.mxu0 %v627
      %889 = vmatpush1.bf16.msra.mxu0 %v626
      %890 = vmatprep.subr.bf16.mxu0 %v635
      %891 = vmatpush1.bf16.msra.mxu0 %v634
      %892 = vmatprep.subr.bf16.mxu0 %v643
      %893 = vmatpush1.bf16.msra.mxu0 %v642
      %894 = vmatprep.subr.bf16.mxu0 %v651
      %895 = vmatpush1.bf16.msra.mxu0 %v650
      %896 = vmatprep.subr.bf16.mxu0 0
      %897 = vmatpush1.bf16.msra.mxu0 0
      %898 = vmatprep.subr.bf16.mxu0 0
      %899 = vmatpush1.bf16.msra.mxu0 0
      %900 = vmatprep.subr.bf16.mxu0 0
      %901 = vmatpush1.bf16.msra.mxu0 0
      %902 = vmatprep.subr.bf16.mxu0 0
      %903 = vmatpush1.bf16.msra.mxu0 0
      %904 = vmatprep.subr.bf16.mxu0 0
      %905 = vmatpush1.bf16.msra.mxu0 0
      %906 = vmatprep.subr.bf16.mxu0 0
      %907 = vmatpush1.bf16.msra.mxu0 0
      %908 = vmatprep.subr.bf16.mxu0 0
      %909 = vmatpush1.bf16.msra.mxu0 0
      %910 = vmatprep.subr.bf16.mxu0 0
      %911 = vmatpush1.bf16.msra.mxu0 0
      %912 = vmatprep.mubr.bf16.mxu0 0
      %913 = vmatmul.mubr.bf16.gmra.mrb[0].mxu0 %v330
      %v914 = vpop.f32.mrb[0].mxu0
      %v915 = vadd.f32 %v744, %v914
      %v916 = vpop.f32.mrb[0].mxu0
      %v917 = vadd.f32 %v748, %v916
      %v918 = vpop.f32.mrb[0].mxu0
      %v919 = vpop.f32.mrb[0].mxu0
      %920 = vdwg.mxu0
      %v921 = vmax.f32 %v792, 0.0
      %v922 = vmax.f32 %v794, 0.0
      %v923 = vmax.f32 %v833, 0.0
      %v924 = vmax.f32 %v835, 0.0
      %v925 = vmax.f32 %v874, 0.0
      %v926 = vmax.f32 %v876, 0.0
      %v927 = vmax.f32 %v915, 0.0
      %v928 = vmax.f32 %v917, 0.0
      %929 = vst [vmem:[#allocation2] sm:$0xff] 0.0
      %930 = vst [vmem:[#allocation2 + $0x8] sm:$0xff] 0.0
      %931 = vst [vmem:[#allocation2 + $0x10] sm:$0xff] 0.0
      %932 = vst [vmem:[#allocation2 + $0x18] sm:$0xff] 0.0
      %933 = vst [vmem:[#allocation2 + $0x20] sm:$0xff] 0.0
      %934 = vst [vmem:[#allocation2 + $0x28] sm:$0xff] 0.0
      %935 = vst [vmem:[#allocation2 + $0x30] sm:$0xf] 0.0
      %936 = vst [vmem:[#allocation2 + $0x38] sm:$0xf] 0.0
      %937 = vst [vmem:[#allocation2 + $0x40] sm:$0xf] 0.0
      %938 = vst [vmem:[#allocation2 + $0x48] sm:$0xf] 0.0
      %939 = vst [vmem:[#allocation2 + $0x50] sm:$0xf] 0.0
      %940 = vst [vmem:[#allocation2 + $0x58] sm:$0xf] 0.0
      %v943 = vcombine.low %v921, %v922
      %v945 = vunpack.c.l.s4 1966171168
      %v946 = vunpack.c.0.s8 %v945
      %v947 = vlaneseq
      %v948 = vshrl.u32 %v947, 7
      %v949 = vsub.s32 %v946, %v948
      %v950 = vrot.slane %v943, %v949
      %v952 = vunpack.c.l.s4 1966171168
      %v953 = vunpack.c.0.s8 %v952
      %v954 = vlaneseq
      %v955 = vshrl.u32 %v954, 7
      %v956 = vsub.s32 %v953, %v955
      %v957 = vrot.slane %v950, %v956
      %v959 = vlaneseq
      %vm960 = vcmp.ge.s32.totalorder %v959, 0
      %vm961 = vcmp.lt.s32.totalorder %v959, 256
      %vm962 = vmand %vm960, %vm961
      %s963 = scalar_lea.vmem [#allocation2], 20
      %964 = vst.msk [vmem:[%s963] ss:$8 sm:$0x3] %vm962, %v957
      %965 = vst.msk [vmem:[%s963] ss:$8 sm:$0x0] %vm962, %v957
      %v968 = vcombine.low %v923, %v924
      %v970 = vunpack.c.l.s4 1966171168
      %v971 = vunpack.c.0.s8 %v970
      %v972 = vlaneseq
      %v973 = vshrl.u32 %v972, 7
      %v974 = vsub.s32 %v971, %v973
      %v975 = vrot.slane %v968, %v974
      %v977 = vunpack.c.l.s4 1966171168
      %v978 = vunpack.c.0.s8 %v977
      %v979 = vlaneseq
      %v980 = vshrl.u32 %v979, 7
      %v981 = vsub.s32 %v978, %v980
      %v982 = vrot.slane %v975, %v981
      %s984 = scalar_lea.vmem [#allocation2], 21
      %985 = vst.msk [vmem:[%s984] ss:$8 sm:$0x3] %vm962, %v982
      %986 = vst.msk [vmem:[%s984] ss:$8 sm:$0x0] %vm962, %v982
      %v989 = vcombine.low %v925, %v926
      %v991 = vunpack.c.l.s4 1966171168
      %v992 = vunpack.c.0.s8 %v991
      %v993 = vlaneseq
      %v994 = vshrl.u32 %v993, 7
      %v995 = vsub.s32 %v992, %v994
      %v996 = vrot.slane %v989, %v995
      %v998 = vunpack.c.l.s4 1966171168
      %v999 = vunpack.c.0.s8 %v998
      %v1000 = vlaneseq
      %v1001 = vshrl.u32 %v1000, 7
      %v1002 = vsub.s32 %v999, %v1001
      %v1003 = vrot.slane %v996, %v1002
      %s1005 = scalar_lea.vmem [#allocation2], 22
      %1006 = vst.msk [vmem:[%s1005] ss:$8 sm:$0x3] %vm962, %v1003
      %1007 = vst.msk [vmem:[%s1005] ss:$8 sm:$0x0] %vm962, %v1003
      %v1010 = vcombine.low %v927, %v928
      %v1012 = vunpack.c.l.s4 1966171168
      %v1013 = vunpack.c.0.s8 %v1012
      %v1014 = vlaneseq
      %v1015 = vshrl.u32 %v1014, 7
      %v1016 = vsub.s32 %v1013, %v1015
      %v1017 = vrot.slane %v1010, %v1016
      %v1019 = vunpack.c.l.s4 1966171168
      %v1020 = vunpack.c.0.s8 %v1019
      %v1021 = vlaneseq
      %v1022 = vshrl.u32 %v1021, 7
      %v1023 = vsub.s32 %v1020, %v1022
      %v1024 = vrot.slane %v1017, %v1023
      %s1026 = scalar_lea.vmem [#allocation2], 23
      %1027 = vst.msk [vmem:[%s1026] ss:$8 sm:$0x3] %vm962, %v1024
      %1028 = vst.msk [vmem:[%s1026] ss:$8 sm:$0x0] %vm962, %v1024
      %v1029 = vld [vmem:[#allocation2] sm:$0xff]
      %v1030 = vld [vmem:[#allocation2 + $0x8] sm:$0xff]
      %v1031 = vld [vmem:[#allocation2 + $0x10] sm:$0xff]
      %v1032 = vld [vmem:[#allocation2 + $0x18] sm:$0xff]
      %v1033 = vld [vmem:[#allocation2 + $0x20] sm:$0xff]
      %v1034 = vld [vmem:[#allocation2 + $0x28] sm:$0xff]
      %v1035 = vpack.c.bf16 %v1029, %v1029
      %v1036 = vpack.c.bf16 %v1030, %v1030
      %v1037 = vpack.c.bf16 %v1031, %v1031
      %v1038 = vpack.c.bf16 %v1032, %v1032
      %v1039 = vpack.c.bf16 %v1033, %v1033
      %v1040 = vpack.c.bf16 %v1034, %v1034
      %v1041 = vld [vmem:[%s3] sm:$0xff]
      %v1042 = vld [vmem:[%s3 + $0x8] sm:$0xff]
      %v1043 = vld [vmem:[%s3 + $0x10] sm:$0xff]
      %v1044 = vld [vmem:[%s3 + $0x18] sm:$0xff]
      %v1045 = vld [vmem:[%s3 + $0x20] sm:$0xff]
      %v1046 = vld [vmem:[%s3 + $0x28] sm:$0xff]
      %v1047 = vld [vmem:[%s3 + $0x30] sm:$0xff]
      %v1048 = vld [vmem:[%s3 + $0x38] sm:$0xff]
      %v1049 = vld [vmem:[%s3 + $0x40] sm:$0xff]
      %v1050 = vld [vmem:[%s3 + $0x48] sm:$0xff]
      %v1051 = vld [vmem:[%s3 + $0x50] sm:$0xff]
      %v1052 = vld [vmem:[%s3 + $0x58] sm:$0xff]
      %v1053 = vld [vmem:[%s3 + $0x60] sm:$0xff]
      %v1054 = vld [vmem:[%s3 + $0x68] sm:$0xff]
      %v1055 = vld [vmem:[%s3 + $0x70] sm:$0xff]
      %v1056 = vld [vmem:[%s3 + $0x78] sm:$0xff]
      %v1057 = vld [vmem:[%s3 + $0x80] sm:$0xff]
      %v1058 = vld [vmem:[%s3 + $0x88] sm:$0xff]
      %v1059 = vld [vmem:[%s3 + $0x90] sm:$0xff]
      %v1060 = vld [vmem:[%s3 + $0x98] sm:$0xff]
      %v1061 = vld [vmem:[%s3 + $0xa0] sm:$0xff]
      %v1062 = vld [vmem:[%s3 + $0xa8] sm:$0xff]
      %v1063 = vld [vmem:[%s3 + $0xb0] sm:$0xff]
      %v1064 = vld [vmem:[%s3 + $0xb8] sm:$0xff]
      %v1065 = vld [vmem:[%s3 + $0xc0] sm:$0xff]
      %v1066 = vld [vmem:[%s3 + $0xc8] sm:$0xff]
      %v1067 = vld [vmem:[%s3 + $0xd0] sm:$0xff]
      %v1068 = vld [vmem:[%s3 + $0xd8] sm:$0xff]
      %v1069 = vld [vmem:[%s3 + $0xe0] sm:$0xff]
      %v1070 = vld [vmem:[%s3 + $0xe8] sm:$0xff]
      %v1071 = vld [vmem:[%s3 + $0xf0] sm:$0xff]
      %v1072 = vld [vmem:[%s3 + $0xf8] sm:$0xff]
      %v1073 = vld [vmem:[%s3 + $0x100] sm:$0xff]
      %v1074 = vld [vmem:[%s3 + $0x108] sm:$0xff]
      %v1075 = vld [vmem:[%s3 + $0x110] sm:$0xff]
      %v1076 = vld [vmem:[%s3 + $0x118] sm:$0xff]
      %v1077 = vld [vmem:[%s3 + $0x120] sm:$0xff]
      %v1078 = vld [vmem:[%s3 + $0x128] sm:$0xff]
      %v1079 = vld [vmem:[%s3 + $0x130] sm:$0xff]
      %v1080 = vld [vmem:[%s3 + $0x138] sm:$0xff]
      %v1081 = vld [vmem:[%s3 + $0x140] sm:$0xff]
      %v1082 = vld [vmem:[%s3 + $0x148] sm:$0xff]
      %v1083 = vld [vmem:[%s3 + $0x150] sm:$0xff]
      %v1084 = vld [vmem:[%s3 + $0x158] sm:$0xff]
      %v1085 = vld [vmem:[%s3 + $0x160] sm:$0xff]
      %v1086 = vld [vmem:[%s3 + $0x168] sm:$0xff]
      %v1087 = vld [vmem:[%s3 + $0x170] sm:$0xff]
      %v1088 = vld [vmem:[%s3 + $0x178] sm:$0xff]
      %v1089 = vld [vmem:[%s3 + $0x180] sm:$0xff]
      %v1090 = vld [vmem:[%s3 + $0x188] sm:$0xff]
      %v1091 = vld [vmem:[%s3 + $0x190] sm:$0xff]
      %v1092 = vld [vmem:[%s3 + $0x198] sm:$0xff]
      %v1093 = vld [vmem:[%s3 + $0x1a0] sm:$0xff]
      %v1094 = vld [vmem:[%s3 + $0x1a8] sm:$0xff]
      %v1095 = vld [vmem:[%s3 + $0x1b0] sm:$0xff]
      %v1096 = vld [vmem:[%s3 + $0x1b8] sm:$0xff]
      %v1097 = vld [vmem:[%s3 + $0x1c0] sm:$0xff]
      %v1098 = vld [vmem:[%s3 + $0x1c8] sm:$0xff]
      %v1099 = vld [vmem:[%s3 + $0x1d0] sm:$0xff]
      %v1100 = vld [vmem:[%s3 + $0x1d8] sm:$0xff]
      %v1101 = vld [vmem:[%s3 + $0x1e0] sm:$0xff]
      %v1102 = vld [vmem:[%s3 + $0x1e8] sm:$0xff]
      %v1103 = vld [vmem:[%s3 + $0x1f0] sm:$0xff]
      %v1104 = vld [vmem:[%s3 + $0x1f8] sm:$0xff]
      %v1105 = vld [vmem:[%s3 + $0x200] sm:$0xff]
      %v1106 = vld [vmem:[%s3 + $0x208] sm:$0xff]
      %v1107 = vld [vmem:[%s3 + $0x210] sm:$0xff]
      %v1108 = vld [vmem:[%s3 + $0x218] sm:$0xff]
      %v1109 = vld [vmem:[%s3 + $0x220] sm:$0xff]
      %v1110 = vld [vmem:[%s3 + $0x228] sm:$0xff]
      %v1111 = vld [vmem:[%s3 + $0x230] sm:$0xff]
      %v1112 = vld [vmem:[%s3 + $0x238] sm:$0xff]
      %v1113 = vld [vmem:[%s3 + $0x240] sm:$0xff]
      %v1114 = vld [vmem:[%s3 + $0x248] sm:$0xff]
      %v1115 = vld [vmem:[%s3 + $0x250] sm:$0xff]
      %v1116 = vld [vmem:[%s3 + $0x258] sm:$0xff]
      %v1117 = vld [vmem:[%s3 + $0x260] sm:$0xff]
      %v1118 = vld [vmem:[%s3 + $0x268] sm:$0xff]
      %v1119 = vld [vmem:[%s3 + $0x270] sm:$0xff]
      %v1120 = vld [vmem:[%s3 + $0x278] sm:$0xff]
      %v1121 = vld [vmem:[%s3 + $0x280] sm:$0xff]
      %v1122 = vld [vmem:[%s3 + $0x288] sm:$0xff]
      %v1123 = vld [vmem:[%s3 + $0x290] sm:$0xff]
      %v1124 = vld [vmem:[%s3 + $0x298] sm:$0xff]
      %v1125 = vld [vmem:[%s3 + $0x2a0] sm:$0xff]
      %v1126 = vld [vmem:[%s3 + $0x2a8] sm:$0xff]
      %v1127 = vld [vmem:[%s3 + $0x2b0] sm:$0xff]
      %v1128 = vld [vmem:[%s3 + $0x2b8] sm:$0xff]
      %v1129 = vld [vmem:[%s3 + $0x2c0] sm:$0xff]
      %v1130 = vld [vmem:[%s3 + $0x2c8] sm:$0xff]
      %v1131 = vld [vmem:[%s3 + $0x2d0] sm:$0xff]
      %v1132 = vld [vmem:[%s3 + $0x2d8] sm:$0xff]
      %v1133 = vld [vmem:[%s3 + $0x2e0] sm:$0xff]
      %v1134 = vld [vmem:[%s3 + $0x2e8] sm:$0xff]
      %v1135 = vld [vmem:[%s3 + $0x2f0] sm:$0xff]
      %v1136 = vld [vmem:[%s3 + $0x2f8] sm:$0xff]
      %v1137 = vld [vmem:[#allocation2] sm:$0xfe]
      %v1138 = vld [vmem:[#allocation2 + $0x8] sm:$0xfe]
      %v1139 = vld [vmem:[#allocation2 + $0x10] sm:$0xfe]
      %v1140 = vld [vmem:[#allocation2 + $0x18] sm:$0xfe]
      %v1141 = vld [vmem:[#allocation2 + $0x20] sm:$0xfe]
      %v1142 = vld [vmem:[#allocation2 + $0x28] sm:$0xfe]
      %v1143 = vld [vmem:[#allocation2 + $0x30] sm:$0x1]
      %v1144 = vld [vmem:[#allocation2 + $0x38] sm:$0x1]
      %v1145 = vld [vmem:[#allocation2 + $0x40] sm:$0x1]
      %v1146 = vld [vmem:[#allocation2 + $0x48] sm:$0x1]
      %v1147 = vld [vmem:[#allocation2 + $0x50] sm:$0x1]
      %v1148 = vld [vmem:[#allocation2 + $0x58] sm:$0x1]
      %v1149 = vpack.c.bf16 %v1143, %v1137
      %v1150 = vpack.c.bf16 %v1144, %v1138
      %v1151 = vpack.c.bf16 %v1145, %v1139
      %v1152 = vpack.c.bf16 %v1146, %v1140
      %v1153 = vpack.c.bf16 %v1147, %v1141
      %v1154 = vpack.c.bf16 %v1148, %v1142
      %s1155 = scalar_lea.vmem %s3, 768
      %v1156 = vld [vmem:[%s1155] sm:$0xff]
      %v1157 = vld [vmem:[%s1155 + $0x8] sm:$0xff]
      %v1158 = vld [vmem:[%s1155 + $0x10] sm:$0xff]
      %v1159 = vld [vmem:[%s1155 + $0x18] sm:$0xff]
      %v1160 = vld [vmem:[%s1155 + $0x20] sm:$0xff]
      %v1161 = vld [vmem:[%s1155 + $0x28] sm:$0xff]
      %v1162 = vld [vmem:[%s1155 + $0x30] sm:$0xff]
      %v1163 = vld [vmem:[%s1155 + $0x38] sm:$0xff]
      %v1164 = vld [vmem:[%s1155 + $0x40] sm:$0xff]
      %v1165 = vld [vmem:[%s1155 + $0x48] sm:$0xff]
      %v1166 = vld [vmem:[%s1155 + $0x50] sm:$0xff]
      %v1167 = vld [vmem:[%s1155 + $0x58] sm:$0xff]
      %v1168 = vld [vmem:[%s1155 + $0x60] sm:$0xff]
      %v1169 = vld [vmem:[%s1155 + $0x68] sm:$0xff]
      %v1170 = vld [vmem:[%s1155 + $0x70] sm:$0xff]
      %v1171 = vld [vmem:[%s1155 + $0x78] sm:$0xff]
      %v1172 = vld [vmem:[%s1155 + $0x80] sm:$0xff]
      %v1173 = vld [vmem:[%s1155 + $0x88] sm:$0xff]
      %v1174 = vld [vmem:[%s1155 + $0x90] sm:$0xff]
      %v1175 = vld [vmem:[%s1155 + $0x98] sm:$0xff]
      %v1176 = vld [vmem:[%s1155 + $0xa0] sm:$0xff]
      %v1177 = vld [vmem:[%s1155 + $0xa8] sm:$0xff]
      %v1178 = vld [vmem:[%s1155 + $0xb0] sm:$0xff]
      %v1179 = vld [vmem:[%s1155 + $0xb8] sm:$0xff]
      %v1180 = vld [vmem:[%s1155 + $0xc0] sm:$0xff]
      %v1181 = vld [vmem:[%s1155 + $0xc8] sm:$0xff]
      %v1182 = vld [vmem:[%s1155 + $0xd0] sm:$0xff]
      %v1183 = vld [vmem:[%s1155 + $0xd8] sm:$0xff]
      %v1184 = vld [vmem:[%s1155 + $0xe0] sm:$0xff]
      %v1185 = vld [vmem:[%s1155 + $0xe8] sm:$0xff]
      %v1186 = vld [vmem:[%s1155 + $0xf0] sm:$0xff]
      %v1187 = vld [vmem:[%s1155 + $0xf8] sm:$0xff]
      %v1188 = vld [vmem:[%s1155 + $0x100] sm:$0xff]
      %v1189 = vld [vmem:[%s1155 + $0x108] sm:$0xff]
      %v1190 = vld [vmem:[%s1155 + $0x110] sm:$0xff]
      %v1191 = vld [vmem:[%s1155 + $0x118] sm:$0xff]
      %v1192 = vld [vmem:[%s1155 + $0x120] sm:$0xff]
      %v1193 = vld [vmem:[%s1155 + $0x128] sm:$0xff]
      %v1194 = vld [vmem:[%s1155 + $0x130] sm:$0xff]
      %v1195 = vld [vmem:[%s1155 + $0x138] sm:$0xff]
      %v1196 = vld [vmem:[%s1155 + $0x140] sm:$0xff]
      %v1197 = vld [vmem:[%s1155 + $0x148] sm:$0xff]
      %v1198 = vld [vmem:[%s1155 + $0x150] sm:$0xff]
      %v1199 = vld [vmem:[%s1155 + $0x158] sm:$0xff]
      %v1200 = vld [vmem:[%s1155 + $0x160] sm:$0xff]
      %v1201 = vld [vmem:[%s1155 + $0x168] sm:$0xff]
      %v1202 = vld [vmem:[%s1155 + $0x170] sm:$0xff]
      %v1203 = vld [vmem:[%s1155 + $0x178] sm:$0xff]
      %v1204 = vld [vmem:[%s1155 + $0x180] sm:$0xff]
      %v1205 = vld [vmem:[%s1155 + $0x188] sm:$0xff]
      %v1206 = vld [vmem:[%s1155 + $0x190] sm:$0xff]
      %v1207 = vld [vmem:[%s1155 + $0x198] sm:$0xff]
      %v1208 = vld [vmem:[%s1155 + $0x1a0] sm:$0xff]
      %v1209 = vld [vmem:[%s1155 + $0x1a8] sm:$0xff]
      %v1210 = vld [vmem:[%s1155 + $0x1b0] sm:$0xff]
      %v1211 = vld [vmem:[%s1155 + $0x1b8] sm:$0xff]
      %v1212 = vld [vmem:[%s1155 + $0x1c0] sm:$0xff]
      %v1213 = vld [vmem:[%s1155 + $0x1c8] sm:$0xff]
      %v1214 = vld [vmem:[%s1155 + $0x1d0] sm:$0xff]
      %v1215 = vld [vmem:[%s1155 + $0x1d8] sm:$0xff]
      %v1216 = vld [vmem:[%s1155 + $0x1e0] sm:$0xff]
      %v1217 = vld [vmem:[%s1155 + $0x1e8] sm:$0xff]
      %v1218 = vld [vmem:[%s1155 + $0x1f0] sm:$0xff]
      %v1219 = vld [vmem:[%s1155 + $0x1f8] sm:$0xff]
      %v1220 = vld [vmem:[%s1155 + $0x200] sm:$0xff]
      %v1221 = vld [vmem:[%s1155 + $0x208] sm:$0xff]
      %v1222 = vld [vmem:[%s1155 + $0x210] sm:$0xff]
      %v1223 = vld [vmem:[%s1155 + $0x218] sm:$0xff]
      %v1224 = vld [vmem:[%s1155 + $0x220] sm:$0xff]
      %v1225 = vld [vmem:[%s1155 + $0x228] sm:$0xff]
      %v1226 = vld [vmem:[%s1155 + $0x230] sm:$0xff]
      %v1227 = vld [vmem:[%s1155 + $0x238] sm:$0xff]
      %v1228 = vld [vmem:[%s1155 + $0x240] sm:$0xff]
      %v1229 = vld [vmem:[%s1155 + $0x248] sm:$0xff]
      %v1230 = vld [vmem:[%s1155 + $0x250] sm:$0xff]
      %v1231 = vld [vmem:[%s1155 + $0x258] sm:$0xff]
      %v1232 = vld [vmem:[%s1155 + $0x260] sm:$0xff]
      %v1233 = vld [vmem:[%s1155 + $0x268] sm:$0xff]
      %v1234 = vld [vmem:[%s1155 + $0x270] sm:$0xff]
      %v1235 = vld [vmem:[%s1155 + $0x278] sm:$0xff]
      %v1236 = vld [vmem:[%s1155 + $0x280] sm:$0xff]
      %v1237 = vld [vmem:[%s1155 + $0x288] sm:$0xff]
      %v1238 = vld [vmem:[%s1155 + $0x290] sm:$0xff]
      %v1239 = vld [vmem:[%s1155 + $0x298] sm:$0xff]
      %v1240 = vld [vmem:[%s1155 + $0x2a0] sm:$0xff]
      %v1241 = vld [vmem:[%s1155 + $0x2a8] sm:$0xff]
      %v1242 = vld [vmem:[%s1155 + $0x2b0] sm:$0xff]
      %v1243 = vld [vmem:[%s1155 + $0x2b8] sm:$0xff]
      %v1244 = vld [vmem:[%s1155 + $0x2c0] sm:$0xff]
      %v1245 = vld [vmem:[%s1155 + $0x2c8] sm:$0xff]
      %v1246 = vld [vmem:[%s1155 + $0x2d0] sm:$0xff]
      %v1247 = vld [vmem:[%s1155 + $0x2d8] sm:$0xff]
      %v1248 = vld [vmem:[%s1155 + $0x2e0] sm:$0xff]
      %v1249 = vld [vmem:[%s1155 + $0x2e8] sm:$0xff]
      %v1250 = vld [vmem:[%s1155 + $0x2f0] sm:$0xff]
      %v1251 = vld [vmem:[%s1155 + $0x2f8] sm:$0xff]
      %v1253 = vshrl.u32 %v1149, 16
      %v1255 = vshll.u32 %v1149, 16
      %v1257 = vrot.slane %v1255, 1
      %v1258 = vor.u32 %v1253, %v1257
      %v1260 = vshrl.u32 %v1150, 16
      %v1262 = vshll.u32 %v1150, 16
      %v1264 = vrot.slane %v1262, 1
      %v1265 = vor.u32 %v1260, %v1264
      %v1267 = vshrl.u32 %v1151, 16
      %v1269 = vshll.u32 %v1151, 16
      %v1271 = vrot.slane %v1269, 1
      %v1272 = vor.u32 %v1267, %v1271
      %v1274 = vshrl.u32 %v1152, 16
      %v1276 = vshll.u32 %v1152, 16
      %v1278 = vrot.slane %v1276, 1
      %v1279 = vor.u32 %v1274, %v1278
      %v1281 = vshrl.u32 %v1153, 16
      %v1283 = vshll.u32 %v1153, 16
      %v1285 = vrot.slane %v1283, 1
      %v1286 = vor.u32 %v1281, %v1285
      %v1288 = vshrl.u32 %v1154, 16
      %v1290 = vshll.u32 %v1154, 16
      %v1292 = vrot.slane %v1290, 1
      %v1293 = vor.u32 %v1288, %v1292
      %v1396 = vunpack.c.l.b16 %v1156
      %v1397 = vunpack.c.h.b16 %v1156
      %v1398 = vunpack.c.l.b16 %v1157
      %v1399 = vunpack.c.h.b16 %v1157
      %v1400 = vunpack.c.l.b16 %v1158
      %v1401 = vunpack.c.h.b16 %v1158
      %v1402 = vunpack.c.l.b16 %v1159
      %v1403 = vunpack.c.h.b16 %v1159
      %v1404 = vunpack.c.l.b16 %v1160
      %v1405 = vunpack.c.h.b16 %v1160
      %v1406 = vunpack.c.l.b16 %v1161
      %v1407 = vunpack.c.h.b16 %v1161
      %v1408 = vunpack.c.l.b16 %v1162
      %v1409 = vunpack.c.h.b16 %v1162
      %v1410 = vunpack.c.l.b16 %v1163
      %v1411 = vunpack.c.h.b16 %v1163
      %v1412 = vunpack.c.l.b16 %v1164
      %v1413 = vunpack.c.h.b16 %v1164
      %v1414 = vunpack.c.l.b16 %v1165
      %v1415 = vunpack.c.h.b16 %v1165
      %v1416 = vunpack.c.l.b16 %v1166
      %v1417 = vunpack.c.h.b16 %v1166
      %v1418 = vunpack.c.l.b16 %v1167
      %v1419 = vunpack.c.h.b16 %v1167
      %v1420 = vunpack.c.l.b16 %v1168
      %v1421 = vunpack.c.h.b16 %v1168
      %v1422 = vunpack.c.l.b16 %v1169
      %v1423 = vunpack.c.h.b16 %v1169
      %v1424 = vunpack.c.l.b16 %v1170
      %v1425 = vunpack.c.h.b16 %v1170
      %v1426 = vunpack.c.l.b16 %v1171
      %v1427 = vunpack.c.h.b16 %v1171
      %v1428 = vunpack.c.l.b16 %v1172
      %v1429 = vunpack.c.h.b16 %v1172
      %v1430 = vunpack.c.l.b16 %v1173
      %v1431 = vunpack.c.h.b16 %v1173
      %v1432 = vunpack.c.l.b16 %v1174
      %v1433 = vunpack.c.h.b16 %v1174
      %v1434 = vunpack.c.l.b16 %v1175
      %v1435 = vunpack.c.h.b16 %v1175
      %v1436 = vunpack.c.l.b16 %v1176
      %v1437 = vunpack.c.h.b16 %v1176
      %v1438 = vunpack.c.l.b16 %v1177
      %v1439 = vunpack.c.h.b16 %v1177
      %v1440 = vunpack.c.l.b16 %v1178
      %v1441 = vunpack.c.h.b16 %v1178
      %v1442 = vunpack.c.l.b16 %v1179
      %v1443 = vunpack.c.h.b16 %v1179
      %v1444 = vunpack.c.l.b16 %v1180
      %v1445 = vunpack.c.h.b16 %v1180
      %v1446 = vunpack.c.l.b16 %v1181
      %v1447 = vunpack.c.h.b16 %v1181
      %v1448 = vunpack.c.l.b16 %v1182
      %v1449 = vunpack.c.h.b16 %v1182
      %v1450 = vunpack.c.l.b16 %v1183
      %v1451 = vunpack.c.h.b16 %v1183
      %v1452 = vunpack.c.l.b16 %v1184
      %v1453 = vunpack.c.h.b16 %v1184
      %v1454 = vunpack.c.l.b16 %v1185
      %v1455 = vunpack.c.h.b16 %v1185
      %v1456 = vunpack.c.l.b16 %v1186
      %v1457 = vunpack.c.h.b16 %v1186
      %v1458 = vunpack.c.l.b16 %v1187
      %v1459 = vunpack.c.h.b16 %v1187
      %v1460 = vunpack.c.l.b16 %v1188
      %v1461 = vunpack.c.h.b16 %v1188
      %v1462 = vunpack.c.l.b16 %v1189
      %v1463 = vunpack.c.h.b16 %v1189
      %v1464 = vunpack.c.l.b16 %v1190
      %v1465 = vunpack.c.h.b16 %v1190
      %v1466 = vunpack.c.l.b16 %v1191
      %v1467 = vunpack.c.h.b16 %v1191
      %v1468 = vunpack.c.l.b16 %v1192
      %v1469 = vunpack.c.h.b16 %v1192
      %v1470 = vunpack.c.l.b16 %v1193
      %v1471 = vunpack.c.h.b16 %v1193
      %v1472 = vunpack.c.l.b16 %v1194
      %v1473 = vunpack.c.h.b16 %v1194
      %v1474 = vunpack.c.l.b16 %v1195
      %v1475 = vunpack.c.h.b16 %v1195
      %v1476 = vunpack.c.l.b16 %v1196
      %v1477 = vunpack.c.h.b16 %v1196
      %v1478 = vunpack.c.l.b16 %v1197
      %v1479 = vunpack.c.h.b16 %v1197
      %v1480 = vunpack.c.l.b16 %v1198
      %v1481 = vunpack.c.h.b16 %v1198
      %v1482 = vunpack.c.l.b16 %v1199
      %v1483 = vunpack.c.h.b16 %v1199
      %v1484 = vunpack.c.l.b16 %v1200
      %v1485 = vunpack.c.h.b16 %v1200
      %v1486 = vunpack.c.l.b16 %v1201
      %v1487 = vunpack.c.h.b16 %v1201
      %v1488 = vunpack.c.l.b16 %v1202
      %v1489 = vunpack.c.h.b16 %v1202
      %v1490 = vunpack.c.l.b16 %v1203
      %v1491 = vunpack.c.h.b16 %v1203
      %v1492 = vunpack.c.l.b16 %v1204
      %v1493 = vunpack.c.h.b16 %v1204
      %v1494 = vunpack.c.l.b16 %v1205
      %v1495 = vunpack.c.h.b16 %v1205
      %v1496 = vunpack.c.l.b16 %v1206
      %v1497 = vunpack.c.h.b16 %v1206
      %v1498 = vunpack.c.l.b16 %v1207
      %v1499 = vunpack.c.h.b16 %v1207
      %v1500 = vunpack.c.l.b16 %v1208
      %v1501 = vunpack.c.h.b16 %v1208
      %v1502 = vunpack.c.l.b16 %v1209
      %v1503 = vunpack.c.h.b16 %v1209
      %v1504 = vunpack.c.l.b16 %v1210
      %v1505 = vunpack.c.h.b16 %v1210
      %v1506 = vunpack.c.l.b16 %v1211
      %v1507 = vunpack.c.h.b16 %v1211
      %v1508 = vunpack.c.l.b16 %v1212
      %v1509 = vunpack.c.h.b16 %v1212
      %v1510 = vunpack.c.l.b16 %v1213
      %v1511 = vunpack.c.h.b16 %v1213
      %v1512 = vunpack.c.l.b16 %v1214
      %v1513 = vunpack.c.h.b16 %v1214
      %v1514 = vunpack.c.l.b16 %v1215
      %v1515 = vunpack.c.h.b16 %v1215
      %v1516 = vunpack.c.l.b16 %v1216
      %v1517 = vunpack.c.h.b16 %v1216
      %v1518 = vunpack.c.l.b16 %v1217
      %v1519 = vunpack.c.h.b16 %v1217
      %v1520 = vunpack.c.l.b16 %v1218
      %v1521 = vunpack.c.h.b16 %v1218
      %v1522 = vunpack.c.l.b16 %v1219
      %v1523 = vunpack.c.h.b16 %v1219
      %v1524 = vunpack.c.l.b16 %v1220
      %v1525 = vunpack.c.h.b16 %v1220
      %v1526 = vunpack.c.l.b16 %v1221
      %v1527 = vunpack.c.h.b16 %v1221
      %v1528 = vunpack.c.l.b16 %v1222
      %v1529 = vunpack.c.h.b16 %v1222
      %v1530 = vunpack.c.l.b16 %v1223
      %v1531 = vunpack.c.h.b16 %v1223
      %v1532 = vunpack.c.l.b16 %v1224
      %v1533 = vunpack.c.h.b16 %v1224
      %v1534 = vunpack.c.l.b16 %v1225
      %v1535 = vunpack.c.h.b16 %v1225
      %v1536 = vunpack.c.l.b16 %v1226
      %v1537 = vunpack.c.h.b16 %v1226
      %v1538 = vunpack.c.l.b16 %v1227
      %v1539 = vunpack.c.h.b16 %v1227
      %v1540 = vunpack.c.l.b16 %v1228
      %v1541 = vunpack.c.h.b16 %v1228
      %v1542 = vunpack.c.l.b16 %v1229
      %v1543 = vunpack.c.h.b16 %v1229
      %v1544 = vunpack.c.l.b16 %v1230
      %v1545 = vunpack.c.h.b16 %v1230
      %v1546 = vunpack.c.l.b16 %v1231
      %v1547 = vunpack.c.h.b16 %v1231
      %v1548 = vunpack.c.l.b16 %v1232
      %v1549 = vunpack.c.h.b16 %v1232
      %v1550 = vunpack.c.l.b16 %v1233
      %v1551 = vunpack.c.h.b16 %v1233
      %v1552 = vunpack.c.l.b16 %v1234
      %v1553 = vunpack.c.h.b16 %v1234
      %v1554 = vunpack.c.l.b16 %v1235
      %v1555 = vunpack.c.h.b16 %v1235
      %v1556 = vunpack.c.l.b16 %v1236
      %v1557 = vunpack.c.h.b16 %v1236
      %v1558 = vunpack.c.l.b16 %v1237
      %v1559 = vunpack.c.h.b16 %v1237
      %v1560 = vunpack.c.l.b16 %v1238
      %v1561 = vunpack.c.h.b16 %v1238
      %v1562 = vunpack.c.l.b16 %v1239
      %v1563 = vunpack.c.h.b16 %v1239
      %v1564 = vunpack.c.l.b16 %v1240
      %v1565 = vunpack.c.h.b16 %v1240
      %v1566 = vunpack.c.l.b16 %v1241
      %v1567 = vunpack.c.h.b16 %v1241
      %v1568 = vunpack.c.l.b16 %v1242
      %v1569 = vunpack.c.h.b16 %v1242
      %v1570 = vunpack.c.l.b16 %v1243
      %v1571 = vunpack.c.h.b16 %v1243
      %v1572 = vunpack.c.l.b16 %v1244
      %v1573 = vunpack.c.h.b16 %v1244
      %v1574 = vunpack.c.l.b16 %v1245
      %v1575 = vunpack.c.h.b16 %v1245
      %v1576 = vunpack.c.l.b16 %v1246
      %v1577 = vunpack.c.h.b16 %v1246
      %v1578 = vunpack.c.l.b16 %v1247
      %v1579 = vunpack.c.h.b16 %v1247
      %v1580 = vunpack.c.l.b16 %v1248
      %v1581 = vunpack.c.h.b16 %v1248
      %v1582 = vunpack.c.l.b16 %v1249
      %v1583 = vunpack.c.h.b16 %v1249
      %v1584 = vunpack.c.l.b16 %v1250
      %v1585 = vunpack.c.h.b16 %v1250
      %v1586 = vunpack.c.l.b16 %v1251
      %v1587 = vunpack.c.h.b16 %v1251
      %v1588 = vpack.c.b16 %v1398, %v1396
      %v1589 = vpack.c.b16 %v1399, %v1397
      %v1590 = vpack.c.b16 %v1402, %v1400
      %v1591 = vpack.c.b16 %v1403, %v1401
      %v1592 = vpack.c.b16 %v1406, %v1404
      %v1593 = vpack.c.b16 %v1407, %v1405
      %v1594 = vpack.c.b16 %v1410, %v1408
      %v1595 = vpack.c.b16 %v1411, %v1409
      %v1596 = vpack.c.b16 %v1414, %v1412
      %v1597 = vpack.c.b16 %v1415, %v1413
      %v1598 = vpack.c.b16 %v1418, %v1416
      %v1599 = vpack.c.b16 %v1419, %v1417
      %v1600 = vpack.c.b16 %v1422, %v1420
      %v1601 = vpack.c.b16 %v1423, %v1421
      %v1602 = vpack.c.b16 %v1426, %v1424
      %v1603 = vpack.c.b16 %v1427, %v1425
      %v1604 = vpack.c.b16 %v1430, %v1428
      %v1605 = vpack.c.b16 %v1431, %v1429
      %v1606 = vpack.c.b16 %v1434, %v1432
      %v1607 = vpack.c.b16 %v1435, %v1433
      %v1608 = vpack.c.b16 %v1438, %v1436
      %v1609 = vpack.c.b16 %v1439, %v1437
      %v1610 = vpack.c.b16 %v1442, %v1440
      %v1611 = vpack.c.b16 %v1443, %v1441
      %v1612 = vpack.c.b16 %v1446, %v1444
      %v1613 = vpack.c.b16 %v1447, %v1445
      %v1614 = vpack.c.b16 %v1450, %v1448
      %v1615 = vpack.c.b16 %v1451, %v1449
      %v1616 = vpack.c.b16 %v1454, %v1452
      %v1617 = vpack.c.b16 %v1455, %v1453
      %v1618 = vpack.c.b16 %v1458, %v1456
      %v1619 = vpack.c.b16 %v1459, %v1457
      %v1620 = vpack.c.b16 %v1462, %v1460
      %v1621 = vpack.c.b16 %v1463, %v1461
      %v1622 = vpack.c.b16 %v1466, %v1464
      %v1623 = vpack.c.b16 %v1467, %v1465
      %v1624 = vpack.c.b16 %v1470, %v1468
      %v1625 = vpack.c.b16 %v1471, %v1469
      %v1626 = vpack.c.b16 %v1474, %v1472
      %v1627 = vpack.c.b16 %v1475, %v1473
      %v1628 = vpack.c.b16 %v1478, %v1476
      %v1629 = vpack.c.b16 %v1479, %v1477
      %v1630 = vpack.c.b16 %v1482, %v1480
      %v1631 = vpack.c.b16 %v1483, %v1481
      %v1632 = vpack.c.b16 %v1486, %v1484
      %v1633 = vpack.c.b16 %v1487, %v1485
      %v1634 = vpack.c.b16 %v1490, %v1488
      %v1635 = vpack.c.b16 %v1491, %v1489
      %v1636 = vpack.c.b16 %v1494, %v1492
      %v1637 = vpack.c.b16 %v1495, %v1493
      %v1638 = vpack.c.b16 %v1498, %v1496
      %v1639 = vpack.c.b16 %v1499, %v1497
      %v1640 = vpack.c.b16 %v1502, %v1500
      %v1641 = vpack.c.b16 %v1503, %v1501
      %v1642 = vpack.c.b16 %v1506, %v1504
      %v1643 = vpack.c.b16 %v1507, %v1505
      %v1644 = vpack.c.b16 %v1510, %v1508
      %v1645 = vpack.c.b16 %v1511, %v1509
      %v1646 = vpack.c.b16 %v1514, %v1512
      %v1647 = vpack.c.b16 %v1515, %v1513
      %v1648 = vpack.c.b16 %v1518, %v1516
      %v1649 = vpack.c.b16 %v1519, %v1517
      %v1650 = vpack.c.b16 %v1522, %v1520
      %v1651 = vpack.c.b16 %v1523, %v1521
      %v1652 = vpack.c.b16 %v1526, %v1524
      %v1653 = vpack.c.b16 %v1527, %v1525
      %v1654 = vpack.c.b16 %v1530, %v1528
      %v1655 = vpack.c.b16 %v1531, %v1529
      %v1656 = vpack.c.b16 %v1534, %v1532
      %v1657 = vpack.c.b16 %v1535, %v1533
      %v1658 = vpack.c.b16 %v1538, %v1536
      %v1659 = vpack.c.b16 %v1539, %v1537
      %v1660 = vpack.c.b16 %v1542, %v1540
      %v1661 = vpack.c.b16 %v1543, %v1541
      %v1662 = vpack.c.b16 %v1546, %v1544
      %v1663 = vpack.c.b16 %v1547, %v1545
      %v1664 = vpack.c.b16 %v1550, %v1548
      %v1665 = vpack.c.b16 %v1551, %v1549
      %v1666 = vpack.c.b16 %v1554, %v1552
      %v1667 = vpack.c.b16 %v1555, %v1553
      %v1668 = vpack.c.b16 %v1558, %v1556
      %v1669 = vpack.c.b16 %v1559, %v1557
      %v1670 = vpack.c.b16 %v1562, %v1560
      %v1671 = vpack.c.b16 %v1563, %v1561
      %v1672 = vpack.c.b16 %v1566, %v1564
      %v1673 = vpack.c.b16 %v1567, %v1565
      %v1674 = vpack.c.b16 %v1570, %v1568
      %v1675 = vpack.c.b16 %v1571, %v1569
      %v1676 = vpack.c.b16 %v1574, %v1572
      %v1677 = vpack.c.b16 %v1575, %v1573
      %v1678 = vpack.c.b16 %v1578, %v1576
      %v1679 = vpack.c.b16 %v1579, %v1577
      %v1680 = vpack.c.b16 %v1582, %v1580
      %v1681 = vpack.c.b16 %v1583, %v1581
      %v1682 = vpack.c.b16 %v1586, %v1584
      %v1683 = vpack.c.b16 %v1587, %v1585
      %1780 = vmatprep.subr.bf16.mxu0 %v1589
      %1781 = vmatpush1.bf16.msra.mxu0 %v1588
      %1782 = vmatprep.subr.bf16.mxu0 %v1591
      %1783 = vmatpush1.bf16.msra.mxu0 %v1590
      %1784 = vmatprep.subr.bf16.mxu0 %v1593
      %1785 = vmatpush1.bf16.msra.mxu0 %v1592
      %1786 = vmatprep.subr.bf16.mxu0 %v1595
      %1787 = vmatpush1.bf16.msra.mxu0 %v1594
      %1788 = vmatprep.subr.bf16.mxu0 %v1597
      %1789 = vmatpush1.bf16.msra.mxu0 %v1596
      %1790 = vmatprep.subr.bf16.mxu0 %v1599
      %1791 = vmatpush1.bf16.msra.mxu0 %v1598
      %1792 = vmatprep.subr.bf16.mxu0 %v1601
      %1793 = vmatpush1.bf16.msra.mxu0 %v1600
      %1794 = vmatprep.subr.bf16.mxu0 %v1603
      %1795 = vmatpush1.bf16.msra.mxu0 %v1602
      %1796 = vmatprep.subr.bf16.mxu0 %v1605
      %1797 = vmatpush1.bf16.msra.mxu0 %v1604
      %1798 = vmatprep.subr.bf16.mxu0 %v1607
      %1799 = vmatpush1.bf16.msra.mxu0 %v1606
      %1800 = vmatprep.subr.bf16.mxu0 %v1609
      %1801 = vmatpush1.bf16.msra.mxu0 %v1608
      %1802 = vmatprep.subr.bf16.mxu0 %v1611
      %1803 = vmatpush1.bf16.msra.mxu0 %v1610
      %1804 = vmatprep.subr.bf16.mxu0 %v1613
      %1805 = vmatpush1.bf16.msra.mxu0 %v1612
      %1806 = vmatprep.subr.bf16.mxu0 %v1615
      %1807 = vmatpush1.bf16.msra.mxu0 %v1614
      %1808 = vmatprep.subr.bf16.mxu0 %v1617
      %1809 = vmatpush1.bf16.msra.mxu0 %v1616
      %1810 = vmatprep.subr.bf16.mxu0 %v1619
      %1811 = vmatpush1.bf16.msra.mxu0 %v1618
      %1812 = vmatprep.mubr.bf16.mxu0 %v1265
      %1813 = vmatmul.mubr.bf16.gmra.mrb[0].mxu0 %v1258
      %v1814 = vpop.f32.mrb[0].mxu0
      %v1815 = vadd.f32 0.0, %v1814
      %v1816 = vpop.f32.mrb[0].mxu0
      %v1817 = vadd.f32 0.0, %v1816
      %v1818 = vpop.f32.mrb[0].mxu0
      %v1819 = vpop.f32.mrb[0].mxu0
      %1820 = vdwg.mxu0
      %1821 = vmatprep.subr.bf16.mxu0 %v1621
      %1822 = vmatpush1.bf16.msra.mxu0 %v1620
      %1823 = vmatprep.subr.bf16.mxu0 %v1623
      %1824 = vmatpush1.bf16.msra.mxu0 %v1622
      %1825 = vmatprep.subr.bf16.mxu0 %v1625
      %1826 = vmatpush1.bf16.msra.mxu0 %v1624
      %1827 = vmatprep.subr.bf16.mxu0 %v1627
      %1828 = vmatpush1.bf16.msra.mxu0 %v1626
      %1829 = vmatprep.subr.bf16.mxu0 %v1629
      %1830 = vmatpush1.bf16.msra.mxu0 %v1628
      %1831 = vmatprep.subr.bf16.mxu0 %v1631
      %1832 = vmatpush1.bf16.msra.mxu0 %v1630
      %1833 = vmatprep.subr.bf16.mxu0 %v1633
      %1834 = vmatpush1.bf16.msra.mxu0 %v1632
      %1835 = vmatprep.subr.bf16.mxu0 %v1635
      %1836 = vmatpush1.bf16.msra.mxu0 %v1634
      %1837 = vmatprep.subr.bf16.mxu0 %v1637
      %1838 = vmatpush1.bf16.msra.mxu0 %v1636
      %1839 = vmatprep.subr.bf16.mxu0 %v1639
      %1840 = vmatpush1.bf16.msra.mxu0 %v1638
      %1841 = vmatprep.subr.bf16.mxu0 %v1641
      %1842 = vmatpush1.bf16.msra.mxu0 %v1640
      %1843 = vmatprep.subr.bf16.mxu0 %v1643
      %1844 = vmatpush1.bf16.msra.mxu0 %v1642
      %1845 = vmatprep.subr.bf16.mxu0 %v1645
      %1846 = vmatpush1.bf16.msra.mxu0 %v1644
      %1847 = vmatprep.subr.bf16.mxu0 %v1647
      %1848 = vmatpush1.bf16.msra.mxu0 %v1646
      %1849 = vmatprep.subr.bf16.mxu0 %v1649
      %1850 = vmatpush1.bf16.msra.mxu0 %v1648
      %1851 = vmatprep.subr.bf16.mxu0 %v1651
      %1852 = vmatpush1.bf16.msra.mxu0 %v1650
      %1853 = vmatprep.mubr.bf16.mxu0 %v1279
      %1854 = vmatmul.mubr.bf16.gmra.mrb[0].mxu0 %v1272
      %v1855 = vpop.f32.mrb[0].mxu0
      %v1856 = vadd.f32 %v1815, %v1855
      %v1857 = vpop.f32.mrb[0].mxu0
      %v1858 = vadd.f32 %v1817, %v1857
      %v1859 = vpop.f32.mrb[0].mxu0
      %v1860 = vpop.f32.mrb[0].mxu0
      %1861 = vdwg.mxu0
      %1862 = vmatprep.subr.bf16.mxu0 %v1653
      %1863 = vmatpush1.bf16.msra.mxu0 %v1652
      %1864 = vmatprep.subr.bf16.mxu0 %v1655
      %1865 = vmatpush1.bf16.msra.mxu0 %v1654
      %1866 = vmatprep.subr.bf16.mxu0 %v1657
      %1867 = vmatpush1.bf16.msra.mxu0 %v1656
      %1868 = vmatprep.subr.bf16.mxu0 %v1659
      %1869 = vmatpush1.bf16.msra.mxu0 %v1658
      %1870 = vmatprep.subr.bf16.mxu0 %v1661
      %1871 = vmatpush1.bf16.msra.mxu0 %v1660
      %1872 = vmatprep.subr.bf16.mxu0 %v1663
      %1873 = vmatpush1.bf16.msra.mxu0 %v1662
      %1874 = vmatprep.subr.bf16.mxu0 %v1665
      %1875 = vmatpush1.bf16.msra.mxu0 %v1664
      %1876 = vmatprep.subr.bf16.mxu0 %v1667
      %1877 = vmatpush1.bf16.msra.mxu0 %v1666
      %1878 = vmatprep.subr.bf16.mxu0 %v1669
      %1879 = vmatpush1.bf16.msra.mxu0 %v1668
      %1880 = vmatprep.subr.bf16.mxu0 %v1671
      %1881 = vmatpush1.bf16.msra.mxu0 %v1670
      %1882 = vmatprep.subr.bf16.mxu0 %v1673
      %1883 = vmatpush1.bf16.msra.mxu0 %v1672
      %1884 = vmatprep.subr.bf16.mxu0 %v1675
      %1885 = vmatpush1.bf16.msra.mxu0 %v1674
      %1886 = vmatprep.subr.bf16.mxu0 %v1677
      %1887 = vmatpush1.bf16.msra.mxu0 %v1676
      %1888 = vmatprep.subr.bf16.mxu0 %v1679
      %1889 = vmatpush1.bf16.msra.mxu0 %v1678
      %1890 = vmatprep.subr.bf16.mxu0 %v1681
      %1891 = vmatpush1.bf16.msra.mxu0 %v1680
      %1892 = vmatprep.subr.bf16.mxu0 %v1683
      %1893 = vmatpush1.bf16.msra.mxu0 %v1682
      %1894 = vmatprep.mubr.bf16.mxu0 %v1293
      %1895 = vmatmul.mubr.bf16.gmra.mrb[0].mxu0 %v1286
      %v1896 = vpop.f32.mrb[0].mxu0
      %v1897 = vadd.f32 %v1856, %v1896
      %v1898 = vpop.f32.mrb[0].mxu0
      %v1899 = vadd.f32 %v1858, %v1898
      %v1900 = vpop.f32.mrb[0].mxu0
      %v1901 = vpop.f32.mrb[0].mxu0
      %1902 = vdwg.mxu0
      %v1999 = vunpack.c.l.b16 %v1041
      %v2000 = vunpack.c.h.b16 %v1041
      %v2001 = vunpack.c.l.b16 %v1042
      %v2002 = vunpack.c.h.b16 %v1042
      %v2003 = vunpack.c.l.b16 %v1043
      %v2004 = vunpack.c.h.b16 %v1043
      %v2005 = vunpack.c.l.b16 %v1044
      %v2006 = vunpack.c.h.b16 %v1044
      %v2007 = vunpack.c.l.b16 %v1045
      %v2008 = vunpack.c.h.b16 %v1045
      %v2009 = vunpack.c.l.b16 %v1046
      %v2010 = vunpack.c.h.b16 %v1046
      %v2011 = vunpack.c.l.b16 %v1047
      %v2012 = vunpack.c.h.b16 %v1047
      %v2013 = vunpack.c.l.b16 %v1048
      %v2014 = vunpack.c.h.b16 %v1048
      %v2015 = vunpack.c.l.b16 %v1049
      %v2016 = vunpack.c.h.b16 %v1049
      %v2017 = vunpack.c.l.b16 %v1050
      %v2018 = vunpack.c.h.b16 %v1050
      %v2019 = vunpack.c.l.b16 %v1051
      %v2020 = vunpack.c.h.b16 %v1051
      %v2021 = vunpack.c.l.b16 %v1052
      %v2022 = vunpack.c.h.b16 %v1052
      %v2023 = vunpack.c.l.b16 %v1053
      %v2024 = vunpack.c.h.b16 %v1053
      %v2025 = vunpack.c.l.b16 %v1054
      %v2026 = vunpack.c.h.b16 %v1054
      %v2027 = vunpack.c.l.b16 %v1055
      %v2028 = vunpack.c.h.b16 %v1055
      %v2029 = vunpack.c.l.b16 %v1056
      %v2030 = vunpack.c.h.b16 %v1056
      %v2031 = vunpack.c.l.b16 %v1057
      %v2032 = vunpack.c.h.b16 %v1057
      %v2033 = vunpack.c.l.b16 %v1058
      %v2034 = vunpack.c.h.b16 %v1058
      %v2035 = vunpack.c.l.b16 %v1059
      %v2036 = vunpack.c.h.b16 %v1059
      %v2037 = vunpack.c.l.b16 %v1060
      %v2038 = vunpack.c.h.b16 %v1060
      %v2039 = vunpack.c.l.b16 %v1061
      %v2040 = vunpack.c.h.b16 %v1061
      %v2041 = vunpack.c.l.b16 %v1062
      %v2042 = vunpack.c.h.b16 %v1062
      %v2043 = vunpack.c.l.b16 %v1063
      %v2044 = vunpack.c.h.b16 %v1063
      %v2045 = vunpack.c.l.b16 %v1064
      %v2046 = vunpack.c.h.b16 %v1064
      %v2047 = vunpack.c.l.b16 %v1065
      %v2048 = vunpack.c.h.b16 %v1065
      %v2049 = vunpack.c.l.b16 %v1066
      %v2050 = vunpack.c.h.b16 %v1066
      %v2051 = vunpack.c.l.b16 %v1067
      %v2052 = vunpack.c.h.b16 %v1067
      %v2053 = vunpack.c.l.b16 %v1068
      %v2054 = vunpack.c.h.b16 %v1068
      %v2055 = vunpack.c.l.b16 %v1069
      %v2056 = vunpack.c.h.b16 %v1069
      %v2057 = vunpack.c.l.b16 %v1070
      %v2058 = vunpack.c.h.b16 %v1070
      %v2059 = vunpack.c.l.b16 %v1071
      %v2060 = vunpack.c.h.b16 %v1071
      %v2061 = vunpack.c.l.b16 %v1072
      %v2062 = vunpack.c.h.b16 %v1072
      %v2063 = vunpack.c.l.b16 %v1073
      %v2064 = vunpack.c.h.b16 %v1073
      %v2065 = vunpack.c.l.b16 %v1074
      %v2066 = vunpack.c.h.b16 %v1074
      %v2067 = vunpack.c.l.b16 %v1075
      %v2068 = vunpack.c.h.b16 %v1075
      %v2069 = vunpack.c.l.b16 %v1076
      %v2070 = vunpack.c.h.b16 %v1076
      %v2071 = vunpack.c.l.b16 %v1077
      %v2072 = vunpack.c.h.b16 %v1077
      %v2073 = vunpack.c.l.b16 %v1078
      %v2074 = vunpack.c.h.b16 %v1078
      %v2075 = vunpack.c.l.b16 %v1079
      %v2076 = vunpack.c.h.b16 %v1079
      %v2077 = vunpack.c.l.b16 %v1080
      %v2078 = vunpack.c.h.b16 %v1080
      %v2079 = vunpack.c.l.b16 %v1081
      %v2080 = vunpack.c.h.b16 %v1081
      %v2081 = vunpack.c.l.b16 %v1082
      %v2082 = vunpack.c.h.b16 %v1082
      %v2083 = vunpack.c.l.b16 %v1083
      %v2084 = vunpack.c.h.b16 %v1083
      %v2085 = vunpack.c.l.b16 %v1084
      %v2086 = vunpack.c.h.b16 %v1084
      %v2087 = vunpack.c.l.b16 %v1085
      %v2088 = vunpack.c.h.b16 %v1085
      %v2089 = vunpack.c.l.b16 %v1086
      %v2090 = vunpack.c.h.b16 %v1086
      %v2091 = vunpack.c.l.b16 %v1087
      %v2092 = vunpack.c.h.b16 %v1087
      %v2093 = vunpack.c.l.b16 %v1088
      %v2094 = vunpack.c.h.b16 %v1088
      %v2095 = vunpack.c.l.b16 %v1089
      %v2096 = vunpack.c.h.b16 %v1089
      %v2097 = vunpack.c.l.b16 %v1090
      %v2098 = vunpack.c.h.b16 %v1090
      %v2099 = vunpack.c.l.b16 %v1091
      %v2100 = vunpack.c.h.b16 %v1091
      %v2101 = vunpack.c.l.b16 %v1092
      %v2102 = vunpack.c.h.b16 %v1092
      %v2103 = vunpack.c.l.b16 %v1093
      %v2104 = vunpack.c.h.b16 %v1093
      %v2105 = vunpack.c.l.b16 %v1094
      %v2106 = vunpack.c.h.b16 %v1094
      %v2107 = vunpack.c.l.b16 %v1095
      %v2108 = vunpack.c.h.b16 %v1095
      %v2109 = vunpack.c.l.b16 %v1096
      %v2110 = vunpack.c.h.b16 %v1096
      %v2111 = vunpack.c.l.b16 %v1097
      %v2112 = vunpack.c.h.b16 %v1097
      %v2113 = vunpack.c.l.b16 %v1098
      %v2114 = vunpack.c.h.b16 %v1098
      %v2115 = vunpack.c.l.b16 %v1099
      %v2116 = vunpack.c.h.b16 %v1099
      %v2117 = vunpack.c.l.b16 %v1100
      %v2118 = vunpack.c.h.b16 %v1100
      %v2119 = vunpack.c.l.b16 %v1101
      %v2120 = vunpack.c.h.b16 %v1101
      %v2121 = vunpack.c.l.b16 %v1102
      %v2122 = vunpack.c.h.b16 %v1102
      %v2123 = vunpack.c.l.b16 %v1103
      %v2124 = vunpack.c.h.b16 %v1103
      %v2125 = vunpack.c.l.b16 %v1104
      %v2126 = vunpack.c.h.b16 %v1104
      %v2127 = vunpack.c.l.b16 %v1105
      %v2128 = vunpack.c.h.b16 %v1105
      %v2129 = vunpack.c.l.b16 %v1106
      %v2130 = vunpack.c.h.b16 %v1106
      %v2131 = vunpack.c.l.b16 %v1107
      %v2132 = vunpack.c.h.b16 %v1107
      %v2133 = vunpack.c.l.b16 %v1108
      %v2134 = vunpack.c.h.b16 %v1108
      %v2135 = vunpack.c.l.b16 %v1109
      %v2136 = vunpack.c.h.b16 %v1109
      %v2137 = vunpack.c.l.b16 %v1110
      %v2138 = vunpack.c.h.b16 %v1110
      %v2139 = vunpack.c.l.b16 %v1111
      %v2140 = vunpack.c.h.b16 %v1111
      %v2141 = vunpack.c.l.b16 %v1112
      %v2142 = vunpack.c.h.b16 %v1112
      %v2143 = vunpack.c.l.b16 %v1113
      %v2144 = vunpack.c.h.b16 %v1113
      %v2145 = vunpack.c.l.b16 %v1114
      %v2146 = vunpack.c.h.b16 %v1114
      %v2147 = vunpack.c.l.b16 %v1115
      %v2148 = vunpack.c.h.b16 %v1115
      %v2149 = vunpack.c.l.b16 %v1116
      %v2150 = vunpack.c.h.b16 %v1116
      %v2151 = vunpack.c.l.b16 %v1117
      %v2152 = vunpack.c.h.b16 %v1117
      %v2153 = vunpack.c.l.b16 %v1118
      %v2154 = vunpack.c.h.b16 %v1118
      %v2155 = vunpack.c.l.b16 %v1119
      %v2156 = vunpack.c.h.b16 %v1119
      %v2157 = vunpack.c.l.b16 %v1120
      %v2158 = vunpack.c.h.b16 %v1120
      %v2159 = vunpack.c.l.b16 %v1121
      %v2160 = vunpack.c.h.b16 %v1121
      %v2161 = vunpack.c.l.b16 %v1122
      %v2162 = vunpack.c.h.b16 %v1122
      %v2163 = vunpack.c.l.b16 %v1123
      %v2164 = vunpack.c.h.b16 %v1123
      %v2165 = vunpack.c.l.b16 %v1124
      %v2166 = vunpack.c.h.b16 %v1124
      %v2167 = vunpack.c.l.b16 %v1125
      %v2168 = vunpack.c.h.b16 %v1125
      %v2169 = vunpack.c.l.b16 %v1126
      %v2170 = vunpack.c.h.b16 %v1126
      %v2171 = vunpack.c.l.b16 %v1127
      %v2172 = vunpack.c.h.b16 %v1127
      %v2173 = vunpack.c.l.b16 %v1128
      %v2174 = vunpack.c.h.b16 %v1128
      %v2175 = vunpack.c.l.b16 %v1129
      %v2176 = vunpack.c.h.b16 %v1129
      %v2177 = vunpack.c.l.b16 %v1130
      %v2178 = vunpack.c.h.b16 %v1130
      %v2179 = vunpack.c.l.b16 %v1131
      %v2180 = vunpack.c.h.b16 %v1131
      %v2181 = vunpack.c.l.b16 %v1132
      %v2182 = vunpack.c.h.b16 %v1132
      %v2183 = vunpack.c.l.b16 %v1133
      %v2184 = vunpack.c.h.b16 %v1133
      %v2185 = vunpack.c.l.b16 %v1134
      %v2186 = vunpack.c.h.b16 %v1134
      %v2187 = vunpack.c.l.b16 %v1135
      %v2188 = vunpack.c.h.b16 %v1135
      %v2189 = vunpack.c.l.b16 %v1136
      %v2190 = vunpack.c.h.b16 %v1136
      %v2191 = vpack.c.b16 %v2001, %v1999
      %v2192 = vpack.c.b16 %v2002, %v2000
      %v2193 = vpack.c.b16 %v2005, %v2003
      %v2194 = vpack.c.b16 %v2006, %v2004
      %v2195 = vpack.c.b16 %v2009, %v2007
      %v2196 = vpack.c.b16 %v2010, %v2008
      %v2197 = vpack.c.b16 %v2013, %v2011
      %v2198 = vpack.c.b16 %v2014, %v2012
      %v2199 = vpack.c.b16 %v2017, %v2015
      %v2200 = vpack.c.b16 %v2018, %v2016
      %v2201 = vpack.c.b16 %v2021, %v2019
      %v2202 = vpack.c.b16 %v2022, %v2020
      %v2203 = vpack.c.b16 %v2025, %v2023
      %v2204 = vpack.c.b16 %v2026, %v2024
      %v2205 = vpack.c.b16 %v2029, %v2027
      %v2206 = vpack.c.b16 %v2030, %v2028
      %v2207 = vpack.c.b16 %v2033, %v2031
      %v2208 = vpack.c.b16 %v2034, %v2032
      %v2209 = vpack.c.b16 %v2037, %v2035
      %v2210 = vpack.c.b16 %v2038, %v2036
      %v2211 = vpack.c.b16 %v2041, %v2039
      %v2212 = vpack.c.b16 %v2042, %v2040
      %v2213 = vpack.c.b16 %v2045, %v2043
      %v2214 = vpack.c.b16 %v2046, %v2044
      %v2215 = vpack.c.b16 %v2049, %v2047
      %v2216 = vpack.c.b16 %v2050, %v2048
      %v2217 = vpack.c.b16 %v2053, %v2051
      %v2218 = vpack.c.b16 %v2054, %v2052
      %v2219 = vpack.c.b16 %v2057, %v2055
      %v2220 = vpack.c.b16 %v2058, %v2056
      %v2221 = vpack.c.b16 %v2061, %v2059
      %v2222 = vpack.c.b16 %v2062, %v2060
      %v2223 = vpack.c.b16 %v2065, %v2063
      %v2224 = vpack.c.b16 %v2066, %v2064
      %v2225 = vpack.c.b16 %v2069, %v2067
      %v2226 = vpack.c.b16 %v2070, %v2068
      %v2227 = vpack.c.b16 %v2073, %v2071
      %v2228 = vpack.c.b16 %v2074, %v2072
      %v2229 = vpack.c.b16 %v2077, %v2075
      %v2230 = vpack.c.b16 %v2078, %v2076
      %v2231 = vpack.c.b16 %v2081, %v2079
      %v2232 = vpack.c.b16 %v2082, %v2080
      %v2233 = vpack.c.b16 %v2085, %v2083
      %v2234 = vpack.c.b16 %v2086, %v2084
      %v2235 = vpack.c.b16 %v2089, %v2087
      %v2236 = vpack.c.b16 %v2090, %v2088
      %v2237 = vpack.c.b16 %v2093, %v2091
      %v2238 = vpack.c.b16 %v2094, %v2092
      %v2239 = vpack.c.b16 %v2097, %v2095
      %v2240 = vpack.c.b16 %v2098, %v2096
      %v2241 = vpack.c.b16 %v2101, %v2099
      %v2242 = vpack.c.b16 %v2102, %v2100
      %v2243 = vpack.c.b16 %v2105, %v2103
      %v2244 = vpack.c.b16 %v2106, %v2104
      %v2245 = vpack.c.b16 %v2109, %v2107
      %v2246 = vpack.c.b16 %v2110, %v2108
      %v2247 = vpack.c.b16 %v2113, %v2111
      %v2248 = vpack.c.b16 %v2114, %v2112
      %v2249 = vpack.c.b16 %v2117, %v2115
      %v2250 = vpack.c.b16 %v2118, %v2116
      %v2251 = vpack.c.b16 %v2121, %v2119
      %v2252 = vpack.c.b16 %v2122, %v2120
      %v2253 = vpack.c.b16 %v2125, %v2123
      %v2254 = vpack.c.b16 %v2126, %v2124
      %v2255 = vpack.c.b16 %v2129, %v2127
      %v2256 = vpack.c.b16 %v2130, %v2128
      %v2257 = vpack.c.b16 %v2133, %v2131
      %v2258 = vpack.c.b16 %v2134, %v2132
      %v2259 = vpack.c.b16 %v2137, %v2135
      %v2260 = vpack.c.b16 %v2138, %v2136
      %v2261 = vpack.c.b16 %v2141, %v2139
      %v2262 = vpack.c.b16 %v2142, %v2140
      %v2263 = vpack.c.b16 %v2145, %v2143
      %v2264 = vpack.c.b16 %v2146, %v2144
      %v2265 = vpack.c.b16 %v2149, %v2147
      %v2266 = vpack.c.b16 %v2150, %v2148
      %v2267 = vpack.c.b16 %v2153, %v2151
      %v2268 = vpack.c.b16 %v2154, %v2152
      %v2269 = vpack.c.b16 %v2157, %v2155
      %v2270 = vpack.c.b16 %v2158, %v2156
      %v2271 = vpack.c.b16 %v2161, %v2159
      %v2272 = vpack.c.b16 %v2162, %v2160
      %v2273 = vpack.c.b16 %v2165, %v2163
      %v2274 = vpack.c.b16 %v2166, %v2164
      %v2275 = vpack.c.b16 %v2169, %v2167
      %v2276 = vpack.c.b16 %v2170, %v2168
      %v2277 = vpack.c.b16 %v2173, %v2171
      %v2278 = vpack.c.b16 %v2174, %v2172
      %v2279 = vpack.c.b16 %v2177, %v2175
      %v2280 = vpack.c.b16 %v2178, %v2176
      %v2281 = vpack.c.b16 %v2181, %v2179
      %v2282 = vpack.c.b16 %v2182, %v2180
      %v2283 = vpack.c.b16 %v2185, %v2183
      %v2284 = vpack.c.b16 %v2186, %v2184
      %v2285 = vpack.c.b16 %v2189, %v2187
      %v2286 = vpack.c.b16 %v2190, %v2188
      %2383 = vmatprep.subr.bf16.mxu0 %v2192
      %2384 = vmatpush1.bf16.msra.mxu0 %v2191
      %2385 = vmatprep.subr.bf16.mxu0 %v2194
      %2386 = vmatpush1.bf16.msra.mxu0 %v2193
      %2387 = vmatprep.subr.bf16.mxu0 %v2196
      %2388 = vmatpush1.bf16.msra.mxu0 %v2195
      %2389 = vmatprep.subr.bf16.mxu0 %v2198
      %2390 = vmatpush1.bf16.msra.mxu0 %v2197
      %2391 = vmatprep.subr.bf16.mxu0 %v2200
      %2392 = vmatpush1.bf16.msra.mxu0 %v2199
      %2393 = vmatprep.subr.bf16.mxu0 %v2202
      %2394 = vmatpush1.bf16.msra.mxu0 %v2201
      %2395 = vmatprep.subr.bf16.mxu0 %v2204
      %2396 = vmatpush1.bf16.msra.mxu0 %v2203
      %2397 = vmatprep.subr.bf16.mxu0 %v2206
      %2398 = vmatpush1.bf16.msra.mxu0 %v2205
      %2399 = vmatprep.subr.bf16.mxu0 %v2208
      %2400 = vmatpush1.bf16.msra.mxu0 %v2207
      %2401 = vmatprep.subr.bf16.mxu0 %v2210
      %2402 = vmatpush1.bf16.msra.mxu0 %v2209
      %2403 = vmatprep.subr.bf16.mxu0 %v2212
      %2404 = vmatpush1.bf16.msra.mxu0 %v2211
      %2405 = vmatprep.subr.bf16.mxu0 %v2214
      %2406 = vmatpush1.bf16.msra.mxu0 %v2213
      %2407 = vmatprep.subr.bf16.mxu0 %v2216
      %2408 = vmatpush1.bf16.msra.mxu0 %v2215
      %2409 = vmatprep.subr.bf16.mxu0 %v2218
      %2410 = vmatpush1.bf16.msra.mxu0 %v2217
      %2411 = vmatprep.subr.bf16.mxu0 %v2220
      %2412 = vmatpush1.bf16.msra.mxu0 %v2219
      %2413 = vmatprep.subr.bf16.mxu0 %v2222
      %2414 = vmatpush1.bf16.msra.mxu0 %v2221
      %2415 = vmatprep.mubr.bf16.mxu0 %v1036
      %2416 = vmatmul.mubr.bf16.gmra.mrb[0].mxu0 %v1035
      %v2417 = vpop.f32.mrb[0].mxu0
      %v2418 = vadd.f32 %v1897, %v2417
      %v2419 = vpop.f32.mrb[0].mxu0
      %v2420 = vadd.f32 %v1899, %v2419
      %v2421 = vpop.f32.mrb[0].mxu0
      %v2422 = vpop.f32.mrb[0].mxu0
      %2423 = vdwg.mxu0
      %2424 = vmatprep.subr.bf16.mxu0 %v2224
      %2425 = vmatpush1.bf16.msra.mxu0 %v2223
      %2426 = vmatprep.subr.bf16.mxu0 %v2226
      %2427 = vmatpush1.bf16.msra.mxu0 %v2225
      %2428 = vmatprep.subr.bf16.mxu0 %v2228
      %2429 = vmatpush1.bf16.msra.mxu0 %v2227
      %2430 = vmatprep.subr.bf16.mxu0 %v2230
      %2431 = vmatpush1.bf16.msra.mxu0 %v2229
      %2432 = vmatprep.subr.bf16.mxu0 %v2232
      %2433 = vmatpush1.bf16.msra.mxu0 %v2231
      %2434 = vmatprep.subr.bf16.mxu0 %v2234
      %2435 = vmatpush1.bf16.msra.mxu0 %v2233
      %2436 = vmatprep.subr.bf16.mxu0 %v2236
      %2437 = vmatpush1.bf16.msra.mxu0 %v2235
      %2438 = vmatprep.subr.bf16.mxu0 %v2238
      %2439 = vmatpush1.bf16.msra.mxu0 %v2237
      %2440 = vmatprep.subr.bf16.mxu0 %v2240
      %2441 = vmatpush1.bf16.msra.mxu0 %v2239
      %2442 = vmatprep.subr.bf16.mxu0 %v2242
      %2443 = vmatpush1.bf16.msra.mxu0 %v2241
      %2444 = vmatprep.subr.bf16.mxu0 %v2244
      %2445 = vmatpush1.bf16.msra.mxu0 %v2243
      %2446 = vmatprep.subr.bf16.mxu0 %v2246
      %2447 = vmatpush1.bf16.msra.mxu0 %v2245
      %2448 = vmatprep.subr.bf16.mxu0 %v2248
      %2449 = vmatpush1.bf16.msra.mxu0 %v2247
      %2450 = vmatprep.subr.bf16.mxu0 %v2250
      %2451 = vmatpush1.bf16.msra.mxu0 %v2249
      %2452 = vmatprep.subr.bf16.mxu0 %v2252
      %2453 = vmatpush1.bf16.msra.mxu0 %v2251
      %2454 = vmatprep.subr.bf16.mxu0 %v2254
      %2455 = vmatpush1.bf16.msra.mxu0 %v2253
      %2456 = vmatprep.mubr.bf16.mxu0 %v1038
      %2457 = vmatmul.mubr.bf16.gmra.mrb[0].mxu0 %v1037
      %v2458 = vpop.f32.mrb[0].mxu0
      %v2459 = vadd.f32 %v2418, %v2458
      %v2460 = vpop.f32.mrb[0].mxu0
      %v2461 = vadd.f32 %v2420, %v2460
      %v2462 = vpop.f32.mrb[0].mxu0
      %v2463 = vpop.f32.mrb[0].mxu0
      %2464 = vdwg.mxu0
      %2465 = vmatprep.subr.bf16.mxu0 %v2256
      %2466 = vmatpush1.bf16.msra.mxu0 %v2255
      %2467 = vmatprep.subr.bf16.mxu0 %v2258
      %2468 = vmatpush1.bf16.msra.mxu0 %v2257
      %2469 = vmatprep.subr.bf16.mxu0 %v2260
      %2470 = vmatpush1.bf16.msra.mxu0 %v2259
      %2471 = vmatprep.subr.bf16.mxu0 %v2262
      %2472 = vmatpush1.bf16.msra.mxu0 %v2261
      %2473 = vmatprep.subr.bf16.mxu0 %v2264
      %2474 = vmatpush1.bf16.msra.mxu0 %v2263
      %2475 = vmatprep.subr.bf16.mxu0 %v2266
      %2476 = vmatpush1.bf16.msra.mxu0 %v2265
      %2477 = vmatprep.subr.bf16.mxu0 %v2268
      %2478 = vmatpush1.bf16.msra.mxu0 %v2267
      %2479 = vmatprep.subr.bf16.mxu0 %v2270
      %2480 = vmatpush1.bf16.msra.mxu0 %v2269
      %2481 = vmatprep.subr.bf16.mxu0 %v2272
      %2482 = vmatpush1.bf16.msra.mxu0 %v2271
      %2483 = vmatprep.subr.bf16.mxu0 %v2274
      %2484 = vmatpush1.bf16.msra.mxu0 %v2273
      %2485 = vmatprep.subr.bf16.mxu0 %v2276
      %2486 = vmatpush1.bf16.msra.mxu0 %v2275
      %2487 = vmatprep.subr.bf16.mxu0 %v2278
      %2488 = vmatpush1.bf16.msra.mxu0 %v2277
      %2489 = vmatprep.subr.bf16.mxu0 %v2280
      %2490 = vmatpush1.bf16.msra.mxu0 %v2279
      %2491 = vmatprep.subr.bf16.mxu0 %v2282
      %2492 = vmatpush1.bf16.msra.mxu0 %v2281
      %2493 = vmatprep.subr.bf16.mxu0 %v2284
      %2494 = vmatpush1.bf16.msra.mxu0 %v2283
      %2495 = vmatprep.subr.bf16.mxu0 %v2286
      %2496 = vmatpush1.bf16.msra.mxu0 %v2285
      %2497 = vmatprep.mubr.bf16.mxu0 %v1040
      %2498 = vmatmul.mubr.bf16.gmra.mrb[0].mxu0 %v1039
      %v2499 = vpop.f32.mrb[0].mxu0
      %v2500 = vadd.f32 %v2459, %v2499
      %v2501 = vpop.f32.mrb[0].mxu0
      %v2502 = vadd.f32 %v2461, %v2501
      %v2503 = vpop.f32.mrb[0].mxu0
      %v2504 = vpop.f32.mrb[0].mxu0
      %2505 = vdwg.mxu0
      %v2506 = vld [vmem:[#allocation2] sm:$0xfc]
      %v2507 = vld [vmem:[#allocation2 + $0x8] sm:$0xfc]
      %v2508 = vld [vmem:[#allocation2 + $0x10] sm:$0xfc]
      %v2509 = vld [vmem:[#allocation2 + $0x18] sm:$0xfc]
      %v2510 = vld [vmem:[#allocation2 + $0x20] sm:$0xfc]
      %v2511 = vld [vmem:[#allocation2 + $0x28] sm:$0xfc]
      %v2512 = vld [vmem:[#allocation2 + $0x30] sm:$0x3]
      %v2513 = vld [vmem:[#allocation2 + $0x38] sm:$0x3]
      %v2514 = vld [vmem:[#allocation2 + $0x40] sm:$0x3]
      %v2515 = vld [vmem:[#allocation2 + $0x48] sm:$0x3]
      %v2516 = vld [vmem:[#allocation2 + $0x50] sm:$0x3]
      %v2517 = vld [vmem:[#allocation2 + $0x58] sm:$0x3]
      %v2518 = vpack.c.bf16 %v2512, %v2506
      %v2519 = vpack.c.bf16 %v2513, %v2507
      %v2520 = vpack.c.bf16 %v2514, %v2508
      %v2521 = vpack.c.bf16 %v2515, %v2509
      %v2522 = vpack.c.bf16 %v2516, %v2510
      %v2523 = vpack.c.bf16 %v2517, %v2511
      %s2524 = scalar_lea.vmem %s3, 1536
      %v2525 = vld [vmem:[%s2524] sm:$0xff]
      %v2526 = vld [vmem:[%s2524 + $0x8] sm:$0xff]
      %v2527 = vld [vmem:[%s2524 + $0x10] sm:$0xff]
      %v2528 = vld [vmem:[%s2524 + $0x18] sm:$0xff]
      %v2529 = vld [vmem:[%s2524 + $0x20] sm:$0xff]
      %v2530 = vld [vmem:[%s2524 + $0x28] sm:$0xff]
      %v2531 = vld [vmem:[%s2524 + $0x30] sm:$0xff]
      %v2532 = vld [vmem:[%s2524 + $0x38] sm:$0xff]
      %v2533 = vld [vmem:[%s2524 + $0x40] sm:$0xff]
      %v2534 = vld [vmem:[%s2524 + $0x48] sm:$0xff]
      %v2535 = vld [vmem:[%s2524 + $0x50] sm:$0xff]
      %v2536 = vld [vmem:[%s2524 + $0x58] sm:$0xff]
      %v2537 = vld [vmem:[%s2524 + $0x60] sm:$0xff]
      %v2538 = vld [vmem:[%s2524 + $0x68] sm:$0xff]
      %v2539 = vld [vmem:[%s2524 + $0x70] sm:$0xff]
      %v2540 = vld [vmem:[%s2524 + $0x78] sm:$0xff]
      %v2541 = vld [vmem:[%s2524 + $0x80] sm:$0xff]
      %v2542 = vld [vmem:[%s2524 + $0x88] sm:$0xff]
      %v2543 = vld [vmem:[%s2524 + $0x90] sm:$0xff]
      %v2544 = vld [vmem:[%s2524 + $0x98] sm:$0xff]
      %v2545 = vld [vmem:[%s2524 + $0xa0] sm:$0xff]
      %v2546 = vld [vmem:[%s2524 + $0xa8] sm:$0xff]
      %v2547 = vld [vmem:[%s2524 + $0xb0] sm:$0xff]
      %v2548 = vld [vmem:[%s2524 + $0xb8] sm:$0xff]
      %v2549 = vld [vmem:[%s2524 + $0xc0] sm:$0xff]
      %v2550 = vld [vmem:[%s2524 + $0xc8] sm:$0xff]
      %v2551 = vld [vmem:[%s2524 + $0xd0] sm:$0xff]
      %v2552 = vld [vmem:[%s2524 + $0xd8] sm:$0xff]
      %v2553 = vld [vmem:[%s2524 + $0xe0] sm:$0xff]
      %v2554 = vld [vmem:[%s2524 + $0xe8] sm:$0xff]
      %v2555 = vld [vmem:[%s2524 + $0xf0] sm:$0xff]
      %v2556 = vld [vmem:[%s2524 + $0xf8] sm:$0xff]
      %v2557 = vld [vmem:[%s2524 + $0x100] sm:$0xff]
      %v2558 = vld [vmem:[%s2524 + $0x108] sm:$0xff]
      %v2559 = vld [vmem:[%s2524 + $0x110] sm:$0xff]
      %v2560 = vld [vmem:[%s2524 + $0x118] sm:$0xff]
      %v2561 = vld [vmem:[%s2524 + $0x120] sm:$0xff]
      %v2562 = vld [vmem:[%s2524 + $0x128] sm:$0xff]
      %v2563 = vld [vmem:[%s2524 + $0x130] sm:$0xff]
      %v2564 = vld [vmem:[%s2524 + $0x138] sm:$0xff]
      %v2565 = vld [vmem:[%s2524 + $0x140] sm:$0xff]
      %v2566 = vld [vmem:[%s2524 + $0x148] sm:$0xff]
      %v2567 = vld [vmem:[%s2524 + $0x150] sm:$0xff]
      %v2568 = vld [vmem:[%s2524 + $0x158] sm:$0xff]
      %v2569 = vld [vmem:[%s2524 + $0x160] sm:$0xff]
      %v2570 = vld [vmem:[%s2524 + $0x168] sm:$0xff]
      %v2571 = vld [vmem:[%s2524 + $0x170] sm:$0xff]
      %v2572 = vld [vmem:[%s2524 + $0x178] sm:$0xff]
      %v2573 = vld [vmem:[%s2524 + $0x180] sm:$0xff]
      %v2574 = vld [vmem:[%s2524 + $0x188] sm:$0xff]
      %v2575 = vld [vmem:[%s2524 + $0x190] sm:$0xff]
      %v2576 = vld [vmem:[%s2524 + $0x198] sm:$0xff]
      %v2577 = vld [vmem:[%s2524 + $0x1a0] sm:$0xff]
      %v2578 = vld [vmem:[%s2524 + $0x1a8] sm:$0xff]
      %v2579 = vld [vmem:[%s2524 + $0x1b0] sm:$0xff]
      %v2580 = vld [vmem:[%s2524 + $0x1b8] sm:$0xff]
      %v2581 = vld [vmem:[%s2524 + $0x1c0] sm:$0xff]
      %v2582 = vld [vmem:[%s2524 + $0x1c8] sm:$0xff]
      %v2583 = vld [vmem:[%s2524 + $0x1d0] sm:$0xff]
      %v2584 = vld [vmem:[%s2524 + $0x1d8] sm:$0xff]
      %v2585 = vld [vmem:[%s2524 + $0x1e0] sm:$0xff]
      %v2586 = vld [vmem:[%s2524 + $0x1e8] sm:$0xff]
      %v2587 = vld [vmem:[%s2524 + $0x1f0] sm:$0xff]
      %v2588 = vld [vmem:[%s2524 + $0x1f8] sm:$0xff]
      %v2589 = vld [vmem:[%s2524 + $0x200] sm:$0xff]
      %v2590 = vld [vmem:[%s2524 + $0x208] sm:$0xff]
      %v2591 = vld [vmem:[%s2524 + $0x210] sm:$0xff]
      %v2592 = vld [vmem:[%s2524 + $0x218] sm:$0xff]
      %v2593 = vld [vmem:[%s2524 + $0x220] sm:$0xff]
      %v2594 = vld [vmem:[%s2524 + $0x228] sm:$0xff]
      %v2595 = vld [vmem:[%s2524 + $0x230] sm:$0xff]
      %v2596 = vld [vmem:[%s2524 + $0x238] sm:$0xff]
      %v2597 = vld [vmem:[%s2524 + $0x240] sm:$0xff]
      %v2598 = vld [vmem:[%s2524 + $0x248] sm:$0xff]
      %v2599 = vld [vmem:[%s2524 + $0x250] sm:$0xff]
      %v2600 = vld [vmem:[%s2524 + $0x258] sm:$0xff]
      %v2601 = vld [vmem:[%s2524 + $0x260] sm:$0xff]
      %v2602 = vld [vmem:[%s2524 + $0x268] sm:$0xff]
      %v2603 = vld [vmem:[%s2524 + $0x270] sm:$0xff]
      %v2604 = vld [vmem:[%s2524 + $0x278] sm:$0xff]
      %v2605 = vld [vmem:[%s2524 + $0x280] sm:$0xff]
      %v2606 = vld [vmem:[%s2524 + $0x288] sm:$0xff]
      %v2607 = vld [vmem:[%s2524 + $0x290] sm:$0xff]
      %v2608 = vld [vmem:[%s2524 + $0x298] sm:$0xff]
      %v2609 = vld [vmem:[%s2524 + $0x2a0] sm:$0xff]
      %v2610 = vld [vmem:[%s2524 + $0x2a8] sm:$0xff]
      %v2611 = vld [vmem:[%s2524 + $0x2b0] sm:$0xff]
      %v2612 = vld [vmem:[%s2524 + $0x2b8] sm:$0xff]
      %v2613 = vld [vmem:[%s2524 + $0x2c0] sm:$0xff]
      %v2614 = vld [vmem:[%s2524 + $0x2c8] sm:$0xff]
      %v2615 = vld [vmem:[%s2524 + $0x2d0] sm:$0xff]
      %v2616 = vld [vmem:[%s2524 + $0x2d8] sm:$0xff]
      %v2617 = vld [vmem:[%s2524 + $0x2e0] sm:$0xff]
      %v2618 = vld [vmem:[%s2524 + $0x2e8] sm:$0xff]
      %v2619 = vld [vmem:[%s2524 + $0x2f0] sm:$0xff]
      %v2620 = vld [vmem:[%s2524 + $0x2f8] sm:$0xff]
      %v2627 = vrot.slane %v2518, 1
      %v2628 = vrot.slane %v2519, 1
      %v2629 = vrot.slane %v2520, 1
      %v2630 = vrot.slane %v2521, 1
      %v2631 = vrot.slane %v2522, 1
      %v2632 = vrot.slane %v2523, 1
      %v2735 = vunpack.c.l.b16 %v2525
      %v2736 = vunpack.c.h.b16 %v2525
      %v2737 = vunpack.c.l.b16 %v2526
      %v2738 = vunpack.c.h.b16 %v2526
      %v2739 = vunpack.c.l.b16 %v2527
      %v2740 = vunpack.c.h.b16 %v2527
      %v2741 = vunpack.c.l.b16 %v2528
      %v2742 = vunpack.c.h.b16 %v2528
      %v2743 = vunpack.c.l.b16 %v2529
      %v2744 = vunpack.c.h.b16 %v2529
      %v2745 = vunpack.c.l.b16 %v2530
      %v2746 = vunpack.c.h.b16 %v2530
      %v2747 = vunpack.c.l.b16 %v2531
      %v2748 = vunpack.c.h.b16 %v2531
      %v2749 = vunpack.c.l.b16 %v2532
      %v2750 = vunpack.c.h.b16 %v2532
      %v2751 = vunpack.c.l.b16 %v2533
      %v2752 = vunpack.c.h.b16 %v2533
      %v2753 = vunpack.c.l.b16 %v2534
      %v2754 = vunpack.c.h.b16 %v2534
      %v2755 = vunpack.c.l.b16 %v2535
      %v2756 = vunpack.c.h.b16 %v2535
      %v2757 = vunpack.c.l.b16 %v2536
      %v2758 = vunpack.c.h.b16 %v2536
      %v2759 = vunpack.c.l.b16 %v2537
      %v2760 = vunpack.c.h.b16 %v2537
      %v2761 = vunpack.c.l.b16 %v2538
      %v2762 = vunpack.c.h.b16 %v2538
      %v2763 = vunpack.c.l.b16 %v2539
      %v2764 = vunpack.c.h.b16 %v2539
      %v2765 = vunpack.c.l.b16 %v2540
      %v2766 = vunpack.c.h.b16 %v2540
      %v2767 = vunpack.c.l.b16 %v2541
      %v2768 = vunpack.c.h.b16 %v2541
      %v2769 = vunpack.c.l.b16 %v2542
      %v2770 = vunpack.c.h.b16 %v2542
      %v2771 = vunpack.c.l.b16 %v2543
      %v2772 = vunpack.c.h.b16 %v2543
      %v2773 = vunpack.c.l.b16 %v2544
      %v2774 = vunpack.c.h.b16 %v2544
      %v2775 = vunpack.c.l.b16 %v2545
      %v2776 = vunpack.c.h.b16 %v2545
      %v2777 = vunpack.c.l.b16 %v2546
      %v2778 = vunpack.c.h.b16 %v2546
      %v2779 = vunpack.c.l.b16 %v2547
      %v2780 = vunpack.c.h.b16 %v2547
      %v2781 = vunpack.c.l.b16 %v2548
      %v2782 = vunpack.c.h.b16 %v2548
      %v2783 = vunpack.c.l.b16 %v2549
      %v2784 = vunpack.c.h.b16 %v2549
      %v2785 = vunpack.c.l.b16 %v2550
      %v2786 = vunpack.c.h.b16 %v2550
      %v2787 = vunpack.c.l.b16 %v2551
      %v2788 = vunpack.c.h.b16 %v2551
      %v2789 = vunpack.c.l.b16 %v2552
      %v2790 = vunpack.c.h.b16 %v2552
      %v2791 = vunpack.c.l.b16 %v2553
      %v2792 = vunpack.c.h.b16 %v2553
      %v2793 = vunpack.c.l.b16 %v2554
      %v2794 = vunpack.c.h.b16 %v2554
      %v2795 = vunpack.c.l.b16 %v2555
      %v2796 = vunpack.c.h.b16 %v2555
      %v2797 = vunpack.c.l.b16 %v2556
      %v2798 = vunpack.c.h.b16 %v2556
      %v2799 = vunpack.c.l.b16 %v2557
      %v2800 = vunpack.c.h.b16 %v2557
      %v2801 = vunpack.c.l.b16 %v2558
      %v2802 = vunpack.c.h.b16 %v2558
      %v2803 = vunpack.c.l.b16 %v2559
      %v2804 = vunpack.c.h.b16 %v2559
      %v2805 = vunpack.c.l.b16 %v2560
      %v2806 = vunpack.c.h.b16 %v2560
      %v2807 = vunpack.c.l.b16 %v2561
      %v2808 = vunpack.c.h.b16 %v2561
      %v2809 = vunpack.c.l.b16 %v2562
      %v2810 = vunpack.c.h.b16 %v2562
      %v2811 = vunpack.c.l.b16 %v2563
      %v2812 = vunpack.c.h.b16 %v2563
      %v2813 = vunpack.c.l.b16 %v2564
      %v2814 = vunpack.c.h.b16 %v2564
      %v2815 = vunpack.c.l.b16 %v2565
      %v2816 = vunpack.c.h.b16 %v2565
      %v2817 = vunpack.c.l.b16 %v2566
      %v2818 = vunpack.c.h.b16 %v2566
      %v2819 = vunpack.c.l.b16 %v2567
      %v2820 = vunpack.c.h.b16 %v2567
      %v2821 = vunpack.c.l.b16 %v2568
      %v2822 = vunpack.c.h.b16 %v2568
      %v2823 = vunpack.c.l.b16 %v2569
      %v2824 = vunpack.c.h.b16 %v2569
      %v2825 = vunpack.c.l.b16 %v2570
      %v2826 = vunpack.c.h.b16 %v2570
      %v2827 = vunpack.c.l.b16 %v2571
      %v2828 = vunpack.c.h.b16 %v2571
      %v2829 = vunpack.c.l.b16 %v2572
      %v2830 = vunpack.c.h.b16 %v2572
      %v2831 = vunpack.c.l.b16 %v2573
      %v2832 = vunpack.c.h.b16 %v2573
      %v2833 = vunpack.c.l.b16 %v2574
      %v2834 = vunpack.c.h.b16 %v2574
      %v2835 = vunpack.c.l.b16 %v2575
      %v2836 = vunpack.c.h.b16 %v2575
      %v2837 = vunpack.c.l.b16 %v2576
      %v2838 = vunpack.c.h.b16 %v2576
      %v2839 = vunpack.c.l.b16 %v2577
      %v2840 = vunpack.c.h.b16 %v2577
      %v2841 = vunpack.c.l.b16 %v2578
      %v2842 = vunpack.c.h.b16 %v2578
      %v2843 = vunpack.c.l.b16 %v2579
      %v2844 = vunpack.c.h.b16 %v2579
      %v2845 = vunpack.c.l.b16 %v2580
      %v2846 = vunpack.c.h.b16 %v2580
      %v2847 = vunpack.c.l.b16 %v2581
      %v2848 = vunpack.c.h.b16 %v2581
      %v2849 = vunpack.c.l.b16 %v2582
      %v2850 = vunpack.c.h.b16 %v2582
      %v2851 = vunpack.c.l.b16 %v2583
      %v2852 = vunpack.c.h.b16 %v2583
      %v2853 = vunpack.c.l.b16 %v2584
      %v2854 = vunpack.c.h.b16 %v2584
      %v2855 = vunpack.c.l.b16 %v2585
      %v2856 = vunpack.c.h.b16 %v2585
      %v2857 = vunpack.c.l.b16 %v2586
      %v2858 = vunpack.c.h.b16 %v2586
      %v2859 = vunpack.c.l.b16 %v2587
      %v2860 = vunpack.c.h.b16 %v2587
      %v2861 = vunpack.c.l.b16 %v2588
      %v2862 = vunpack.c.h.b16 %v2588
      %v2863 = vunpack.c.l.b16 %v2589
      %v2864 = vunpack.c.h.b16 %v2589
      %v2865 = vunpack.c.l.b16 %v2590
      %v2866 = vunpack.c.h.b16 %v2590
      %v2867 = vunpack.c.l.b16 %v2591
      %v2868 = vunpack.c.h.b16 %v2591
      %v2869 = vunpack.c.l.b16 %v2592
      %v2870 = vunpack.c.h.b16 %v2592
      %v2871 = vunpack.c.l.b16 %v2593
      %v2872 = vunpack.c.h.b16 %v2593
      %v2873 = vunpack.c.l.b16 %v2594
      %v2874 = vunpack.c.h.b16 %v2594
      %v2875 = vunpack.c.l.b16 %v2595
      %v2876 = vunpack.c.h.b16 %v2595
      %v2877 = vunpack.c.l.b16 %v2596
      %v2878 = vunpack.c.h.b16 %v2596
      %v2879 = vunpack.c.l.b16 %v2597
      %v2880 = vunpack.c.h.b16 %v2597
      %v2881 = vunpack.c.l.b16 %v2598
      %v2882 = vunpack.c.h.b16 %v2598
      %v2883 = vunpack.c.l.b16 %v2599
      %v2884 = vunpack.c.h.b16 %v2599
      %v2885 = vunpack.c.l.b16 %v2600
      %v2886 = vunpack.c.h.b16 %v2600
      %v2887 = vunpack.c.l.b16 %v2601
      %v2888 = vunpack.c.h.b16 %v2601
      %v2889 = vunpack.c.l.b16 %v2602
      %v2890 = vunpack.c.h.b16 %v2602
      %v2891 = vunpack.c.l.b16 %v2603
      %v2892 = vunpack.c.h.b16 %v2603
      %v2893 = vunpack.c.l.b16 %v2604
      %v2894 = vunpack.c.h.b16 %v2604
      %v2895 = vunpack.c.l.b16 %v2605
      %v2896 = vunpack.c.h.b16 %v2605
      %v2897 = vunpack.c.l.b16 %v2606
      %v2898 = vunpack.c.h.b16 %v2606
      %v2899 = vunpack.c.l.b16 %v2607
      %v2900 = vunpack.c.h.b16 %v2607
      %v2901 = vunpack.c.l.b16 %v2608
      %v2902 = vunpack.c.h.b16 %v2608
      %v2903 = vunpack.c.l.b16 %v2609
      %v2904 = vunpack.c.h.b16 %v2609
      %v2905 = vunpack.c.l.b16 %v2610
      %v2906 = vunpack.c.h.b16 %v2610
      %v2907 = vunpack.c.l.b16 %v2611
      %v2908 = vunpack.c.h.b16 %v2611
      %v2909 = vunpack.c.l.b16 %v2612
      %v2910 = vunpack.c.h.b16 %v2612
      %v2911 = vunpack.c.l.b16 %v2613
      %v2912 = vunpack.c.h.b16 %v2613
      %v2913 = vunpack.c.l.b16 %v2614
      %v2914 = vunpack.c.h.b16 %v2614
      %v2915 = vunpack.c.l.b16 %v2615
      %v2916 = vunpack.c.h.b16 %v2615
      %v2917 = vunpack.c.l.b16 %v2616
      %v2918 = vunpack.c.h.b16 %v2616
      %v2919 = vunpack.c.l.b16 %v2617
      %v2920 = vunpack.c.h.b16 %v2617
      %v2921 = vunpack.c.l.b16 %v2618
      %v2922 = vunpack.c.h.b16 %v2618
      %v2923 = vunpack.c.l.b16 %v2619
      %v2924 = vunpack.c.h.b16 %v2619
      %v2925 = vunpack.c.l.b16 %v2620
      %v2926 = vunpack.c.h.b16 %v2620
      %v2927 = vpack.c.b16 %v2737, %v2735
      %v2928 = vpack.c.b16 %v2738, %v2736
      %v2929 = vpack.c.b16 %v2741, %v2739
      %v2930 = vpack.c.b16 %v2742, %v2740
      %v2931 = vpack.c.b16 %v2745, %v2743
      %v2932 = vpack.c.b16 %v2746, %v2744
      %v2933 = vpack.c.b16 %v2749, %v2747
      %v2934 = vpack.c.b16 %v2750, %v2748
      %v2935 = vpack.c.b16 %v2753, %v2751
      %v2936 = vpack.c.b16 %v2754, %v2752
      %v2937 = vpack.c.b16 %v2757, %v2755
      %v2938 = vpack.c.b16 %v2758, %v2756
      %v2939 = vpack.c.b16 %v2761, %v2759
      %v2940 = vpack.c.b16 %v2762, %v2760
      %v2941 = vpack.c.b16 %v2765, %v2763
      %v2942 = vpack.c.b16 %v2766, %v2764
      %v2943 = vpack.c.b16 %v2769, %v2767
      %v2944 = vpack.c.b16 %v2770, %v2768
      %v2945 = vpack.c.b16 %v2773, %v2771
      %v2946 = vpack.c.b16 %v2774, %v2772
      %v2947 = vpack.c.b16 %v2777, %v2775
      %v2948 = vpack.c.b16 %v2778, %v2776
      %v2949 = vpack.c.b16 %v2781, %v2779
      %v2950 = vpack.c.b16 %v2782, %v2780
      %v2951 = vpack.c.b16 %v2785, %v2783
      %v2952 = vpack.c.b16 %v2786, %v2784
      %v2953 = vpack.c.b16 %v2789, %v2787
      %v2954 = vpack.c.b16 %v2790, %v2788
      %v2955 = vpack.c.b16 %v2793, %v2791
      %v2956 = vpack.c.b16 %v2794, %v2792
      %v2957 = vpack.c.b16 %v2797, %v2795
      %v2958 = vpack.c.b16 %v2798, %v2796
      %v2959 = vpack.c.b16 %v2801, %v2799
      %v2960 = vpack.c.b16 %v2802, %v2800
      %v2961 = vpack.c.b16 %v2805, %v2803
      %v2962 = vpack.c.b16 %v2806, %v2804
      %v2963 = vpack.c.b16 %v2809, %v2807
      %v2964 = vpack.c.b16 %v2810, %v2808
      %v2965 = vpack.c.b16 %v2813, %v2811
      %v2966 = vpack.c.b16 %v2814, %v2812
      %v2967 = vpack.c.b16 %v2817, %v2815
      %v2968 = vpack.c.b16 %v2818, %v2816
      %v2969 = vpack.c.b16 %v2821, %v2819
      %v2970 = vpack.c.b16 %v2822, %v2820
      %v2971 = vpack.c.b16 %v2825, %v2823
      %v2972 = vpack.c.b16 %v2826, %v2824
      %v2973 = vpack.c.b16 %v2829, %v2827
      %v2974 = vpack.c.b16 %v2830, %v2828
      %v2975 = vpack.c.b16 %v2833, %v2831
      %v2976 = vpack.c.b16 %v2834, %v2832
      %v2977 = vpack.c.b16 %v2837, %v2835
      %v2978 = vpack.c.b16 %v2838, %v2836
      %v2979 = vpack.c.b16 %v2841, %v2839
      %v2980 = vpack.c.b16 %v2842, %v2840
      %v2981 = vpack.c.b16 %v2845, %v2843
      %v2982 = vpack.c.b16 %v2846, %v2844
      %v2983 = vpack.c.b16 %v2849, %v2847
      %v2984 = vpack.c.b16 %v2850, %v2848
      %v2985 = vpack.c.b16 %v2853, %v2851
      %v2986 = vpack.c.b16 %v2854, %v2852
      %v2987 = vpack.c.b16 %v2857, %v2855
      %v2988 = vpack.c.b16 %v2858, %v2856
      %v2989 = vpack.c.b16 %v2861, %v2859
      %v2990 = vpack.c.b16 %v2862, %v2860
      %v2991 = vpack.c.b16 %v2865, %v2863
      %v2992 = vpack.c.b16 %v2866, %v2864
      %v2993 = vpack.c.b16 %v2869, %v2867
      %v2994 = vpack.c.b16 %v2870, %v2868
      %v2995 = vpack.c.b16 %v2873, %v2871
      %v2996 = vpack.c.b16 %v2874, %v2872
      %v2997 = vpack.c.b16 %v2877, %v2875
      %v2998 = vpack.c.b16 %v2878, %v2876
      %v2999 = vpack.c.b16 %v2881, %v2879
      %v3000 = vpack.c.b16 %v2882, %v2880
      %v3001 = vpack.c.b16 %v2885, %v2883
      %v3002 = vpack.c.b16 %v2886, %v2884
      %v3003 = vpack.c.b16 %v2889, %v2887
      %v3004 = vpack.c.b16 %v2890, %v2888
      %v3005 = vpack.c.b16 %v2893, %v2891
      %v3006 = vpack.c.b16 %v2894, %v2892
      %v3007 = vpack.c.b16 %v2897, %v2895
      %v3008 = vpack.c.b16 %v2898, %v2896
      %v3009 = vpack.c.b16 %v2901, %v2899
      %v3010 = vpack.c.b16 %v2902, %v2900
      %v3011 = vpack.c.b16 %v2905, %v2903
      %v3012 = vpack.c.b16 %v2906, %v2904
      %v3013 = vpack.c.b16 %v2909, %v2907
      %v3014 = vpack.c.b16 %v2910, %v2908
      %v3015 = vpack.c.b16 %v2913, %v2911
      %v3016 = vpack.c.b16 %v2914, %v2912
      %v3017 = vpack.c.b16 %v2917, %v2915
      %v3018 = vpack.c.b16 %v2918, %v2916
      %v3019 = vpack.c.b16 %v2921, %v2919
      %v3020 = vpack.c.b16 %v2922, %v2920
      %v3021 = vpack.c.b16 %v2925, %v2923
      %v3022 = vpack.c.b16 %v2926, %v2924
      %3119 = vmatprep.subr.bf16.mxu0 %v2928
      %3120 = vmatpush1.bf16.msra.mxu0 %v2927
      %3121 = vmatprep.subr.bf16.mxu0 %v2930
      %3122 = vmatpush1.bf16.msra.mxu0 %v2929
      %3123 = vmatprep.subr.bf16.mxu0 %v2932
      %3124 = vmatpush1.bf16.msra.mxu0 %v2931
      %3125 = vmatprep.subr.bf16.mxu0 %v2934
      %3126 = vmatpush1.bf16.msra.mxu0 %v2933
      %3127 = vmatprep.subr.bf16.mxu0 %v2936
      %3128 = vmatpush1.bf16.msra.mxu0 %v2935
      %3129 = vmatprep.subr.bf16.mxu0 %v2938
      %3130 = vmatpush1.bf16.msra.mxu0 %v2937
      %3131 = vmatprep.subr.bf16.mxu0 %v2940
      %3132 = vmatpush1.bf16.msra.mxu0 %v2939
      %3133 = vmatprep.subr.bf16.mxu0 %v2942
      %3134 = vmatpush1.bf16.msra.mxu0 %v2941
      %3135 = vmatprep.subr.bf16.mxu0 %v2944
      %3136 = vmatpush1.bf16.msra.mxu0 %v2943
      %3137 = vmatprep.subr.bf16.mxu0 %v2946
      %3138 = vmatpush1.bf16.msra.mxu0 %v2945
      %3139 = vmatprep.subr.bf16.mxu0 %v2948
      %3140 = vmatpush1.bf16.msra.mxu0 %v2947
      %3141 = vmatprep.subr.bf16.mxu0 %v2950
      %3142 = vmatpush1.bf16.msra.mxu0 %v2949
      %3143 = vmatprep.subr.bf16.mxu0 %v2952
      %3144 = vmatpush1.bf16.msra.mxu0 %v2951
      %3145 = vmatprep.subr.bf16.mxu0 %v2954
      %3146 = vmatpush1.bf16.msra.mxu0 %v2953
      %3147 = vmatprep.subr.bf16.mxu0 %v2956
      %3148 = vmatpush1.bf16.msra.mxu0 %v2955
      %3149 = vmatprep.subr.bf16.mxu0 %v2958
      %3150 = vmatpush1.bf16.msra.mxu0 %v2957
      %3151 = vmatprep.mubr.bf16.mxu0 %v2628
      %3152 = vmatmul.mubr.bf16.gmra.mrb[0].mxu0 %v2627
      %v3153 = vpop.f32.mrb[0].mxu0
      %v3154 = vadd.f32 0.0, %v3153
      %v3155 = vpop.f32.mrb[0].mxu0
      %v3156 = vadd.f32 0.0, %v3155
      %v3157 = vpop.f32.mrb[0].mxu0
      %v3158 = vpop.f32.mrb[0].mxu0
      %3159 = vdwg.mxu0
      %3160 = vmatprep.subr.bf16.mxu0 %v2960
      %3161 = vmatpush1.bf16.msra.mxu0 %v2959
      %3162 = vmatprep.subr.bf16.mxu0 %v2962
      %3163 = vmatpush1.bf16.msra.mxu0 %v2961
      %3164 = vmatprep.subr.bf16.mxu0 %v2964
      %3165 = vmatpush1.bf16.msra.mxu0 %v2963
      %3166 = vmatprep.subr.bf16.mxu0 %v2966
      %3167 = vmatpush1.bf16.msra.mxu0 %v2965
      %3168 = vmatprep.subr.bf16.mxu0 %v2968
      %3169 = vmatpush1.bf16.msra.mxu0 %v2967
      %3170 = vmatprep.subr.bf16.mxu0 %v2970
      %3171 = vmatpush1.bf16.msra.mxu0 %v2969
      %3172 = vmatprep.subr.bf16.mxu0 %v2972
      %3173 = vmatpush1.bf16.msra.mxu0 %v2971
      %3174 = vmatprep.subr.bf16.mxu0 %v2974
      %3175 = vmatpush1.bf16.msra.mxu0 %v2973
      %3176 = vmatprep.subr.bf16.mxu0 %v2976
      %3177 = vmatpush1.bf16.msra.mxu0 %v2975
      %3178 = vmatprep.subr.bf16.mxu0 %v2978
      %3179 = vmatpush1.bf16.msra.mxu0 %v2977
      %3180 = vmatprep.subr.bf16.mxu0 %v2980
      %3181 = vmatpush1.bf16.msra.mxu0 %v2979
      %3182 = vmatprep.subr.bf16.mxu0 %v2982
      %3183 = vmatpush1.bf16.msra.mxu0 %v2981
      %3184 = vmatprep.subr.bf16.mxu0 %v2984
      %3185 = vmatpush1.bf16.msra.mxu0 %v2983
      %3186 = vmatprep.subr.bf16.mxu0 %v2986
      %3187 = vmatpush1.bf16.msra.mxu0 %v2985
      %3188 = vmatprep.subr.bf16.mxu0 %v2988
      %3189 = vmatpush1.bf16.msra.mxu0 %v2987
      %3190 = vmatprep.subr.bf16.mxu0 %v2990
      %3191 = vmatpush1.bf16.msra.mxu0 %v2989
      %3192 = vmatprep.mubr.bf16.mxu0 %v2630
      %3193 = vmatmul.mubr.bf16.gmra.mrb[0].mxu0 %v2629
      %v3194 = vpop.f32.mrb[0].mxu0
      %v3195 = vadd.f32 %v3154, %v3194
      %v3196 = vpop.f32.mrb[0].mxu0
      %v3197 = vadd.f32 %v3156, %v3196
      %v3198 = vpop.f32.mrb[0].mxu0
      %v3199 = vpop.f32.mrb[0].mxu0
      %3200 = vdwg.mxu0
      %3201 = vmatprep.subr.bf16.mxu0 %v2992
      %3202 = vmatpush1.bf16.msra.mxu0 %v2991
      %3203 = vmatprep.subr.bf16.mxu0 %v2994
      %3204 = vmatpush1.bf16.msra.mxu0 %v2993
      %3205 = vmatprep.subr.bf16.mxu0 %v2996
      %3206 = vmatpush1.bf16.msra.mxu0 %v2995
      %3207 = vmatprep.subr.bf16.mxu0 %v2998
      %3208 = vmatpush1.bf16.msra.mxu0 %v2997
      %3209 = vmatprep.subr.bf16.mxu0 %v3000
      %3210 = vmatpush1.bf16.msra.mxu0 %v2999
      %3211 = vmatprep.subr.bf16.mxu0 %v3002
      %3212 = vmatpush1.bf16.msra.mxu0 %v3001
      %3213 = vmatprep.subr.bf16.mxu0 %v3004
      %3214 = vmatpush1.bf16.msra.mxu0 %v3003
      %3215 = vmatprep.subr.bf16.mxu0 %v3006
      %3216 = vmatpush1.bf16.msra.mxu0 %v3005
      %3217 = vmatprep.subr.bf16.mxu0 %v3008
      %3218 = vmatpush1.bf16.msra.mxu0 %v3007
      %3219 = vmatprep.subr.bf16.mxu0 %v3010
      %3220 = vmatpush1.bf16.msra.mxu0 %v3009
      %3221 = vmatprep.subr.bf16.mxu0 %v3012
      %3222 = vmatpush1.bf16.msra.mxu0 %v3011
      %3223 = vmatprep.subr.bf16.mxu0 %v3014
      %3224 = vmatpush1.bf16.msra.mxu0 %v3013
      %3225 = vmatprep.subr.bf16.mxu0 %v3016
      %3226 = vmatpush1.bf16.msra.mxu0 %v3015
      %3227 = vmatprep.subr.bf16.mxu0 %v3018
      %3228 = vmatpush1.bf16.msra.mxu0 %v3017
      %3229 = vmatprep.subr.bf16.mxu0 %v3020
      %3230 = vmatpush1.bf16.msra.mxu0 %v3019
      %3231 = vmatprep.subr.bf16.mxu0 %v3022
      %3232 = vmatpush1.bf16.msra.mxu0 %v3021
      %3233 = vmatprep.mubr.bf16.mxu0 %v2632
      %3234 = vmatmul.mubr.bf16.gmra.mrb[0].mxu0 %v2631
      %v3235 = vpop.f32.mrb[0].mxu0
      %v3236 = vadd.f32 %v3195, %v3235
      %v3237 = vpop.f32.mrb[0].mxu0
      %v3238 = vadd.f32 %v3197, %v3237
      %v3239 = vpop.f32.mrb[0].mxu0
      %v3240 = vpop.f32.mrb[0].mxu0
      %3241 = vdwg.mxu0
      %v3242 = vadd.f32 %v2500, %v3236
      %v3243 = vadd.f32 %v2502, %v3238
      %v3244 = vld [vmem:[#allocation2] sm:$0xf8]
      %v3245 = vld [vmem:[#allocation2 + $0x8] sm:$0xf8]
      %v3246 = vld [vmem:[#allocation2 + $0x10] sm:$0xf8]
      %v3247 = vld [vmem:[#allocation2 + $0x18] sm:$0xf8]
      %v3248 = vld [vmem:[#allocation2 + $0x20] sm:$0xf8]
      %v3249 = vld [vmem:[#allocation2 + $0x28] sm:$0xf8]
      %v3250 = vld [vmem:[#allocation2 + $0x30] sm:$0x7]
      %v3251 = vld [vmem:[#allocation2 + $0x38] sm:$0x7]
      %v3252 = vld [vmem:[#allocation2 + $0x40] sm:$0x7]
      %v3253 = vld [vmem:[#allocation2 + $0x48] sm:$0x7]
      %v3254 = vld [vmem:[#allocation2 + $0x50] sm:$0x7]
      %v3255 = vld [vmem:[#allocation2 + $0x58] sm:$0x7]
      %v3256 = vpack.c.bf16 %v3250, %v3244
      %v3257 = vpack.c.bf16 %v3251, %v3245
      %v3258 = vpack.c.bf16 %v3252, %v3246
      %v3259 = vpack.c.bf16 %v3253, %v3247
      %v3260 = vpack.c.bf16 %v3254, %v3248
      %v3261 = vpack.c.bf16 %v3255, %v3249
      %s3262 = scalar_lea.vmem %s3, 2304
      %v3263 = vld [vmem:[%s3262] sm:$0xff]
      %v3264 = vld [vmem:[%s3262 + $0x8] sm:$0xff]
      %v3265 = vld [vmem:[%s3262 + $0x10] sm:$0xff]
      %v3266 = vld [vmem:[%s3262 + $0x18] sm:$0xff]
      %v3267 = vld [vmem:[%s3262 + $0x20] sm:$0xff]
      %v3268 = vld [vmem:[%s3262 + $0x28] sm:$0xff]
      %v3269 = vld [vmem:[%s3262 + $0x30] sm:$0xff]
      %v3270 = vld [vmem:[%s3262 + $0x38] sm:$0xff]
      %v3271 = vld [vmem:[%s3262 + $0x40] sm:$0xff]
      %v3272 = vld [vmem:[%s3262 + $0x48] sm:$0xff]
      %v3273 = vld [vmem:[%s3262 + $0x50] sm:$0xff]
      %v3274 = vld [vmem:[%s3262 + $0x58] sm:$0xff]
      %v3275 = vld [vmem:[%s3262 + $0x60] sm:$0xff]
      %v3276 = vld [vmem:[%s3262 + $0x68] sm:$0xff]
      %v3277 = vld [vmem:[%s3262 + $0x70] sm:$0xff]
      %v3278 = vld [vmem:[%s3262 + $0x78] sm:$0xff]
      %v3279 = vld [vmem:[%s3262 + $0x80] sm:$0xff]
      %v3280 = vld [vmem:[%s3262 + $0x88] sm:$0xff]
      %v3281 = vld [vmem:[%s3262 + $0x90] sm:$0xff]
      %v3282 = vld [vmem:[%s3262 + $0x98] sm:$0xff]
      %v3283 = vld [vmem:[%s3262 + $0xa0] sm:$0xff]
      %v3284 = vld [vmem:[%s3262 + $0xa8] sm:$0xff]
      %v3285 = vld [vmem:[%s3262 + $0xb0] sm:$0xff]
      %v3286 = vld [vmem:[%s3262 + $0xb8] sm:$0xff]
      %v3287 = vld [vmem:[%s3262 + $0xc0] sm:$0xff]
      %v3288 = vld [vmem:[%s3262 + $0xc8] sm:$0xff]
      %v3289 = vld [vmem:[%s3262 + $0xd0] sm:$0xff]
      %v3290 = vld [vmem:[%s3262 + $0xd8] sm:$0xff]
      %v3291 = vld [vmem:[%s3262 + $0xe0] sm:$0xff]
      %v3292 = vld [vmem:[%s3262 + $0xe8] sm:$0xff]
      %v3293 = vld [vmem:[%s3262 + $0xf0] sm:$0xff]
      %v3294 = vld [vmem:[%s3262 + $0xf8] sm:$0xff]
      %v3295 = vld [vmem:[%s3262 + $0x100] sm:$0xff]
      %v3296 = vld [vmem:[%s3262 + $0x108] sm:$0xff]
      %v3297 = vld [vmem:[%s3262 + $0x110] sm:$0xff]
      %v3298 = vld [vmem:[%s3262 + $0x118] sm:$0xff]
      %v3299 = vld [vmem:[%s3262 + $0x120] sm:$0xff]
      %v3300 = vld [vmem:[%s3262 + $0x128] sm:$0xff]
      %v3301 = vld [vmem:[%s3262 + $0x130] sm:$0xff]
      %v3302 = vld [vmem:[%s3262 + $0x138] sm:$0xff]
      %v3303 = vld [vmem:[%s3262 + $0x140] sm:$0xff]
      %v3304 = vld [vmem:[%s3262 + $0x148] sm:$0xff]
      %v3305 = vld [vmem:[%s3262 + $0x150] sm:$0xff]
      %v3306 = vld [vmem:[%s3262 + $0x158] sm:$0xff]
      %v3307 = vld [vmem:[%s3262 + $0x160] sm:$0xff]
      %v3308 = vld [vmem:[%s3262 + $0x168] sm:$0xff]
      %v3309 = vld [vmem:[%s3262 + $0x170] sm:$0xff]
      %v3310 = vld [vmem:[%s3262 + $0x178] sm:$0xff]
      %v3311 = vld [vmem:[%s3262 + $0x180] sm:$0xff]
      %v3312 = vld [vmem:[%s3262 + $0x188] sm:$0xff]
      %v3313 = vld [vmem:[%s3262 + $0x190] sm:$0xff]
      %v3314 = vld [vmem:[%s3262 + $0x198] sm:$0xff]
      %v3315 = vld [vmem:[%s3262 + $0x1a0] sm:$0xff]
      %v3316 = vld [vmem:[%s3262 + $0x1a8] sm:$0xff]
      %v3317 = vld [vmem:[%s3262 + $0x1b0] sm:$0xff]
      %v3318 = vld [vmem:[%s3262 + $0x1b8] sm:$0xff]
      %v3319 = vld [vmem:[%s3262 + $0x1c0] sm:$0xff]
      %v3320 = vld [vmem:[%s3262 + $0x1c8] sm:$0xff]
      %v3321 = vld [vmem:[%s3262 + $0x1d0] sm:$0xff]
      %v3322 = vld [vmem:[%s3262 + $0x1d8] sm:$0xff]
      %v3323 = vld [vmem:[%s3262 + $0x1e0] sm:$0xff]
      %v3324 = vld [vmem:[%s3262 + $0x1e8] sm:$0xff]
      %v3325 = vld [vmem:[%s3262 + $0x1f0] sm:$0xff]
      %v3326 = vld [vmem:[%s3262 + $0x1f8] sm:$0xff]
      %v3327 = vld [vmem:[%s3262 + $0x200] sm:$0xff]
      %v3328 = vld [vmem:[%s3262 + $0x208] sm:$0xff]
      %v3329 = vld [vmem:[%s3262 + $0x210] sm:$0xff]
      %v3330 = vld [vmem:[%s3262 + $0x218] sm:$0xff]
      %v3331 = vld [vmem:[%s3262 + $0x220] sm:$0xff]
      %v3332 = vld [vmem:[%s3262 + $0x228] sm:$0xff]
      %v3333 = vld [vmem:[%s3262 + $0x230] sm:$0xff]
      %v3334 = vld [vmem:[%s3262 + $0x238] sm:$0xff]
      %v3335 = vld [vmem:[%s3262 + $0x240] sm:$0xff]
      %v3336 = vld [vmem:[%s3262 + $0x248] sm:$0xff]
      %v3337 = vld [vmem:[%s3262 + $0x250] sm:$0xff]
      %v3338 = vld [vmem:[%s3262 + $0x258] sm:$0xff]
      %v3339 = vld [vmem:[%s3262 + $0x260] sm:$0xff]
      %v3340 = vld [vmem:[%s3262 + $0x268] sm:$0xff]
      %v3341 = vld [vmem:[%s3262 + $0x270] sm:$0xff]
      %v3342 = vld [vmem:[%s3262 + $0x278] sm:$0xff]
      %v3343 = vld [vmem:[%s3262 + $0x280] sm:$0xff]
      %v3344 = vld [vmem:[%s3262 + $0x288] sm:$0xff]
      %v3345 = vld [vmem:[%s3262 + $0x290] sm:$0xff]
      %v3346 = vld [vmem:[%s3262 + $0x298] sm:$0xff]
      %v3347 = vld [vmem:[%s3262 + $0x2a0] sm:$0xff]
      %v3348 = vld [vmem:[%s3262 + $0x2a8] sm:$0xff]
      %v3349 = vld [vmem:[%s3262 + $0x2b0] sm:$0xff]
      %v3350 = vld [vmem:[%s3262 + $0x2b8] sm:$0xff]
      %v3351 = vld [vmem:[%s3262 + $0x2c0] sm:$0xff]
      %v3352 = vld [vmem:[%s3262 + $0x2c8] sm:$0xff]
      %v3353 = vld [vmem:[%s3262 + $0x2d0] sm:$0xff]
      %v3354 = vld [vmem:[%s3262 + $0x2d8] sm:$0xff]
      %v3355 = vld [vmem:[%s3262 + $0x2e0] sm:$0xff]
      %v3356 = vld [vmem:[%s3262 + $0x2e8] sm:$0xff]
      %v3357 = vld [vmem:[%s3262 + $0x2f0] sm:$0xff]
      %v3358 = vld [vmem:[%s3262 + $0x2f8] sm:$0xff]
      %v3360 = vshrl.u32 %v3256, 16
      %v3362 = vrot.slane %v3360, 1
      %v3363 = vshll.u32 %v3256, 16
      %v3365 = vrot.slane %v3363, 2
      %v3366 = vor.u32 %v3362, %v3365
      %v3368 = vshrl.u32 %v3257, 16
      %v3370 = vrot.slane %v3368, 1
      %v3371 = vshll.u32 %v3257, 16
      %v3373 = vrot.slane %v3371, 2
      %v3374 = vor.u32 %v3370, %v3373
      %v3376 = vshrl.u32 %v3258, 16
      %v3378 = vrot.slane %v3376, 1
      %v3379 = vshll.u32 %v3258, 16
      %v3381 = vrot.slane %v3379, 2
      %v3382 = vor.u32 %v3378, %v3381
      %v3384 = vshrl.u32 %v3259, 16
      %v3386 = vrot.slane %v3384, 1
      %v3387 = vshll.u32 %v3259, 16
      %v3389 = vrot.slane %v3387, 2
      %v3390 = vor.u32 %v3386, %v3389
      %v3392 = vshrl.u32 %v3260, 16
      %v3394 = vrot.slane %v3392, 1
      %v3395 = vshll.u32 %v3260, 16
      %v3397 = vrot.slane %v3395, 2
      %v3398 = vor.u32 %v3394, %v3397
      %v3400 = vshrl.u32 %v3261, 16
      %v3402 = vrot.slane %v3400, 1
      %v3403 = vshll.u32 %v3261, 16
      %v3405 = vrot.slane %v3403, 2
      %v3406 = vor.u32 %v3402, %v3405
      %v3509 = vunpack.c.l.b16 %v3263
      %v3510 = vunpack.c.h.b16 %v3263
      %v3511 = vunpack.c.l.b16 %v3264
      %v3512 = vunpack.c.h.b16 %v3264
      %v3513 = vunpack.c.l.b16 %v3265
      %v3514 = vunpack.c.h.b16 %v3265
      %v3515 = vunpack.c.l.b16 %v3266
      %v3516 = vunpack.c.h.b16 %v3266
      %v3517 = vunpack.c.l.b16 %v3267
      %v3518 = vunpack.c.h.b16 %v3267
      %v3519 = vunpack.c.l.b16 %v3268
      %v3520 = vunpack.c.h.b16 %v3268
      %v3521 = vunpack.c.l.b16 %v3269
      %v3522 = vunpack.c.h.b16 %v3269
      %v3523 = vunpack.c.l.b16 %v3270
      %v3524 = vunpack.c.h.b16 %v3270
      %v3525 = vunpack.c.l.b16 %v3271
      %v3526 = vunpack.c.h.b16 %v3271
      %v3527 = vunpack.c.l.b16 %v3272
      %v3528 = vunpack.c.h.b16 %v3272
      %v3529 = vunpack.c.l.b16 %v3273
      %v3530 = vunpack.c.h.b16 %v3273
      %v3531 = vunpack.c.l.b16 %v3274
      %v3532 = vunpack.c.h.b16 %v3274
      %v3533 = vunpack.c.l.b16 %v3275
      %v3534 = vunpack.c.h.b16 %v3275
      %v3535 = vunpack.c.l.b16 %v3276
      %v3536 = vunpack.c.h.b16 %v3276
      %v3537 = vunpack.c.l.b16 %v3277
      %v3538 = vunpack.c.h.b16 %v3277
      %v3539 = vunpack.c.l.b16 %v3278
      %v3540 = vunpack.c.h.b16 %v3278
      %v3541 = vunpack.c.l.b16 %v3279
      %v3542 = vunpack.c.h.b16 %v3279
      %v3543 = vunpack.c.l.b16 %v3280
      %v3544 = vunpack.c.h.b16 %v3280
      %v3545 = vunpack.c.l.b16 %v3281
      %v3546 = vunpack.c.h.b16 %v3281
      %v3547 = vunpack.c.l.b16 %v3282
      %v3548 = vunpack.c.h.b16 %v3282
      %v3549 = vunpack.c.l.b16 %v3283
      %v3550 = vunpack.c.h.b16 %v3283
      %v3551 = vunpack.c.l.b16 %v3284
      %v3552 = vunpack.c.h.b16 %v3284
      %v3553 = vunpack.c.l.b16 %v3285
      %v3554 = vunpack.c.h.b16 %v3285
      %v3555 = vunpack.c.l.b16 %v3286
      %v3556 = vunpack.c.h.b16 %v3286
      %v3557 = vunpack.c.l.b16 %v3287
      %v3558 = vunpack.c.h.b16 %v3287
      %v3559 = vunpack.c.l.b16 %v3288
      %v3560 = vunpack.c.h.b16 %v3288
      %v3561 = vunpack.c.l.b16 %v3289
      %v3562 = vunpack.c.h.b16 %v3289
      %v3563 = vunpack.c.l.b16 %v3290
      %v3564 = vunpack.c.h.b16 %v3290
      %v3565 = vunpack.c.l.b16 %v3291
      %v3566 = vunpack.c.h.b16 %v3291
      %v3567 = vunpack.c.l.b16 %v3292
      %v3568 = vunpack.c.h.b16 %v3292
      %v3569 = vunpack.c.l.b16 %v3293
      %v3570 = vunpack.c.h.b16 %v3293
      %v3571 = vunpack.c.l.b16 %v3294
      %v3572 = vunpack.c.h.b16 %v3294
      %v3573 = vunpack.c.l.b16 %v3295
      %v3574 = vunpack.c.h.b16 %v3295
      %v3575 = vunpack.c.l.b16 %v3296
      %v3576 = vunpack.c.h.b16 %v3296
      %v3577 = vunpack.c.l.b16 %v3297
      %v3578 = vunpack.c.h.b16 %v3297
      %v3579 = vunpack.c.l.b16 %v3298
      %v3580 = vunpack.c.h.b16 %v3298
      %v3581 = vunpack.c.l.b16 %v3299
      %v3582 = vunpack.c.h.b16 %v3299
      %v3583 = vunpack.c.l.b16 %v3300
      %v3584 = vunpack.c.h.b16 %v3300
      %v3585 = vunpack.c.l.b16 %v3301
      %v3586 = vunpack.c.h.b16 %v3301
      %v3587 = vunpack.c.l.b16 %v3302
      %v3588 = vunpack.c.h.b16 %v3302
      %v3589 = vunpack.c.l.b16 %v3303
      %v3590 = vunpack.c.h.b16 %v3303
      %v3591 = vunpack.c.l.b16 %v3304
      %v3592 = vunpack.c.h.b16 %v3304
      %v3593 = vunpack.c.l.b16 %v3305
      %v3594 = vunpack.c.h.b16 %v3305
      %v3595 = vunpack.c.l.b16 %v3306
      %v3596 = vunpack.c.h.b16 %v3306
      %v3597 = vunpack.c.l.b16 %v3307
      %v3598 = vunpack.c.h.b16 %v3307
      %v3599 = vunpack.c.l.b16 %v3308
      %v3600 = vunpack.c.h.b16 %v3308
      %v3601 = vunpack.c.l.b16 %v3309
      %v3602 = vunpack.c.h.b16 %v3309
      %v3603 = vunpack.c.l.b16 %v3310
      %v3604 = vunpack.c.h.b16 %v3310
      %v3605 = vunpack.c.l.b16 %v3311
      %v3606 = vunpack.c.h.b16 %v3311
      %v3607 = vunpack.c.l.b16 %v3312
      %v3608 = vunpack.c.h.b16 %v3312
      %v3609 = vunpack.c.l.b16 %v3313
      %v3610 = vunpack.c.h.b16 %v3313
      %v3611 = vunpack.c.l.b16 %v3314
      %v3612 = vunpack.c.h.b16 %v3314
      %v3613 = vunpack.c.l.b16 %v3315
      %v3614 = vunpack.c.h.b16 %v3315
      %v3615 = vunpack.c.l.b16 %v3316
      %v3616 = vunpack.c.h.b16 %v3316
      %v3617 = vunpack.c.l.b16 %v3317
      %v3618 = vunpack.c.h.b16 %v3317
      %v3619 = vunpack.c.l.b16 %v3318
      %v3620 = vunpack.c.h.b16 %v3318
      %v3621 = vunpack.c.l.b16 %v3319
      %v3622 = vunpack.c.h.b16 %v3319
      %v3623 = vunpack.c.l.b16 %v3320
      %v3624 = vunpack.c.h.b16 %v3320
      %v3625 = vunpack.c.l.b16 %v3321
      %v3626 = vunpack.c.h.b16 %v3321
      %v3627 = vunpack.c.l.b16 %v3322
      %v3628 = vunpack.c.h.b16 %v3322
      %v3629 = vunpack.c.l.b16 %v3323
      %v3630 = vunpack.c.h.b16 %v3323
      %v3631 = vunpack.c.l.b16 %v3324
      %v3632 = vunpack.c.h.b16 %v3324
      %v3633 = vunpack.c.l.b16 %v3325
      %v3634 = vunpack.c.h.b16 %v3325
      %v3635 = vunpack.c.l.b16 %v3326
      %v3636 = vunpack.c.h.b16 %v3326
      %v3637 = vunpack.c.l.b16 %v3327
      %v3638 = vunpack.c.h.b16 %v3327
      %v3639 = vunpack.c.l.b16 %v3328
      %v3640 = vunpack.c.h.b16 %v3328
      %v3641 = vunpack.c.l.b16 %v3329
      %v3642 = vunpack.c.h.b16 %v3329
      %v3643 = vunpack.c.l.b16 %v3330
      %v3644 = vunpack.c.h.b16 %v3330
      %v3645 = vunpack.c.l.b16 %v3331
      %v3646 = vunpack.c.h.b16 %v3331
      %v3647 = vunpack.c.l.b16 %v3332
      %v3648 = vunpack.c.h.b16 %v3332
      %v3649 = vunpack.c.l.b16 %v3333
      %v3650 = vunpack.c.h.b16 %v3333
      %v3651 = vunpack.c.l.b16 %v3334
      %v3652 = vunpack.c.h.b16 %v3334
      %v3653 = vunpack.c.l.b16 %v3335
      %v3654 = vunpack.c.h.b16 %v3335
      %v3655 = vunpack.c.l.b16 %v3336
      %v3656 = vunpack.c.h.b16 %v3336
      %v3657 = vunpack.c.l.b16 %v3337
      %v3658 = vunpack.c.h.b16 %v3337
      %v3659 = vunpack.c.l.b16 %v3338
      %v3660 = vunpack.c.h.b16 %v3338
      %v3661 = vunpack.c.l.b16 %v3339
      %v3662 = vunpack.c.h.b16 %v3339
      %v3663 = vunpack.c.l.b16 %v3340
      %v3664 = vunpack.c.h.b16 %v3340
      %v3665 = vunpack.c.l.b16 %v3341
      %v3666 = vunpack.c.h.b16 %v3341
      %v3667 = vunpack.c.l.b16 %v3342
      %v3668 = vunpack.c.h.b16 %v3342
      %v3669 = vunpack.c.l.b16 %v3343
      %v3670 = vunpack.c.h.b16 %v3343
      %v3671 = vunpack.c.l.b16 %v3344
      %v3672 = vunpack.c.h.b16 %v3344
      %v3673 = vunpack.c.l.b16 %v3345
      %v3674 = vunpack.c.h.b16 %v3345
      %v3675 = vunpack.c.l.b16 %v3346
      %v3676 = vunpack.c.h.b16 %v3346
      %v3677 = vunpack.c.l.b16 %v3347
      %v3678 = vunpack.c.h.b16 %v3347
      %v3679 = vunpack.c.l.b16 %v3348
      %v3680 = vunpack.c.h.b16 %v3348
      %v3681 = vunpack.c.l.b16 %v3349
      %v3682 = vunpack.c.h.b16 %v3349
      %v3683 = vunpack.c.l.b16 %v3350
      %v3684 = vunpack.c.h.b16 %v3350
      %v3685 = vunpack.c.l.b16 %v3351
      %v3686 = vunpack.c.h.b16 %v3351
      %v3687 = vunpack.c.l.b16 %v3352
      %v3688 = vunpack.c.h.b16 %v3352
      %v3689 = vunpack.c.l.b16 %v3353
      %v3690 = vunpack.c.h.b16 %v3353
      %v3691 = vunpack.c.l.b16 %v3354
      %v3692 = vunpack.c.h.b16 %v3354
      %v3693 = vunpack.c.l.b16 %v3355
      %v3694 = vunpack.c.h.b16 %v3355
      %v3695 = vunpack.c.l.b16 %v3356
      %v3696 = vunpack.c.h.b16 %v3356
      %v3697 = vunpack.c.l.b16 %v3357
      %v3698 = vunpack.c.h.b16 %v3357
      %v3699 = vunpack.c.l.b16 %v3358
      %v3700 = vunpack.c.h.b16 %v3358
      %v3701 = vpack.c.b16 %v3511, %v3509
      %v3702 = vpack.c.b16 %v3512, %v3510
      %v3703 = vpack.c.b16 %v3515, %v3513
      %v3704 = vpack.c.b16 %v3516, %v3514
      %v3705 = vpack.c.b16 %v3519, %v3517
      %v3706 = vpack.c.b16 %v3520, %v3518
      %v3707 = vpack.c.b16 %v3523, %v3521
      %v3708 = vpack.c.b16 %v3524, %v3522
      %v3709 = vpack.c.b16 %v3527, %v3525
      %v3710 = vpack.c.b16 %v3528, %v3526
      %v3711 = vpack.c.b16 %v3531, %v3529
      %v3712 = vpack.c.b16 %v3532, %v3530
      %v3713 = vpack.c.b16 %v3535, %v3533
      %v3714 = vpack.c.b16 %v3536, %v3534
      %v3715 = vpack.c.b16 %v3539, %v3537
      %v3716 = vpack.c.b16 %v3540, %v3538
      %v3717 = vpack.c.b16 %v3543, %v3541
      %v3718 = vpack.c.b16 %v3544, %v3542
      %v3719 = vpack.c.b16 %v3547, %v3545
      %v3720 = vpack.c.b16 %v3548, %v3546
      %v3721 = vpack.c.b16 %v3551, %v3549
      %v3722 = vpack.c.b16 %v3552, %v3550
      %v3723 = vpack.c.b16 %v3555, %v3553
      %v3724 = vpack.c.b16 %v3556, %v3554
      %v3725 = vpack.c.b16 %v3559, %v3557
      %v3726 = vpack.c.b16 %v3560, %v3558
      %v3727 = vpack.c.b16 %v3563, %v3561
      %v3728 = vpack.c.b16 %v3564, %v3562
      %v3729 = vpack.c.b16 %v3567, %v3565
      %v3730 = vpack.c.b16 %v3568, %v3566
      %v3731 = vpack.c.b16 %v3571, %v3569
      %v3732 = vpack.c.b16 %v3572, %v3570
      %v3733 = vpack.c.b16 %v3575, %v3573
      %v3734 = vpack.c.b16 %v3576, %v3574
      %v3735 = vpack.c.b16 %v3579, %v3577
      %v3736 = vpack.c.b16 %v3580, %v3578
      %v3737 = vpack.c.b16 %v3583, %v3581
      %v3738 = vpack.c.b16 %v3584, %v3582
      %v3739 = vpack.c.b16 %v3587, %v3585
      %v3740 = vpack.c.b16 %v3588, %v3586
      %v3741 = vpack.c.b16 %v3591, %v3589
      %v3742 = vpack.c.b16 %v3592, %v3590
      %v3743 = vpack.c.b16 %v3595, %v3593
      %v3744 = vpack.c.b16 %v3596, %v3594
      %v3745 = vpack.c.b16 %v3599, %v3597
      %v3746 = vpack.c.b16 %v3600, %v3598
      %v3747 = vpack.c.b16 %v3603, %v3601
      %v3748 = vpack.c.b16 %v3604, %v3602
      %v3749 = vpack.c.b16 %v3607, %v3605
      %v3750 = vpack.c.b16 %v3608, %v3606
      %v3751 = vpack.c.b16 %v3611, %v3609
      %v3752 = vpack.c.b16 %v3612, %v3610
      %v3753 = vpack.c.b16 %v3615, %v3613
      %v3754 = vpack.c.b16 %v3616, %v3614
      %v3755 = vpack.c.b16 %v3619, %v3617
      %v3756 = vpack.c.b16 %v3620, %v3618
      %v3757 = vpack.c.b16 %v3623, %v3621
      %v3758 = vpack.c.b16 %v3624, %v3622
      %v3759 = vpack.c.b16 %v3627, %v3625
      %v3760 = vpack.c.b16 %v3628, %v3626
      %v3761 = vpack.c.b16 %v3631, %v3629
      %v3762 = vpack.c.b16 %v3632, %v3630
      %v3763 = vpack.c.b16 %v3635, %v3633
      %v3764 = vpack.c.b16 %v3636, %v3634
      %v3765 = vpack.c.b16 %v3639, %v3637
      %v3766 = vpack.c.b16 %v3640, %v3638
      %v3767 = vpack.c.b16 %v3643, %v3641
      %v3768 = vpack.c.b16 %v3644, %v3642
      %v3769 = vpack.c.b16 %v3647, %v3645
      %v3770 = vpack.c.b16 %v3648, %v3646
      %v3771 = vpack.c.b16 %v3651, %v3649
      %v3772 = vpack.c.b16 %v3652, %v3650
      %v3773 = vpack.c.b16 %v3655, %v3653
      %v3774 = vpack.c.b16 %v3656, %v3654
      %v3775 = vpack.c.b16 %v3659, %v3657
      %v3776 = vpack.c.b16 %v3660, %v3658
      %v3777 = vpack.c.b16 %v3663, %v3661
      %v3778 = vpack.c.b16 %v3664, %v3662
      %v3779 = vpack.c.b16 %v3667, %v3665
      %v3780 = vpack.c.b16 %v3668, %v3666
      %v3781 = vpack.c.b16 %v3671, %v3669
      %v3782 = vpack.c.b16 %v3672, %v3670
      %v3783 = vpack.c.b16 %v3675, %v3673
      %v3784 = vpack.c.b16 %v3676, %v3674
      %v3785 = vpack.c.b16 %v3679, %v3677
      %v3786 = vpack.c.b16 %v3680, %v3678
      %v3787 = vpack.c.b16 %v3683, %v3681
      %v3788 = vpack.c.b16 %v3684, %v3682
      %v3789 = vpack.c.b16 %v3687, %v3685
      %v3790 = vpack.c.b16 %v3688, %v3686
      %v3791 = vpack.c.b16 %v3691, %v3689
      %v3792 = vpack.c.b16 %v3692, %v3690
      %v3793 = vpack.c.b16 %v3695, %v3693
      %v3794 = vpack.c.b16 %v3696, %v3694
      %v3795 = vpack.c.b16 %v3699, %v3697
      %v3796 = vpack.c.b16 %v3700, %v3698
      %3893 = vmatprep.subr.bf16.mxu0 %v3702
      %3894 = vmatpush1.bf16.msra.mxu0 %v3701
      %3895 = vmatprep.subr.bf16.mxu0 %v3704
      %3896 = vmatpush1.bf16.msra.mxu0 %v3703
      %3897 = vmatprep.subr.bf16.mxu0 %v3706
      %3898 = vmatpush1.bf16.msra.mxu0 %v3705
      %3899 = vmatprep.subr.bf16.mxu0 %v3708
      %3900 = vmatpush1.bf16.msra.mxu0 %v3707
      %3901 = vmatprep.subr.bf16.mxu0 %v3710
      %3902 = vmatpush1.bf16.msra.mxu0 %v3709
      %3903 = vmatprep.subr.bf16.mxu0 %v3712
      %3904 = vmatpush1.bf16.msra.mxu0 %v3711
      %3905 = vmatprep.subr.bf16.mxu0 %v3714
      %3906 = vmatpush1.bf16.msra.mxu0 %v3713
      %3907 = vmatprep.subr.bf16.mxu0 %v3716
      %3908 = vmatpush1.bf16.msra.mxu0 %v3715
      %3909 = vmatprep.subr.bf16.mxu0 %v3718
      %3910 = vmatpush1.bf16.msra.mxu0 %v3717
      %3911 = vmatprep.subr.bf16.mxu0 %v3720
      %3912 = vmatpush1.bf16.msra.mxu0 %v3719
      %3913 = vmatprep.subr.bf16.mxu0 %v3722
      %3914 = vmatpush1.bf16.msra.mxu0 %v3721
      %3915 = vmatprep.subr.bf16.mxu0 %v3724
      %3916 = vmatpush1.bf16.msra.mxu0 %v3723
      %3917 = vmatprep.subr.bf16.mxu0 %v3726
      %3918 = vmatpush1.bf16.msra.mxu0 %v3725
      %3919 = vmatprep.subr.bf16.mxu0 %v3728
      %3920 = vmatpush1.bf16.msra.mxu0 %v3727
      %3921 = vmatprep.subr.bf16.mxu0 %v3730
      %3922 = vmatpush1.bf16.msra.mxu0 %v3729
      %3923 = vmatprep.subr.bf16.mxu0 %v3732
      %3924 = vmatpush1.bf16.msra.mxu0 %v3731
      %3925 = vmatprep.mubr.bf16.mxu0 %v3374
      %3926 = vmatmul.mubr.bf16.gmra.mrb[0].mxu0 %v3366
      %v3927 = vpop.f32.mrb[0].mxu0
      %v3928 = vadd.f32 0.0, %v3927
      %v3929 = vpop.f32.mrb[0].mxu0
      %v3930 = vadd.f32 0.0, %v3929
      %v3931 = vpop.f32.mrb[0].mxu0
      %v3932 = vpop.f32.mrb[0].mxu0
      %3933 = vdwg.mxu0
      %3934 = vmatprep.subr.bf16.mxu0 %v3734
      %3935 = vmatpush1.bf16.msra.mxu0 %v3733
      %3936 = vmatprep.subr.bf16.mxu0 %v3736
      %3937 = vmatpush1.bf16.msra.mxu0 %v3735
      %3938 = vmatprep.subr.bf16.mxu0 %v3738
      %3939 = vmatpush1.bf16.msra.mxu0 %v3737
      %3940 = vmatprep.subr.bf16.mxu0 %v3740
      %3941 = vmatpush1.bf16.msra.mxu0 %v3739
      %3942 = vmatprep.subr.bf16.mxu0 %v3742
      %3943 = vmatpush1.bf16.msra.mxu0 %v3741
      %3944 = vmatprep.subr.bf16.mxu0 %v3744
      %3945 = vmatpush1.bf16.msra.mxu0 %v3743
      %3946 = vmatprep.subr.bf16.mxu0 %v3746
      %3947 = vmatpush1.bf16.msra.mxu0 %v3745
      %3948 = vmatprep.subr.bf16.mxu0 %v3748
      %3949 = vmatpush1.bf16.msra.mxu0 %v3747
      %3950 = vmatprep.subr.bf16.mxu0 %v3750
      %3951 = vmatpush1.bf16.msra.mxu0 %v3749
      %3952 = vmatprep.subr.bf16.mxu0 %v3752
      %3953 = vmatpush1.bf16.msra.mxu0 %v3751
      %3954 = vmatprep.subr.bf16.mxu0 %v3754
      %3955 = vmatpush1.bf16.msra.mxu0 %v3753
      %3956 = vmatprep.subr.bf16.mxu0 %v3756
      %3957 = vmatpush1.bf16.msra.mxu0 %v3755
      %3958 = vmatprep.subr.bf16.mxu0 %v3758
      %3959 = vmatpush1.bf16.msra.mxu0 %v3757
      %3960 = vmatprep.subr.bf16.mxu0 %v3760
      %3961 = vmatpush1.bf16.msra.mxu0 %v3759
      %3962 = vmatprep.subr.bf16.mxu0 %v3762
      %3963 = vmatpush1.bf16.msra.mxu0 %v3761
      %3964 = vmatprep.subr.bf16.mxu0 %v3764
      %3965 = vmatpush1.bf16.msra.mxu0 %v3763
      %3966 = vmatprep.mubr.bf16.mxu0 %v3390
      %3967 = vmatmul.mubr.bf16.gmra.mrb[0].mxu0 %v3382
      %v3968 = vpop.f32.mrb[0].mxu0
      %v3969 = vadd.f32 %v3928, %v3968
      %v3970 = vpop.f32.mrb[0].mxu0
      %v3971 = vadd.f32 %v3930, %v3970
      %v3972 = vpop.f32.mrb[0].mxu0
      %v3973 = vpop.f32.mrb[0].mxu0
      %3974 = vdwg.mxu0
      %3975 = vmatprep.subr.bf16.mxu0 %v3766
      %3976 = vmatpush1.bf16.msra.mxu0 %v3765
      %3977 = vmatprep.subr.bf16.mxu0 %v3768
      %3978 = vmatpush1.bf16.msra.mxu0 %v3767
      %3979 = vmatprep.subr.bf16.mxu0 %v3770
      %3980 = vmatpush1.bf16.msra.mxu0 %v3769
      %3981 = vmatprep.subr.bf16.mxu0 %v3772
      %3982 = vmatpush1.bf16.msra.mxu0 %v3771
      %3983 = vmatprep.subr.bf16.mxu0 %v3774
      %3984 = vmatpush1.bf16.msra.mxu0 %v3773
      %3985 = vmatprep.subr.bf16.mxu0 %v3776
      %3986 = vmatpush1.bf16.msra.mxu0 %v3775
      %3987 = vmatprep.subr.bf16.mxu0 %v3778
      %3988 = vmatpush1.bf16.msra.mxu0 %v3777
      %3989 = vmatprep.subr.bf16.mxu0 %v3780
      %3990 = vmatpush1.bf16.msra.mxu0 %v3779
      %3991 = vmatprep.subr.bf16.mxu0 %v3782
      %3992 = vmatpush1.bf16.msra.mxu0 %v3781
      %3993 = vmatprep.subr.bf16.mxu0 %v3784
      %3994 = vmatpush1.bf16.msra.mxu0 %v3783
      %3995 = vmatprep.subr.bf16.mxu0 %v3786
      %3996 = vmatpush1.bf16.msra.mxu0 %v3785
      %3997 = vmatprep.subr.bf16.mxu0 %v3788
      %3998 = vmatpush1.bf16.msra.mxu0 %v3787
      %3999 = vmatprep.subr.bf16.mxu0 %v3790
      %4000 = vmatpush1.bf16.msra.mxu0 %v3789
      %4001 = vmatprep.subr.bf16.mxu0 %v3792
      %4002 = vmatpush1.bf16.msra.mxu0 %v3791
      %4003 = vmatprep.subr.bf16.mxu0 %v3794
      %4004 = vmatpush1.bf16.msra.mxu0 %v3793
      %4005 = vmatprep.subr.bf16.mxu0 %v3796
      %4006 = vmatpush1.bf16.msra.mxu0 %v3795
      %4007 = vmatprep.mubr.bf16.mxu0 %v3406
      %4008 = vmatmul.mubr.bf16.gmra.mrb[0].mxu0 %v3398
      %v4009 = vpop.f32.mrb[0].mxu0
      %v4010 = vadd.f32 %v3969, %v4009
      %v4011 = vpop.f32.mrb[0].mxu0
      %v4012 = vadd.f32 %v3971, %v4011
      %v4013 = vpop.f32.mrb[0].mxu0
      %v4014 = vpop.f32.mrb[0].mxu0
      %4015 = vdwg.mxu0
      %v4016 = vadd.f32 %v3242, %v4010
      %v4017 = vadd.f32 %v3243, %v4012
      %v4018 = vld [vmem:[#allocation2] sm:$0xf0]
      %v4019 = vld [vmem:[#allocation2 + $0x8] sm:$0xf0]
      %v4020 = vld [vmem:[#allocation2 + $0x10] sm:$0xf0]
      %v4021 = vld [vmem:[#allocation2 + $0x18] sm:$0xf0]
      %v4022 = vld [vmem:[#allocation2 + $0x20] sm:$0xf0]
      %v4023 = vld [vmem:[#allocation2 + $0x28] sm:$0xf0]
      %v4024 = vld [vmem:[#allocation2 + $0x30] sm:$0xf]
      %v4025 = vld [vmem:[#allocation2 + $0x38] sm:$0xf]
      %v4026 = vld [vmem:[#allocation2 + $0x40] sm:$0xf]
      %v4027 = vld [vmem:[#allocation2 + $0x48] sm:$0xf]
      %v4028 = vld [vmem:[#allocation2 + $0x50] sm:$0xf]
      %v4029 = vld [vmem:[#allocation2 + $0x58] sm:$0xf]
      %v4030 = vpack.c.bf16 %v4024, %v4018
      %v4031 = vpack.c.bf16 %v4025, %v4019
      %v4032 = vpack.c.bf16 %v4026, %v4020
      %v4033 = vpack.c.bf16 %v4027, %v4021
      %v4034 = vpack.c.bf16 %v4028, %v4022
      %v4035 = vpack.c.bf16 %v4029, %v4023
      %s4036 = scalar_lea.vmem %s3, 3072
      %v4037 = vld [vmem:[%s4036] sm:$0xff]
      %v4038 = vld [vmem:[%s4036 + $0x8] sm:$0xff]
      %v4039 = vld [vmem:[%s4036 + $0x10] sm:$0xff]
      %v4040 = vld [vmem:[%s4036 + $0x18] sm:$0xff]
      %v4041 = vld [vmem:[%s4036 + $0x20] sm:$0xff]
      %v4042 = vld [vmem:[%s4036 + $0x28] sm:$0xff]
      %v4043 = vld [vmem:[%s4036 + $0x30] sm:$0xff]
      %v4044 = vld [vmem:[%s4036 + $0x38] sm:$0xff]
      %v4045 = vld [vmem:[%s4036 + $0x40] sm:$0xff]
      %v4046 = vld [vmem:[%s4036 + $0x48] sm:$0xff]
      %v4047 = vld [vmem:[%s4036 + $0x50] sm:$0xff]
      %v4048 = vld [vmem:[%s4036 + $0x58] sm:$0xff]
      %v4049 = vld [vmem:[%s4036 + $0x60] sm:$0xff]
      %v4050 = vld [vmem:[%s4036 + $0x68] sm:$0xff]
      %v4051 = vld [vmem:[%s4036 + $0x70] sm:$0xff]
      %v4052 = vld [vmem:[%s4036 + $0x78] sm:$0xff]
      %v4053 = vld [vmem:[%s4036 + $0x80] sm:$0xff]
      %v4054 = vld [vmem:[%s4036 + $0x88] sm:$0xff]
      %v4055 = vld [vmem:[%s4036 + $0x90] sm:$0xff]
      %v4056 = vld [vmem:[%s4036 + $0x98] sm:$0xff]
      %v4057 = vld [vmem:[%s4036 + $0xa0] sm:$0xff]
      %v4058 = vld [vmem:[%s4036 + $0xa8] sm:$0xff]
      %v4059 = vld [vmem:[%s4036 + $0xb0] sm:$0xff]
      %v4060 = vld [vmem:[%s4036 + $0xb8] sm:$0xff]
      %v4061 = vld [vmem:[%s4036 + $0xc0] sm:$0xff]
      %v4062 = vld [vmem:[%s4036 + $0xc8] sm:$0xff]
      %v4063 = vld [vmem:[%s4036 + $0xd0] sm:$0xff]
      %v4064 = vld [vmem:[%s4036 + $0xd8] sm:$0xff]
      %v4065 = vld [vmem:[%s4036 + $0xe0] sm:$0xff]
      %v4066 = vld [vmem:[%s4036 + $0xe8] sm:$0xff]
      %v4067 = vld [vmem:[%s4036 + $0xf0] sm:$0xff]
      %v4068 = vld [vmem:[%s4036 + $0xf8] sm:$0xff]
      %v4069 = vld [vmem:[%s4036 + $0x100] sm:$0xff]
      %v4070 = vld [vmem:[%s4036 + $0x108] sm:$0xff]
      %v4071 = vld [vmem:[%s4036 + $0x110] sm:$0xff]
      %v4072 = vld [vmem:[%s4036 + $0x118] sm:$0xff]
      %v4073 = vld [vmem:[%s4036 + $0x120] sm:$0xff]
      %v4074 = vld [vmem:[%s4036 + $0x128] sm:$0xff]
      %v4075 = vld [vmem:[%s4036 + $0x130] sm:$0xff]
      %v4076 = vld [vmem:[%s4036 + $0x138] sm:$0xff]
      %v4077 = vld [vmem:[%s4036 + $0x140] sm:$0xff]
      %v4078 = vld [vmem:[%s4036 + $0x148] sm:$0xff]
      %v4079 = vld [vmem:[%s4036 + $0x150] sm:$0xff]
      %v4080 = vld [vmem:[%s4036 + $0x158] sm:$0xff]
      %v4081 = vld [vmem:[%s4036 + $0x160] sm:$0xff]
      %v4082 = vld [vmem:[%s4036 + $0x168] sm:$0xff]
      %v4083 = vld [vmem:[%s4036 + $0x170] sm:$0xff]
      %v4084 = vld [vmem:[%s4036 + $0x178] sm:$0xff]
      %v4085 = vld [vmem:[%s4036 + $0x180] sm:$0xff]
      %v4086 = vld [vmem:[%s4036 + $0x188] sm:$0xff]
      %v4087 = vld [vmem:[%s4036 + $0x190] sm:$0xff]
      %v4088 = vld [vmem:[%s4036 + $0x198] sm:$0xff]
      %v4089 = vld [vmem:[%s4036 + $0x1a0] sm:$0xff]
      %v4090 = vld [vmem:[%s4036 + $0x1a8] sm:$0xff]
      %v4091 = vld [vmem:[%s4036 + $0x1b0] sm:$0xff]
      %v4092 = vld [vmem:[%s4036 + $0x1b8] sm:$0xff]
      %v4093 = vld [vmem:[%s4036 + $0x1c0] sm:$0xff]
      %v4094 = vld [vmem:[%s4036 + $0x1c8] sm:$0xff]
      %v4095 = vld [vmem:[%s4036 + $0x1d0] sm:$0xff]
      %v4096 = vld [vmem:[%s4036 + $0x1d8] sm:$0xff]
      %v4097 = vld [vmem:[%s4036 + $0x1e0] sm:$0xff]
      %v4098 = vld [vmem:[%s4036 + $0x1e8] sm:$0xff]
      %v4099 = vld [vmem:[%s4036 + $0x1f0] sm:$0xff]
      %v4100 = vld [vmem:[%s4036 + $0x1f8] sm:$0xff]
      %v4101 = vld [vmem:[%s4036 + $0x200] sm:$0xff]
      %v4102 = vld [vmem:[%s4036 + $0x208] sm:$0xff]
      %v4103 = vld [vmem:[%s4036 + $0x210] sm:$0xff]
      %v4104 = vld [vmem:[%s4036 + $0x218] sm:$0xff]
      %v4105 = vld [vmem:[%s4036 + $0x220] sm:$0xff]
      %v4106 = vld [vmem:[%s4036 + $0x228] sm:$0xff]
      %v4107 = vld [vmem:[%s4036 + $0x230] sm:$0xff]
      %v4108 = vld [vmem:[%s4036 + $0x238] sm:$0xff]
      %v4109 = vld [vmem:[%s4036 + $0x240] sm:$0xff]
      %v4110 = vld [vmem:[%s4036 + $0x248] sm:$0xff]
      %v4111 = vld [vmem:[%s4036 + $0x250] sm:$0xff]
      %v4112 = vld [vmem:[%s4036 + $0x258] sm:$0xff]
      %v4113 = vld [vmem:[%s4036 + $0x260] sm:$0xff]
      %v4114 = vld [vmem:[%s4036 + $0x268] sm:$0xff]
      %v4115 = vld [vmem:[%s4036 + $0x270] sm:$0xff]
      %v4116 = vld [vmem:[%s4036 + $0x278] sm:$0xff]
      %v4117 = vld [vmem:[%s4036 + $0x280] sm:$0xff]
      %v4118 = vld [vmem:[%s4036 + $0x288] sm:$0xff]
      %v4119 = vld [vmem:[%s4036 + $0x290] sm:$0xff]
      %v4120 = vld [vmem:[%s4036 + $0x298] sm:$0xff]
      %v4121 = vld [vmem:[%s4036 + $0x2a0] sm:$0xff]
      %v4122 = vld [vmem:[%s4036 + $0x2a8] sm:$0xff]
      %v4123 = vld [vmem:[%s4036 + $0x2b0] sm:$0xff]
      %v4124 = vld [vmem:[%s4036 + $0x2b8] sm:$0xff]
      %v4125 = vld [vmem:[%s4036 + $0x2c0] sm:$0xff]
      %v4126 = vld [vmem:[%s4036 + $0x2c8] sm:$0xff]
      %v4127 = vld [vmem:[%s4036 + $0x2d0] sm:$0xff]
      %v4128 = vld [vmem:[%s4036 + $0x2d8] sm:$0xff]
      %v4129 = vld [vmem:[%s4036 + $0x2e0] sm:$0xff]
      %v4130 = vld [vmem:[%s4036 + $0x2e8] sm:$0xff]
      %v4131 = vld [vmem:[%s4036 + $0x2f0] sm:$0xff]
      %v4132 = vld [vmem:[%s4036 + $0x2f8] sm:$0xff]
      %v4139 = vrot.slane %v4030, 2
      %v4140 = vrot.slane %v4031, 2
      %v4141 = vrot.slane %v4032, 2
      %v4142 = vrot.slane %v4033, 2
      %v4143 = vrot.slane %v4034, 2
      %v4144 = vrot.slane %v4035, 2
      %v4247 = vunpack.c.l.b16 %v4037
      %v4248 = vunpack.c.h.b16 %v4037
      %v4249 = vunpack.c.l.b16 %v4038
      %v4250 = vunpack.c.h.b16 %v4038
      %v4251 = vunpack.c.l.b16 %v4039
      %v4252 = vunpack.c.h.b16 %v4039
      %v4253 = vunpack.c.l.b16 %v4040
      %v4254 = vunpack.c.h.b16 %v4040
      %v4255 = vunpack.c.l.b16 %v4041
      %v4256 = vunpack.c.h.b16 %v4041
      %v4257 = vunpack.c.l.b16 %v4042
      %v4258 = vunpack.c.h.b16 %v4042
      %v4259 = vunpack.c.l.b16 %v4043
      %v4260 = vunpack.c.h.b16 %v4043
      %v4261 = vunpack.c.l.b16 %v4044
      %v4262 = vunpack.c.h.b16 %v4044
      %v4263 = vunpack.c.l.b16 %v4045
      %v4264 = vunpack.c.h.b16 %v4045
      %v4265 = vunpack.c.l.b16 %v4046
      %v4266 = vunpack.c.h.b16 %v4046
      %v4267 = vunpack.c.l.b16 %v4047
      %v4268 = vunpack.c.h.b16 %v4047
      %v4269 = vunpack.c.l.b16 %v4048
      %v4270 = vunpack.c.h.b16 %v4048
      %v4271 = vunpack.c.l.b16 %v4049
      %v4272 = vunpack.c.h.b16 %v4049
      %v4273 = vunpack.c.l.b16 %v4050
      %v4274 = vunpack.c.h.b16 %v4050
      %v4275 = vunpack.c.l.b16 %v4051
      %v4276 = vunpack.c.h.b16 %v4051
      %v4277 = vunpack.c.l.b16 %v4052
      %v4278 = vunpack.c.h.b16 %v4052
      %v4279 = vunpack.c.l.b16 %v4053
      %v4280 = vunpack.c.h.b16 %v4053
      %v4281 = vunpack.c.l.b16 %v4054
      %v4282 = vunpack.c.h.b16 %v4054
      %v4283 = vunpack.c.l.b16 %v4055
      %v4284 = vunpack.c.h.b16 %v4055
      %v4285 = vunpack.c.l.b16 %v4056
      %v4286 = vunpack.c.h.b16 %v4056
      %v4287 = vunpack.c.l.b16 %v4057
      %v4288 = vunpack.c.h.b16 %v4057
      %v4289 = vunpack.c.l.b16 %v4058
      %v4290 = vunpack.c.h.b16 %v4058
      %v4291 = vunpack.c.l.b16 %v4059
      %v4292 = vunpack.c.h.b16 %v4059
      %v4293 = vunpack.c.l.b16 %v4060
      %v4294 = vunpack.c.h.b16 %v4060
      %v4295 = vunpack.c.l.b16 %v4061
      %v4296 = vunpack.c.h.b16 %v4061
      %v4297 = vunpack.c.l.b16 %v4062
      %v4298 = vunpack.c.h.b16 %v4062
      %v4299 = vunpack.c.l.b16 %v4063
      %v4300 = vunpack.c.h.b16 %v4063
      %v4301 = vunpack.c.l.b16 %v4064
      %v4302 = vunpack.c.h.b16 %v4064
      %v4303 = vunpack.c.l.b16 %v4065
      %v4304 = vunpack.c.h.b16 %v4065
      %v4305 = vunpack.c.l.b16 %v4066
      %v4306 = vunpack.c.h.b16 %v4066
      %v4307 = vunpack.c.l.b16 %v4067
      %v4308 = vunpack.c.h.b16 %v4067
      %v4309 = vunpack.c.l.b16 %v4068
      %v4310 = vunpack.c.h.b16 %v4068
      %v4311 = vunpack.c.l.b16 %v4069
      %v4312 = vunpack.c.h.b16 %v4069
      %v4313 = vunpack.c.l.b16 %v4070
      %v4314 = vunpack.c.h.b16 %v4070
      %v4315 = vunpack.c.l.b16 %v4071
      %v4316 = vunpack.c.h.b16 %v4071
      %v4317 = vunpack.c.l.b16 %v4072
      %v4318 = vunpack.c.h.b16 %v4072
      %v4319 = vunpack.c.l.b16 %v4073
      %v4320 = vunpack.c.h.b16 %v4073
      %v4321 = vunpack.c.l.b16 %v4074
      %v4322 = vunpack.c.h.b16 %v4074
      %v4323 = vunpack.c.l.b16 %v4075
      %v4324 = vunpack.c.h.b16 %v4075
      %v4325 = vunpack.c.l.b16 %v4076
      %v4326 = vunpack.c.h.b16 %v4076
      %v4327 = vunpack.c.l.b16 %v4077
      %v4328 = vunpack.c.h.b16 %v4077
      %v4329 = vunpack.c.l.b16 %v4078
      %v4330 = vunpack.c.h.b16 %v4078
      %v4331 = vunpack.c.l.b16 %v4079
      %v4332 = vunpack.c.h.b16 %v4079
      %v4333 = vunpack.c.l.b16 %v4080
      %v4334 = vunpack.c.h.b16 %v4080
      %v4335 = vunpack.c.l.b16 %v4081
      %v4336 = vunpack.c.h.b16 %v4081
      %v4337 = vunpack.c.l.b16 %v4082
      %v4338 = vunpack.c.h.b16 %v4082
      %v4339 = vunpack.c.l.b16 %v4083
      %v4340 = vunpack.c.h.b16 %v4083
      %v4341 = vunpack.c.l.b16 %v4084
      %v4342 = vunpack.c.h.b16 %v4084
      %v4343 = vunpack.c.l.b16 %v4085
      %v4344 = vunpack.c.h.b16 %v4085
      %v4345 = vunpack.c.l.b16 %v4086
      %v4346 = vunpack.c.h.b16 %v4086
      %v4347 = vunpack.c.l.b16 %v4087
      %v4348 = vunpack.c.h.b16 %v4087
      %v4349 = vunpack.c.l.b16 %v4088
      %v4350 = vunpack.c.h.b16 %v4088
      %v4351 = vunpack.c.l.b16 %v4089
      %v4352 = vunpack.c.h.b16 %v4089
      %v4353 = vunpack.c.l.b16 %v4090
      %v4354 = vunpack.c.h.b16 %v4090
      %v4355 = vunpack.c.l.b16 %v4091
      %v4356 = vunpack.c.h.b16 %v4091
      %v4357 = vunpack.c.l.b16 %v4092
      %v4358 = vunpack.c.h.b16 %v4092
      %v4359 = vunpack.c.l.b16 %v4093
      %v4360 = vunpack.c.h.b16 %v4093
      %v4361 = vunpack.c.l.b16 %v4094
      %v4362 = vunpack.c.h.b16 %v4094
      %v4363 = vunpack.c.l.b16 %v4095
      %v4364 = vunpack.c.h.b16 %v4095
      %v4365 = vunpack.c.l.b16 %v4096
      %v4366 = vunpack.c.h.b16 %v4096
      %v4367 = vunpack.c.l.b16 %v4097
      %v4368 = vunpack.c.h.b16 %v4097
      %v4369 = vunpack.c.l.b16 %v4098
      %v4370 = vunpack.c.h.b16 %v4098
      %v4371 = vunpack.c.l.b16 %v4099
      %v4372 = vunpack.c.h.b16 %v4099
      %v4373 = vunpack.c.l.b16 %v4100
      %v4374 = vunpack.c.h.b16 %v4100
      %v4375 = vunpack.c.l.b16 %v4101
      %v4376 = vunpack.c.h.b16 %v4101
      %v4377 = vunpack.c.l.b16 %v4102
      %v4378 = vunpack.c.h.b16 %v4102
      %v4379 = vunpack.c.l.b16 %v4103
      %v4380 = vunpack.c.h.b16 %v4103
      %v4381 = vunpack.c.l.b16 %v4104
      %v4382 = vunpack.c.h.b16 %v4104
      %v4383 = vunpack.c.l.b16 %v4105
      %v4384 = vunpack.c.h.b16 %v4105
      %v4385 = vunpack.c.l.b16 %v4106
      %v4386 = vunpack.c.h.b16 %v4106
      %v4387 = vunpack.c.l.b16 %v4107
      %v4388 = vunpack.c.h.b16 %v4107
      %v4389 = vunpack.c.l.b16 %v4108
      %v4390 = vunpack.c.h.b16 %v4108
      %v4391 = vunpack.c.l.b16 %v4109
      %v4392 = vunpack.c.h.b16 %v4109
      %v4393 = vunpack.c.l.b16 %v4110
      %v4394 = vunpack.c.h.b16 %v4110
      %v4395 = vunpack.c.l.b16 %v4111
      %v4396 = vunpack.c.h.b16 %v4111
      %v4397 = vunpack.c.l.b16 %v4112
      %v4398 = vunpack.c.h.b16 %v4112
      %v4399 = vunpack.c.l.b16 %v4113
      %v4400 = vunpack.c.h.b16 %v4113
      %v4401 = vunpack.c.l.b16 %v4114
      %v4402 = vunpack.c.h.b16 %v4114
      %v4403 = vunpack.c.l.b16 %v4115
      %v4404 = vunpack.c.h.b16 %v4115
      %v4405 = vunpack.c.l.b16 %v4116
      %v4406 = vunpack.c.h.b16 %v4116
      %v4407 = vunpack.c.l.b16 %v4117
      %v4408 = vunpack.c.h.b16 %v4117
      %v4409 = vunpack.c.l.b16 %v4118
      %v4410 = vunpack.c.h.b16 %v4118
      %v4411 = vunpack.c.l.b16 %v4119
      %v4412 = vunpack.c.h.b16 %v4119
      %v4413 = vunpack.c.l.b16 %v4120
      %v4414 = vunpack.c.h.b16 %v4120
      %v4415 = vunpack.c.l.b16 %v4121
      %v4416 = vunpack.c.h.b16 %v4121
      %v4417 = vunpack.c.l.b16 %v4122
      %v4418 = vunpack.c.h.b16 %v4122
      %v4419 = vunpack.c.l.b16 %v4123
      %v4420 = vunpack.c.h.b16 %v4123
      %v4421 = vunpack.c.l.b16 %v4124
      %v4422 = vunpack.c.h.b16 %v4124
      %v4423 = vunpack.c.l.b16 %v4125
      %v4424 = vunpack.c.h.b16 %v4125
      %v4425 = vunpack.c.l.b16 %v4126
      %v4426 = vunpack.c.h.b16 %v4126
      %v4427 = vunpack.c.l.b16 %v4127
      %v4428 = vunpack.c.h.b16 %v4127
      %v4429 = vunpack.c.l.b16 %v4128
      %v4430 = vunpack.c.h.b16 %v4128
      %v4431 = vunpack.c.l.b16 %v4129
      %v4432 = vunpack.c.h.b16 %v4129
      %v4433 = vunpack.c.l.b16 %v4130
      %v4434 = vunpack.c.h.b16 %v4130
      %v4435 = vunpack.c.l.b16 %v4131
      %v4436 = vunpack.c.h.b16 %v4131
      %v4437 = vunpack.c.l.b16 %v4132
      %v4438 = vunpack.c.h.b16 %v4132
      %v4439 = vpack.c.b16 %v4249, %v4247
      %v4440 = vpack.c.b16 %v4250, %v4248
      %v4441 = vpack.c.b16 %v4253, %v4251
      %v4442 = vpack.c.b16 %v4254, %v4252
      %v4443 = vpack.c.b16 %v4257, %v4255
      %v4444 = vpack.c.b16 %v4258, %v4256
      %v4445 = vpack.c.b16 %v4261, %v4259
      %v4446 = vpack.c.b16 %v4262, %v4260
      %v4447 = vpack.c.b16 %v4265, %v4263
      %v4448 = vpack.c.b16 %v4266, %v4264
      %v4449 = vpack.c.b16 %v4269, %v4267
      %v4450 = vpack.c.b16 %v4270, %v4268
      %v4451 = vpack.c.b16 %v4273, %v4271
      %v4452 = vpack.c.b16 %v4274, %v4272
      %v4453 = vpack.c.b16 %v4277, %v4275
      %v4454 = vpack.c.b16 %v4278, %v4276
      %v4455 = vpack.c.b16 %v4281, %v4279
      %v4456 = vpack.c.b16 %v4282, %v4280
      %v4457 = vpack.c.b16 %v4285, %v4283
      %v4458 = vpack.c.b16 %v4286, %v4284
      %v4459 = vpack.c.b16 %v4289, %v4287
      %v4460 = vpack.c.b16 %v4290, %v4288
      %v4461 = vpack.c.b16 %v4293, %v4291
      %v4462 = vpack.c.b16 %v4294, %v4292
      %v4463 = vpack.c.b16 %v4297, %v4295
      %v4464 = vpack.c.b16 %v4298, %v4296
      %v4465 = vpack.c.b16 %v4301, %v4299
      %v4466 = vpack.c.b16 %v4302, %v4300
      %v4467 = vpack.c.b16 %v4305, %v4303
      %v4468 = vpack.c.b16 %v4306, %v4304
      %v4469 = vpack.c.b16 %v4309, %v4307
      %v4470 = vpack.c.b16 %v4310, %v4308
      %v4471 = vpack.c.b16 %v4313, %v4311
      %v4472 = vpack.c.b16 %v4314, %v4312
      %v4473 = vpack.c.b16 %v4317, %v4315
      %v4474 = vpack.c.b16 %v4318, %v4316
      %v4475 = vpack.c.b16 %v4321, %v4319
      %v4476 = vpack.c.b16 %v4322, %v4320
      %v4477 = vpack.c.b16 %v4325, %v4323
      %v4478 = vpack.c.b16 %v4326, %v4324
      %v4479 = vpack.c.b16 %v4329, %v4327
      %v4480 = vpack.c.b16 %v4330, %v4328
      %v4481 = vpack.c.b16 %v4333, %v4331
      %v4482 = vpack.c.b16 %v4334, %v4332
      %v4483 = vpack.c.b16 %v4337, %v4335
      %v4484 = vpack.c.b16 %v4338, %v4336
      %v4485 = vpack.c.b16 %v4341, %v4339
      %v4486 = vpack.c.b16 %v4342, %v4340
      %v4487 = vpack.c.b16 %v4345, %v4343
      %v4488 = vpack.c.b16 %v4346, %v4344
      %v4489 = vpack.c.b16 %v4349, %v4347
      %v4490 = vpack.c.b16 %v4350, %v4348
      %v4491 = vpack.c.b16 %v4353, %v4351
      %v4492 = vpack.c.b16 %v4354, %v4352
      %v4493 = vpack.c.b16 %v4357, %v4355
      %v4494 = vpack.c.b16 %v4358, %v4356
      %v4495 = vpack.c.b16 %v4361, %v4359
      %v4496 = vpack.c.b16 %v4362, %v4360
      %v4497 = vpack.c.b16 %v4365, %v4363
      %v4498 = vpack.c.b16 %v4366, %v4364
      %v4499 = vpack.c.b16 %v4369, %v4367
      %v4500 = vpack.c.b16 %v4370, %v4368
      %v4501 = vpack.c.b16 %v4373, %v4371
      %v4502 = vpack.c.b16 %v4374, %v4372
      %v4503 = vpack.c.b16 %v4377, %v4375
      %v4504 = vpack.c.b16 %v4378, %v4376
      %v4505 = vpack.c.b16 %v4381, %v4379
      %v4506 = vpack.c.b16 %v4382, %v4380
      %v4507 = vpack.c.b16 %v4385, %v4383
      %v4508 = vpack.c.b16 %v4386, %v4384
      %v4509 = vpack.c.b16 %v4389, %v4387
      %v4510 = vpack.c.b16 %v4390, %v4388
      %v4511 = vpack.c.b16 %v4393, %v4391
      %v4512 = vpack.c.b16 %v4394, %v4392
      %v4513 = vpack.c.b16 %v4397, %v4395
      %v4514 = vpack.c.b16 %v4398, %v4396
      %v4515 = vpack.c.b16 %v4401, %v4399
      %v4516 = vpack.c.b16 %v4402, %v4400
      %v4517 = vpack.c.b16 %v4405, %v4403
      %v4518 = vpack.c.b16 %v4406, %v4404
      %v4519 = vpack.c.b16 %v4409, %v4407
      %v4520 = vpack.c.b16 %v4410, %v4408
      %v4521 = vpack.c.b16 %v4413, %v4411
      %v4522 = vpack.c.b16 %v4414, %v4412
      %v4523 = vpack.c.b16 %v4417, %v4415
      %v4524 = vpack.c.b16 %v4418, %v4416
      %v4525 = vpack.c.b16 %v4421, %v4419
      %v4526 = vpack.c.b16 %v4422, %v4420
      %v4527 = vpack.c.b16 %v4425, %v4423
      %v4528 = vpack.c.b16 %v4426, %v4424
      %v4529 = vpack.c.b16 %v4429, %v4427
      %v4530 = vpack.c.b16 %v4430, %v4428
      %v4531 = vpack.c.b16 %v4433, %v4431
      %v4532 = vpack.c.b16 %v4434, %v4432
      %v4533 = vpack.c.b16 %v4437, %v4435
      %v4534 = vpack.c.b16 %v4438, %v4436
      %4631 = vmatprep.subr.bf16.mxu0 %v4440
      %4632 = vmatpush1.bf16.msra.mxu0 %v4439
      %4633 = vmatprep.subr.bf16.mxu0 %v4442
      %4634 = vmatpush1.bf16.msra.mxu0 %v4441
      %4635 = vmatprep.subr.bf16.mxu0 %v4444
      %4636 = vmatpush1.bf16.msra.mxu0 %v4443
      %4637 = vmatprep.subr.bf16.mxu0 %v4446
      %4638 = vmatpush1.bf16.msra.mxu0 %v4445
      %4639 = vmatprep.subr.bf16.mxu0 %v4448
      %4640 = vmatpush1.bf16.msra.mxu0 %v4447
      %4641 = vmatprep.subr.bf16.mxu0 %v4450
      %4642 = vmatpush1.bf16.msra.mxu0 %v4449
      %4643 = vmatprep.subr.bf16.mxu0 %v4452
      %4644 = vmatpush1.bf16.msra.mxu0 %v4451
      %4645 = vmatprep.subr.bf16.mxu0 %v4454
      %4646 = vmatpush1.bf16.msra.mxu0 %v4453
      %4647 = vmatprep.subr.bf16.mxu0 %v4456
      %4648 = vmatpush1.bf16.msra.mxu0 %v4455
      %4649 = vmatprep.subr.bf16.mxu0 %v4458
      %4650 = vmatpush1.bf16.msra.mxu0 %v4457
      %4651 = vmatprep.subr.bf16.mxu0 %v4460
      %4652 = vmatpush1.bf16.msra.mxu0 %v4459
      %4653 = vmatprep.subr.bf16.mxu0 %v4462
      %4654 = vmatpush1.bf16.msra.mxu0 %v4461
      %4655 = vmatprep.subr.bf16.mxu0 %v4464
      %4656 = vmatpush1.bf16.msra.mxu0 %v4463
      %4657 = vmatprep.subr.bf16.mxu0 %v4466
      %4658 = vmatpush1.bf16.msra.mxu0 %v4465
      %4659 = vmatprep.subr.bf16.mxu0 %v4468
      %4660 = vmatpush1.bf16.msra.mxu0 %v4467
      %4661 = vmatprep.subr.bf16.mxu0 %v4470
      %4662 = vmatpush1.bf16.msra.mxu0 %v4469
      %4663 = vmatprep.mubr.bf16.mxu0 %v4140
      %4664 = vmatmul.mubr.bf16.gmra.mrb[0].mxu0 %v4139
      %v4665 = vpop.f32.mrb[0].mxu0
      %v4666 = vadd.f32 0.0, %v4665
      %v4667 = vpop.f32.mrb[0].mxu0
      %v4668 = vadd.f32 0.0, %v4667
      %v4669 = vpop.f32.mrb[0].mxu0
      %v4670 = vpop.f32.mrb[0].mxu0
      %4671 = vdwg.mxu0
      %4672 = vmatprep.subr.bf16.mxu0 %v4472
      %4673 = vmatpush1.bf16.msra.mxu0 %v4471
      %4674 = vmatprep.subr.bf16.mxu0 %v4474
      %4675 = vmatpush1.bf16.msra.mxu0 %v4473
      %4676 = vmatprep.subr.bf16.mxu0 %v4476
      %4677 = vmatpush1.bf16.msra.mxu0 %v4475
      %4678 = vmatprep.subr.bf16.mxu0 %v4478
      %4679 = vmatpush1.bf16.msra.mxu0 %v4477
      %4680 = vmatprep.subr.bf16.mxu0 %v4480
      %4681 = vmatpush1.bf16.msra.mxu0 %v4479
      %4682 = vmatprep.subr.bf16.mxu0 %v4482
      %4683 = vmatpush1.bf16.msra.mxu0 %v4481
      %4684 = vmatprep.subr.bf16.mxu0 %v4484
      %4685 = vmatpush1.bf16.msra.mxu0 %v4483
      %4686 = vmatprep.subr.bf16.mxu0 %v4486
      %4687 = vmatpush1.bf16.msra.mxu0 %v4485
      %4688 = vmatprep.subr.bf16.mxu0 %v4488
      %4689 = vmatpush1.bf16.msra.mxu0 %v4487
      %4690 = vmatprep.subr.bf16.mxu0 %v4490
      %4691 = vmatpush1.bf16.msra.mxu0 %v4489
      %4692 = vmatprep.subr.bf16.mxu0 %v4492
      %4693 = vmatpush1.bf16.msra.mxu0 %v4491
      %4694 = vmatprep.subr.bf16.mxu0 %v4494
      %4695 = vmatpush1.bf16.msra.mxu0 %v4493
      %4696 = vmatprep.subr.bf16.mxu0 %v4496
      %4697 = vmatpush1.bf16.msra.mxu0 %v4495
      %4698 = vmatprep.subr.bf16.mxu0 %v4498
      %4699 = vmatpush1.bf16.msra.mxu0 %v4497
      %4700 = vmatprep.subr.bf16.mxu0 %v4500
      %4701 = vmatpush1.bf16.msra.mxu0 %v4499
      %4702 = vmatprep.subr.bf16.mxu0 %v4502
      %4703 = vmatpush1.bf16.msra.mxu0 %v4501
      %4704 = vmatprep.mubr.bf16.mxu0 %v4142
      %4705 = vmatmul.mubr.bf16.gmra.mrb[0].mxu0 %v4141
      %v4706 = vpop.f32.mrb[0].mxu0
      %v4707 = vadd.f32 %v4666, %v4706
      %v4708 = vpop.f32.mrb[0].mxu0
      %v4709 = vadd.f32 %v4668, %v4708
      %v4710 = vpop.f32.mrb[0].mxu0
      %v4711 = vpop.f32.mrb[0].mxu0
      %4712 = vdwg.mxu0
      %4713 = vmatprep.subr.bf16.mxu0 %v4504
      %4714 = vmatpush1.bf16.msra.mxu0 %v4503
      %4715 = vmatprep.subr.bf16.mxu0 %v4506
      %4716 = vmatpush1.bf16.msra.mxu0 %v4505
      %4717 = vmatprep.subr.bf16.mxu0 %v4508
      %4718 = vmatpush1.bf16.msra.mxu0 %v4507
      %4719 = vmatprep.subr.bf16.mxu0 %v4510
      %4720 = vmatpush1.bf16.msra.mxu0 %v4509
      %4721 = vmatprep.subr.bf16.mxu0 %v4512
      %4722 = vmatpush1.bf16.msra.mxu0 %v4511
      %4723 = vmatprep.subr.bf16.mxu0 %v4514
      %4724 = vmatpush1.bf16.msra.mxu0 %v4513
      %4725 = vmatprep.subr.bf16.mxu0 %v4516
      %4726 = vmatpush1.bf16.msra.mxu0 %v4515
      %4727 = vmatprep.subr.bf16.mxu0 %v4518
      %4728 = vmatpush1.bf16.msra.mxu0 %v4517
      %4729 = vmatprep.subr.bf16.mxu0 %v4520
      %4730 = vmatpush1.bf16.msra.mxu0 %v4519
      %4731 = vmatprep.subr.bf16.mxu0 %v4522
      %4732 = vmatpush1.bf16.msra.mxu0 %v4521
      %4733 = vmatprep.subr.bf16.mxu0 %v4524
      %4734 = vmatpush1.bf16.msra.mxu0 %v4523
      %4735 = vmatprep.subr.bf16.mxu0 %v4526
      %4736 = vmatpush1.bf16.msra.mxu0 %v4525
      %4737 = vmatprep.subr.bf16.mxu0 %v4528
      %4738 = vmatpush1.bf16.msra.mxu0 %v4527
      %4739 = vmatprep.subr.bf16.mxu0 %v4530
      %4740 = vmatpush1.bf16.msra.mxu0 %v4529
      %4741 = vmatprep.subr.bf16.mxu0 %v4532
      %4742 = vmatpush1.bf16.msra.mxu0 %v4531
      %4743 = vmatprep.subr.bf16.mxu0 %v4534
      %4744 = vmatpush1.bf16.msra.mxu0 %v4533
      %4745 = vmatprep.mubr.bf16.mxu0 %v4144
      %4746 = vmatmul.mubr.bf16.gmra.mrb[0].mxu0 %v4143
      %v4747 = vpop.f32.mrb[0].mxu0
      %v4748 = vadd.f32 %v4707, %v4747
      %v4749 = vpop.f32.mrb[0].mxu0
      %v4750 = vadd.f32 %v4709, %v4749
      %v4751 = vpop.f32.mrb[0].mxu0
      %v4752 = vpop.f32.mrb[0].mxu0
      %4753 = vdwg.mxu0
      %v4754 = vadd.f32 %v4016, %v4748
      %v4755 = vadd.f32 %v4017, %v4750
      %v4756 = vld [vmem:[%s4] sm:$0x3]
      %v4758 = vlaneseq
      %v4759 = vshrl.u32 %v4758, 7
      %v4760 = vsub.s32 0, %v4759
      %v4761 = vrot.slane %v4756, %v4760
      %v4762 = vlaneseq
      %v4763 = vshrl.u32 %v4762, 7
      %v4764 = vsub.s32 1, %v4763
      %v4765 = vrot.slane %v4756, %v4764
      %v4768 = vadd.f32 %v4754, %v4761
      %v4769 = vadd.f32 %v4755, %v4765
      %v4770 = vmax.f32 %v4768, 0.0
      %v4771 = vmax.f32 %v4769, 0.0
      %4772 = vst [vmem:[#allocation3] sm:$0xff] 0.0
      %4773 = vst [vmem:[#allocation3 + $0x8] sm:$0xff] 0.0
      %4774 = vst [vmem:[#allocation3 + $0x10] sm:$0xff] 0.0
      %vm4775 = vcmask 785408
      %4776 = vst.msk [vmem:[#allocation3 + $0x18] sm:$0xff] %vm4775, 0.0
      %4777 = vst [vmem:[#allocation3 + $0x20] sm:$0x7f] 0.0
      %4778 = vst [vmem:[#allocation3 + $0x28] sm:$0x7f] 0.0
      %4779 = vst [vmem:[#allocation3 + $0x30] sm:$0x7f] 0.0
      %vm4780 = vcmask 784384
      %4781 = vst.msk [vmem:[#allocation3 + $0x38] sm:$0x7f] %vm4780, 0.0
      %v4784 = vrot.slane %v4770, 4
      %v4785 = vrot.slane %v4771, 4
      %4788 = vst [vmem:[#allocation3 + $0x8] sm:$0xf0] %v4784
      %vm4789 = vcmask 785412
      %4790 = vst.msk [vmem:[#allocation3 + $0x10] sm:$0xf0] %vm4789, %v4785
      %4791 = vst [vmem:[#allocation3 + $0x28] sm:$0x7] %v4784
      %vm4792 = vcmask 780288
      %4793 = vst.msk [vmem:[#allocation3 + $0x30] sm:$0x7] %vm4792, %v4785
      %v4794 = vld [vmem:[#allocation3] sm:$0xff]
      %v4795 = vld [vmem:[#allocation3 + $0x8] sm:$0xff]
      %v4796 = vld [vmem:[#allocation3 + $0x10] sm:$0xff]
      %v4797 = vld [vmem:[#allocation3 + $0x18] sm:$0xff]
      %v4798 = vld [vmem:[#allocation3 + $0x20] sm:$0x7]
      %v4799 = vld [vmem:[#allocation3 + $0x28] sm:$0x7]
      %v4800 = vld [vmem:[#allocation3 + $0x30] sm:$0x7]
      %v4801 = vld [vmem:[#allocation3 + $0x38] sm:$0x7]
      %v4802 = vpack.c.bf16 %v4798, %v4794
      %v4803 = vpack.c.bf16 %v4799, %v4795
      %v4804 = vpack.c.bf16 %v4800, %v4796
      %v4805 = vpack.c.bf16 %v4801, %v4797
      %v4806 = vld [vmem:[%s5] sm:$0xff]
      %v4807 = vld [vmem:[%s5 + $0x8] sm:$0xff]
      %v4808 = vld [vmem:[%s5 + $0x10] sm:$0xff]
      %v4809 = vld [vmem:[%s5 + $0x18] sm:$0xff]
      %v4810 = vld [vmem:[%s5 + $0x20] sm:$0xff]
      %v4811 = vld [vmem:[%s5 + $0x28] sm:$0xff]
      %v4812 = vld [vmem:[%s5 + $0x30] sm:$0xff]
      %v4813 = vld [vmem:[%s5 + $0x38] sm:$0xff]
      %v4814 = vld [vmem:[%s5 + $0x40] sm:$0xff]
      %v4815 = vld [vmem:[%s5 + $0x48] sm:$0xff]
      %v4816 = vld [vmem:[%s5 + $0x50] sm:$0xff]
      %v4817 = vld [vmem:[%s5 + $0x58] sm:$0xff]
      %v4818 = vld [vmem:[%s5 + $0x60] sm:$0xff]
      %v4819 = vld [vmem:[%s5 + $0x68] sm:$0xff]
      %v4820 = vld [vmem:[%s5 + $0x70] sm:$0xff]
      %v4821 = vld [vmem:[%s5 + $0x78] sm:$0xff]
      %v4822 = vld [vmem:[%s5 + $0x80] sm:$0xff]
      %v4823 = vld [vmem:[%s5 + $0x88] sm:$0xff]
      %v4824 = vld [vmem:[%s5 + $0x90] sm:$0xff]
      %v4825 = vld [vmem:[%s5 + $0x98] sm:$0xff]
      %v4826 = vld [vmem:[%s5 + $0xa0] sm:$0xff]
      %v4827 = vld [vmem:[%s5 + $0xa8] sm:$0xff]
      %v4828 = vld [vmem:[%s5 + $0xb0] sm:$0xff]
      %v4829 = vld [vmem:[%s5 + $0xb8] sm:$0xff]
      %v4830 = vld [vmem:[%s5 + $0xc0] sm:$0xff]
      %v4831 = vld [vmem:[%s5 + $0xc8] sm:$0xff]
      %v4832 = vld [vmem:[%s5 + $0xd0] sm:$0xff]
      %v4833 = vld [vmem:[%s5 + $0xd8] sm:$0xff]
      %v4834 = vld [vmem:[%s5 + $0xe0] sm:$0xff]
      %v4835 = vld [vmem:[%s5 + $0xe8] sm:$0xff]
      %v4836 = vld [vmem:[%s5 + $0xf0] sm:$0xff]
      %v4837 = vld [vmem:[%s5 + $0xf8] sm:$0xff]
      %v4838 = vld [vmem:[%s5 + $0x100] sm:$0xff]
      %v4839 = vld [vmem:[%s5 + $0x108] sm:$0xff]
      %v4840 = vld [vmem:[%s5 + $0x110] sm:$0xff]
      %v4841 = vld [vmem:[%s5 + $0x118] sm:$0xff]
      %v4842 = vld [vmem:[%s5 + $0x120] sm:$0xff]
      %v4843 = vld [vmem:[%s5 + $0x128] sm:$0xff]
      %v4844 = vld [vmem:[%s5 + $0x130] sm:$0xff]
      %v4845 = vld [vmem:[%s5 + $0x138] sm:$0xff]
      %v4846 = vld [vmem:[%s5 + $0x140] sm:$0xff]
      %v4847 = vld [vmem:[%s5 + $0x148] sm:$0xff]
      %v4848 = vld [vmem:[%s5 + $0x150] sm:$0xff]
      %v4849 = vld [vmem:[%s5 + $0x158] sm:$0xff]
      %v4850 = vld [vmem:[%s5 + $0x160] sm:$0xff]
      %v4851 = vld [vmem:[%s5 + $0x168] sm:$0xff]
      %v4852 = vld [vmem:[%s5 + $0x170] sm:$0xff]
      %v4853 = vld [vmem:[%s5 + $0x178] sm:$0xff]
      %v4854 = vld [vmem:[%s5 + $0x180] sm:$0xff]
      %v4855 = vld [vmem:[%s5 + $0x188] sm:$0xff]
      %v4856 = vld [vmem:[%s5 + $0x190] sm:$0xff]
      %v4857 = vld [vmem:[%s5 + $0x198] sm:$0xff]
      %v4858 = vld [vmem:[%s5 + $0x1a0] sm:$0xff]
      %v4859 = vld [vmem:[%s5 + $0x1a8] sm:$0xff]
      %v4860 = vld [vmem:[%s5 + $0x1b0] sm:$0xff]
      %v4861 = vld [vmem:[%s5 + $0x1b8] sm:$0xff]
      %v4862 = vld [vmem:[%s5 + $0x1c0] sm:$0xff]
      %v4863 = vld [vmem:[%s5 + $0x1c8] sm:$0xff]
      %v4864 = vld [vmem:[%s5 + $0x1d0] sm:$0xff]
      %v4865 = vld [vmem:[%s5 + $0x1d8] sm:$0xff]
      %v4866 = vld [vmem:[#allocation3] sm:$0xfe]
      %v4867 = vld [vmem:[#allocation3 + $0x8] sm:$0xfe]
      %v4868 = vld [vmem:[#allocation3 + $0x10] sm:$0xfe]
      %v4869 = vld [vmem:[#allocation3 + $0x18] sm:$0xfe]
      %v4870 = vld [vmem:[#allocation3 + $0x20] sm:$0xf]
      %v4871 = vld [vmem:[#allocation3 + $0x28] sm:$0xf]
      %v4872 = vld [vmem:[#allocation3 + $0x30] sm:$0xf]
      %v4873 = vld [vmem:[#allocation3 + $0x38] sm:$0xf]
      %v4874 = vpack.c.bf16 %v4870, %v4866
      %v4875 = vpack.c.bf16 %v4871, %v4867
      %v4876 = vpack.c.bf16 %v4872, %v4868
      %v4877 = vpack.c.bf16 %v4873, %v4869
      %s4878 = scalar_lea.vmem %s5, 480
      %v4879 = vld [vmem:[%s4878] sm:$0xff]
      %v4880 = vld [vmem:[%s4878 + $0x8] sm:$0xff]
      %v4881 = vld [vmem:[%s4878 + $0x10] sm:$0xff]
      %v4882 = vld [vmem:[%s4878 + $0x18] sm:$0xff]
      %v4883 = vld [vmem:[%s4878 + $0x20] sm:$0xff]
      %v4884 = vld [vmem:[%s4878 + $0x28] sm:$0xff]
      %v4885 = vld [vmem:[%s4878 + $0x30] sm:$0xff]
      %v4886 = vld [vmem:[%s4878 + $0x38] sm:$0xff]
      %v4887 = vld [vmem:[%s4878 + $0x40] sm:$0xff]
      %v4888 = vld [vmem:[%s4878 + $0x48] sm:$0xff]
      %v4889 = vld [vmem:[%s4878 + $0x50] sm:$0xff]
      %v4890 = vld [vmem:[%s4878 + $0x58] sm:$0xff]
      %v4891 = vld [vmem:[%s4878 + $0x60] sm:$0xff]
      %v4892 = vld [vmem:[%s4878 + $0x68] sm:$0xff]
      %v4893 = vld [vmem:[%s4878 + $0x70] sm:$0xff]
      %v4894 = vld [vmem:[%s4878 + $0x78] sm:$0xff]
      %v4895 = vld [vmem:[%s4878 + $0x80] sm:$0xff]
      %v4896 = vld [vmem:[%s4878 + $0x88] sm:$0xff]
      %v4897 = vld [vmem:[%s4878 + $0x90] sm:$0xff]
      %v4898 = vld [vmem:[%s4878 + $0x98] sm:$0xff]
      %v4899 = vld [vmem:[%s4878 + $0xa0] sm:$0xff]
      %v4900 = vld [vmem:[%s4878 + $0xa8] sm:$0xff]
      %v4901 = vld [vmem:[%s4878 + $0xb0] sm:$0xff]
      %v4902 = vld [vmem:[%s4878 + $0xb8] sm:$0xff]
      %v4903 = vld [vmem:[%s4878 + $0xc0] sm:$0xff]
      %v4904 = vld [vmem:[%s4878 + $0xc8] sm:$0xff]
      %v4905 = vld [vmem:[%s4878 + $0xd0] sm:$0xff]
      %v4906 = vld [vmem:[%s4878 + $0xd8] sm:$0xff]
      %v4907 = vld [vmem:[%s4878 + $0xe0] sm:$0xff]
      %v4908 = vld [vmem:[%s4878 + $0xe8] sm:$0xff]
      %v4909 = vld [vmem:[%s4878 + $0xf0] sm:$0xff]
      %v4910 = vld [vmem:[%s4878 + $0xf8] sm:$0xff]
      %v4911 = vld [vmem:[%s4878 + $0x100] sm:$0xff]
      %v4912 = vld [vmem:[%s4878 + $0x108] sm:$0xff]
      %v4913 = vld [vmem:[%s4878 + $0x110] sm:$0xff]
      %v4914 = vld [vmem:[%s4878 + $0x118] sm:$0xff]
      %v4915 = vld [vmem:[%s4878 + $0x120] sm:$0xff]
      %v4916 = vld [vmem:[%s4878 + $0x128] sm:$0xff]
      %v4917 = vld [vmem:[%s4878 + $0x130] sm:$0xff]
      %v4918 = vld [vmem:[%s4878 + $0x138] sm:$0xff]
      %v4919 = vld [vmem:[%s4878 + $0x140] sm:$0xff]
      %v4920 = vld [vmem:[%s4878 + $0x148] sm:$0xff]
      %v4921 = vld [vmem:[%s4878 + $0x150] sm:$0xff]
      %v4922 = vld [vmem:[%s4878 + $0x158] sm:$0xff]
      %v4923 = vld [vmem:[%s4878 + $0x160] sm:$0xff]
      %v4924 = vld [vmem:[%s4878 + $0x168] sm:$0xff]
      %v4925 = vld [vmem:[%s4878 + $0x170] sm:$0xff]
      %v4926 = vld [vmem:[%s4878 + $0x178] sm:$0xff]
      %v4927 = vld [vmem:[%s4878 + $0x180] sm:$0xff]
      %v4928 = vld [vmem:[%s4878 + $0x188] sm:$0xff]
      %v4929 = vld [vmem:[%s4878 + $0x190] sm:$0xff]
      %v4930 = vld [vmem:[%s4878 + $0x198] sm:$0xff]
      %v4931 = vld [vmem:[%s4878 + $0x1a0] sm:$0xff]
      %v4932 = vld [vmem:[%s4878 + $0x1a8] sm:$0xff]
      %v4933 = vld [vmem:[%s4878 + $0x1b0] sm:$0xff]
      %v4934 = vld [vmem:[%s4878 + $0x1b8] sm:$0xff]
      %v4935 = vld [vmem:[%s4878 + $0x1c0] sm:$0xff]
      %v4936 = vld [vmem:[%s4878 + $0x1c8] sm:$0xff]
      %v4937 = vld [vmem:[%s4878 + $0x1d0] sm:$0xff]
      %v4938 = vld [vmem:[%s4878 + $0x1d8] sm:$0xff]
      %v4940 = vshrl.u32 %v4874, 16
      %v4942 = vshll.u32 %v4874, 16
      %v4944 = vrot.slane %v4942, 1
      %v4945 = vor.u32 %v4940, %v4944
      %v4947 = vshrl.u32 %v4875, 16
      %v4949 = vshll.u32 %v4875, 16
      %v4951 = vrot.slane %v4949, 1
      %v4952 = vor.u32 %v4947, %v4951
      %v4954 = vshrl.u32 %v4876, 16
      %v4956 = vshll.u32 %v4876, 16
      %v4958 = vrot.slane %v4956, 1
      %v4959 = vor.u32 %v4954, %v4958
      %v4961 = vshrl.u32 %v4877, 16
      %v4963 = vshll.u32 %v4877, 16
      %v4965 = vrot.slane %v4963, 1
      %v4966 = vor.u32 %v4961, %v4965
      %v5030 = vunpack.c.l.b16 %v4879
      %v5031 = vunpack.c.h.b16 %v4879
      %v5032 = vunpack.c.l.b16 %v4880
      %v5033 = vunpack.c.h.b16 %v4880
      %v5034 = vunpack.c.l.b16 %v4881
      %v5035 = vunpack.c.h.b16 %v4881
      %v5036 = vunpack.c.l.b16 %v4882
      %v5037 = vunpack.c.h.b16 %v4882
      %v5038 = vunpack.c.l.b16 %v4883
      %v5039 = vunpack.c.h.b16 %v4883
      %v5040 = vunpack.c.l.b16 %v4884
      %v5041 = vunpack.c.h.b16 %v4884
      %v5042 = vunpack.c.l.b16 %v4885
      %v5043 = vunpack.c.h.b16 %v4885
      %v5044 = vunpack.c.l.b16 %v4886
      %v5045 = vunpack.c.h.b16 %v4886
      %v5046 = vunpack.c.l.b16 %v4887
      %v5047 = vunpack.c.h.b16 %v4887
      %v5048 = vunpack.c.l.b16 %v4888
      %v5049 = vunpack.c.h.b16 %v4888
      %v5050 = vunpack.c.l.b16 %v4889
      %v5051 = vunpack.c.h.b16 %v4889
      %v5052 = vunpack.c.l.b16 %v4890
      %v5053 = vunpack.c.h.b16 %v4890
      %v5054 = vunpack.c.l.b16 %v4891
      %v5055 = vunpack.c.h.b16 %v4891
      %v5056 = vunpack.c.l.b16 %v4892
      %v5057 = vunpack.c.h.b16 %v4892
      %v5058 = vunpack.c.l.b16 %v4893
      %v5059 = vunpack.c.h.b16 %v4893
      %v5060 = vunpack.c.l.b16 %v4894
      %v5061 = vunpack.c.h.b16 %v4894
      %v5062 = vunpack.c.l.b16 %v4895
      %v5063 = vunpack.c.h.b16 %v4895
      %v5064 = vunpack.c.l.b16 %v4896
      %v5065 = vunpack.c.h.b16 %v4896
      %v5066 = vunpack.c.l.b16 %v4897
      %v5067 = vunpack.c.h.b16 %v4897
      %v5068 = vunpack.c.l.b16 %v4898
      %v5069 = vunpack.c.h.b16 %v4898
      %v5070 = vunpack.c.l.b16 %v4899
      %v5071 = vunpack.c.h.b16 %v4899
      %v5072 = vunpack.c.l.b16 %v4900
      %v5073 = vunpack.c.h.b16 %v4900
      %v5074 = vunpack.c.l.b16 %v4901
      %v5075 = vunpack.c.h.b16 %v4901
      %v5076 = vunpack.c.l.b16 %v4902
      %v5077 = vunpack.c.h.b16 %v4902
      %v5078 = vunpack.c.l.b16 %v4903
      %v5079 = vunpack.c.h.b16 %v4903
      %v5080 = vunpack.c.l.b16 %v4904
      %v5081 = vunpack.c.h.b16 %v4904
      %v5082 = vunpack.c.l.b16 %v4905
      %v5083 = vunpack.c.h.b16 %v4905
      %v5084 = vunpack.c.l.b16 %v4906
      %v5085 = vunpack.c.h.b16 %v4906
      %v5086 = vunpack.c.l.b16 %v4907
      %v5087 = vunpack.c.h.b16 %v4907
      %v5088 = vunpack.c.l.b16 %v4908
      %v5089 = vunpack.c.h.b16 %v4908
      %v5090 = vunpack.c.l.b16 %v4909
      %v5091 = vunpack.c.h.b16 %v4909
      %v5092 = vunpack.c.l.b16 %v4910
      %v5093 = vunpack.c.h.b16 %v4910
      %v5094 = vunpack.c.l.b16 %v4911
      %v5095 = vunpack.c.h.b16 %v4911
      %v5096 = vunpack.c.l.b16 %v4912
      %v5097 = vunpack.c.h.b16 %v4912
      %v5098 = vunpack.c.l.b16 %v4913
      %v5099 = vunpack.c.h.b16 %v4913
      %v5100 = vunpack.c.l.b16 %v4914
      %v5101 = vunpack.c.h.b16 %v4914
      %v5102 = vunpack.c.l.b16 %v4915
      %v5103 = vunpack.c.h.b16 %v4915
      %v5104 = vunpack.c.l.b16 %v4916
      %v5105 = vunpack.c.h.b16 %v4916
      %v5106 = vunpack.c.l.b16 %v4917
      %v5107 = vunpack.c.h.b16 %v4917
      %v5108 = vunpack.c.l.b16 %v4918
      %v5109 = vunpack.c.h.b16 %v4918
      %v5110 = vunpack.c.l.b16 %v4919
      %v5111 = vunpack.c.h.b16 %v4919
      %v5112 = vunpack.c.l.b16 %v4920
      %v5113 = vunpack.c.h.b16 %v4920
      %v5114 = vunpack.c.l.b16 %v4921
      %v5115 = vunpack.c.h.b16 %v4921
      %v5116 = vunpack.c.l.b16 %v4922
      %v5117 = vunpack.c.h.b16 %v4922
      %v5118 = vunpack.c.l.b16 %v4923
      %v5119 = vunpack.c.h.b16 %v4923
      %v5120 = vunpack.c.l.b16 %v4924
      %v5121 = vunpack.c.h.b16 %v4924
      %v5122 = vunpack.c.l.b16 %v4925
      %v5123 = vunpack.c.h.b16 %v4925
      %v5124 = vunpack.c.l.b16 %v4926
      %v5125 = vunpack.c.h.b16 %v4926
      %v5126 = vunpack.c.l.b16 %v4927
      %v5127 = vunpack.c.h.b16 %v4927
      %v5128 = vunpack.c.l.b16 %v4928
      %v5129 = vunpack.c.h.b16 %v4928
      %v5130 = vunpack.c.l.b16 %v4929
      %v5131 = vunpack.c.h.b16 %v4929
      %v5132 = vunpack.c.l.b16 %v4930
      %v5133 = vunpack.c.h.b16 %v4930
      %v5134 = vunpack.c.l.b16 %v4931
      %v5135 = vunpack.c.h.b16 %v4931
      %v5136 = vunpack.c.l.b16 %v4932
      %v5137 = vunpack.c.h.b16 %v4932
      %v5138 = vunpack.c.l.b16 %v4933
      %v5139 = vunpack.c.h.b16 %v4933
      %v5140 = vunpack.c.l.b16 %v4934
      %v5141 = vunpack.c.h.b16 %v4934
      %v5142 = vunpack.c.l.b16 %v4935
      %v5143 = vunpack.c.h.b16 %v4935
      %v5144 = vunpack.c.l.b16 %v4936
      %v5145 = vunpack.c.h.b16 %v4936
      %v5146 = vunpack.c.l.b16 %v4937
      %v5147 = vunpack.c.h.b16 %v4937
      %v5148 = vunpack.c.l.b16 %v4938
      %v5149 = vunpack.c.h.b16 %v4938
      %v5150 = vpack.c.b16 %v5032, %v5030
      %v5151 = vpack.c.b16 %v5033, %v5031
      %v5152 = vpack.c.b16 %v5036, %v5034
      %v5153 = vpack.c.b16 %v5037, %v5035
      %v5154 = vpack.c.b16 %v5040, %v5038
      %v5155 = vpack.c.b16 %v5041, %v5039
      %v5156 = vpack.c.b16 %v5044, %v5042
      %v5157 = vpack.c.b16 %v5045, %v5043
      %v5158 = vpack.c.b16 %v5048, %v5046
      %v5159 = vpack.c.b16 %v5049, %v5047
      %v5160 = vpack.c.b16 %v5052, %v5050
      %v5161 = vpack.c.b16 %v5053, %v5051
      %v5162 = vpack.c.b16 %v5056, %v5054
      %v5163 = vpack.c.b16 %v5057, %v5055
      %v5164 = vpack.c.b16 %v5060, %v5058
      %v5165 = vpack.c.b16 %v5061, %v5059
      %v5166 = vpack.c.b16 %v5064, %v5062
      %v5167 = vpack.c.b16 %v5065, %v5063
      %v5168 = vpack.c.b16 %v5068, %v5066
      %v5169 = vpack.c.b16 %v5069, %v5067
      %v5170 = vpack.c.b16 %v5072, %v5070
      %v5171 = vpack.c.b16 %v5073, %v5071
      %v5172 = vpack.c.b16 %v5076, %v5074
      %v5173 = vpack.c.b16 %v5077, %v5075
      %v5174 = vpack.c.b16 %v5080, %v5078
      %v5175 = vpack.c.b16 %v5081, %v5079
      %v5176 = vpack.c.b16 %v5084, %v5082
      %v5177 = vpack.c.b16 %v5085, %v5083
      %v5178 = vpack.c.b16 %v5088, %v5086
      %v5179 = vpack.c.b16 %v5089, %v5087
      %v5180 = vpack.c.b16 %v5092, %v5090
      %v5181 = vpack.c.b16 %v5093, %v5091
      %v5182 = vpack.c.b16 %v5096, %v5094
      %v5183 = vpack.c.b16 %v5097, %v5095
      %v5184 = vpack.c.b16 %v5100, %v5098
      %v5185 = vpack.c.b16 %v5101, %v5099
      %v5186 = vpack.c.b16 %v5104, %v5102
      %v5187 = vpack.c.b16 %v5105, %v5103
      %v5188 = vpack.c.b16 %v5108, %v5106
      %v5189 = vpack.c.b16 %v5109, %v5107
      %v5190 = vpack.c.b16 %v5112, %v5110
      %v5191 = vpack.c.b16 %v5113, %v5111
      %v5192 = vpack.c.b16 %v5116, %v5114
      %v5193 = vpack.c.b16 %v5117, %v5115
      %v5194 = vpack.c.b16 %v5120, %v5118
      %v5195 = vpack.c.b16 %v5121, %v5119
      %v5196 = vpack.c.b16 %v5124, %v5122
      %v5197 = vpack.c.b16 %v5125, %v5123
      %v5198 = vpack.c.b16 %v5128, %v5126
      %v5199 = vpack.c.b16 %v5129, %v5127
      %v5200 = vpack.c.b16 %v5132, %v5130
      %v5201 = vpack.c.b16 %v5133, %v5131
      %v5202 = vpack.c.b16 %v5136, %v5134
      %v5203 = vpack.c.b16 %v5137, %v5135
      %v5204 = vpack.c.b16 %v5140, %v5138
      %v5205 = vpack.c.b16 %v5141, %v5139
      %v5206 = vpack.c.b16 %v5144, %v5142
      %v5207 = vpack.c.b16 %v5145, %v5143
      %v5208 = vpack.c.b16 %v5148, %v5146
      %v5209 = vpack.c.b16 %v5149, %v5147
      %v5271 = vsel %vm4775, %v4966, 0
      %5273 = vmatprep.subr.bf16.mxu0 %v5151
      %5274 = vmatpush1.bf16.msra.mxu0 %v5150
      %5275 = vmatprep.subr.bf16.mxu0 %v5153
      %5276 = vmatpush1.bf16.msra.mxu0 %v5152
      %5277 = vmatprep.subr.bf16.mxu0 %v5155
      %5278 = vmatpush1.bf16.msra.mxu0 %v5154
      %5279 = vmatprep.subr.bf16.mxu0 %v5157
      %5280 = vmatpush1.bf16.msra.mxu0 %v5156
      %5281 = vmatprep.subr.bf16.mxu0 %v5159
      %5282 = vmatpush1.bf16.msra.mxu0 %v5158
      %5283 = vmatprep.subr.bf16.mxu0 %v5161
      %5284 = vmatpush1.bf16.msra.mxu0 %v5160
      %5285 = vmatprep.subr.bf16.mxu0 %v5163
      %5286 = vmatpush1.bf16.msra.mxu0 %v5162
      %5287 = vmatprep.subr.bf16.mxu0 %v5165
      %5288 = vmatpush1.bf16.msra.mxu0 %v5164
      %5289 = vmatprep.subr.bf16.mxu0 %v5167
      %5290 = vmatpush1.bf16.msra.mxu0 %v5166
      %5291 = vmatprep.subr.bf16.mxu0 %v5169
      %5292 = vmatpush1.bf16.msra.mxu0 %v5168
      %5293 = vmatprep.subr.bf16.mxu0 %v5171
      %5294 = vmatpush1.bf16.msra.mxu0 %v5170
      %5295 = vmatprep.subr.bf16.mxu0 %v5173
      %5296 = vmatpush1.bf16.msra.mxu0 %v5172
      %5297 = vmatprep.subr.bf16.mxu0 %v5175
      %5298 = vmatpush1.bf16.msra.mxu0 %v5174
      %5299 = vmatprep.subr.bf16.mxu0 %v5177
      %5300 = vmatpush1.bf16.msra.mxu0 %v5176
      %5301 = vmatprep.subr.bf16.mxu0 %v5179
      %5302 = vmatpush1.bf16.msra.mxu0 %v5178
      %5303 = vmatprep.subr.bf16.mxu0 %v5181
      %5304 = vmatpush1.bf16.msra.mxu0 %v5180
      %5305 = vmatprep.mubr.bf16.mxu0 %v4952
      %5306 = vmatmul.mubr.bf16.gmra.mrb[0].mxu0 %v4945
      %v5307 = vpop.f32.mrb[0].mxu0
      %v5308 = vadd.f32 0.0, %v5307
      %v5309 = vpop.f32.mrb[0].mxu0
      %v5310 = vadd.f32 0.0, %v5309
      %v5311 = vpop.f32.mrb[0].mxu0
      %v5312 = vadd.f32 0.0, %v5311
      %v5313 = vpop.f32.mrb[0].mxu0
      %v5314 = vadd.f32 0.0, %v5313
      %5315 = vdwg.mxu0
      %5316 = vmatprep.subr.bf16.mxu0 %v5183
      %5317 = vmatpush1.bf16.msra.mxu0 %v5182
      %5318 = vmatprep.subr.bf16.mxu0 %v5185
      %5319 = vmatpush1.bf16.msra.mxu0 %v5184
      %5320 = vmatprep.subr.bf16.mxu0 %v5187
      %5321 = vmatpush1.bf16.msra.mxu0 %v5186
      %5322 = vmatprep.subr.bf16.mxu0 %v5189
      %5323 = vmatpush1.bf16.msra.mxu0 %v5188
      %5324 = vmatprep.subr.bf16.mxu0 %v5191
      %5325 = vmatpush1.bf16.msra.mxu0 %v5190
      %5326 = vmatprep.subr.bf16.mxu0 %v5193
      %5327 = vmatpush1.bf16.msra.mxu0 %v5192
      %5328 = vmatprep.subr.bf16.mxu0 %v5195
      %5329 = vmatpush1.bf16.msra.mxu0 %v5194
      %5330 = vmatprep.subr.bf16.mxu0 %v5197
      %5331 = vmatpush1.bf16.msra.mxu0 %v5196
      %5332 = vmatprep.subr.bf16.mxu0 %v5199
      %5333 = vmatpush1.bf16.msra.mxu0 %v5198
      %5334 = vmatprep.subr.bf16.mxu0 %v5201
      %5335 = vmatpush1.bf16.msra.mxu0 %v5200
      %5336 = vmatprep.subr.bf16.mxu0 %v5203
      %5337 = vmatpush1.bf16.msra.mxu0 %v5202
      %5338 = vmatprep.subr.bf16.mxu0 %v5205
      %5339 = vmatpush1.bf16.msra.mxu0 %v5204
      %5340 = vmatprep.subr.bf16.mxu0 %v5207
      %5341 = vmatpush1.bf16.msra.mxu0 %v5206
      %5342 = vmatprep.subr.bf16.mxu0 %v5209
      %5343 = vmatpush1.bf16.msra.mxu0 %v5208
      %5344 = vmatprep.subr.bf16.mxu0 0
      %5345 = vmatpush1.bf16.msra.mxu0 0
      %5346 = vmatprep.subr.bf16.mxu0 0
      %5347 = vmatpush1.bf16.msra.mxu0 0
      %5348 = vmatprep.mubr.bf16.mxu0 %v5271
      %5349 = vmatmul.mubr.bf16.gmra.mrb[0].mxu0 %v4959
      %v5350 = vpop.f32.mrb[0].mxu0
      %v5351 = vadd.f32 %v5308, %v5350
      %v5352 = vpop.f32.mrb[0].mxu0
      %v5353 = vadd.f32 %v5310, %v5352
      %v5354 = vpop.f32.mrb[0].mxu0
      %v5355 = vadd.f32 %v5312, %v5354
      %v5356 = vpop.f32.mrb[0].mxu0
      %v5357 = vadd.f32 %v5314, %v5356
      %5358 = vdwg.mxu0
      %v5419 = vunpack.c.l.b16 %v4806
      %v5420 = vunpack.c.h.b16 %v4806
      %v5421 = vunpack.c.l.b16 %v4807
      %v5422 = vunpack.c.h.b16 %v4807
      %v5423 = vunpack.c.l.b16 %v4808
      %v5424 = vunpack.c.h.b16 %v4808
      %v5425 = vunpack.c.l.b16 %v4809
      %v5426 = vunpack.c.h.b16 %v4809
      %v5427 = vunpack.c.l.b16 %v4810
      %v5428 = vunpack.c.h.b16 %v4810
      %v5429 = vunpack.c.l.b16 %v4811
      %v5430 = vunpack.c.h.b16 %v4811
      %v5431 = vunpack.c.l.b16 %v4812
      %v5432 = vunpack.c.h.b16 %v4812
      %v5433 = vunpack.c.l.b16 %v4813
      %v5434 = vunpack.c.h.b16 %v4813
      %v5435 = vunpack.c.l.b16 %v4814
      %v5436 = vunpack.c.h.b16 %v4814
      %v5437 = vunpack.c.l.b16 %v4815
      %v5438 = vunpack.c.h.b16 %v4815
      %v5439 = vunpack.c.l.b16 %v4816
      %v5440 = vunpack.c.h.b16 %v4816
      %v5441 = vunpack.c.l.b16 %v4817
      %v5442 = vunpack.c.h.b16 %v4817
      %v5443 = vunpack.c.l.b16 %v4818
      %v5444 = vunpack.c.h.b16 %v4818
      %v5445 = vunpack.c.l.b16 %v4819
      %v5446 = vunpack.c.h.b16 %v4819
      %v5447 = vunpack.c.l.b16 %v4820
      %v5448 = vunpack.c.h.b16 %v4820
      %v5449 = vunpack.c.l.b16 %v4821
      %v5450 = vunpack.c.h.b16 %v4821
      %v5451 = vunpack.c.l.b16 %v4822
      %v5452 = vunpack.c.h.b16 %v4822
      %v5453 = vunpack.c.l.b16 %v4823
      %v5454 = vunpack.c.h.b16 %v4823
      %v5455 = vunpack.c.l.b16 %v4824
      %v5456 = vunpack.c.h.b16 %v4824
      %v5457 = vunpack.c.l.b16 %v4825
      %v5458 = vunpack.c.h.b16 %v4825
      %v5459 = vunpack.c.l.b16 %v4826
      %v5460 = vunpack.c.h.b16 %v4826
      %v5461 = vunpack.c.l.b16 %v4827
      %v5462 = vunpack.c.h.b16 %v4827
      %v5463 = vunpack.c.l.b16 %v4828
      %v5464 = vunpack.c.h.b16 %v4828
      %v5465 = vunpack.c.l.b16 %v4829
      %v5466 = vunpack.c.h.b16 %v4829
      %v5467 = vunpack.c.l.b16 %v4830
      %v5468 = vunpack.c.h.b16 %v4830
      %v5469 = vunpack.c.l.b16 %v4831
      %v5470 = vunpack.c.h.b16 %v4831
      %v5471 = vunpack.c.l.b16 %v4832
      %v5472 = vunpack.c.h.b16 %v4832
      %v5473 = vunpack.c.l.b16 %v4833
      %v5474 = vunpack.c.h.b16 %v4833
      %v5475 = vunpack.c.l.b16 %v4834
      %v5476 = vunpack.c.h.b16 %v4834
      %v5477 = vunpack.c.l.b16 %v4835
      %v5478 = vunpack.c.h.b16 %v4835
      %v5479 = vunpack.c.l.b16 %v4836
      %v5480 = vunpack.c.h.b16 %v4836
      %v5481 = vunpack.c.l.b16 %v4837
      %v5482 = vunpack.c.h.b16 %v4837
      %v5483 = vunpack.c.l.b16 %v4838
      %v5484 = vunpack.c.h.b16 %v4838
      %v5485 = vunpack.c.l.b16 %v4839
      %v5486 = vunpack.c.h.b16 %v4839
      %v5487 = vunpack.c.l.b16 %v4840
      %v5488 = vunpack.c.h.b16 %v4840
      %v5489 = vunpack.c.l.b16 %v4841
      %v5490 = vunpack.c.h.b16 %v4841
      %v5491 = vunpack.c.l.b16 %v4842
      %v5492 = vunpack.c.h.b16 %v4842
      %v5493 = vunpack.c.l.b16 %v4843
      %v5494 = vunpack.c.h.b16 %v4843
      %v5495 = vunpack.c.l.b16 %v4844
      %v5496 = vunpack.c.h.b16 %v4844
      %v5497 = vunpack.c.l.b16 %v4845
      %v5498 = vunpack.c.h.b16 %v4845
      %v5499 = vunpack.c.l.b16 %v4846
      %v5500 = vunpack.c.h.b16 %v4846
      %v5501 = vunpack.c.l.b16 %v4847
      %v5502 = vunpack.c.h.b16 %v4847
      %v5503 = vunpack.c.l.b16 %v4848
      %v5504 = vunpack.c.h.b16 %v4848
      %v5505 = vunpack.c.l.b16 %v4849
      %v5506 = vunpack.c.h.b16 %v4849
      %v5507 = vunpack.c.l.b16 %v4850
      %v5508 = vunpack.c.h.b16 %v4850
      %v5509 = vunpack.c.l.b16 %v4851
      %v5510 = vunpack.c.h.b16 %v4851
      %v5511 = vunpack.c.l.b16 %v4852
      %v5512 = vunpack.c.h.b16 %v4852
      %v5513 = vunpack.c.l.b16 %v4853
      %v5514 = vunpack.c.h.b16 %v4853
      %v5515 = vunpack.c.l.b16 %v4854
      %v5516 = vunpack.c.h.b16 %v4854
      %v5517 = vunpack.c.l.b16 %v4855
      %v5518 = vunpack.c.h.b16 %v4855
      %v5519 = vunpack.c.l.b16 %v4856
      %v5520 = vunpack.c.h.b16 %v4856
      %v5521 = vunpack.c.l.b16 %v4857
      %v5522 = vunpack.c.h.b16 %v4857
      %v5523 = vunpack.c.l.b16 %v4858
      %v5524 = vunpack.c.h.b16 %v4858
      %v5525 = vunpack.c.l.b16 %v4859
      %v5526 = vunpack.c.h.b16 %v4859
      %v5527 = vunpack.c.l.b16 %v4860
      %v5528 = vunpack.c.h.b16 %v4860
      %v5529 = vunpack.c.l.b16 %v4861
      %v5530 = vunpack.c.h.b16 %v4861
      %v5531 = vunpack.c.l.b16 %v4862
      %v5532 = vunpack.c.h.b16 %v4862
      %v5533 = vunpack.c.l.b16 %v4863
      %v5534 = vunpack.c.h.b16 %v4863
      %v5535 = vunpack.c.l.b16 %v4864
      %v5536 = vunpack.c.h.b16 %v4864
      %v5537 = vunpack.c.l.b16 %v4865
      %v5538 = vunpack.c.h.b16 %v4865
      %v5539 = vpack.c.b16 %v5421, %v5419
      %v5540 = vpack.c.b16 %v5422, %v5420
      %v5541 = vpack.c.b16 %v5425, %v5423
      %v5542 = vpack.c.b16 %v5426, %v5424
      %v5543 = vpack.c.b16 %v5429, %v5427
      %v5544 = vpack.c.b16 %v5430, %v5428
      %v5545 = vpack.c.b16 %v5433, %v5431
      %v5546 = vpack.c.b16 %v5434, %v5432
      %v5547 = vpack.c.b16 %v5437, %v5435
      %v5548 = vpack.c.b16 %v5438, %v5436
      %v5549 = vpack.c.b16 %v5441, %v5439
      %v5550 = vpack.c.b16 %v5442, %v5440
      %v5551 = vpack.c.b16 %v5445, %v5443
      %v5552 = vpack.c.b16 %v5446, %v5444
      %v5553 = vpack.c.b16 %v5449, %v5447
      %v5554 = vpack.c.b16 %v5450, %v5448
      %v5555 = vpack.c.b16 %v5453, %v5451
      %v5556 = vpack.c.b16 %v5454, %v5452
      %v5557 = vpack.c.b16 %v5457, %v5455
      %v5558 = vpack.c.b16 %v5458, %v5456
      %v5559 = vpack.c.b16 %v5461, %v5459
      %v5560 = vpack.c.b16 %v5462, %v5460
      %v5561 = vpack.c.b16 %v5465, %v5463
      %v5562 = vpack.c.b16 %v5466, %v5464
      %v5563 = vpack.c.b16 %v5469, %v5467
      %v5564 = vpack.c.b16 %v5470, %v5468
      %v5565 = vpack.c.b16 %v5473, %v5471
      %v5566 = vpack.c.b16 %v5474, %v5472
      %v5567 = vpack.c.b16 %v5477, %v5475
      %v5568 = vpack.c.b16 %v5478, %v5476
      %v5569 = vpack.c.b16 %v5481, %v5479
      %v5570 = vpack.c.b16 %v5482, %v5480
      %v5571 = vpack.c.b16 %v5485, %v5483
      %v5572 = vpack.c.b16 %v5486, %v5484
      %v5573 = vpack.c.b16 %v5489, %v5487
      %v5574 = vpack.c.b16 %v5490, %v5488
      %v5575 = vpack.c.b16 %v5493, %v5491
      %v5576 = vpack.c.b16 %v5494, %v5492
      %v5577 = vpack.c.b16 %v5497, %v5495
      %v5578 = vpack.c.b16 %v5498, %v5496
      %v5579 = vpack.c.b16 %v5501, %v5499
      %v5580 = vpack.c.b16 %v5502, %v5500
      %v5581 = vpack.c.b16 %v5505, %v5503
      %v5582 = vpack.c.b16 %v5506, %v5504
      %v5583 = vpack.c.b16 %v5509, %v5507
      %v5584 = vpack.c.b16 %v5510, %v5508
      %v5585 = vpack.c.b16 %v5513, %v5511
      %v5586 = vpack.c.b16 %v5514, %v5512
      %v5587 = vpack.c.b16 %v5517, %v5515
      %v5588 = vpack.c.b16 %v5518, %v5516
      %v5589 = vpack.c.b16 %v5521, %v5519
      %v5590 = vpack.c.b16 %v5522, %v5520
      %v5591 = vpack.c.b16 %v5525, %v5523
      %v5592 = vpack.c.b16 %v5526, %v5524
      %v5593 = vpack.c.b16 %v5529, %v5527
      %v5594 = vpack.c.b16 %v5530, %v5528
      %v5595 = vpack.c.b16 %v5533, %v5531
      %v5596 = vpack.c.b16 %v5534, %v5532
      %v5597 = vpack.c.b16 %v5537, %v5535
      %v5598 = vpack.c.b16 %v5538, %v5536
      %v5660 = vsel %vm4775, %v4805, 0
      %5662 = vmatprep.subr.bf16.mxu0 %v5540
      %5663 = vmatpush1.bf16.msra.mxu0 %v5539
      %5664 = vmatprep.subr.bf16.mxu0 %v5542
      %5665 = vmatpush1.bf16.msra.mxu0 %v5541
      %5666 = vmatprep.subr.bf16.mxu0 %v5544
      %5667 = vmatpush1.bf16.msra.mxu0 %v5543
      %5668 = vmatprep.subr.bf16.mxu0 %v5546
      %5669 = vmatpush1.bf16.msra.mxu0 %v5545
      %5670 = vmatprep.subr.bf16.mxu0 %v5548
      %5671 = vmatpush1.bf16.msra.mxu0 %v5547
      %5672 = vmatprep.subr.bf16.mxu0 %v5550
      %5673 = vmatpush1.bf16.msra.mxu0 %v5549
      %5674 = vmatprep.subr.bf16.mxu0 %v5552
      %5675 = vmatpush1.bf16.msra.mxu0 %v5551
      %5676 = vmatprep.subr.bf16.mxu0 %v5554
      %5677 = vmatpush1.bf16.msra.mxu0 %v5553
      %5678 = vmatprep.subr.bf16.mxu0 %v5556
      %5679 = vmatpush1.bf16.msra.mxu0 %v5555
      %5680 = vmatprep.subr.bf16.mxu0 %v5558
      %5681 = vmatpush1.bf16.msra.mxu0 %v5557
      %5682 = vmatprep.subr.bf16.mxu0 %v5560
      %5683 = vmatpush1.bf16.msra.mxu0 %v5559
      %5684 = vmatprep.subr.bf16.mxu0 %v5562
      %5685 = vmatpush1.bf16.msra.mxu0 %v5561
      %5686 = vmatprep.subr.bf16.mxu0 %v5564
      %5687 = vmatpush1.bf16.msra.mxu0 %v5563
      %5688 = vmatprep.subr.bf16.mxu0 %v5566
      %5689 = vmatpush1.bf16.msra.mxu0 %v5565
      %5690 = vmatprep.subr.bf16.mxu0 %v5568
      %5691 = vmatpush1.bf16.msra.mxu0 %v5567
      %5692 = vmatprep.subr.bf16.mxu0 %v5570
      %5693 = vmatpush1.bf16.msra.mxu0 %v5569
      %5694 = vmatprep.mubr.bf16.mxu0 %v4803
      %5695 = vmatmul.mubr.bf16.gmra.mrb[0].mxu0 %v4802
      %v5696 = vpop.f32.mrb[0].mxu0
      %v5697 = vadd.f32 %v5351, %v5696
      %v5698 = vpop.f32.mrb[0].mxu0
      %v5699 = vadd.f32 %v5353, %v5698
      %v5700 = vpop.f32.mrb[0].mxu0
      %v5701 = vadd.f32 %v5355, %v5700
      %v5702 = vpop.f32.mrb[0].mxu0
      %v5703 = vadd.f32 %v5357, %v5702
      %5704 = vdwg.mxu0
      %5705 = vmatprep.subr.bf16.mxu0 %v5572
      %5706 = vmatpush1.bf16.msra.mxu0 %v5571
      %5707 = vmatprep.subr.bf16.mxu0 %v5574
      %5708 = vmatpush1.bf16.msra.mxu0 %v5573
      %5709 = vmatprep.subr.bf16.mxu0 %v5576
      %5710 = vmatpush1.bf16.msra.mxu0 %v5575
      %5711 = vmatprep.subr.bf16.mxu0 %v5578
      %5712 = vmatpush1.bf16.msra.mxu0 %v5577
      %5713 = vmatprep.subr.bf16.mxu0 %v5580
      %5714 = vmatpush1.bf16.msra.mxu0 %v5579
      %5715 = vmatprep.subr.bf16.mxu0 %v5582
      %5716 = vmatpush1.bf16.msra.mxu0 %v5581
      %5717 = vmatprep.subr.bf16.mxu0 %v5584
      %5718 = vmatpush1.bf16.msra.mxu0 %v5583
      %5719 = vmatprep.subr.bf16.mxu0 %v5586
      %5720 = vmatpush1.bf16.msra.mxu0 %v5585
      %5721 = vmatprep.subr.bf16.mxu0 %v5588
      %5722 = vmatpush1.bf16.msra.mxu0 %v5587
      %5723 = vmatprep.subr.bf16.mxu0 %v5590
      %5724 = vmatpush1.bf16.msra.mxu0 %v5589
      %5725 = vmatprep.subr.bf16.mxu0 %v5592
      %5726 = vmatpush1.bf16.msra.mxu0 %v5591
      %5727 = vmatprep.subr.bf16.mxu0 %v5594
      %5728 = vmatpush1.bf16.msra.mxu0 %v5593
      %5729 = vmatprep.subr.bf16.mxu0 %v5596
      %5730 = vmatpush1.bf16.msra.mxu0 %v5595
      %5731 = vmatprep.subr.bf16.mxu0 %v5598
      %5732 = vmatpush1.bf16.msra.mxu0 %v5597
      %5733 = vmatprep.subr.bf16.mxu0 0
      %5734 = vmatpush1.bf16.msra.mxu0 0
      %5735 = vmatprep.subr.bf16.mxu0 0
      %5736 = vmatpush1.bf16.msra.mxu0 0
      %5737 = vmatprep.mubr.bf16.mxu0 %v5660
      %5738 = vmatmul.mubr.bf16.gmra.mrb[0].mxu0 %v4804
      %v5739 = vpop.f32.mrb[0].mxu0
      %v5740 = vadd.f32 %v5697, %v5739
      %v5741 = vpop.f32.mrb[0].mxu0
      %v5742 = vadd.f32 %v5699, %v5741
      %v5743 = vpop.f32.mrb[0].mxu0
      %v5744 = vadd.f32 %v5701, %v5743
      %v5745 = vpop.f32.mrb[0].mxu0
      %v5746 = vadd.f32 %v5703, %v5745
      %5747 = vdwg.mxu0
      %v5748 = vld [vmem:[#allocation3] sm:$0xfc]
      %v5749 = vld [vmem:[#allocation3 + $0x8] sm:$0xfc]
      %v5750 = vld [vmem:[#allocation3 + $0x10] sm:$0xfc]
      %v5751 = vld [vmem:[#allocation3 + $0x18] sm:$0xfc]
      %v5752 = vld [vmem:[#allocation3 + $0x20] sm:$0x1f]
      %v5753 = vld [vmem:[#allocation3 + $0x28] sm:$0x1f]
      %v5754 = vld [vmem:[#allocation3 + $0x30] sm:$0x1f]
      %v5755 = vld [vmem:[#allocation3 + $0x38] sm:$0x1f]
      %v5756 = vpack.c.bf16 %v5752, %v5748
      %v5757 = vpack.c.bf16 %v5753, %v5749
      %v5758 = vpack.c.bf16 %v5754, %v5750
      %v5759 = vpack.c.bf16 %v5755, %v5751
      %s5760 = scalar_lea.vmem %s5, 960
      %v5761 = vld [vmem:[%s5760] sm:$0xff]
      %v5762 = vld [vmem:[%s5760 + $0x8] sm:$0xff]
      %v5763 = vld [vmem:[%s5760 + $0x10] sm:$0xff]
      %v5764 = vld [vmem:[%s5760 + $0x18] sm:$0xff]
      %v5765 = vld [vmem:[%s5760 + $0x20] sm:$0xff]
      %v5766 = vld [vmem:[%s5760 + $0x28] sm:$0xff]
      %v5767 = vld [vmem:[%s5760 + $0x30] sm:$0xff]
      %v5768 = vld [vmem:[%s5760 + $0x38] sm:$0xff]
      %v5769 = vld [vmem:[%s5760 + $0x40] sm:$0xff]
      %v5770 = vld [vmem:[%s5760 + $0x48] sm:$0xff]
      %v5771 = vld [vmem:[%s5760 + $0x50] sm:$0xff]
      %v5772 = vld [vmem:[%s5760 + $0x58] sm:$0xff]
      %v5773 = vld [vmem:[%s5760 + $0x60] sm:$0xff]
      %v5774 = vld [vmem:[%s5760 + $0x68] sm:$0xff]
      %v5775 = vld [vmem:[%s5760 + $0x70] sm:$0xff]
      %v5776 = vld [vmem:[%s5760 + $0x78] sm:$0xff]
      %v5777 = vld [vmem:[%s5760 + $0x80] sm:$0xff]
      %v5778 = vld [vmem:[%s5760 + $0x88] sm:$0xff]
      %v5779 = vld [vmem:[%s5760 + $0x90] sm:$0xff]
      %v5780 = vld [vmem:[%s5760 + $0x98] sm:$0xff]
      %v5781 = vld [vmem:[%s5760 + $0xa0] sm:$0xff]
      %v5782 = vld [vmem:[%s5760 + $0xa8] sm:$0xff]
      %v5783 = vld [vmem:[%s5760 + $0xb0] sm:$0xff]
      %v5784 = vld [vmem:[%s5760 + $0xb8] sm:$0xff]
      %v5785 = vld [vmem:[%s5760 + $0xc0] sm:$0xff]
      %v5786 = vld [vmem:[%s5760 + $0xc8] sm:$0xff]
      %v5787 = vld [vmem:[%s5760 + $0xd0] sm:$0xff]
      %v5788 = vld [vmem:[%s5760 + $0xd8] sm:$0xff]
      %v5789 = vld [vmem:[%s5760 + $0xe0] sm:$0xff]
      %v5790 = vld [vmem:[%s5760 + $0xe8] sm:$0xff]
      %v5791 = vld [vmem:[%s5760 + $0xf0] sm:$0xff]
      %v5792 = vld [vmem:[%s5760 + $0xf8] sm:$0xff]
      %v5793 = vld [vmem:[%s5760 + $0x100] sm:$0xff]
      %v5794 = vld [vmem:[%s5760 + $0x108] sm:$0xff]
      %v5795 = vld [vmem:[%s5760 + $0x110] sm:$0xff]
      %v5796 = vld [vmem:[%s5760 + $0x118] sm:$0xff]
      %v5797 = vld [vmem:[%s5760 + $0x120] sm:$0xff]
      %v5798 = vld [vmem:[%s5760 + $0x128] sm:$0xff]
      %v5799 = vld [vmem:[%s5760 + $0x130] sm:$0xff]
      %v5800 = vld [vmem:[%s5760 + $0x138] sm:$0xff]
      %v5801 = vld [vmem:[%s5760 + $0x140] sm:$0xff]
      %v5802 = vld [vmem:[%s5760 + $0x148] sm:$0xff]
      %v5803 = vld [vmem:[%s5760 + $0x150] sm:$0xff]
      %v5804 = vld [vmem:[%s5760 + $0x158] sm:$0xff]
      %v5805 = vld [vmem:[%s5760 + $0x160] sm:$0xff]
      %v5806 = vld [vmem:[%s5760 + $0x168] sm:$0xff]
      %v5807 = vld [vmem:[%s5760 + $0x170] sm:$0xff]
      %v5808 = vld [vmem:[%s5760 + $0x178] sm:$0xff]
      %v5809 = vld [vmem:[%s5760 + $0x180] sm:$0xff]
      %v5810 = vld [vmem:[%s5760 + $0x188] sm:$0xff]
      %v5811 = vld [vmem:[%s5760 + $0x190] sm:$0xff]
      %v5812 = vld [vmem:[%s5760 + $0x198] sm:$0xff]
      %v5813 = vld [vmem:[%s5760 + $0x1a0] sm:$0xff]
      %v5814 = vld [vmem:[%s5760 + $0x1a8] sm:$0xff]
      %v5815 = vld [vmem:[%s5760 + $0x1b0] sm:$0xff]
      %v5816 = vld [vmem:[%s5760 + $0x1b8] sm:$0xff]
      %v5817 = vld [vmem:[%s5760 + $0x1c0] sm:$0xff]
      %v5818 = vld [vmem:[%s5760 + $0x1c8] sm:$0xff]
      %v5819 = vld [vmem:[%s5760 + $0x1d0] sm:$0xff]
      %v5820 = vld [vmem:[%s5760 + $0x1d8] sm:$0xff]
      %v5825 = vrot.slane %v5756, 1
      %v5826 = vrot.slane %v5757, 1
      %v5827 = vrot.slane %v5758, 1
      %v5828 = vrot.slane %v5759, 1
      %v5892 = vunpack.c.l.b16 %v5761
      %v5893 = vunpack.c.h.b16 %v5761
      %v5894 = vunpack.c.l.b16 %v5762
      %v5895 = vunpack.c.h.b16 %v5762
      %v5896 = vunpack.c.l.b16 %v5763
      %v5897 = vunpack.c.h.b16 %v5763
      %v5898 = vunpack.c.l.b16 %v5764
      %v5899 = vunpack.c.h.b16 %v5764
      %v5900 = vunpack.c.l.b16 %v5765
      %v5901 = vunpack.c.h.b16 %v5765
      %v5902 = vunpack.c.l.b16 %v5766
      %v5903 = vunpack.c.h.b16 %v5766
      %v5904 = vunpack.c.l.b16 %v5767
      %v5905 = vunpack.c.h.b16 %v5767
      %v5906 = vunpack.c.l.b16 %v5768
      %v5907 = vunpack.c.h.b16 %v5768
      %v5908 = vunpack.c.l.b16 %v5769
      %v5909 = vunpack.c.h.b16 %v5769
      %v5910 = vunpack.c.l.b16 %v5770
      %v5911 = vunpack.c.h.b16 %v5770
      %v5912 = vunpack.c.l.b16 %v5771
      %v5913 = vunpack.c.h.b16 %v5771
      %v5914 = vunpack.c.l.b16 %v5772
      %v5915 = vunpack.c.h.b16 %v5772
      %v5916 = vunpack.c.l.b16 %v5773
      %v5917 = vunpack.c.h.b16 %v5773
      %v5918 = vunpack.c.l.b16 %v5774
      %v5919 = vunpack.c.h.b16 %v5774
      %v5920 = vunpack.c.l.b16 %v5775
      %v5921 = vunpack.c.h.b16 %v5775
      %v5922 = vunpack.c.l.b16 %v5776
      %v5923 = vunpack.c.h.b16 %v5776
      %v5924 = vunpack.c.l.b16 %v5777
      %v5925 = vunpack.c.h.b16 %v5777
      %v5926 = vunpack.c.l.b16 %v5778
      %v5927 = vunpack.c.h.b16 %v5778
      %v5928 = vunpack.c.l.b16 %v5779
      %v5929 = vunpack.c.h.b16 %v5779
      %v5930 = vunpack.c.l.b16 %v5780
      %v5931 = vunpack.c.h.b16 %v5780
      %v5932 = vunpack.c.l.b16 %v5781
      %v5933 = vunpack.c.h.b16 %v5781
      %v5934 = vunpack.c.l.b16 %v5782
      %v5935 = vunpack.c.h.b16 %v5782
      %v5936 = vunpack.c.l.b16 %v5783
      %v5937 = vunpack.c.h.b16 %v5783
      %v5938 = vunpack.c.l.b16 %v5784
      %v5939 = vunpack.c.h.b16 %v5784
      %v5940 = vunpack.c.l.b16 %v5785
      %v5941 = vunpack.c.h.b16 %v5785
      %v5942 = vunpack.c.l.b16 %v5786
      %v5943 = vunpack.c.h.b16 %v5786
      %v5944 = vunpack.c.l.b16 %v5787
      %v5945 = vunpack.c.h.b16 %v5787
      %v5946 = vunpack.c.l.b16 %v5788
      %v5947 = vunpack.c.h.b16 %v5788
      %v5948 = vunpack.c.l.b16 %v5789
      %v5949 = vunpack.c.h.b16 %v5789
      %v5950 = vunpack.c.l.b16 %v5790
      %v5951 = vunpack.c.h.b16 %v5790
      %v5952 = vunpack.c.l.b16 %v5791
      %v5953 = vunpack.c.h.b16 %v5791
      %v5954 = vunpack.c.l.b16 %v5792
      %v5955 = vunpack.c.h.b16 %v5792
      %v5956 = vunpack.c.l.b16 %v5793
      %v5957 = vunpack.c.h.b16 %v5793
      %v5958 = vunpack.c.l.b16 %v5794
      %v5959 = vunpack.c.h.b16 %v5794
      %v5960 = vunpack.c.l.b16 %v5795
      %v5961 = vunpack.c.h.b16 %v5795
      %v5962 = vunpack.c.l.b16 %v5796
      %v5963 = vunpack.c.h.b16 %v5796
      %v5964 = vunpack.c.l.b16 %v5797
      %v5965 = vunpack.c.h.b16 %v5797
      %v5966 = vunpack.c.l.b16 %v5798
      %v5967 = vunpack.c.h.b16 %v5798
      %v5968 = vunpack.c.l.b16 %v5799
      %v5969 = vunpack.c.h.b16 %v5799
      %v5970 = vunpack.c.l.b16 %v5800
      %v5971 = vunpack.c.h.b16 %v5800
      %v5972 = vunpack.c.l.b16 %v5801
      %v5973 = vunpack.c.h.b16 %v5801
      %v5974 = vunpack.c.l.b16 %v5802
      %v5975 = vunpack.c.h.b16 %v5802
      %v5976 = vunpack.c.l.b16 %v5803
      %v5977 = vunpack.c.h.b16 %v5803
      %v5978 = vunpack.c.l.b16 %v5804
      %v5979 = vunpack.c.h.b16 %v5804
      %v5980 = vunpack.c.l.b16 %v5805
      %v5981 = vunpack.c.h.b16 %v5805
      %v5982 = vunpack.c.l.b16 %v5806
      %v5983 = vunpack.c.h.b16 %v5806
      %v5984 = vunpack.c.l.b16 %v5807
      %v5985 = vunpack.c.h.b16 %v5807
      %v5986 = vunpack.c.l.b16 %v5808
      %v5987 = vunpack.c.h.b16 %v5808
      %v5988 = vunpack.c.l.b16 %v5809
      %v5989 = vunpack.c.h.b16 %v5809
      %v5990 = vunpack.c.l.b16 %v5810
      %v5991 = vunpack.c.h.b16 %v5810
      %v5992 = vunpack.c.l.b16 %v5811
      %v5993 = vunpack.c.h.b16 %v5811
      %v5994 = vunpack.c.l.b16 %v5812
      %v5995 = vunpack.c.h.b16 %v5812
      %v5996 = vunpack.c.l.b16 %v5813
      %v5997 = vunpack.c.h.b16 %v5813
      %v5998 = vunpack.c.l.b16 %v5814
      %v5999 = vunpack.c.h.b16 %v5814
      %v6000 = vunpack.c.l.b16 %v5815
      %v6001 = vunpack.c.h.b16 %v5815
      %v6002 = vunpack.c.l.b16 %v5816
      %v6003 = vunpack.c.h.b16 %v5816
      %v6004 = vunpack.c.l.b16 %v5817
      %v6005 = vunpack.c.h.b16 %v5817
      %v6006 = vunpack.c.l.b16 %v5818
      %v6007 = vunpack.c.h.b16 %v5818
      %v6008 = vunpack.c.l.b16 %v5819
      %v6009 = vunpack.c.h.b16 %v5819
      %v6010 = vunpack.c.l.b16 %v5820
      %v6011 = vunpack.c.h.b16 %v5820
      %v6012 = vpack.c.b16 %v5894, %v5892
      %v6013 = vpack.c.b16 %v5895, %v5893
      %v6014 = vpack.c.b16 %v5898, %v5896
      %v6015 = vpack.c.b16 %v5899, %v5897
      %v6016 = vpack.c.b16 %v5902, %v5900
      %v6017 = vpack.c.b16 %v5903, %v5901
      %v6018 = vpack.c.b16 %v5906, %v5904
      %v6019 = vpack.c.b16 %v5907, %v5905
      %v6020 = vpack.c.b16 %v5910, %v5908
      %v6021 = vpack.c.b16 %v5911, %v5909
      %v6022 = vpack.c.b16 %v5914, %v5912
      %v6023 = vpack.c.b16 %v5915, %v5913
      %v6024 = vpack.c.b16 %v5918, %v5916
      %v6025 = vpack.c.b16 %v5919, %v5917
      %v6026 = vpack.c.b16 %v5922, %v5920
      %v6027 = vpack.c.b16 %v5923, %v5921
      %v6028 = vpack.c.b16 %v5926, %v5924
      %v6029 = vpack.c.b16 %v5927, %v5925
      %v6030 = vpack.c.b16 %v5930, %v5928
      %v6031 = vpack.c.b16 %v5931, %v5929
      %v6032 = vpack.c.b16 %v5934, %v5932
      %v6033 = vpack.c.b16 %v5935, %v5933
      %v6034 = vpack.c.b16 %v5938, %v5936
      %v6035 = vpack.c.b16 %v5939, %v5937
      %v6036 = vpack.c.b16 %v5942, %v5940
      %v6037 = vpack.c.b16 %v5943, %v5941
      %v6038 = vpack.c.b16 %v5946, %v5944
      %v6039 = vpack.c.b16 %v5947, %v5945
      %v6040 = vpack.c.b16 %v5950, %v5948
      %v6041 = vpack.c.b16 %v5951, %v5949
      %v6042 = vpack.c.b16 %v5954, %v5952
      %v6043 = vpack.c.b16 %v5955, %v5953
      %v6044 = vpack.c.b16 %v5958, %v5956
      %v6045 = vpack.c.b16 %v5959, %v5957
      %v6046 = vpack.c.b16 %v5962, %v5960
      %v6047 = vpack.c.b16 %v5963, %v5961
      %v6048 = vpack.c.b16 %v5966, %v5964
      %v6049 = vpack.c.b16 %v5967, %v5965
      %v6050 = vpack.c.b16 %v5970, %v5968
      %v6051 = vpack.c.b16 %v5971, %v5969
      %v6052 = vpack.c.b16 %v5974, %v5972
      %v6053 = vpack.c.b16 %v5975, %v5973
      %v6054 = vpack.c.b16 %v5978, %v5976
      %v6055 = vpack.c.b16 %v5979, %v5977
      %v6056 = vpack.c.b16 %v5982, %v5980
      %v6057 = vpack.c.b16 %v5983, %v5981
      %v6058 = vpack.c.b16 %v5986, %v5984
      %v6059 = vpack.c.b16 %v5987, %v5985
      %v6060 = vpack.c.b16 %v5990, %v5988
      %v6061 = vpack.c.b16 %v5991, %v5989
      %v6062 = vpack.c.b16 %v5994, %v5992
      %v6063 = vpack.c.b16 %v5995, %v5993
      %v6064 = vpack.c.b16 %v5998, %v5996
      %v6065 = vpack.c.b16 %v5999, %v5997
      %v6066 = vpack.c.b16 %v6002, %v6000
      %v6067 = vpack.c.b16 %v6003, %v6001
      %v6068 = vpack.c.b16 %v6006, %v6004
      %v6069 = vpack.c.b16 %v6007, %v6005
      %v6070 = vpack.c.b16 %v6010, %v6008
      %v6071 = vpack.c.b16 %v6011, %v6009
      %v6133 = vsel %vm4775, %v5828, 0
      %6135 = vmatprep.subr.bf16.mxu0 %v6013
      %6136 = vmatpush1.bf16.msra.mxu0 %v6012
      %6137 = vmatprep.subr.bf16.mxu0 %v6015
      %6138 = vmatpush1.bf16.msra.mxu0 %v6014
      %6139 = vmatprep.subr.bf16.mxu0 %v6017
      %6140 = vmatpush1.bf16.msra.mxu0 %v6016
      %6141 = vmatprep.subr.bf16.mxu0 %v6019
      %6142 = vmatpush1.bf16.msra.mxu0 %v6018
      %6143 = vmatprep.subr.bf16.mxu0 %v6021
      %6144 = vmatpush1.bf16.msra.mxu0 %v6020
      %6145 = vmatprep.subr.bf16.mxu0 %v6023
      %6146 = vmatpush1.bf16.msra.mxu0 %v6022
      %6147 = vmatprep.subr.bf16.mxu0 %v6025
      %6148 = vmatpush1.bf16.msra.mxu0 %v6024
      %6149 = vmatprep.subr.bf16.mxu0 %v6027
      %6150 = vmatpush1.bf16.msra.mxu0 %v6026
      %6151 = vmatprep.subr.bf16.mxu0 %v6029
      %6152 = vmatpush1.bf16.msra.mxu0 %v6028
      %6153 = vmatprep.subr.bf16.mxu0 %v6031
      %6154 = vmatpush1.bf16.msra.mxu0 %v6030
      %6155 = vmatprep.subr.bf16.mxu0 %v6033
      %6156 = vmatpush1.bf16.msra.mxu0 %v6032
      %6157 = vmatprep.subr.bf16.mxu0 %v6035
      %6158 = vmatpush1.bf16.msra.mxu0 %v6034
      %6159 = vmatprep.subr.bf16.mxu0 %v6037
      %6160 = vmatpush1.bf16.msra.mxu0 %v6036
      %6161 = vmatprep.subr.bf16.mxu0 %v6039
      %6162 = vmatpush1.bf16.msra.mxu0 %v6038
      %6163 = vmatprep.subr.bf16.mxu0 %v6041
      %6164 = vmatpush1.bf16.msra.mxu0 %v6040
      %6165 = vmatprep.subr.bf16.mxu0 %v6043
      %6166 = vmatpush1.bf16.msra.mxu0 %v6042
      %6167 = vmatprep.mubr.bf16.mxu0 %v5826
      %6168 = vmatmul.mubr.bf16.gmra.mrb[0].mxu0 %v5825
      %v6169 = vpop.f32.mrb[0].mxu0
      %v6170 = vadd.f32 0.0, %v6169
      %v6171 = vpop.f32.mrb[0].mxu0
      %v6172 = vadd.f32 0.0, %v6171
      %v6173 = vpop.f32.mrb[0].mxu0
      %v6174 = vadd.f32 0.0, %v6173
      %v6175 = vpop.f32.mrb[0].mxu0
      %v6176 = vadd.f32 0.0, %v6175
      %6177 = vdwg.mxu0
      %6178 = vmatprep.subr.bf16.mxu0 %v6045
      %6179 = vmatpush1.bf16.msra.mxu0 %v6044
      %6180 = vmatprep.subr.bf16.mxu0 %v6047
      %6181 = vmatpush1.bf16.msra.mxu0 %v6046
      %6182 = vmatprep.subr.bf16.mxu0 %v6049
      %6183 = vmatpush1.bf16.msra.mxu0 %v6048
      %6184 = vmatprep.subr.bf16.mxu0 %v6051
      %6185 = vmatpush1.bf16.msra.mxu0 %v6050
      %6186 = vmatprep.subr.bf16.mxu0 %v6053
      %6187 = vmatpush1.bf16.msra.mxu0 %v6052
      %6188 = vmatprep.subr.bf16.mxu0 %v6055
      %6189 = vmatpush1.bf16.msra.mxu0 %v6054
      %6190 = vmatprep.subr.bf16.mxu0 %v6057
      %6191 = vmatpush1.bf16.msra.mxu0 %v6056
      %6192 = vmatprep.subr.bf16.mxu0 %v6059
      %6193 = vmatpush1.bf16.msra.mxu0 %v6058
      %6194 = vmatprep.subr.bf16.mxu0 %v6061
      %6195 = vmatpush1.bf16.msra.mxu0 %v6060
      %6196 = vmatprep.subr.bf16.mxu0 %v6063
      %6197 = vmatpush1.bf16.msra.mxu0 %v6062
      %6198 = vmatprep.subr.bf16.mxu0 %v6065
      %6199 = vmatpush1.bf16.msra.mxu0 %v6064
      %6200 = vmatprep.subr.bf16.mxu0 %v6067
      %6201 = vmatpush1.bf16.msra.mxu0 %v6066
      %6202 = vmatprep.subr.bf16.mxu0 %v6069
      %6203 = vmatpush1.bf16.msra.mxu0 %v6068
      %6204 = vmatprep.subr.bf16.mxu0 %v6071
      %6205 = vmatpush1.bf16.msra.mxu0 %v6070
      %6206 = vmatprep.subr.bf16.mxu0 0
      %6207 = vmatpush1.bf16.msra.mxu0 0
      %6208 = vmatprep.subr.bf16.mxu0 0
      %6209 = vmatpush1.bf16.msra.mxu0 0
      %6210 = vmatprep.mubr.bf16.mxu0 %v6133
      %6211 = vmatmul.mubr.bf16.gmra.mrb[0].mxu0 %v5827
      %v6212 = vpop.f32.mrb[0].mxu0
      %v6213 = vadd.f32 %v6170, %v6212
      %v6214 = vpop.f32.mrb[0].mxu0
      %v6215 = vadd.f32 %v6172, %v6214
      %v6216 = vpop.f32.mrb[0].mxu0
      %v6217 = vadd.f32 %v6174, %v6216
      %v6218 = vpop.f32.mrb[0].mxu0
      %v6219 = vadd.f32 %v6176, %v6218
      %6220 = vdwg.mxu0
      %v6221 = vadd.f32 %v5740, %v6213
      %v6222 = vadd.f32 %v5742, %v6215
      %v6223 = vadd.f32 %v5744, %v6217
      %v6224 = vadd.f32 %v5746, %v6219
      %v6225 = vld [vmem:[#allocation3] sm:$0xf8]
      %v6226 = vld [vmem:[#allocation3 + $0x8] sm:$0xf8]
      %v6227 = vld [vmem:[#allocation3 + $0x10] sm:$0xf8]
      %v6228 = vld [vmem:[#allocation3 + $0x18] sm:$0xf8]
      %v6229 = vld [vmem:[#allocation3 + $0x20] sm:$0x3f]
      %v6230 = vld [vmem:[#allocation3 + $0x28] sm:$0x3f]
      %v6231 = vld [vmem:[#allocation3 + $0x30] sm:$0x3f]
      %v6232 = vld [vmem:[#allocation3 + $0x38] sm:$0x3f]
      %v6233 = vpack.c.bf16 %v6229, %v6225
      %v6234 = vpack.c.bf16 %v6230, %v6226
      %v6235 = vpack.c.bf16 %v6231, %v6227
      %v6236 = vpack.c.bf16 %v6232, %v6228
      %s6237 = scalar_lea.vmem %s5, 1440
      %v6238 = vld [vmem:[%s6237] sm:$0xff]
      %v6239 = vld [vmem:[%s6237 + $0x8] sm:$0xff]
      %v6240 = vld [vmem:[%s6237 + $0x10] sm:$0xff]
      %v6241 = vld [vmem:[%s6237 + $0x18] sm:$0xff]
      %v6242 = vld [vmem:[%s6237 + $0x20] sm:$0xff]
      %v6243 = vld [vmem:[%s6237 + $0x28] sm:$0xff]
      %v6244 = vld [vmem:[%s6237 + $0x30] sm:$0xff]
      %v6245 = vld [vmem:[%s6237 + $0x38] sm:$0xff]
      %v6246 = vld [vmem:[%s6237 + $0x40] sm:$0xff]
      %v6247 = vld [vmem:[%s6237 + $0x48] sm:$0xff]
      %v6248 = vld [vmem:[%s6237 + $0x50] sm:$0xff]
      %v6249 = vld [vmem:[%s6237 + $0x58] sm:$0xff]
      %v6250 = vld [vmem:[%s6237 + $0x60] sm:$0xff]
      %v6251 = vld [vmem:[%s6237 + $0x68] sm:$0xff]
      %v6252 = vld [vmem:[%s6237 + $0x70] sm:$0xff]
      %v6253 = vld [vmem:[%s6237 + $0x78] sm:$0xff]
      %v6254 = vld [vmem:[%s6237 + $0x80] sm:$0xff]
      %v6255 = vld [vmem:[%s6237 + $0x88] sm:$0xff]
      %v6256 = vld [vmem:[%s6237 + $0x90] sm:$0xff]
      %v6257 = vld [vmem:[%s6237 + $0x98] sm:$0xff]
      %v6258 = vld [vmem:[%s6237 + $0xa0] sm:$0xff]
      %v6259 = vld [vmem:[%s6237 + $0xa8] sm:$0xff]
      %v6260 = vld [vmem:[%s6237 + $0xb0] sm:$0xff]
      %v6261 = vld [vmem:[%s6237 + $0xb8] sm:$0xff]
      %v6262 = vld [vmem:[%s6237 + $0xc0] sm:$0xff]
      %v6263 = vld [vmem:[%s6237 + $0xc8] sm:$0xff]
      %v6264 = vld [vmem:[%s6237 + $0xd0] sm:$0xff]
      %v6265 = vld [vmem:[%s6237 + $0xd8] sm:$0xff]
      %v6266 = vld [vmem:[%s6237 + $0xe0] sm:$0xff]
      %v6267 = vld [vmem:[%s6237 + $0xe8] sm:$0xff]
      %v6268 = vld [vmem:[%s6237 + $0xf0] sm:$0xff]
      %v6269 = vld [vmem:[%s6237 + $0xf8] sm:$0xff]
      %v6270 = vld [vmem:[%s6237 + $0x100] sm:$0xff]
      %v6271 = vld [vmem:[%s6237 + $0x108] sm:$0xff]
      %v6272 = vld [vmem:[%s6237 + $0x110] sm:$0xff]
      %v6273 = vld [vmem:[%s6237 + $0x118] sm:$0xff]
      %v6274 = vld [vmem:[%s6237 + $0x120] sm:$0xff]
      %v6275 = vld [vmem:[%s6237 + $0x128] sm:$0xff]
      %v6276 = vld [vmem:[%s6237 + $0x130] sm:$0xff]
      %v6277 = vld [vmem:[%s6237 + $0x138] sm:$0xff]
      %v6278 = vld [vmem:[%s6237 + $0x140] sm:$0xff]
      %v6279 = vld [vmem:[%s6237 + $0x148] sm:$0xff]
      %v6280 = vld [vmem:[%s6237 + $0x150] sm:$0xff]
      %v6281 = vld [vmem:[%s6237 + $0x158] sm:$0xff]
      %v6282 = vld [vmem:[%s6237 + $0x160] sm:$0xff]
      %v6283 = vld [vmem:[%s6237 + $0x168] sm:$0xff]
      %v6284 = vld [vmem:[%s6237 + $0x170] sm:$0xff]
      %v6285 = vld [vmem:[%s6237 + $0x178] sm:$0xff]
      %v6286 = vld [vmem:[%s6237 + $0x180] sm:$0xff]
      %v6287 = vld [vmem:[%s6237 + $0x188] sm:$0xff]
      %v6288 = vld [vmem:[%s6237 + $0x190] sm:$0xff]
      %v6289 = vld [vmem:[%s6237 + $0x198] sm:$0xff]
      %v6290 = vld [vmem:[%s6237 + $0x1a0] sm:$0xff]
      %v6291 = vld [vmem:[%s6237 + $0x1a8] sm:$0xff]
      %v6292 = vld [vmem:[%s6237 + $0x1b0] sm:$0xff]
      %v6293 = vld [vmem:[%s6237 + $0x1b8] sm:$0xff]
      %v6294 = vld [vmem:[%s6237 + $0x1c0] sm:$0xff]
      %v6295 = vld [vmem:[%s6237 + $0x1c8] sm:$0xff]
      %v6296 = vld [vmem:[%s6237 + $0x1d0] sm:$0xff]
      %v6297 = vld [vmem:[%s6237 + $0x1d8] sm:$0xff]
      %v6299 = vshrl.u32 %v6233, 16
      %v6301 = vrot.slane %v6299, 1
      %v6302 = vshll.u32 %v6233, 16
      %v6304 = vrot.slane %v6302, 2
      %v6305 = vor.u32 %v6301, %v6304
      %v6307 = vshrl.u32 %v6234, 16
      %v6309 = vrot.slane %v6307, 1
      %v6310 = vshll.u32 %v6234, 16
      %v6312 = vrot.slane %v6310, 2
      %v6313 = vor.u32 %v6309, %v6312
      %v6315 = vshrl.u32 %v6235, 16
      %v6317 = vrot.slane %v6315, 1
      %v6318 = vshll.u32 %v6235, 16
      %v6320 = vrot.slane %v6318, 2
      %v6321 = vor.u32 %v6317, %v6320
      %v6323 = vshrl.u32 %v6236, 16
      %v6325 = vrot.slane %v6323, 1
      %v6326 = vshll.u32 %v6236, 16
      %v6328 = vrot.slane %v6326, 2
      %v6329 = vor.u32 %v6325, %v6328
      %v6393 = vunpack.c.l.b16 %v6238
      %v6394 = vunpack.c.h.b16 %v6238
      %v6395 = vunpack.c.l.b16 %v6239
      %v6396 = vunpack.c.h.b16 %v6239
      %v6397 = vunpack.c.l.b16 %v6240
      %v6398 = vunpack.c.h.b16 %v6240
      %v6399 = vunpack.c.l.b16 %v6241
      %v6400 = vunpack.c.h.b16 %v6241
      %v6401 = vunpack.c.l.b16 %v6242
      %v6402 = vunpack.c.h.b16 %v6242
      %v6403 = vunpack.c.l.b16 %v6243
      %v6404 = vunpack.c.h.b16 %v6243
      %v6405 = vunpack.c.l.b16 %v6244
      %v6406 = vunpack.c.h.b16 %v6244
      %v6407 = vunpack.c.l.b16 %v6245
      %v6408 = vunpack.c.h.b16 %v6245
      %v6409 = vunpack.c.l.b16 %v6246
      %v6410 = vunpack.c.h.b16 %v6246
      %v6411 = vunpack.c.l.b16 %v6247
      %v6412 = vunpack.c.h.b16 %v6247
      %v6413 = vunpack.c.l.b16 %v6248
      %v6414 = vunpack.c.h.b16 %v6248
      %v6415 = vunpack.c.l.b16 %v6249
      %v6416 = vunpack.c.h.b16 %v6249
      %v6417 = vunpack.c.l.b16 %v6250
      %v6418 = vunpack.c.h.b16 %v6250
      %v6419 = vunpack.c.l.b16 %v6251
      %v6420 = vunpack.c.h.b16 %v6251
      %v6421 = vunpack.c.l.b16 %v6252
      %v6422 = vunpack.c.h.b16 %v6252
      %v6423 = vunpack.c.l.b16 %v6253
      %v6424 = vunpack.c.h.b16 %v6253
      %v6425 = vunpack.c.l.b16 %v6254
      %v6426 = vunpack.c.h.b16 %v6254
      %v6427 = vunpack.c.l.b16 %v6255
      %v6428 = vunpack.c.h.b16 %v6255
      %v6429 = vunpack.c.l.b16 %v6256
      %v6430 = vunpack.c.h.b16 %v6256
      %v6431 = vunpack.c.l.b16 %v6257
      %v6432 = vunpack.c.h.b16 %v6257
      %v6433 = vunpack.c.l.b16 %v6258
      %v6434 = vunpack.c.h.b16 %v6258
      %v6435 = vunpack.c.l.b16 %v6259
      %v6436 = vunpack.c.h.b16 %v6259
      %v6437 = vunpack.c.l.b16 %v6260
      %v6438 = vunpack.c.h.b16 %v6260
      %v6439 = vunpack.c.l.b16 %v6261
      %v6440 = vunpack.c.h.b16 %v6261
      %v6441 = vunpack.c.l.b16 %v6262
      %v6442 = vunpack.c.h.b16 %v6262
      %v6443 = vunpack.c.l.b16 %v6263
      %v6444 = vunpack.c.h.b16 %v6263
      %v6445 = vunpack.c.l.b16 %v6264
      %v6446 = vunpack.c.h.b16 %v6264
      %v6447 = vunpack.c.l.b16 %v6265
      %v6448 = vunpack.c.h.b16 %v6265
      %v6449 = vunpack.c.l.b16 %v6266
      %v6450 = vunpack.c.h.b16 %v6266
      %v6451 = vunpack.c.l.b16 %v6267
      %v6452 = vunpack.c.h.b16 %v6267
      %v6453 = vunpack.c.l.b16 %v6268
      %v6454 = vunpack.c.h.b16 %v6268
      %v6455 = vunpack.c.l.b16 %v6269
      %v6456 = vunpack.c.h.b16 %v6269
      %v6457 = vunpack.c.l.b16 %v6270
      %v6458 = vunpack.c.h.b16 %v6270
      %v6459 = vunpack.c.l.b16 %v6271
      %v6460 = vunpack.c.h.b16 %v6271
      %v6461 = vunpack.c.l.b16 %v6272
      %v6462 = vunpack.c.h.b16 %v6272
      %v6463 = vunpack.c.l.b16 %v6273
      %v6464 = vunpack.c.h.b16 %v6273
      %v6465 = vunpack.c.l.b16 %v6274
      %v6466 = vunpack.c.h.b16 %v6274
      %v6467 = vunpack.c.l.b16 %v6275
      %v6468 = vunpack.c.h.b16 %v6275
      %v6469 = vunpack.c.l.b16 %v6276
      %v6470 = vunpack.c.h.b16 %v6276
      %v6471 = vunpack.c.l.b16 %v6277
      %v6472 = vunpack.c.h.b16 %v6277
      %v6473 = vunpack.c.l.b16 %v6278
      %v6474 = vunpack.c.h.b16 %v6278
      %v6475 = vunpack.c.l.b16 %v6279
      %v6476 = vunpack.c.h.b16 %v6279
      %v6477 = vunpack.c.l.b16 %v6280
      %v6478 = vunpack.c.h.b16 %v6280
      %v6479 = vunpack.c.l.b16 %v6281
      %v6480 = vunpack.c.h.b16 %v6281
      %v6481 = vunpack.c.l.b16 %v6282
      %v6482 = vunpack.c.h.b16 %v6282
      %v6483 = vunpack.c.l.b16 %v6283
      %v6484 = vunpack.c.h.b16 %v6283
      %v6485 = vunpack.c.l.b16 %v6284
      %v6486 = vunpack.c.h.b16 %v6284
      %v6487 = vunpack.c.l.b16 %v6285
      %v6488 = vunpack.c.h.b16 %v6285
      %v6489 = vunpack.c.l.b16 %v6286
      %v6490 = vunpack.c.h.b16 %v6286
      %v6491 = vunpack.c.l.b16 %v6287
      %v6492 = vunpack.c.h.b16 %v6287
      %v6493 = vunpack.c.l.b16 %v6288
      %v6494 = vunpack.c.h.b16 %v6288
      %v6495 = vunpack.c.l.b16 %v6289
      %v6496 = vunpack.c.h.b16 %v6289
      %v6497 = vunpack.c.l.b16 %v6290
      %v6498 = vunpack.c.h.b16 %v6290
      %v6499 = vunpack.c.l.b16 %v6291
      %v6500 = vunpack.c.h.b16 %v6291
      %v6501 = vunpack.c.l.b16 %v6292
      %v6502 = vunpack.c.h.b16 %v6292
      %v6503 = vunpack.c.l.b16 %v6293
      %v6504 = vunpack.c.h.b16 %v6293
      %v6505 = vunpack.c.l.b16 %v6294
      %v6506 = vunpack.c.h.b16 %v6294
      %v6507 = vunpack.c.l.b16 %v6295
      %v6508 = vunpack.c.h.b16 %v6295
      %v6509 = vunpack.c.l.b16 %v6296
      %v6510 = vunpack.c.h.b16 %v6296
      %v6511 = vunpack.c.l.b16 %v6297
      %v6512 = vunpack.c.h.b16 %v6297
      %v6513 = vpack.c.b16 %v6395, %v6393
      %v6514 = vpack.c.b16 %v6396, %v6394
      %v6515 = vpack.c.b16 %v6399, %v6397
      %v6516 = vpack.c.b16 %v6400, %v6398
      %v6517 = vpack.c.b16 %v6403, %v6401
      %v6518 = vpack.c.b16 %v6404, %v6402
      %v6519 = vpack.c.b16 %v6407, %v6405
      %v6520 = vpack.c.b16 %v6408, %v6406
      %v6521 = vpack.c.b16 %v6411, %v6409
      %v6522 = vpack.c.b16 %v6412, %v6410
      %v6523 = vpack.c.b16 %v6415, %v6413
      %v6524 = vpack.c.b16 %v6416, %v6414
      %v6525 = vpack.c.b16 %v6419, %v6417
      %v6526 = vpack.c.b16 %v6420, %v6418
      %v6527 = vpack.c.b16 %v6423, %v6421
      %v6528 = vpack.c.b16 %v6424, %v6422
      %v6529 = vpack.c.b16 %v6427, %v6425
      %v6530 = vpack.c.b16 %v6428, %v6426
      %v6531 = vpack.c.b16 %v6431, %v6429
      %v6532 = vpack.c.b16 %v6432, %v6430
      %v6533 = vpack.c.b16 %v6435, %v6433
      %v6534 = vpack.c.b16 %v6436, %v6434
      %v6535 = vpack.c.b16 %v6439, %v6437
      %v6536 = vpack.c.b16 %v6440, %v6438
      %v6537 = vpack.c.b16 %v6443, %v6441
      %v6538 = vpack.c.b16 %v6444, %v6442
      %v6539 = vpack.c.b16 %v6447, %v6445
      %v6540 = vpack.c.b16 %v6448, %v6446
      %v6541 = vpack.c.b16 %v6451, %v6449
      %v6542 = vpack.c.b16 %v6452, %v6450
      %v6543 = vpack.c.b16 %v6455, %v6453
      %v6544 = vpack.c.b16 %v6456, %v6454
      %v6545 = vpack.c.b16 %v6459, %v6457
      %v6546 = vpack.c.b16 %v6460, %v6458
      %v6547 = vpack.c.b16 %v6463, %v6461
      %v6548 = vpack.c.b16 %v6464, %v6462
      %v6549 = vpack.c.b16 %v6467, %v6465
      %v6550 = vpack.c.b16 %v6468, %v6466
      %v6551 = vpack.c.b16 %v6471, %v6469
      %v6552 = vpack.c.b16 %v6472, %v6470
      %v6553 = vpack.c.b16 %v6475, %v6473
      %v6554 = vpack.c.b16 %v6476, %v6474
      %v6555 = vpack.c.b16 %v6479, %v6477
      %v6556 = vpack.c.b16 %v6480, %v6478
      %v6557 = vpack.c.b16 %v6483, %v6481
      %v6558 = vpack.c.b16 %v6484, %v6482
      %v6559 = vpack.c.b16 %v6487, %v6485
      %v6560 = vpack.c.b16 %v6488, %v6486
      %v6561 = vpack.c.b16 %v6491, %v6489
      %v6562 = vpack.c.b16 %v6492, %v6490
      %v6563 = vpack.c.b16 %v6495, %v6493
      %v6564 = vpack.c.b16 %v6496, %v6494
      %v6565 = vpack.c.b16 %v6499, %v6497
      %v6566 = vpack.c.b16 %v6500, %v6498
      %v6567 = vpack.c.b16 %v6503, %v6501
      %v6568 = vpack.c.b16 %v6504, %v6502
      %v6569 = vpack.c.b16 %v6507, %v6505
      %v6570 = vpack.c.b16 %v6508, %v6506
      %v6571 = vpack.c.b16 %v6511, %v6509
      %v6572 = vpack.c.b16 %v6512, %v6510
      %v6634 = vsel %vm4775, %v6329, 0
      %6636 = vmatprep.subr.bf16.mxu0 %v6514
      %6637 = vmatpush1.bf16.msra.mxu0 %v6513
      %6638 = vmatprep.subr.bf16.mxu0 %v6516
      %6639 = vmatpush1.bf16.msra.mxu0 %v6515
      %6640 = vmatprep.subr.bf16.mxu0 %v6518
      %6641 = vmatpush1.bf16.msra.mxu0 %v6517
      %6642 = vmatprep.subr.bf16.mxu0 %v6520
      %6643 = vmatpush1.bf16.msra.mxu0 %v6519
      %6644 = vmatprep.subr.bf16.mxu0 %v6522
      %6645 = vmatpush1.bf16.msra.mxu0 %v6521
      %6646 = vmatprep.subr.bf16.mxu0 %v6524
      %6647 = vmatpush1.bf16.msra.mxu0 %v6523
      %6648 = vmatprep.subr.bf16.mxu0 %v6526
      %6649 = vmatpush1.bf16.msra.mxu0 %v6525
      %6650 = vmatprep.subr.bf16.mxu0 %v6528
      %6651 = vmatpush1.bf16.msra.mxu0 %v6527
      %6652 = vmatprep.subr.bf16.mxu0 %v6530
      %6653 = vmatpush1.bf16.msra.mxu0 %v6529
      %6654 = vmatprep.subr.bf16.mxu0 %v6532
      %6655 = vmatpush1.bf16.msra.mxu0 %v6531
      %6656 = vmatprep.subr.bf16.mxu0 %v6534
      %6657 = vmatpush1.bf16.msra.mxu0 %v6533
      %6658 = vmatprep.subr.bf16.mxu0 %v6536
      %6659 = vmatpush1.bf16.msra.mxu0 %v6535
      %6660 = vmatprep.subr.bf16.mxu0 %v6538
      %6661 = vmatpush1.bf16.msra.mxu0 %v6537
      %6662 = vmatprep.subr.bf16.mxu0 %v6540
      %6663 = vmatpush1.bf16.msra.mxu0 %v6539
      %6664 = vmatprep.subr.bf16.mxu0 %v6542
      %6665 = vmatpush1.bf16.msra.mxu0 %v6541
      %6666 = vmatprep.subr.bf16.mxu0 %v6544
      %6667 = vmatpush1.bf16.msra.mxu0 %v6543
      %6668 = vmatprep.mubr.bf16.mxu0 %v6313
      %6669 = vmatmul.mubr.bf16.gmra.mrb[0].mxu0 %v6305
      %v6670 = vpop.f32.mrb[0].mxu0
      %v6671 = vadd.f32 0.0, %v6670
      %v6672 = vpop.f32.mrb[0].mxu0
      %v6673 = vadd.f32 0.0, %v6672
      %v6674 = vpop.f32.mrb[0].mxu0
      %v6675 = vadd.f32 0.0, %v6674
      %v6676 = vpop.f32.mrb[0].mxu0
      %v6677 = vadd.f32 0.0, %v6676
      %6678 = vdwg.mxu0
      %6679 = vmatprep.subr.bf16.mxu0 %v6546
      %6680 = vmatpush1.bf16.msra.mxu0 %v6545
      %6681 = vmatprep.subr.bf16.mxu0 %v6548
      %6682 = vmatpush1.bf16.msra.mxu0 %v6547
      %6683 = vmatprep.subr.bf16.mxu0 %v6550
      %6684 = vmatpush1.bf16.msra.mxu0 %v6549
      %6685 = vmatprep.subr.bf16.mxu0 %v6552
      %6686 = vmatpush1.bf16.msra.mxu0 %v6551
      %6687 = vmatprep.subr.bf16.mxu0 %v6554
      %6688 = vmatpush1.bf16.msra.mxu0 %v6553
      %6689 = vmatprep.subr.bf16.mxu0 %v6556
      %6690 = vmatpush1.bf16.msra.mxu0 %v6555
      %6691 = vmatprep.subr.bf16.mxu0 %v6558
      %6692 = vmatpush1.bf16.msra.mxu0 %v6557
      %6693 = vmatprep.subr.bf16.mxu0 %v6560
      %6694 = vmatpush1.bf16.msra.mxu0 %v6559
      %6695 = vmatprep.subr.bf16.mxu0 %v6562
      %6696 = vmatpush1.bf16.msra.mxu0 %v6561
      %6697 = vmatprep.subr.bf16.mxu0 %v6564
      %6698 = vmatpush1.bf16.msra.mxu0 %v6563
      %6699 = vmatprep.subr.bf16.mxu0 %v6566
      %6700 = vmatpush1.bf16.msra.mxu0 %v6565
      %6701 = vmatprep.subr.bf16.mxu0 %v6568
      %6702 = vmatpush1.bf16.msra.mxu0 %v6567
      %6703 = vmatprep.subr.bf16.mxu0 %v6570
      %6704 = vmatpush1.bf16.msra.mxu0 %v6569
      %6705 = vmatprep.subr.bf16.mxu0 %v6572
      %6706 = vmatpush1.bf16.msra.mxu0 %v6571
      %6707 = vmatprep.subr.bf16.mxu0 0
      %6708 = vmatpush1.bf16.msra.mxu0 0
      %6709 = vmatprep.subr.bf16.mxu0 0
      %6710 = vmatpush1.bf16.msra.mxu0 0
      %6711 = vmatprep.mubr.bf16.mxu0 %v6634
      %6712 = vmatmul.mubr.bf16.gmra.mrb[0].mxu0 %v6321
      %v6713 = vpop.f32.mrb[0].mxu0
      %v6714 = vadd.f32 %v6671, %v6713
      %v6715 = vpop.f32.mrb[0].mxu0
      %v6716 = vadd.f32 %v6673, %v6715
      %v6717 = vpop.f32.mrb[0].mxu0
      %v6718 = vadd.f32 %v6675, %v6717
      %v6719 = vpop.f32.mrb[0].mxu0
      %v6720 = vadd.f32 %v6677, %v6719
      %6721 = vdwg.mxu0
      %v6722 = vadd.f32 %v6221, %v6714
      %v6723 = vadd.f32 %v6222, %v6716
      %v6724 = vadd.f32 %v6223, %v6718
      %v6725 = vadd.f32 %v6224, %v6720
      %v6726 = vld [vmem:[#allocation3] sm:$0xf0]
      %v6727 = vld [vmem:[#allocation3 + $0x8] sm:$0xf0]
      %v6728 = vld [vmem:[#allocation3 + $0x10] sm:$0xf0]
      %v6729 = vld [vmem:[#allocation3 + $0x18] sm:$0xf0]
      %v6730 = vld [vmem:[#allocation3 + $0x20] sm:$0x7f]
      %v6731 = vld [vmem:[#allocation3 + $0x28] sm:$0x7f]
      %v6732 = vld [vmem:[#allocation3 + $0x30] sm:$0x7f]
      %v6733 = vld [vmem:[#allocation3 + $0x38] sm:$0x7f]
      %v6734 = vpack.c.bf16 %v6730, %v6726
      %v6735 = vpack.c.bf16 %v6731, %v6727
      %v6736 = vpack.c.bf16 %v6732, %v6728
      %v6737 = vpack.c.bf16 %v6733, %v6729
      %s6738 = scalar_lea.vmem %s5, 1920
      %v6739 = vld [vmem:[%s6738] sm:$0xff]
      %v6740 = vld [vmem:[%s6738 + $0x8] sm:$0xff]
      %v6741 = vld [vmem:[%s6738 + $0x10] sm:$0xff]
      %v6742 = vld [vmem:[%s6738 + $0x18] sm:$0xff]
      %v6743 = vld [vmem:[%s6738 + $0x20] sm:$0xff]
      %v6744 = vld [vmem:[%s6738 + $0x28] sm:$0xff]
      %v6745 = vld [vmem:[%s6738 + $0x30] sm:$0xff]
      %v6746 = vld [vmem:[%s6738 + $0x38] sm:$0xff]
      %v6747 = vld [vmem:[%s6738 + $0x40] sm:$0xff]
      %v6748 = vld [vmem:[%s6738 + $0x48] sm:$0xff]
      %v6749 = vld [vmem:[%s6738 + $0x50] sm:$0xff]
      %v6750 = vld [vmem:[%s6738 + $0x58] sm:$0xff]
      %v6751 = vld [vmem:[%s6738 + $0x60] sm:$0xff]
      %v6752 = vld [vmem:[%s6738 + $0x68] sm:$0xff]
      %v6753 = vld [vmem:[%s6738 + $0x70] sm:$0xff]
      %v6754 = vld [vmem:[%s6738 + $0x78] sm:$0xff]
      %v6755 = vld [vmem:[%s6738 + $0x80] sm:$0xff]
      %v6756 = vld [vmem:[%s6738 + $0x88] sm:$0xff]
      %v6757 = vld [vmem:[%s6738 + $0x90] sm:$0xff]
      %v6758 = vld [vmem:[%s6738 + $0x98] sm:$0xff]
      %v6759 = vld [vmem:[%s6738 + $0xa0] sm:$0xff]
      %v6760 = vld [vmem:[%s6738 + $0xa8] sm:$0xff]
      %v6761 = vld [vmem:[%s6738 + $0xb0] sm:$0xff]
      %v6762 = vld [vmem:[%s6738 + $0xb8] sm:$0xff]
      %v6763 = vld [vmem:[%s6738 + $0xc0] sm:$0xff]
      %v6764 = vld [vmem:[%s6738 + $0xc8] sm:$0xff]
      %v6765 = vld [vmem:[%s6738 + $0xd0] sm:$0xff]
      %v6766 = vld [vmem:[%s6738 + $0xd8] sm:$0xff]
      %v6767 = vld [vmem:[%s6738 + $0xe0] sm:$0xff]
      %v6768 = vld [vmem:[%s6738 + $0xe8] sm:$0xff]
      %v6769 = vld [vmem:[%s6738 + $0xf0] sm:$0xff]
      %v6770 = vld [vmem:[%s6738 + $0xf8] sm:$0xff]
      %v6771 = vld [vmem:[%s6738 + $0x100] sm:$0xff]
      %v6772 = vld [vmem:[%s6738 + $0x108] sm:$0xff]
      %v6773 = vld [vmem:[%s6738 + $0x110] sm:$0xff]
      %v6774 = vld [vmem:[%s6738 + $0x118] sm:$0xff]
      %v6775 = vld [vmem:[%s6738 + $0x120] sm:$0xff]
      %v6776 = vld [vmem:[%s6738 + $0x128] sm:$0xff]
      %v6777 = vld [vmem:[%s6738 + $0x130] sm:$0xff]
      %v6778 = vld [vmem:[%s6738 + $0x138] sm:$0xff]
      %v6779 = vld [vmem:[%s6738 + $0x140] sm:$0xff]
      %v6780 = vld [vmem:[%s6738 + $0x148] sm:$0xff]
      %v6781 = vld [vmem:[%s6738 + $0x150] sm:$0xff]
      %v6782 = vld [vmem:[%s6738 + $0x158] sm:$0xff]
      %v6783 = vld [vmem:[%s6738 + $0x160] sm:$0xff]
      %v6784 = vld [vmem:[%s6738 + $0x168] sm:$0xff]
      %v6785 = vld [vmem:[%s6738 + $0x170] sm:$0xff]
      %v6786 = vld [vmem:[%s6738 + $0x178] sm:$0xff]
      %v6787 = vld [vmem:[%s6738 + $0x180] sm:$0xff]
      %v6788 = vld [vmem:[%s6738 + $0x188] sm:$0xff]
      %v6789 = vld [vmem:[%s6738 + $0x190] sm:$0xff]
      %v6790 = vld [vmem:[%s6738 + $0x198] sm:$0xff]
      %v6791 = vld [vmem:[%s6738 + $0x1a0] sm:$0xff]
      %v6792 = vld [vmem:[%s6738 + $0x1a8] sm:$0xff]
      %v6793 = vld [vmem:[%s6738 + $0x1b0] sm:$0xff]
      %v6794 = vld [vmem:[%s6738 + $0x1b8] sm:$0xff]
      %v6795 = vld [vmem:[%s6738 + $0x1c0] sm:$0xff]
      %v6796 = vld [vmem:[%s6738 + $0x1c8] sm:$0xff]
      %v6797 = vld [vmem:[%s6738 + $0x1d0] sm:$0xff]
      %v6798 = vld [vmem:[%s6738 + $0x1d8] sm:$0xff]
      %v6803 = vrot.slane %v6734, 2
      %v6804 = vrot.slane %v6735, 2
      %v6805 = vrot.slane %v6736, 2
      %v6806 = vrot.slane %v6737, 2
      %v6870 = vunpack.c.l.b16 %v6739
      %v6871 = vunpack.c.h.b16 %v6739
      %v6872 = vunpack.c.l.b16 %v6740
      %v6873 = vunpack.c.h.b16 %v6740
      %v6874 = vunpack.c.l.b16 %v6741
      %v6875 = vunpack.c.h.b16 %v6741
      %v6876 = vunpack.c.l.b16 %v6742
      %v6877 = vunpack.c.h.b16 %v6742
      %v6878 = vunpack.c.l.b16 %v6743
      %v6879 = vunpack.c.h.b16 %v6743
      %v6880 = vunpack.c.l.b16 %v6744
      %v6881 = vunpack.c.h.b16 %v6744
      %v6882 = vunpack.c.l.b16 %v6745
      %v6883 = vunpack.c.h.b16 %v6745
      %v6884 = vunpack.c.l.b16 %v6746
      %v6885 = vunpack.c.h.b16 %v6746
      %v6886 = vunpack.c.l.b16 %v6747
      %v6887 = vunpack.c.h.b16 %v6747
      %v6888 = vunpack.c.l.b16 %v6748
      %v6889 = vunpack.c.h.b16 %v6748
      %v6890 = vunpack.c.l.b16 %v6749
      %v6891 = vunpack.c.h.b16 %v6749
      %v6892 = vunpack.c.l.b16 %v6750
      %v6893 = vunpack.c.h.b16 %v6750
      %v6894 = vunpack.c.l.b16 %v6751
      %v6895 = vunpack.c.h.b16 %v6751
      %v6896 = vunpack.c.l.b16 %v6752
      %v6897 = vunpack.c.h.b16 %v6752
      %v6898 = vunpack.c.l.b16 %v6753
      %v6899 = vunpack.c.h.b16 %v6753
      %v6900 = vunpack.c.l.b16 %v6754
      %v6901 = vunpack.c.h.b16 %v6754
      %v6902 = vunpack.c.l.b16 %v6755
      %v6903 = vunpack.c.h.b16 %v6755
      %v6904 = vunpack.c.l.b16 %v6756
      %v6905 = vunpack.c.h.b16 %v6756
      %v6906 = vunpack.c.l.b16 %v6757
      %v6907 = vunpack.c.h.b16 %v6757
      %v6908 = vunpack.c.l.b16 %v6758
      %v6909 = vunpack.c.h.b16 %v6758
      %v6910 = vunpack.c.l.b16 %v6759
      %v6911 = vunpack.c.h.b16 %v6759
      %v6912 = vunpack.c.l.b16 %v6760
      %v6913 = vunpack.c.h.b16 %v6760
      %v6914 = vunpack.c.l.b16 %v6761
      %v6915 = vunpack.c.h.b16 %v6761
      %v6916 = vunpack.c.l.b16 %v6762
      %v6917 = vunpack.c.h.b16 %v6762
      %v6918 = vunpack.c.l.b16 %v6763
      %v6919 = vunpack.c.h.b16 %v6763
      %v6920 = vunpack.c.l.b16 %v6764
      %v6921 = vunpack.c.h.b16 %v6764
      %v6922 = vunpack.c.l.b16 %v6765
      %v6923 = vunpack.c.h.b16 %v6765
      %v6924 = vunpack.c.l.b16 %v6766
      %v6925 = vunpack.c.h.b16 %v6766
      %v6926 = vunpack.c.l.b16 %v6767
      %v6927 = vunpack.c.h.b16 %v6767
      %v6928 = vunpack.c.l.b16 %v6768
      %v6929 = vunpack.c.h.b16 %v6768
      %v6930 = vunpack.c.l.b16 %v6769
      %v6931 = vunpack.c.h.b16 %v6769
      %v6932 = vunpack.c.l.b16 %v6770
      %v6933 = vunpack.c.h.b16 %v6770
      %v6934 = vunpack.c.l.b16 %v6771
      %v6935 = vunpack.c.h.b16 %v6771
      %v6936 = vunpack.c.l.b16 %v6772
      %v6937 = vunpack.c.h.b16 %v6772
      %v6938 = vunpack.c.l.b16 %v6773
      %v6939 = vunpack.c.h.b16 %v6773
      %v6940 = vunpack.c.l.b16 %v6774
      %v6941 = vunpack.c.h.b16 %v6774
      %v6942 = vunpack.c.l.b16 %v6775
      %v6943 = vunpack.c.h.b16 %v6775
      %v6944 = vunpack.c.l.b16 %v6776
      %v6945 = vunpack.c.h.b16 %v6776
      %v6946 = vunpack.c.l.b16 %v6777
      %v6947 = vunpack.c.h.b16 %v6777
      %v6948 = vunpack.c.l.b16 %v6778
      %v6949 = vunpack.c.h.b16 %v6778
      %v6950 = vunpack.c.l.b16 %v6779
      %v6951 = vunpack.c.h.b16 %v6779
      %v6952 = vunpack.c.l.b16 %v6780
      %v6953 = vunpack.c.h.b16 %v6780
      %v6954 = vunpack.c.l.b16 %v6781
      %v6955 = vunpack.c.h.b16 %v6781
      %v6956 = vunpack.c.l.b16 %v6782
      %v6957 = vunpack.c.h.b16 %v6782
      %v6958 = vunpack.c.l.b16 %v6783
      %v6959 = vunpack.c.h.b16 %v6783
      %v6960 = vunpack.c.l.b16 %v6784
      %v6961 = vunpack.c.h.b16 %v6784
      %v6962 = vunpack.c.l.b16 %v6785
      %v6963 = vunpack.c.h.b16 %v6785
      %v6964 = vunpack.c.l.b16 %v6786
      %v6965 = vunpack.c.h.b16 %v6786
      %v6966 = vunpack.c.l.b16 %v6787
      %v6967 = vunpack.c.h.b16 %v6787
      %v6968 = vunpack.c.l.b16 %v6788
      %v6969 = vunpack.c.h.b16 %v6788
      %v6970 = vunpack.c.l.b16 %v6789
      %v6971 = vunpack.c.h.b16 %v6789
      %v6972 = vunpack.c.l.b16 %v6790
      %v6973 = vunpack.c.h.b16 %v6790
      %v6974 = vunpack.c.l.b16 %v6791
      %v6975 = vunpack.c.h.b16 %v6791
      %v6976 = vunpack.c.l.b16 %v6792
      %v6977 = vunpack.c.h.b16 %v6792
      %v6978 = vunpack.c.l.b16 %v6793
      %v6979 = vunpack.c.h.b16 %v6793
      %v6980 = vunpack.c.l.b16 %v6794
      %v6981 = vunpack.c.h.b16 %v6794
      %v6982 = vunpack.c.l.b16 %v6795
      %v6983 = vunpack.c.h.b16 %v6795
      %v6984 = vunpack.c.l.b16 %v6796
      %v6985 = vunpack.c.h.b16 %v6796
      %v6986 = vunpack.c.l.b16 %v6797
      %v6987 = vunpack.c.h.b16 %v6797
      %v6988 = vunpack.c.l.b16 %v6798
      %v6989 = vunpack.c.h.b16 %v6798
      %v6990 = vpack.c.b16 %v6872, %v6870
      %v6991 = vpack.c.b16 %v6873, %v6871
      %v6992 = vpack.c.b16 %v6876, %v6874
      %v6993 = vpack.c.b16 %v6877, %v6875
      %v6994 = vpack.c.b16 %v6880, %v6878
      %v6995 = vpack.c.b16 %v6881, %v6879
      %v6996 = vpack.c.b16 %v6884, %v6882
      %v6997 = vpack.c.b16 %v6885, %v6883
      %v6998 = vpack.c.b16 %v6888, %v6886
      %v6999 = vpack.c.b16 %v6889, %v6887
      %v7000 = vpack.c.b16 %v6892, %v6890
      %v7001 = vpack.c.b16 %v6893, %v6891
      %v7002 = vpack.c.b16 %v6896, %v6894
      %v7003 = vpack.c.b16 %v6897, %v6895
      %v7004 = vpack.c.b16 %v6900, %v6898
      %v7005 = vpack.c.b16 %v6901, %v6899
      %v7006 = vpack.c.b16 %v6904, %v6902
      %v7007 = vpack.c.b16 %v6905, %v6903
      %v7008 = vpack.c.b16 %v6908, %v6906
      %v7009 = vpack.c.b16 %v6909, %v6907
      %v7010 = vpack.c.b16 %v6912, %v6910
      %v7011 = vpack.c.b16 %v6913, %v6911
      %v7012 = vpack.c.b16 %v6916, %v6914
      %v7013 = vpack.c.b16 %v6917, %v6915
      %v7014 = vpack.c.b16 %v6920, %v6918
      %v7015 = vpack.c.b16 %v6921, %v6919
      %v7016 = vpack.c.b16 %v6924, %v6922
      %v7017 = vpack.c.b16 %v6925, %v6923
      %v7018 = vpack.c.b16 %v6928, %v6926
      %v7019 = vpack.c.b16 %v6929, %v6927
      %v7020 = vpack.c.b16 %v6932, %v6930
      %v7021 = vpack.c.b16 %v6933, %v6931
      %v7022 = vpack.c.b16 %v6936, %v6934
      %v7023 = vpack.c.b16 %v6937, %v6935
      %v7024 = vpack.c.b16 %v6940, %v6938
      %v7025 = vpack.c.b16 %v6941, %v6939
      %v7026 = vpack.c.b16 %v6944, %v6942
      %v7027 = vpack.c.b16 %v6945, %v6943
      %v7028 = vpack.c.b16 %v6948, %v6946
      %v7029 = vpack.c.b16 %v6949, %v6947
      %v7030 = vpack.c.b16 %v6952, %v6950
      %v7031 = vpack.c.b16 %v6953, %v6951
      %v7032 = vpack.c.b16 %v6956, %v6954
      %v7033 = vpack.c.b16 %v6957, %v6955
      %v7034 = vpack.c.b16 %v6960, %v6958
      %v7035 = vpack.c.b16 %v6961, %v6959
      %v7036 = vpack.c.b16 %v6964, %v6962
      %v7037 = vpack.c.b16 %v6965, %v6963
      %v7038 = vpack.c.b16 %v6968, %v6966
      %v7039 = vpack.c.b16 %v6969, %v6967
      %v7040 = vpack.c.b16 %v6972, %v6970
      %v7041 = vpack.c.b16 %v6973, %v6971
      %v7042 = vpack.c.b16 %v6976, %v6974
      %v7043 = vpack.c.b16 %v6977, %v6975
      %v7044 = vpack.c.b16 %v6980, %v6978
      %v7045 = vpack.c.b16 %v6981, %v6979
      %v7046 = vpack.c.b16 %v6984, %v6982
      %v7047 = vpack.c.b16 %v6985, %v6983
      %v7048 = vpack.c.b16 %v6988, %v6986
      %v7049 = vpack.c.b16 %v6989, %v6987
      %v7111 = vsel %vm4775, %v6806, 0
      %7113 = vmatprep.subr.bf16.mxu0 %v6991
      %7114 = vmatpush1.bf16.msra.mxu0 %v6990
      %7115 = vmatprep.subr.bf16.mxu0 %v6993
      %7116 = vmatpush1.bf16.msra.mxu0 %v6992
      %7117 = vmatprep.subr.bf16.mxu0 %v6995
      %7118 = vmatpush1.bf16.msra.mxu0 %v6994
      %7119 = vmatprep.subr.bf16.mxu0 %v6997
      %7120 = vmatpush1.bf16.msra.mxu0 %v6996
      %7121 = vmatprep.subr.bf16.mxu0 %v6999
      %7122 = vmatpush1.bf16.msra.mxu0 %v6998
      %7123 = vmatprep.subr.bf16.mxu0 %v7001
      %7124 = vmatpush1.bf16.msra.mxu0 %v7000
      %7125 = vmatprep.subr.bf16.mxu0 %v7003
      %7126 = vmatpush1.bf16.msra.mxu0 %v7002
      %7127 = vmatprep.subr.bf16.mxu0 %v7005
      %7128 = vmatpush1.bf16.msra.mxu0 %v7004
      %7129 = vmatprep.subr.bf16.mxu0 %v7007
      %7130 = vmatpush1.bf16.msra.mxu0 %v7006
      %7131 = vmatprep.subr.bf16.mxu0 %v7009
      %7132 = vmatpush1.bf16.msra.mxu0 %v7008
      %7133 = vmatprep.subr.bf16.mxu0 %v7011
      %7134 = vmatpush1.bf16.msra.mxu0 %v7010
      %7135 = vmatprep.subr.bf16.mxu0 %v7013
      %7136 = vmatpush1.bf16.msra.mxu0 %v7012
      %7137 = vmatprep.subr.bf16.mxu0 %v7015
      %7138 = vmatpush1.bf16.msra.mxu0 %v7014
      %7139 = vmatprep.subr.bf16.mxu0 %v7017
      %7140 = vmatpush1.bf16.msra.mxu0 %v7016
      %7141 = vmatprep.subr.bf16.mxu0 %v7019
      %7142 = vmatpush1.bf16.msra.mxu0 %v7018
      %7143 = vmatprep.subr.bf16.mxu0 %v7021
      %7144 = vmatpush1.bf16.msra.mxu0 %v7020
      %7145 = vmatprep.mubr.bf16.mxu0 %v6804
      %7146 = vmatmul.mubr.bf16.gmra.mrb[0].mxu0 %v6803
      %v7147 = vpop.f32.mrb[0].mxu0
      %v7148 = vadd.f32 0.0, %v7147
      %v7149 = vpop.f32.mrb[0].mxu0
      %v7150 = vadd.f32 0.0, %v7149
      %v7151 = vpop.f32.mrb[0].mxu0
      %v7152 = vadd.f32 0.0, %v7151
      %v7153 = vpop.f32.mrb[0].mxu0
      %v7154 = vadd.f32 0.0, %v7153
      %7155 = vdwg.mxu0
      %7156 = vmatprep.subr.bf16.mxu0 %v7023
      %7157 = vmatpush1.bf16.msra.mxu0 %v7022
      %7158 = vmatprep.subr.bf16.mxu0 %v7025
      %7159 = vmatpush1.bf16.msra.mxu0 %v7024
      %7160 = vmatprep.subr.bf16.mxu0 %v7027
      %7161 = vmatpush1.bf16.msra.mxu0 %v7026
      %7162 = vmatprep.subr.bf16.mxu0 %v7029
      %7163 = vmatpush1.bf16.msra.mxu0 %v7028
      %7164 = vmatprep.subr.bf16.mxu0 %v7031
      %7165 = vmatpush1.bf16.msra.mxu0 %v7030
      %7166 = vmatprep.subr.bf16.mxu0 %v7033
      %7167 = vmatpush1.bf16.msra.mxu0 %v7032
      %7168 = vmatprep.subr.bf16.mxu0 %v7035
      %7169 = vmatpush1.bf16.msra.mxu0 %v7034
      %7170 = vmatprep.subr.bf16.mxu0 %v7037
      %7171 = vmatpush1.bf16.msra.mxu0 %v7036
      %7172 = vmatprep.subr.bf16.mxu0 %v7039
      %7173 = vmatpush1.bf16.msra.mxu0 %v7038
      %7174 = vmatprep.subr.bf16.mxu0 %v7041
      %7175 = vmatpush1.bf16.msra.mxu0 %v7040
      %7176 = vmatprep.subr.bf16.mxu0 %v7043
      %7177 = vmatpush1.bf16.msra.mxu0 %v7042
      %7178 = vmatprep.subr.bf16.mxu0 %v7045
      %7179 = vmatpush1.bf16.msra.mxu0 %v7044
      %7180 = vmatprep.subr.bf16.mxu0 %v7047
      %7181 = vmatpush1.bf16.msra.mxu0 %v7046
      %7182 = vmatprep.subr.bf16.mxu0 %v7049
      %7183 = vmatpush1.bf16.msra.mxu0 %v7048
      %7184 = vmatprep.subr.bf16.mxu0 0
      %7185 = vmatpush1.bf16.msra.mxu0 0
      %7186 = vmatprep.subr.bf16.mxu0 0
      %7187 = vmatpush1.bf16.msra.mxu0 0
      %7188 = vmatprep.mubr.bf16.mxu0 %v7111
      %7189 = vmatmul.mubr.bf16.gmra.mrb[0].mxu0 %v6805
      %v7190 = vpop.f32.mrb[0].mxu0
      %v7191 = vadd.f32 %v7148, %v7190
      %v7192 = vpop.f32.mrb[0].mxu0
      %v7193 = vadd.f32 %v7150, %v7192
      %v7194 = vpop.f32.mrb[0].mxu0
      %v7195 = vadd.f32 %v7152, %v7194
      %v7196 = vpop.f32.mrb[0].mxu0
      %v7197 = vadd.f32 %v7154, %v7196
      %7198 = vdwg.mxu0
      %v7199 = vadd.f32 %v6722, %v7191
      %v7200 = vadd.f32 %v6723, %v7193
      %v7201 = vadd.f32 %v6724, %v7195
      %v7202 = vadd.f32 %v6725, %v7197
      %v7203 = vld [vmem:[%s6] sm:$0x3]
      %v7205 = vlaneseq
      %v7206 = vshrl.u32 %v7205, 7
      %v7207 = vsub.s32 0, %v7206
      %v7208 = vrot.slane %v7203, %v7207
      %v7209 = vlaneseq
      %v7210 = vshrl.u32 %v7209, 7
      %v7211 = vsub.s32 1, %v7210
      %v7212 = vrot.slane %v7203, %v7211
      %v7215 = vadd.f32 %v7199, %v7208
      %v7216 = vadd.f32 %v7200, %v7212
      %v7217 = vadd.f32 %v7201, %v7208
      %v7218 = vadd.f32 %v7202, %v7212
      %v7219 = vmax.f32 %v7215, 0.0
      %v7220 = vmax.f32 %v7216, 0.0
      %v7221 = vmax.f32 %v7217, 0.0
      %v7222 = vmax.f32 %v7218, 0.0
      %7223 = vst [vmem:[#allocation4] sm:$0xff] 0.0
      %7224 = vst [vmem:[#allocation4 + $0x8] sm:$0xff] 0.0
      %vm7225 = vcmask 130048
      %7226 = vst.msk [vmem:[#allocation4 + $0x10] sm:$0xff] %vm7225, 0.0
      %7227 = vst [vmem:[#allocation4 + $0x18] sm:$0xff] 0.0
      %7228 = vst [vmem:[#allocation4 + $0x20] sm:$0xff] 0.0
      %7229 = vst.msk [vmem:[#allocation4 + $0x28] sm:$0xff] %vm7225, 0.0
      %7230 = vst [vmem:[#allocation4 + $0x30] sm:$0x1] 0.0
      %7231 = vst [vmem:[#allocation4 + $0x38] sm:$0x1] 0.0
      %vm7232 = vcmask 122880
      %7233 = vst.msk [vmem:[#allocation4 + $0x40] sm:$0x1] %vm7232, 0.0
      %vm7238 = vcmask 1042432
      %v7239 = vrot.slane %v7219, 5
      %v7240 = vrot.slane %v7220, 5
      %v7241 = vrot.slane %v7221, 5
      %v7242 = vsel %vm7238, %v7239, %v7241
      %v7243 = vrot.slane %v7222, 5
      %v7244 = vsel %vm7238, %v7240, %v7243
      %7245 = vrot.lane.b32.xlu0 %v7239, 48
      %v7246 = vpop.permute.xlu0 %7245
      %7247 = vrot.lane.b32.xlu0 %v7240, 48
      %v7248 = vpop.permute.xlu0 %7247
      %7249 = vrot.lane.b32.xlu0 %v7242, 48
      %v7250 = vpop.permute.xlu0 %7249
      %7251 = vrot.lane.b32.xlu0 %v7244, 48
      %v7252 = vpop.permute.xlu0 %7251
      %vm7253 = vcmask 392192
      %v7254 = vsel %vm7253, %v7246, %v7248
      %v7255 = vsel %vm7253, %v7250, %v7252
      %vm7260 = vcmask 1047939
      %7261 = vst.msk [vmem:[#allocation4] sm:$0xf8] %vm7260, %v7246
      %vm7262 = vcmask 785411
      %7263 = vst.msk [vmem:[#allocation4 + $0x8] sm:$0xf8] %vm7262, %v7254
      %vm7264 = vcmask 1045888
      %7265 = vst.msk [vmem:[#allocation4 + $0x18] sm:$0x3f] %vm7264, %v7250
      %vm7266 = vcmask 783360
      %7267 = vst.msk [vmem:[#allocation4 + $0x20] sm:$0x3f] %vm7266, %v7255
      %v7268 = vld [vmem:[#allocation4] sm:$0xff]
      %v7269 = vld [vmem:[#allocation4 + $0x8] sm:$0xff]
      %v7270 = vld [vmem:[#allocation4 + $0x10] sm:$0xff]
      %v7271 = vld [vmem:[#allocation4 + $0x18] sm:$0x3f]
      %v7272 = vld [vmem:[#allocation4 + $0x20] sm:$0x3f]
      %v7273 = vld [vmem:[#allocation4 + $0x28] sm:$0x3f]
      %v7274 = vpack.c.bf16 %v7271, %v7268
      %v7275 = vpack.c.bf16 %v7272, %v7269
      %v7276 = vpack.c.bf16 %v7273, %v7270
      %v7277 = vld [vmem:[%s7] sm:$0xf]
      %v7278 = vld [vmem:[%s7 + $0x4] sm:$0xf]
      %v7279 = vld [vmem:[%s7 + $0x8] sm:$0xf]
      %v7280 = vld [vmem:[%s7 + $0xc] sm:$0xf]
      %v7281 = vld [vmem:[%s7 + $0x10] sm:$0xf]
      %v7282 = vld [vmem:[%s7 + $0x14] sm:$0xf]
      %v7283 = vld [vmem:[%s7 + $0x18] sm:$0xf]
      %v7284 = vld [vmem:[%s7 + $0x1c] sm:$0xf]
      %v7285 = vld [vmem:[%s7 + $0x20] sm:$0xf]
      %v7286 = vld [vmem:[%s7 + $0x24] sm:$0xf]
      %v7287 = vld [vmem:[%s7 + $0x28] sm:$0xf]
      %v7288 = vld [vmem:[%s7 + $0x2c] sm:$0xf]
      %v7289 = vld [vmem:[%s7 + $0x30] sm:$0xf]
      %v7290 = vld [vmem:[%s7 + $0x34] sm:$0xf]
      %v7291 = vld [vmem:[%s7 + $0x38] sm:$0xf]
      %v7292 = vld [vmem:[%s7 + $0x3c] sm:$0xf]
      %v7293 = vld [vmem:[%s7 + $0x40] sm:$0xf]
      %v7294 = vld [vmem:[%s7 + $0x44] sm:$0xf]
      %v7295 = vld [vmem:[%s7 + $0x48] sm:$0xf]
      %v7296 = vld [vmem:[%s7 + $0x4c] sm:$0xf]
      %v7297 = vld [vmem:[%s7 + $0x50] sm:$0xf]
      %v7298 = vld [vmem:[%s7 + $0x54] sm:$0xf]
      %v7299 = vld [vmem:[%s7 + $0x58] sm:$0xf]
      %v7300 = vld [vmem:[%s7 + $0x5c] sm:$0xf]
      %v7301 = vld [vmem:[%s7 + $0x60] sm:$0xf]
      %v7302 = vld [vmem:[%s7 + $0x64] sm:$0xf]
      %v7303 = vld [vmem:[%s7 + $0x68] sm:$0xf]
      %v7304 = vld [vmem:[%s7 + $0x6c] sm:$0xf]
      %v7305 = vld [vmem:[%s7 + $0x70] sm:$0xf]
      %v7306 = vld [vmem:[%s7 + $0x74] sm:$0xf]
      %v7307 = vld [vmem:[%s7 + $0x78] sm:$0xf]
      %v7308 = vld [vmem:[%s7 + $0x7c] sm:$0xf]
      %v7309 = vld [vmem:[%s7 + $0x80] sm:$0xf]
      %v7310 = vld [vmem:[%s7 + $0x84] sm:$0xf]
      %v7311 = vld [vmem:[#allocation4] sm:$0xfe]
      %v7312 = vld [vmem:[#allocation4 + $0x8] sm:$0xfe]
      %v7313 = vld [vmem:[#allocation4 + $0x10] sm:$0xfe]
      %v7314 = vld [vmem:[#allocation4 + $0x18] sm:$0x7f]
      %v7315 = vld [vmem:[#allocation4 + $0x20] sm:$0x7f]
      %v7316 = vld [vmem:[#allocation4 + $0x28] sm:$0x7f]
      %v7317 = vpack.c.bf16 %v7314, %v7311
      %v7318 = vpack.c.bf16 %v7315, %v7312
      %v7319 = vpack.c.bf16 %v7316, %v7313
      %s7320 = scalar_lea.vmem %s7, 136
      %v7321 = vld [vmem:[%s7320] sm:$0xf]
      %v7322 = vld [vmem:[%s7320 + $0x4] sm:$0xf]
      %v7323 = vld [vmem:[%s7320 + $0x8] sm:$0xf]
      %v7324 = vld [vmem:[%s7320 + $0xc] sm:$0xf]
      %v7325 = vld [vmem:[%s7320 + $0x10] sm:$0xf]
      %v7326 = vld [vmem:[%s7320 + $0x14] sm:$0xf]
      %v7327 = vld [vmem:[%s7320 + $0x18] sm:$0xf]
      %v7328 = vld [vmem:[%s7320 + $0x1c] sm:$0xf]
      %v7329 = vld [vmem:[%s7320 + $0x20] sm:$0xf]
      %v7330 = vld [vmem:[%s7320 + $0x24] sm:$0xf]
      %v7331 = vld [vmem:[%s7320 + $0x28] sm:$0xf]
      %v7332 = vld [vmem:[%s7320 + $0x2c] sm:$0xf]
      %v7333 = vld [vmem:[%s7320 + $0x30] sm:$0xf]
      %v7334 = vld [vmem:[%s7320 + $0x34] sm:$0xf]
      %v7335 = vld [vmem:[%s7320 + $0x38] sm:$0xf]
      %v7336 = vld [vmem:[%s7320 + $0x3c] sm:$0xf]
      %v7337 = vld [vmem:[%s7320 + $0x40] sm:$0xf]
      %v7338 = vld [vmem:[%s7320 + $0x44] sm:$0xf]
      %v7339 = vld [vmem:[%s7320 + $0x48] sm:$0xf]
      %v7340 = vld [vmem:[%s7320 + $0x4c] sm:$0xf]
      %v7341 = vld [vmem:[%s7320 + $0x50] sm:$0xf]
      %v7342 = vld [vmem:[%s7320 + $0x54] sm:$0xf]
      %v7343 = vld [vmem:[%s7320 + $0x58] sm:$0xf]
      %v7344 = vld [vmem:[%s7320 + $0x5c] sm:$0xf]
      %v7345 = vld [vmem:[%s7320 + $0x60] sm:$0xf]
      %v7346 = vld [vmem:[%s7320 + $0x64] sm:$0xf]
      %v7347 = vld [vmem:[%s7320 + $0x68] sm:$0xf]
      %v7348 = vld [vmem:[%s7320 + $0x6c] sm:$0xf]
      %v7349 = vld [vmem:[%s7320 + $0x70] sm:$0xf]
      %v7350 = vld [vmem:[%s7320 + $0x74] sm:$0xf]
      %v7351 = vld [vmem:[%s7320 + $0x78] sm:$0xf]
      %v7352 = vld [vmem:[%s7320 + $0x7c] sm:$0xf]
      %v7353 = vld [vmem:[%s7320 + $0x80] sm:$0xf]
      %v7354 = vld [vmem:[%s7320 + $0x84] sm:$0xf]
      %v7356 = vshrl.u32 %v7317, 16
      %v7358 = vshll.u32 %v7317, 16
      %v7360 = vrot.slane %v7358, 1
      %v7361 = vor.u32 %v7356, %v7360
      %v7363 = vshrl.u32 %v7318, 16
      %v7365 = vshll.u32 %v7318, 16
      %v7367 = vrot.slane %v7365, 1
      %v7368 = vor.u32 %v7363, %v7367
      %v7370 = vshrl.u32 %v7319, 16
      %v7372 = vshll.u32 %v7319, 16
      %v7374 = vrot.slane %v7372, 1
      %v7375 = vor.u32 %v7370, %v7374
      %v7412 = vunpack.c.l.b16 %v7321
      %v7413 = vunpack.c.l.b16 %v7322
      %v7414 = vunpack.c.l.b16 %v7323
      %v7415 = vunpack.c.l.b16 %v7324
      %v7416 = vunpack.c.l.b16 %v7325
      %v7417 = vunpack.c.l.b16 %v7326
      %v7418 = vunpack.c.l.b16 %v7327
      %v7419 = vunpack.c.l.b16 %v7328
      %v7420 = vunpack.c.l.b16 %v7329
      %v7421 = vunpack.c.l.b16 %v7330
      %v7422 = vunpack.c.l.b16 %v7331
      %v7423 = vunpack.c.l.b16 %v7332
      %v7424 = vunpack.c.l.b16 %v7333
      %v7425 = vunpack.c.l.b16 %v7334
      %v7426 = vunpack.c.l.b16 %v7335
      %v7427 = vunpack.c.l.b16 %v7336
      %v7428 = vunpack.c.l.b16 %v7337
      %v7429 = vunpack.c.l.b16 %v7338
      %v7430 = vunpack.c.l.b16 %v7339
      %v7431 = vunpack.c.l.b16 %v7340
      %v7432 = vunpack.c.l.b16 %v7341
      %v7433 = vunpack.c.l.b16 %v7342
      %v7434 = vunpack.c.l.b16 %v7343
      %v7435 = vunpack.c.l.b16 %v7344
      %v7436 = vunpack.c.l.b16 %v7345
      %v7437 = vunpack.c.l.b16 %v7346
      %v7438 = vunpack.c.l.b16 %v7347
      %v7439 = vunpack.c.l.b16 %v7348
      %v7440 = vunpack.c.l.b16 %v7349
      %v7441 = vunpack.c.l.b16 %v7350
      %v7442 = vunpack.c.l.b16 %v7351
      %v7443 = vunpack.c.l.b16 %v7352
      %v7444 = vunpack.c.l.b16 %v7353
      %v7445 = vunpack.c.l.b16 %v7354
      %v7446 = vpack.c.b16 %v7413, %v7412
      %v7447 = vpack.c.b16 %v7415, %v7414
      %v7448 = vpack.c.b16 %v7417, %v7416
      %v7449 = vpack.c.b16 %v7419, %v7418
      %v7450 = vpack.c.b16 %v7421, %v7420
      %v7451 = vpack.c.b16 %v7423, %v7422
      %v7452 = vpack.c.b16 %v7425, %v7424
      %v7453 = vpack.c.b16 %v7427, %v7426
      %v7454 = vpack.c.b16 %v7429, %v7428
      %v7455 = vpack.c.b16 %v7431, %v7430
      %v7456 = vpack.c.b16 %v7433, %v7432
      %v7457 = vpack.c.b16 %v7435, %v7434
      %v7458 = vpack.c.b16 %v7437, %v7436
      %v7459 = vpack.c.b16 %v7439, %v7438
      %v7460 = vpack.c.b16 %v7441, %v7440
      %v7461 = vpack.c.b16 %v7443, %v7442
      %v7462 = vpack.c.b16 %v7445, %v7444
      %v7481 = vsel %vm7225, %v7375, 0
      %7483 = vmatprep.subr.bf16.mxu0 0
      %7484 = vmatpush1.bf16.msra.mxu0 %v7446
      %7485 = vmatprep.subr.bf16.mxu0 0
      %7486 = vmatpush1.bf16.msra.mxu0 %v7447
      %7487 = vmatprep.subr.bf16.mxu0 0
      %7488 = vmatpush1.bf16.msra.mxu0 %v7448
      %7489 = vmatprep.subr.bf16.mxu0 0
      %7490 = vmatpush1.bf16.msra.mxu0 %v7449
      %7491 = vmatprep.subr.bf16.mxu0 0
      %7492 = vmatpush1.bf16.msra.mxu0 %v7450
      %7493 = vmatprep.subr.bf16.mxu0 0
      %7494 = vmatpush1.bf16.msra.mxu0 %v7451
      %7495 = vmatprep.subr.bf16.mxu0 0
      %7496 = vmatpush1.bf16.msra.mxu0 %v7452
      %7497 = vmatprep.subr.bf16.mxu0 0
      %7498 = vmatpush1.bf16.msra.mxu0 %v7453
      %7499 = vmatprep.subr.bf16.mxu0 0
      %7500 = vmatpush1.bf16.msra.mxu0 %v7454
      %7501 = vmatprep.subr.bf16.mxu0 0
      %7502 = vmatpush1.bf16.msra.mxu0 %v7455
      %7503 = vmatprep.subr.bf16.mxu0 0
      %7504 = vmatpush1.bf16.msra.mxu0 %v7456
      %7505 = vmatprep.subr.bf16.mxu0 0
      %7506 = vmatpush1.bf16.msra.mxu0 %v7457
      %7507 = vmatprep.subr.bf16.mxu0 0
      %7508 = vmatpush1.bf16.msra.mxu0 %v7458
      %7509 = vmatprep.subr.bf16.mxu0 0
      %7510 = vmatpush1.bf16.msra.mxu0 %v7459
      %7511 = vmatprep.subr.bf16.mxu0 0
      %7512 = vmatpush1.bf16.msra.mxu0 %v7460
      %7513 = vmatprep.subr.bf16.mxu0 0
      %7514 = vmatpush1.bf16.msra.mxu0 %v7461
      %7515 = vmatprep.mubr.bf16.mxu0 %v7368
      %7516 = vmatmul.mubr.bf16.gmra.mrb[0].mxu0 %v7361
      %v7517 = vpop.f32.mrb[0].mxu0
      %v7518 = vadd.f32 0.0, %v7517
      %v7519 = vpop.f32.mrb[0].mxu0
      %v7520 = vpop.f32.mrb[0].mxu0
      %v7521 = vadd.f32 0.0, %v7520
      %v7522 = vpop.f32.mrb[0].mxu0
      %7523 = vdwg.mxu0
      %7524 = vmatprep.subr.bf16.mxu0 0
      %7525 = vmatpush1.bf16.msra.mxu0 %v7462
      %7526 = vmatprep.subr.bf16.mxu0 0
      %7527 = vmatpush1.bf16.msra.mxu0 0
      %7528 = vmatprep.subr.bf16.mxu0 0
      %7529 = vmatpush1.bf16.msra.mxu0 0
      %7530 = vmatprep.subr.bf16.mxu0 0
      %7531 = vmatpush1.bf16.msra.mxu0 0
      %7532 = vmatprep.subr.bf16.mxu0 0
      %7533 = vmatpush1.bf16.msra.mxu0 0
      %7534 = vmatprep.subr.bf16.mxu0 0
      %7535 = vmatpush1.bf16.msra.mxu0 0
      %7536 = vmatprep.subr.bf16.mxu0 0
      %7537 = vmatpush1.bf16.msra.mxu0 0
      %7538 = vmatprep.subr.bf16.mxu0 0
      %7539 = vmatpush1.bf16.msra.mxu0 0
      %7540 = vmatprep.subr.bf16.mxu0 0
      %7541 = vmatpush1.bf16.msra.mxu0 0
      %7542 = vmatprep.subr.bf16.mxu0 0
      %7543 = vmatpush1.bf16.msra.mxu0 0
      %7544 = vmatprep.subr.bf16.mxu0 0
      %7545 = vmatpush1.bf16.msra.mxu0 0
      %7546 = vmatprep.subr.bf16.mxu0 0
      %7547 = vmatpush1.bf16.msra.mxu0 0
      %7548 = vmatprep.subr.bf16.mxu0 0
      %7549 = vmatpush1.bf16.msra.mxu0 0
      %7550 = vmatprep.subr.bf16.mxu0 0
      %7551 = vmatpush1.bf16.msra.mxu0 0
      %7552 = vmatprep.subr.bf16.mxu0 0
      %7553 = vmatpush1.bf16.msra.mxu0 0
      %7554 = vmatprep.subr.bf16.mxu0 0
      %7555 = vmatpush1.bf16.msra.mxu0 0
      %7556 = vmatprep.mubr.bf16.mxu0 0
      %7557 = vmatmul.mubr.bf16.gmra.mrb[0].mxu0 %v7481
      %v7558 = vpop.f32.mrb[0].mxu0
      %v7559 = vadd.f32 %v7518, %v7558
      %v7560 = vpop.f32.mrb[0].mxu0
      %v7561 = vpop.f32.mrb[0].mxu0
      %v7562 = vadd.f32 %v7521, %v7561
      %v7563 = vpop.f32.mrb[0].mxu0
      %7564 = vdwg.mxu0
      %v7599 = vunpack.c.l.b16 %v7277
      %v7600 = vunpack.c.l.b16 %v7278
      %v7601 = vunpack.c.l.b16 %v7279
      %v7602 = vunpack.c.l.b16 %v7280
      %v7603 = vunpack.c.l.b16 %v7281
      %v7604 = vunpack.c.l.b16 %v7282
      %v7605 = vunpack.c.l.b16 %v7283
      %v7606 = vunpack.c.l.b16 %v7284
      %v7607 = vunpack.c.l.b16 %v7285
      %v7608 = vunpack.c.l.b16 %v7286
      %v7609 = vunpack.c.l.b16 %v7287
      %v7610 = vunpack.c.l.b16 %v7288
      %v7611 = vunpack.c.l.b16 %v7289
      %v7612 = vunpack.c.l.b16 %v7290
      %v7613 = vunpack.c.l.b16 %v7291
      %v7614 = vunpack.c.l.b16 %v7292
      %v7615 = vunpack.c.l.b16 %v7293
      %v7616 = vunpack.c.l.b16 %v7294
      %v7617 = vunpack.c.l.b16 %v7295
      %v7618 = vunpack.c.l.b16 %v7296
      %v7619 = vunpack.c.l.b16 %v7297
      %v7620 = vunpack.c.l.b16 %v7298
      %v7621 = vunpack.c.l.b16 %v7299
      %v7622 = vunpack.c.l.b16 %v7300
      %v7623 = vunpack.c.l.b16 %v7301
      %v7624 = vunpack.c.l.b16 %v7302
      %v7625 = vunpack.c.l.b16 %v7303
      %v7626 = vunpack.c.l.b16 %v7304
      %v7627 = vunpack.c.l.b16 %v7305
      %v7628 = vunpack.c.l.b16 %v7306
      %v7629 = vunpack.c.l.b16 %v7307
      %v7630 = vunpack.c.l.b16 %v7308
      %v7631 = vunpack.c.l.b16 %v7309
      %v7632 = vunpack.c.l.b16 %v7310
      %v7633 = vpack.c.b16 %v7600, %v7599
      %v7634 = vpack.c.b16 %v7602, %v7601
      %v7635 = vpack.c.b16 %v7604, %v7603
      %v7636 = vpack.c.b16 %v7606, %v7605
      %v7637 = vpack.c.b16 %v7608, %v7607
      %v7638 = vpack.c.b16 %v7610, %v7609
      %v7639 = vpack.c.b16 %v7612, %v7611
      %v7640 = vpack.c.b16 %v7614, %v7613
      %v7641 = vpack.c.b16 %v7616, %v7615
      %v7642 = vpack.c.b16 %v7618, %v7617
      %v7643 = vpack.c.b16 %v7620, %v7619
      %v7644 = vpack.c.b16 %v7622, %v7621
      %v7645 = vpack.c.b16 %v7624, %v7623
      %v7646 = vpack.c.b16 %v7626, %v7625
      %v7647 = vpack.c.b16 %v7628, %v7627
      %v7648 = vpack.c.b16 %v7630, %v7629
      %v7649 = vpack.c.b16 %v7632, %v7631
      %v7668 = vsel %vm7225, %v7276, 0
      %7670 = vmatprep.subr.bf16.mxu0 0
      %7671 = vmatpush1.bf16.msra.mxu0 %v7633
      %7672 = vmatprep.subr.bf16.mxu0 0
      %7673 = vmatpush1.bf16.msra.mxu0 %v7634
      %7674 = vmatprep.subr.bf16.mxu0 0
      %7675 = vmatpush1.bf16.msra.mxu0 %v7635
      %7676 = vmatprep.subr.bf16.mxu0 0
      %7677 = vmatpush1.bf16.msra.mxu0 %v7636
      %7678 = vmatprep.subr.bf16.mxu0 0
      %7679 = vmatpush1.bf16.msra.mxu0 %v7637
      %7680 = vmatprep.subr.bf16.mxu0 0
      %7681 = vmatpush1.bf16.msra.mxu0 %v7638
      %7682 = vmatprep.subr.bf16.mxu0 0
      %7683 = vmatpush1.bf16.msra.mxu0 %v7639
      %7684 = vmatprep.subr.bf16.mxu0 0
      %7685 = vmatpush1.bf16.msra.mxu0 %v7640
      %7686 = vmatprep.subr.bf16.mxu0 0
      %7687 = vmatpush1.bf16.msra.mxu0 %v7641
      %7688 = vmatprep.subr.bf16.mxu0 0
      %7689 = vmatpush1.bf16.msra.mxu0 %v7642
      %7690 = vmatprep.subr.bf16.mxu0 0
      %7691 = vmatpush1.bf16.msra.mxu0 %v7643
      %7692 = vmatprep.subr.bf16.mxu0 0
      %7693 = vmatpush1.bf16.msra.mxu0 %v7644
      %7694 = vmatprep.subr.bf16.mxu0 0
      %7695 = vmatpush1.bf16.msra.mxu0 %v7645
      %7696 = vmatprep.subr.bf16.mxu0 0
      %7697 = vmatpush1.bf16.msra.mxu0 %v7646
      %7698 = vmatprep.subr.bf16.mxu0 0
      %7699 = vmatpush1.bf16.msra.mxu0 %v7647
      %7700 = vmatprep.subr.bf16.mxu0 0
      %7701 = vmatpush1.bf16.msra.mxu0 %v7648
      %7702 = vmatprep.mubr.bf16.mxu0 %v7275
      %7703 = vmatmul.mubr.bf16.gmra.mrb[0].mxu0 %v7274
      %v7704 = vpop.f32.mrb[0].mxu0
      %v7705 = vadd.f32 %v7559, %v7704
      %v7706 = vpop.f32.mrb[0].mxu0
      %v7707 = vpop.f32.mrb[0].mxu0
      %v7708 = vadd.f32 %v7562, %v7707
      %v7709 = vpop.f32.mrb[0].mxu0
      %7710 = vdwg.mxu0
      %7711 = vmatprep.subr.bf16.mxu0 0
      %7712 = vmatpush1.bf16.msra.mxu0 %v7649
      %7713 = vmatprep.subr.bf16.mxu0 0
      %7714 = vmatpush1.bf16.msra.mxu0 0
      %7715 = vmatprep.subr.bf16.mxu0 0
      %7716 = vmatpush1.bf16.msra.mxu0 0
      %7717 = vmatprep.subr.bf16.mxu0 0
      %7718 = vmatpush1.bf16.msra.mxu0 0
      %7719 = vmatprep.subr.bf16.mxu0 0
      %7720 = vmatpush1.bf16.msra.mxu0 0
      %7721 = vmatprep.subr.bf16.mxu0 0
      %7722 = vmatpush1.bf16.msra.mxu0 0
      %7723 = vmatprep.subr.bf16.mxu0 0
      %7724 = vmatpush1.bf16.msra.mxu0 0
      %7725 = vmatprep.subr.bf16.mxu0 0
      %7726 = vmatpush1.bf16.msra.mxu0 0
      %7727 = vmatprep.subr.bf16.mxu0 0
      %7728 = vmatpush1.bf16.msra.mxu0 0
      %7729 = vmatprep.subr.bf16.mxu0 0
      %7730 = vmatpush1.bf16.msra.mxu0 0
      %7731 = vmatprep.subr.bf16.mxu0 0
      %7732 = vmatpush1.bf16.msra.mxu0 0
      %7733 = vmatprep.subr.bf16.mxu0 0
      %7734 = vmatpush1.bf16.msra.mxu0 0
      %7735 = vmatprep.subr.bf16.mxu0 0
      %7736 = vmatpush1.bf16.msra.mxu0 0
      %7737 = vmatprep.subr.bf16.mxu0 0
      %7738 = vmatpush1.bf16.msra.mxu0 0
      %7739 = vmatprep.subr.bf16.mxu0 0
      %7740 = vmatpush1.bf16.msra.mxu0 0
      %7741 = vmatprep.subr.bf16.mxu0 0
      %7742 = vmatpush1.bf16.msra.mxu0 0
      %7743 = vmatprep.mubr.bf16.mxu0 0
      %7744 = vmatmul.mubr.bf16.gmra.mrb[0].mxu0 %v7668
      %v7745 = vpop.f32.mrb[0].mxu0
      %v7746 = vadd.f32 %v7705, %v7745
      %v7747 = vpop.f32.mrb[0].mxu0
      %v7748 = vpop.f32.mrb[0].mxu0
      %v7749 = vadd.f32 %v7708, %v7748
      %v7750 = vpop.f32.mrb[0].mxu0
      %7751 = vdwg.mxu0
      %v7752 = vld [vmem:[#allocation4] sm:$0xfc]
      %v7753 = vld [vmem:[#allocation4 + $0x8] sm:$0xfc]
      %v7754 = vld [vmem:[#allocation4 + $0x10] sm:$0xfc]
      %v7755 = vld [vmem:[#allocation4 + $0x18] sm:$0xff]
      %v7756 = vld [vmem:[#allocation4 + $0x20] sm:$0xff]
      %v7757 = vld [vmem:[#allocation4 + $0x28] sm:$0xff]
      %v7758 = vpack.c.bf16 %v7755, %v7752
      %v7759 = vpack.c.bf16 %v7756, %v7753
      %v7760 = vpack.c.bf16 %v7757, %v7754
      %s7761 = scalar_lea.vmem %s7, 272
      %v7762 = vld [vmem:[%s7761] sm:$0xf]
      %v7763 = vld [vmem:[%s7761 + $0x4] sm:$0xf]
      %v7764 = vld [vmem:[%s7761 + $0x8] sm:$0xf]
      %v7765 = vld [vmem:[%s7761 + $0xc] sm:$0xf]
      %v7766 = vld [vmem:[%s7761 + $0x10] sm:$0xf]
      %v7767 = vld [vmem:[%s7761 + $0x14] sm:$0xf]
      %v7768 = vld [vmem:[%s7761 + $0x18] sm:$0xf]
      %v7769 = vld [vmem:[%s7761 + $0x1c] sm:$0xf]
      %v7770 = vld [vmem:[%s7761 + $0x20] sm:$0xf]
      %v7771 = vld [vmem:[%s7761 + $0x24] sm:$0xf]
      %v7772 = vld [vmem:[%s7761 + $0x28] sm:$0xf]
      %v7773 = vld [vmem:[%s7761 + $0x2c] sm:$0xf]
      %v7774 = vld [vmem:[%s7761 + $0x30] sm:$0xf]
      %v7775 = vld [vmem:[%s7761 + $0x34] sm:$0xf]
      %v7776 = vld [vmem:[%s7761 + $0x38] sm:$0xf]
      %v7777 = vld [vmem:[%s7761 + $0x3c] sm:$0xf]
      %v7778 = vld [vmem:[%s7761 + $0x40] sm:$0xf]
      %v7779 = vld [vmem:[%s7761 + $0x44] sm:$0xf]
      %v7780 = vld [vmem:[%s7761 + $0x48] sm:$0xf]
      %v7781 = vld [vmem:[%s7761 + $0x4c] sm:$0xf]
      %v7782 = vld [vmem:[%s7761 + $0x50] sm:$0xf]
      %v7783 = vld [vmem:[%s7761 + $0x54] sm:$0xf]
      %v7784 = vld [vmem:[%s7761 + $0x58] sm:$0xf]
      %v7785 = vld [vmem:[%s7761 + $0x5c] sm:$0xf]
      %v7786 = vld [vmem:[%s7761 + $0x60] sm:$0xf]
      %v7787 = vld [vmem:[%s7761 + $0x64] sm:$0xf]
      %v7788 = vld [vmem:[%s7761 + $0x68] sm:$0xf]
      %v7789 = vld [vmem:[%s7761 + $0x6c] sm:$0xf]
      %v7790 = vld [vmem:[%s7761 + $0x70] sm:$0xf]
      %v7791 = vld [vmem:[%s7761 + $0x74] sm:$0xf]
      %v7792 = vld [vmem:[%s7761 + $0x78] sm:$0xf]
      %v7793 = vld [vmem:[%s7761 + $0x7c] sm:$0xf]
      %v7794 = vld [vmem:[%s7761 + $0x80] sm:$0xf]
      %v7795 = vld [vmem:[%s7761 + $0x84] sm:$0xf]
      %v7799 = vrot.slane %v7758, 1
      %v7800 = vrot.slane %v7759, 1
      %v7801 = vrot.slane %v7760, 1
      %v7838 = vunpack.c.l.b16 %v7762
      %v7839 = vunpack.c.l.b16 %v7763
      %v7840 = vunpack.c.l.b16 %v7764
      %v7841 = vunpack.c.l.b16 %v7765
      %v7842 = vunpack.c.l.b16 %v7766
      %v7843 = vunpack.c.l.b16 %v7767
      %v7844 = vunpack.c.l.b16 %v7768
      %v7845 = vunpack.c.l.b16 %v7769
      %v7846 = vunpack.c.l.b16 %v7770
      %v7847 = vunpack.c.l.b16 %v7771
      %v7848 = vunpack.c.l.b16 %v7772
      %v7849 = vunpack.c.l.b16 %v7773
      %v7850 = vunpack.c.l.b16 %v7774
      %v7851 = vunpack.c.l.b16 %v7775
      %v7852 = vunpack.c.l.b16 %v7776
      %v7853 = vunpack.c.l.b16 %v7777
      %v7854 = vunpack.c.l.b16 %v7778
      %v7855 = vunpack.c.l.b16 %v7779
      %v7856 = vunpack.c.l.b16 %v7780
      %v7857 = vunpack.c.l.b16 %v7781
      %v7858 = vunpack.c.l.b16 %v7782
      %v7859 = vunpack.c.l.b16 %v7783
      %v7860 = vunpack.c.l.b16 %v7784
      %v7861 = vunpack.c.l.b16 %v7785
      %v7862 = vunpack.c.l.b16 %v7786
      %v7863 = vunpack.c.l.b16 %v7787
      %v7864 = vunpack.c.l.b16 %v7788
      %v7865 = vunpack.c.l.b16 %v7789
      %v7866 = vunpack.c.l.b16 %v7790
      %v7867 = vunpack.c.l.b16 %v7791
      %v7868 = vunpack.c.l.b16 %v7792
      %v7869 = vunpack.c.l.b16 %v7793
      %v7870 = vunpack.c.l.b16 %v7794
      %v7871 = vunpack.c.l.b16 %v7795
      %v7872 = vpack.c.b16 %v7839, %v7838
      %v7873 = vpack.c.b16 %v7841, %v7840
      %v7874 = vpack.c.b16 %v7843, %v7842
      %v7875 = vpack.c.b16 %v7845, %v7844
      %v7876 = vpack.c.b16 %v7847, %v7846
      %v7877 = vpack.c.b16 %v7849, %v7848
      %v7878 = vpack.c.b16 %v7851, %v7850
      %v7879 = vpack.c.b16 %v7853, %v7852
      %v7880 = vpack.c.b16 %v7855, %v7854
      %v7881 = vpack.c.b16 %v7857, %v7856
      %v7882 = vpack.c.b16 %v7859, %v7858
      %v7883 = vpack.c.b16 %v7861, %v7860
      %v7884 = vpack.c.b16 %v7863, %v7862
      %v7885 = vpack.c.b16 %v7865, %v7864
      %v7886 = vpack.c.b16 %v7867, %v7866
      %v7887 = vpack.c.b16 %v7869, %v7868
      %v7888 = vpack.c.b16 %v7871, %v7870
      %v7907 = vsel %vm7225, %v7801, 0
      %7909 = vmatprep.subr.bf16.mxu0 0
      %7910 = vmatpush1.bf16.msra.mxu0 %v7872
      %7911 = vmatprep.subr.bf16.mxu0 0
      %7912 = vmatpush1.bf16.msra.mxu0 %v7873
      %7913 = vmatprep.subr.bf16.mxu0 0
      %7914 = vmatpush1.bf16.msra.mxu0 %v7874
      %7915 = vmatprep.subr.bf16.mxu0 0
      %7916 = vmatpush1.bf16.msra.mxu0 %v7875
      %7917 = vmatprep.subr.bf16.mxu0 0
      %7918 = vmatpush1.bf16.msra.mxu0 %v7876
      %7919 = vmatprep.subr.bf16.mxu0 0
      %7920 = vmatpush1.bf16.msra.mxu0 %v7877
      %7921 = vmatprep.subr.bf16.mxu0 0
      %7922 = vmatpush1.bf16.msra.mxu0 %v7878
      %7923 = vmatprep.subr.bf16.mxu0 0
      %7924 = vmatpush1.bf16.msra.mxu0 %v7879
      %7925 = vmatprep.subr.bf16.mxu0 0
      %7926 = vmatpush1.bf16.msra.mxu0 %v7880
      %7927 = vmatprep.subr.bf16.mxu0 0
      %7928 = vmatpush1.bf16.msra.mxu0 %v7881
      %7929 = vmatprep.subr.bf16.mxu0 0
      %7930 = vmatpush1.bf16.msra.mxu0 %v7882
      %7931 = vmatprep.subr.bf16.mxu0 0
      %7932 = vmatpush1.bf16.msra.mxu0 %v7883
      %7933 = vmatprep.subr.bf16.mxu0 0
      %7934 = vmatpush1.bf16.msra.mxu0 %v7884
      %7935 = vmatprep.subr.bf16.mxu0 0
      %7936 = vmatpush1.bf16.msra.mxu0 %v7885
      %7937 = vmatprep.subr.bf16.mxu0 0
      %7938 = vmatpush1.bf16.msra.mxu0 %v7886
      %7939 = vmatprep.subr.bf16.mxu0 0
      %7940 = vmatpush1.bf16.msra.mxu0 %v7887
      %7941 = vmatprep.mubr.bf16.mxu0 %v7800
      %7942 = vmatmul.mubr.bf16.gmra.mrb[0].mxu0 %v7799
      %v7943 = vpop.f32.mrb[0].mxu0
      %v7944 = vadd.f32 0.0, %v7943
      %v7945 = vpop.f32.mrb[0].mxu0
      %v7946 = vpop.f32.mrb[0].mxu0
      %v7947 = vadd.f32 0.0, %v7946
      %v7948 = vpop.f32.mrb[0].mxu0
      %7949 = vdwg.mxu0
      %7950 = vmatprep.subr.bf16.mxu0 0
      %7951 = vmatpush1.bf16.msra.mxu0 %v7888
      %7952 = vmatprep.subr.bf16.mxu0 0
      %7953 = vmatpush1.bf16.msra.mxu0 0
      %7954 = vmatprep.subr.bf16.mxu0 0
      %7955 = vmatpush1.bf16.msra.mxu0 0
      %7956 = vmatprep.subr.bf16.mxu0 0
      %7957 = vmatpush1.bf16.msra.mxu0 0
      %7958 = vmatprep.subr.bf16.mxu0 0
      %7959 = vmatpush1.bf16.msra.mxu0 0
      %7960 = vmatprep.subr.bf16.mxu0 0
      %7961 = vmatpush1.bf16.msra.mxu0 0
      %7962 = vmatprep.subr.bf16.mxu0 0
      %7963 = vmatpush1.bf16.msra.mxu0 0
      %7964 = vmatprep.subr.bf16.mxu0 0
      %7965 = vmatpush1.bf16.msra.mxu0 0
      %7966 = vmatprep.subr.bf16.mxu0 0
      %7967 = vmatpush1.bf16.msra.mxu0 0
      %7968 = vmatprep.subr.bf16.mxu0 0
      %7969 = vmatpush1.bf16.msra.mxu0 0
      %7970 = vmatprep.subr.bf16.mxu0 0
      %7971 = vmatpush1.bf16.msra.mxu0 0
      %7972 = vmatprep.subr.bf16.mxu0 0
      %7973 = vmatpush1.bf16.msra.mxu0 0
      %7974 = vmatprep.subr.bf16.mxu0 0
      %7975 = vmatpush1.bf16.msra.mxu0 0
      %7976 = vmatprep.subr.bf16.mxu0 0
      %7977 = vmatpush1.bf16.msra.mxu0 0
      %7978 = vmatprep.subr.bf16.mxu0 0
      %7979 = vmatpush1.bf16.msra.mxu0 0
      %7980 = vmatprep.subr.bf16.mxu0 0
      %7981 = vmatpush1.bf16.msra.mxu0 0
      %7982 = vmatprep.mubr.bf16.mxu0 0
      %7983 = vmatmul.mubr.bf16.gmra.mrb[0].mxu0 %v7907
      %v7984 = vpop.f32.mrb[0].mxu0
      %v7985 = vadd.f32 %v7944, %v7984
      %v7986 = vpop.f32.mrb[0].mxu0
      %v7987 = vpop.f32.mrb[0].mxu0
      %v7988 = vadd.f32 %v7947, %v7987
      %v7989 = vpop.f32.mrb[0].mxu0
      %7990 = vdwg.mxu0
      %v7991 = vadd.f32 %v7746, %v7985
      %v7992 = vadd.f32 %v7749, %v7988
      %v7993 = vld [vmem:[#allocation4] sm:$0xf8]
      %v7994 = vld [vmem:[#allocation4 + $0x8] sm:$0xf8]
      %v7995 = vld [vmem:[#allocation4 + $0x10] sm:$0xf8]
      %v7996 = vld [vmem:[#allocation4 + $0x18] sm:$0xff]
      %v7997 = vld [vmem:[#allocation4 + $0x20] sm:$0xff]
      %v7998 = vld [vmem:[#allocation4 + $0x28] sm:$0xff]
      %v7999 = vld [vmem:[#allocation4 + $0x30] sm:$0x1]
      %v8000 = vld [vmem:[#allocation4 + $0x38] sm:$0x1]
      %v8001 = vld [vmem:[#allocation4 + $0x40] sm:$0x1]
      %v8002 = vpack.c.bf16 %v7996, %v7993
      %v8003 = vpack.c.bf16 %v7997, %v7994
      %v8004 = vpack.c.bf16 %v7998, %v7995
      %v8005 = vpack.c.bf16 %v7999, %v7999
      %v8006 = vpack.c.bf16 %v8000, %v8000
      %v8007 = vpack.c.bf16 %v8001, %v8001
      %s8008 = scalar_lea.vmem %s7, 408
      %v8009 = vld [vmem:[%s8008] sm:$0xf]
      %v8010 = vld [vmem:[%s8008 + $0x4] sm:$0xf]
      %v8011 = vld [vmem:[%s8008 + $0x8] sm:$0xf]
      %v8012 = vld [vmem:[%s8008 + $0xc] sm:$0xf]
      %v8013 = vld [vmem:[%s8008 + $0x10] sm:$0xf]
      %v8014 = vld [vmem:[%s8008 + $0x14] sm:$0xf]
      %v8015 = vld [vmem:[%s8008 + $0x18] sm:$0xf]
      %v8016 = vld [vmem:[%s8008 + $0x1c] sm:$0xf]
      %v8017 = vld [vmem:[%s8008 + $0x20] sm:$0xf]
      %v8018 = vld [vmem:[%s8008 + $0x24] sm:$0xf]
      %v8019 = vld [vmem:[%s8008 + $0x28] sm:$0xf]
      %v8020 = vld [vmem:[%s8008 + $0x2c] sm:$0xf]
      %v8021 = vld [vmem:[%s8008 + $0x30] sm:$0xf]
      %v8022 = vld [vmem:[%s8008 + $0x34] sm:$0xf]
      %v8023 = vld [vmem:[%s8008 + $0x38] sm:$0xf]
      %v8024 = vld [vmem:[%s8008 + $0x3c] sm:$0xf]
      %v8025 = vld [vmem:[%s8008 + $0x40] sm:$0xf]
      %v8026 = vld [vmem:[%s8008 + $0x44] sm:$0xf]
      %v8027 = vld [vmem:[%s8008 + $0x48] sm:$0xf]
      %v8028 = vld [vmem:[%s8008 + $0x4c] sm:$0xf]
      %v8029 = vld [vmem:[%s8008 + $0x50] sm:$0xf]
      %v8030 = vld [vmem:[%s8008 + $0x54] sm:$0xf]
      %v8031 = vld [vmem:[%s8008 + $0x58] sm:$0xf]
      %v8032 = vld [vmem:[%s8008 + $0x5c] sm:$0xf]
      %v8033 = vld [vmem:[%s8008 + $0x60] sm:$0xf]
      %v8034 = vld [vmem:[%s8008 + $0x64] sm:$0xf]
      %v8035 = vld [vmem:[%s8008 + $0x68] sm:$0xf]
      %v8036 = vld [vmem:[%s8008 + $0x6c] sm:$0xf]
      %v8037 = vld [vmem:[%s8008 + $0x70] sm:$0xf]
      %v8038 = vld [vmem:[%s8008 + $0x74] sm:$0xf]
      %v8039 = vld [vmem:[%s8008 + $0x78] sm:$0xf]
      %v8040 = vld [vmem:[%s8008 + $0x7c] sm:$0xf]
      %v8041 = vld [vmem:[%s8008 + $0x80] sm:$0xf]
      %v8042 = vld [vmem:[%s8008 + $0x84] sm:$0xf]
      %vm8043 = vsmask.f32 6400
      %v8045 = vshrl.u32 %v8002, 16
      %v8047 = vrot.slane %v8045, 1
      %v8048 = vshll.u32 %v8002, 16
      %v8050 = vrot.slane %v8048, 2
      %v8051 = vor.u32 %v8047, %v8050
      %v8053 = vshll.u32 %v8005, 16
      %v8055 = vrot.slane %v8053, 2
      %v8056 = vsel %vm8043, %v8051, %v8055
      %v8058 = vshrl.u32 %v8003, 16
      %v8060 = vrot.slane %v8058, 1
      %v8061 = vshll.u32 %v8003, 16
      %v8063 = vrot.slane %v8061, 2
      %v8064 = vor.u32 %v8060, %v8063
      %v8066 = vshll.u32 %v8006, 16
      %v8068 = vrot.slane %v8066, 2
      %v8069 = vsel %vm8043, %v8064, %v8068
      %v8071 = vshrl.u32 %v8004, 16
      %v8073 = vrot.slane %v8071, 1
      %v8074 = vshll.u32 %v8004, 16
      %v8076 = vrot.slane %v8074, 2
      %v8077 = vor.u32 %v8073, %v8076
      %v8079 = vshll.u32 %v8007, 16
      %v8081 = vrot.slane %v8079, 2
      %v8082 = vsel %vm8043, %v8077, %v8081
      %v8119 = vunpack.c.l.b16 %v8009
      %v8120 = vunpack.c.l.b16 %v8010
      %v8121 = vunpack.c.l.b16 %v8011
      %v8122 = vunpack.c.l.b16 %v8012
      %v8123 = vunpack.c.l.b16 %v8013
      %v8124 = vunpack.c.l.b16 %v8014
      %v8125 = vunpack.c.l.b16 %v8015
      %v8126 = vunpack.c.l.b16 %v8016
      %v8127 = vunpack.c.l.b16 %v8017
      %v8128 = vunpack.c.l.b16 %v8018
      %v8129 = vunpack.c.l.b16 %v8019
      %v8130 = vunpack.c.l.b16 %v8020
      %v8131 = vunpack.c.l.b16 %v8021
      %v8132 = vunpack.c.l.b16 %v8022
      %v8133 = vunpack.c.l.b16 %v8023
      %v8134 = vunpack.c.l.b16 %v8024
      %v8135 = vunpack.c.l.b16 %v8025
      %v8136 = vunpack.c.l.b16 %v8026
      %v8137 = vunpack.c.l.b16 %v8027
      %v8138 = vunpack.c.l.b16 %v8028
      %v8139 = vunpack.c.l.b16 %v8029
      %v8140 = vunpack.c.l.b16 %v8030
      %v8141 = vunpack.c.l.b16 %v8031
      %v8142 = vunpack.c.l.b16 %v8032
      %v8143 = vunpack.c.l.b16 %v8033
      %v8144 = vunpack.c.l.b16 %v8034
      %v8145 = vunpack.c.l.b16 %v8035
      %v8146 = vunpack.c.l.b16 %v8036
      %v8147 = vunpack.c.l.b16 %v8037
      %v8148 = vunpack.c.l.b16 %v8038
      %v8149 = vunpack.c.l.b16 %v8039
      %v8150 = vunpack.c.l.b16 %v8040
      %v8151 = vunpack.c.l.b16 %v8041
      %v8152 = vunpack.c.l.b16 %v8042
      %v8153 = vpack.c.b16 %v8120, %v8119
      %v8154 = vpack.c.b16 %v8122, %v8121
      %v8155 = vpack.c.b16 %v8124, %v8123
      %v8156 = vpack.c.b16 %v8126, %v8125
      %v8157 = vpack.c.b16 %v8128, %v8127
      %v8158 = vpack.c.b16 %v8130, %v8129
      %v8159 = vpack.c.b16 %v8132, %v8131
      %v8160 = vpack.c.b16 %v8134, %v8133
      %v8161 = vpack.c.b16 %v8136, %v8135
      %v8162 = vpack.c.b16 %v8138, %v8137
      %v8163 = vpack.c.b16 %v8140, %v8139
      %v8164 = vpack.c.b16 %v8142, %v8141
      %v8165 = vpack.c.b16 %v8144, %v8143
      %v8166 = vpack.c.b16 %v8146, %v8145
      %v8167 = vpack.c.b16 %v8148, %v8147
      %v8168 = vpack.c.b16 %v8150, %v8149
      %v8169 = vpack.c.b16 %v8152, %v8151
      %v8188 = vsel %vm7225, %v8082, 0
      %8190 = vmatprep.subr.bf16.mxu0 0
      %8191 = vmatpush1.bf16.msra.mxu0 %v8153
      %8192 = vmatprep.subr.bf16.mxu0 0
      %8193 = vmatpush1.bf16.msra.mxu0 %v8154
      %8194 = vmatprep.subr.bf16.mxu0 0
      %8195 = vmatpush1.bf16.msra.mxu0 %v8155
      %8196 = vmatprep.subr.bf16.mxu0 0
      %8197 = vmatpush1.bf16.msra.mxu0 %v8156
      %8198 = vmatprep.subr.bf16.mxu0 0
      %8199 = vmatpush1.bf16.msra.mxu0 %v8157
      %8200 = vmatprep.subr.bf16.mxu0 0
      %8201 = vmatpush1.bf16.msra.mxu0 %v8158
      %8202 = vmatprep.subr.bf16.mxu0 0
      %8203 = vmatpush1.bf16.msra.mxu0 %v8159
      %8204 = vmatprep.subr.bf16.mxu0 0
      %8205 = vmatpush1.bf16.msra.mxu0 %v8160
      %8206 = vmatprep.subr.bf16.mxu0 0
      %8207 = vmatpush1.bf16.msra.mxu0 %v8161
      %8208 = vmatprep.subr.bf16.mxu0 0
      %8209 = vmatpush1.bf16.msra.mxu0 %v8162
      %8210 = vmatprep.subr.bf16.mxu0 0
      %8211 = vmatpush1.bf16.msra.mxu0 %v8163
      %8212 = vmatprep.subr.bf16.mxu0 0
      %8213 = vmatpush1.bf16.msra.mxu0 %v8164
      %8214 = vmatprep.subr.bf16.mxu0 0
      %8215 = vmatpush1.bf16.msra.mxu0 %v8165
      %8216 = vmatprep.subr.bf16.mxu0 0
      %8217 = vmatpush1.bf16.msra.mxu0 %v8166
      %8218 = vmatprep.subr.bf16.mxu0 0
      %8219 = vmatpush1.bf16.msra.mxu0 %v8167
      %8220 = vmatprep.subr.bf16.mxu0 0
      %8221 = vmatpush1.bf16.msra.mxu0 %v8168
      %8222 = vmatprep.mubr.bf16.mxu0 %v8069
      %8223 = vmatmul.mubr.bf16.gmra.mrb[0].mxu0 %v8056
      %v8224 = vpop.f32.mrb[0].mxu0
      %v8225 = vadd.f32 0.0, %v8224
      %v8226 = vpop.f32.mrb[0].mxu0
      %v8227 = vpop.f32.mrb[0].mxu0
      %v8228 = vadd.f32 0.0, %v8227
      %v8229 = vpop.f32.mrb[0].mxu0
      %8230 = vdwg.mxu0
      %8231 = vmatprep.subr.bf16.mxu0 0
      %8232 = vmatpush1.bf16.msra.mxu0 %v8169
      %8233 = vmatprep.subr.bf16.mxu0 0
      %8234 = vmatpush1.bf16.msra.mxu0 0
      %8235 = vmatprep.subr.bf16.mxu0 0
      %8236 = vmatpush1.bf16.msra.mxu0 0
      %8237 = vmatprep.subr.bf16.mxu0 0
      %8238 = vmatpush1.bf16.msra.mxu0 0
      %8239 = vmatprep.subr.bf16.mxu0 0
      %8240 = vmatpush1.bf16.msra.mxu0 0
      %8241 = vmatprep.subr.bf16.mxu0 0
      %8242 = vmatpush1.bf16.msra.mxu0 0
      %8243 = vmatprep.subr.bf16.mxu0 0
      %8244 = vmatpush1.bf16.msra.mxu0 0
      %8245 = vmatprep.subr.bf16.mxu0 0
      %8246 = vmatpush1.bf16.msra.mxu0 0
      %8247 = vmatprep.subr.bf16.mxu0 0
      %8248 = vmatpush1.bf16.msra.mxu0 0
      %8249 = vmatprep.subr.bf16.mxu0 0
      %8250 = vmatpush1.bf16.msra.mxu0 0
      %8251 = vmatprep.subr.bf16.mxu0 0
      %8252 = vmatpush1.bf16.msra.mxu0 0
      %8253 = vmatprep.subr.bf16.mxu0 0
      %8254 = vmatpush1.bf16.msra.mxu0 0
      %8255 = vmatprep.subr.bf16.mxu0 0
      %8256 = vmatpush1.bf16.msra.mxu0 0
      %8257 = vmatprep.subr.bf16.mxu0 0
      %8258 = vmatpush1.bf16.msra.mxu0 0
      %8259 = vmatprep.subr.bf16.mxu0 0
      %8260 = vmatpush1.bf16.msra.mxu0 0
      %8261 = vmatprep.subr.bf16.mxu0 0
      %8262 = vmatpush1.bf16.msra.mxu0 0
      %8263 = vmatprep.mubr.bf16.mxu0 0
      %8264 = vmatmul.mubr.bf16.gmra.mrb[0].mxu0 %v8188
      %v8265 = vpop.f32.mrb[0].mxu0
      %v8266 = vadd.f32 %v8225, %v8265
      %v8267 = vpop.f32.mrb[0].mxu0
      %v8268 = vpop.f32.mrb[0].mxu0
      %v8269 = vadd.f32 %v8228, %v8268
      %v8270 = vpop.f32.mrb[0].mxu0
      %8271 = vdwg.mxu0
      %v8272 = vadd.f32 %v7991, %v8266
      %v8273 = vadd.f32 %v7992, %v8269
      %v8274 = vld [vmem:[#allocation5] sm:$0x1]
      %v8276 = vlaneseq
      %v8277 = vshrl.u32 %v8276, 7
      %v8278 = vsub.s32 0, %v8277
      %v8279 = vrot.slane %v8274, %v8278
      %8280 = vset.pattern.permute.xlu0 0
      %8281 = vperm.xlu0 %8280, %v8279
      %v8282 = vpop.permute.xlu0 %8281
      %v8284 = vadd.f32 %v8272, %v8282
      %v8285 = vadd.f32 %v8273, %v8282
      %v8286 = vsub.f32 0.0, %v8284
      %v8287 = vsub.f32 0.0, %v8285
      %v8288 = vmul.f32 %v8286, 1.442695
      %v8289 = vpow.pop %v8288
      %v8290 = vmul.f32 %v8287, 1.442695
      %v8291 = vpow.pop %v8290
      %v8292 = vadd.f32 %v8289, 1.0
      %v8293 = vadd.f32 %v8291, 1.0
      %v8294 = vrcp.pop %v8292
      %v8295 = vmul.f32 1.0, %v8294
      %v8296 = vrcp.pop %v8293
      %v8297 = vmul.f32 1.0, %v8296
      %vm8298 = vcmask 457728
      %8299 = vst.msk [vmem:[%s328] sm:$0xff] %vm8298, %v8295
      %vm8300 = vcmask 455680
      %8301 = vst.msk [vmem:[%s328 + $0x8] sm:$0x3f] %vm8300, %v8297
      %p8302 = scmp.lt.s32.totalorder %s22, 1
      %s8303 = scalar_select %p8302, %s22, 1
      %s8304 = smul.addr %s8303, 2
      %s8305 = smul.addr %s8304, 8
      %s8306 = scalar_lea.vmem %s9, %s8305
      // Predicated region
      $region57: #{generator_forward.1} parent=55 // pred_check
        %p8307 = pneg %p234
      $region58: #{generator_forward.1} parent=55 // pred_check_branch
        %8309 = sbr.rel (%p8307) target = $region60
      $region59: #{generator_forward.1} parent=55 // pred_region
        _
      $region60: #{generator_forward.1} parent=55 // pred_fallthru
        _
    $region56: #{generator_forward.1} parent=5 // pred_fallthru
      _
    %p8310 = scmp.le.s32.totalorder 2, %s17
    // Predicated region
    $region61: #{generator_forward.1} parent=5 // pred_check
      %p8311 = pneg %p8310
    $region62: #{generator_forward.1} parent=5 // pred_check_branch
      %8313 = sbr.rel (%p8311) target = $region64
    $region63: #{generator_forward.1} parent=5 // pred_region
      %s8314 = ssub.s32 %s17, 2
      // Predicated region
      $region65: #{generator_forward.1} parent=63 // pred_check
        %p8315 = pneg %p240
      $region66: #{generator_forward.1} parent=63 // pred_check_branch
        %8317 = sbr.rel (%p8315) target = $region68
      $region67: #{generator_forward.1} parent=63 // pred_region
        %p8318 = scmp.lt.s32.totalorder %s23, 1
        %s8319 = scalar_select %p8318, %s23, 1
        %s8320 = smul.addr %s8319, 2
        %s8321 = smul.addr %s8320, 8
        %s8322 = scalar_lea.vmem %s9, %s8321
      $region68: #{generator_forward.1} parent=63 // pred_fallthru
        _
    $region64: #{generator_forward.1} parent=5 // pred_fallthru
      _
  $region6: #{generator_forward.1} parent=0 // loop_footer
    %s21 = sadd.s32 1, %s17
  $region7: #{generator_forward.1} parent=0 // loop_footer_branch
    %16 = sbr.rel target = $region3
  $region8: #{generator_forward.1} parent=0 // loop_exit
    _

</llo_original>
